<compile_context>
chip_gen: v6e
topology: v6e:2x2x1
jax: 0.10.0
libtpu: 0.0.40
codegen_flags: <defaults>
</compile_context>

<pallas_src>
import jax
import jax.numpy as jnp
from jax.experimental import pallas as pl
from jax.experimental.pallas import tpu as pltpu

F_IN = 784            # 28 * 28 input features (unpadded; full last dim of x)
H1, H2, H3 = 1024, 512, 256
OUT_PAD = 128         # final layer padded 1 -> 128 so the last matmul is a real MXU op


def _round_up(n, m):
    return ((n + m - 1) // m) * m


def _cdiv(a, b):
    return (a + b - 1) // b


def _leaky_relu(x, slope=0.2):
    # max(x, slope*x): 2 VALU ops vs. cmp+select+mul (3) for where(x>0, x, slope*x).
    return jnp.maximum(x, slope * x)


def discriminator_kernel(x_ref,
                         w1_ref, b1_ref,
                         w2_ref, b2_ref,
                         w3_ref, b3_ref,
                         w4_ref, b4_ref,
                         o_ref):
    """Fused 4-layer MLP (Linear+LeakyReLU x3, Linear+Sigmoid) for one batch tile.

    x arrives f32 and is cast to bf16 in-kernel (halves x-side HBM traffic vs. a
    wrapper cast pass). Weights are resident bf16 VMEM blocks. Matmul accumulation
    and all elementwise math are f32. Dropout layers are eval-mode identity.
    """
    cdt = w1_ref.dtype  # bf16 compute dtype for MXU inputs

    x = x_ref[...].astype(cdt)                                       # (tile, 784)

    h = jnp.dot(x, w1_ref[...], preferred_element_type=jnp.float32) + b1_ref[...]
    h = _leaky_relu(h)
    # Dropout(0.3): identity in eval mode.

    h = jnp.dot(h.astype(cdt), w2_ref[...],
                preferred_element_type=jnp.float32) + b2_ref[...]
    h = _leaky_relu(h)

    h = jnp.dot(h.astype(cdt), w3_ref[...],
                preferred_element_type=jnp.float32) + b3_ref[...]
    h = _leaky_relu(h)

    logits = jnp.dot(h.astype(cdt), w4_ref[...],
                     preferred_element_type=jnp.float32) + b4_ref[...]  # (tile, 128)

    z = logits[:, :1]                                                # real logit column
    # Exact sigmoid; exp(-z) -> +inf for very negative z gives 1/inf = 0 correctly.
    o_ref[...] = 1.0 / (1.0 + jnp.exp(-z))


def prepare_params(params, compute_dtype=jnp.bfloat16):
    """One-time weight prep, hoisted out of the forward (perf-review item):
    cast matmul weights to bf16 and pad the final layer 1 -> 128 output lanes."""
    (w1, b1), (w2, b2), (w3, b3), (w4, b4) = params
    w4_p = jnp.pad(w4, ((0, 0), (0, OUT_PAD - w4.shape[1])))
    b4_p = jnp.pad(b4, ((0, 0), (0, OUT_PAD - b4.shape[1])))
    return dict(
        w1=w1.astype(compute_dtype), b1=b1,
        w2=w2.astype(compute_dtype), b2=b2,
        w3=w3.astype(compute_dtype), b3=b3,
        w4=w4_p.astype(compute_dtype), b4=b4_p,
    )


def _pick_batch_tile(B):
    """Adaptive batch tile: don't pad tiny batches to 256 rows, use 512-row tiles
    for very large batches, and keep >=2 grid steps when there's enough work so
    the 'parallel' batch axis can shard across both TensorCores on v7x."""
    max_tile = 512 if B >= 2048 else 256
    tile = min(max_tile, _round_up(max(B, 16), 16))
    if B > 128 and _cdiv(B, tile) < 2:
        tile = max(128, _round_up(_cdiv(B, 2), 16))
    return tile


def discriminator_forward(x, prepared):
    """x: (B, 784) float32 (flattened 28x28 image). Returns (B, 1) float32."""
    B, F = x.shape
    assert F == F_IN

    tile = _pick_batch_tile(B)
    B_pad = _round_up(B, tile)
    x_p = jnp.pad(x, ((0, B_pad - B), (0, 0))) if B_pad != B else x

    args = (x_p,
            prepared["w1"], prepared["b1"],
            prepared["w2"], prepared["b2"],
            prepared["w3"], prepared["b3"],
            prepared["w4"], prepared["b4"])

    def run(weight_mode):
        def resident(arr):
            # Full block, constant block index -> stays resident in VMEM across
            # all batch tiles; optionally single-buffered (never re-fetched).
            kwargs = {} if weight_mode is None else {"pipeline_mode": weight_mode}
            return pl.BlockSpec(arr.shape, lambda i: (0, 0), **kwargs)

        return pl.pallas_call(
            discriminator_kernel,
            out_shape=jax.ShapeDtypeStruct((B_pad, 1), jnp.float32),
            grid_spec=pltpu.PrefetchScalarGridSpec(
                num_scalar_prefetch=0,
                grid=(B_pad // tile,),
                in_specs=[
                    pl.BlockSpec((tile, F_IN), lambda i: (i, 0)),   # x tile (f32)
                    resident(prepared["w1"]), resident(prepared["b1"]),
                    resident(prepared["w2"]), resident(prepared["b2"]),
                    resident(prepared["w3"]), resident(prepared["b3"]),
                    resident(prepared["w4"]), resident(prepared["b4"]),
                ],
                out_specs=pl.BlockSpec((tile, 1), lambda i: (i, 0)),
            ),
            compiler_params=pltpu.CompilerParams(
                dimension_semantics=("parallel",),
                vmem_limit_bytes=32 * 1024 * 1024,
            ),
        )(*args)

    try:
        # Single-buffer the resident weights/biases (frees ~3 MiB VMEM).
        out = run(pl.Buffered(buffer_count=1))
    except Exception:
        # Fallback if this jax build rejects pipeline_mode / buffer_count=1.
        out = run(None)

    return out[:B]


def init_params(key):
    """Deterministic init mirroring nn.Linear default (U[-1/sqrt(fan_in), +])."""
    dims = [(F_IN, H1), (H1, H2), (H2, H3), (H3, 1)]
    params = []
    for (fan_in, fan_out) in dims:
        key, kw, kb = jax.random.split(key, 3)
        bound = 1.0 / jnp.sqrt(fan_in)
        # Stored as (in_features, out_features): transposed relative to PyTorch's
        # (out, in) layout so the kernel computes x @ W.
        w = jax.random.uniform(kw, (fan_in, fan_out), jnp.float32, -bound, bound)
        b = jax.random.uniform(kb, (1, fan_out), jnp.float32, -bound, bound)
        params.append((w, b))
    return params


def reference_forward(x, params):
    """Pure-JAX f32 reference (eval-mode) for a sanity check."""
    h = x
    for idx, (w, b) in enumerate(params):
        h = h @ w + b
        if idx < 3:
            h = jnp.where(h > 0, h, 0.2 * h)
    return jax.nn.sigmoid(h)


if __name__ == "__main__":
    key = jax.random.PRNGKey(0)
    kp, kx = jax.random.split(key)

    params = init_params(kp)
    prepared = prepare_params(params)   # one-time weight cast/pad (hoisted)

    # Small example batch: 8 flattened 28x28 "images" (equivalent to a PyTorch
    # input of shape (8, 1, 28, 28) after .view(B, 784)).
    B = 8
    x_img = jax.random.normal(kx, (B, 1, 28, 28), jnp.float32)
    x = x_img.reshape(B, F_IN)

    out = discriminator_forward(x, prepared)
    out = jax.block_until_ready(out)
    ref = reference_forward(x, params)
    assert out.shape == (B, 1), out.shape
    assert jnp.allclose(out, ref, atol=2e-2, rtol=0.0), (
        "mismatch vs reference: max abs diff = "
        f"{float(jnp.max(jnp.abs(out - ref)))}")

    # Second shape: exercises multi-tile grid (2 steps), batch padding and the
    # 'parallel' batch axis.
    B2 = 300
    x2 = jax.random.normal(jax.random.PRNGKey(1), (B2, F_IN), jnp.float32)
    out2 = jax.block_until_ready(discriminator_forward(x2, prepared))
    ref2 = reference_forward(x2, params)
    assert out2.shape == (B2, 1), out2.shape
    assert jnp.allclose(out2, ref2, atol=2e-2, rtol=0.0), (
        "mismatch vs reference (B=300): max abs diff = "
        f"{float(jnp.max(jnp.abs(out2 - ref2)))}")

    print("KERNEL_OK")
</pallas_src>

<mosaic_0001>
module attributes {stable_mosaic.version = 11 : i64} {
  func.func @discriminator_kernel(%arg0: i32, %arg1: memref<16x784xf32, #tpu.memory_space<vmem>>, %arg2: memref<784x1024xbf16, #tpu.memory_space<vmem>>, %arg3: memref<1x1024xf32, #tpu.memory_space<vmem>>, %arg4: memref<1024x512xbf16, #tpu.memory_space<vmem>>, %arg5: memref<1x512xf32, #tpu.memory_space<vmem>>, %arg6: memref<512x256xbf16, #tpu.memory_space<vmem>>, %arg7: memref<1x256xf32, #tpu.memory_space<vmem>>, %arg8: memref<256x128xbf16, #tpu.memory_space<vmem>>, %arg9: memref<1x128xf32, #tpu.memory_space<vmem>>, %arg10: memref<16x1xf32, #tpu.memory_space<vmem>>) attributes {dimension_semantics = [#tpu.dimension_semantics<parallel>], iteration_bounds = array<i64: 1>, scalar_prefetch = 0 : i64, scratch_operands = 0 : i64, tpu.core_type = #tpu.core_type<tc>, window_params = [{transform_indices = @transform_0, window_bounds = array<i64: 16, 784>}, {pipeline_mode = #tpu.pipeline_mode<synchronous>, transform_indices = @transform_1, window_bounds = array<i64: 784, 1024>}, {pipeline_mode = #tpu.pipeline_mode<synchronous>, transform_indices = @transform_2, window_bounds = array<i64: 1, 1024>}, {pipeline_mode = #tpu.pipeline_mode<synchronous>, transform_indices = @transform_3, window_bounds = array<i64: 1024, 512>}, {pipeline_mode = #tpu.pipeline_mode<synchronous>, transform_indices = @transform_4, window_bounds = array<i64: 1, 512>}, {pipeline_mode = #tpu.pipeline_mode<synchronous>, transform_indices = @transform_5, window_bounds = array<i64: 512, 256>}, {pipeline_mode = #tpu.pipeline_mode<synchronous>, transform_indices = @transform_6, window_bounds = array<i64: 1, 256>}, {pipeline_mode = #tpu.pipeline_mode<synchronous>, transform_indices = @transform_7, window_bounds = array<i64: 256, 128>}, {pipeline_mode = #tpu.pipeline_mode<synchronous>, transform_indices = @transform_8, window_bounds = array<i64: 1, 128>}, {transform_indices = @transform_9, window_bounds = array<i64: 16, 1>}]} {
    %c0 = arith.constant 0 : index
    %c0_0 = arith.constant 0 : index
    %0 = vector.load %arg1[%c0, %c0_0] : memref<16x784xf32, #tpu.memory_space<vmem>>, vector<16x784xf32>
    %1 = arith.truncf %0 : vector<16x784xf32> to vector<16x784xbf16>
    %c0_1 = arith.constant 0 : index
    %c0_2 = arith.constant 0 : index
    %2 = vector.load %arg2[%c0_1, %c0_2] : memref<784x1024xbf16, #tpu.memory_space<vmem>>, vector<784x1024xbf16>
    %cst = arith.constant dense<0.000000e+00> : vector<16x1024xf32>
    %3 = tpu.matmul %1, %2, %cst {dimension_numbers = #tpu.dot_dimension_numbers<[1], [0], [0], [1], [0, 0, 1, 1], [], []>} : vector<16x784xbf16>, vector<784x1024xbf16>, vector<16x1024xf32> -> vector<16x1024xf32>
    %c0_3 = arith.constant 0 : index
    %c0_4 = arith.constant 0 : index
    %4 = vector.load %arg3[%c0_3, %c0_4] : memref<1x1024xf32, #tpu.memory_space<vmem>>, vector<1x1024xf32>
    %5 = vector.broadcast %4 : vector<1x1024xf32> to vector<16x1024xf32>
    %6 = arith.addf %3, %5 : vector<16x1024xf32>
    %cst_5 = arith.constant 2.000000e-01 : f32
    %7 = vector.broadcast %cst_5 : f32 to vector<16x1024xf32>
    %8 = arith.mulf %7, %6 : vector<16x1024xf32>
    %9 = arith.maximumf %6, %8 : vector<16x1024xf32>
    %10 = arith.truncf %9 : vector<16x1024xf32> to vector<16x1024xbf16>
    %c0_6 = arith.constant 0 : index
    %c0_7 = arith.constant 0 : index
    %11 = vector.load %arg4[%c0_6, %c0_7] : memref<1024x512xbf16, #tpu.memory_space<vmem>>, vector<1024x512xbf16>
    %cst_8 = arith.constant dense<0.000000e+00> : vector<16x512xf32>
    %12 = tpu.matmul %10, %11, %cst_8 {dimension_numbers = #tpu.dot_dimension_numbers<[1], [0], [0], [1], [0, 0, 1, 1], [], []>} : vector<16x1024xbf16>, vector<1024x512xbf16>, vector<16x512xf32> -> vector<16x512xf32>
    %c0_9 = arith.constant 0 : index
    %c0_10 = arith.constant 0 : index
    %13 = vector.load %arg5[%c0_9, %c0_10] : memref<1x512xf32, #tpu.memory_space<vmem>>, vector<1x512xf32>
    %14 = vector.broadcast %13 : vector<1x512xf32> to vector<16x512xf32>
    %15 = arith.addf %12, %14 : vector<16x512xf32>
    %cst_11 = arith.constant 2.000000e-01 : f32
    %16 = vector.broadcast %cst_11 : f32 to vector<16x512xf32>
    %17 = arith.mulf %16, %15 : vector<16x512xf32>
    %18 = arith.maximumf %15, %17 : vector<16x512xf32>
    %19 = arith.truncf %18 : vector<16x512xf32> to vector<16x512xbf16>
    %c0_12 = arith.constant 0 : index
    %c0_13 = arith.constant 0 : index
    %20 = vector.load %arg6[%c0_12, %c0_13] : memref<512x256xbf16, #tpu.memory_space<vmem>>, vector<512x256xbf16>
    %cst_14 = arith.constant dense<0.000000e+00> : vector<16x256xf32>
    %21 = tpu.matmul %19, %20, %cst_14 {dimension_numbers = #tpu.dot_dimension_numbers<[1], [0], [0], [1], [0, 0, 1, 1], [], []>} : vector<16x512xbf16>, vector<512x256xbf16>, vector<16x256xf32> -> vector<16x256xf32>
    %c0_15 = arith.constant 0 : index
    %c0_16 = arith.constant 0 : index
    %22 = vector.load %arg7[%c0_15, %c0_16] : memref<1x256xf32, #tpu.memory_space<vmem>>, vector<1x256xf32>
    %23 = vector.broadcast %22 : vector<1x256xf32> to vector<16x256xf32>
    %24 = arith.addf %21, %23 : vector<16x256xf32>
    %cst_17 = arith.constant 2.000000e-01 : f32
    %25 = vector.broadcast %cst_17 : f32 to vector<16x256xf32>
    %26 = arith.mulf %25, %24 : vector<16x256xf32>
    %27 = arith.maximumf %24, %26 : vector<16x256xf32>
    %28 = arith.truncf %27 : vector<16x256xf32> to vector<16x256xbf16>
    %c0_18 = arith.constant 0 : index
    %c0_19 = arith.constant 0 : index
    %29 = vector.load %arg8[%c0_18, %c0_19] : memref<256x128xbf16, #tpu.memory_space<vmem>>, vector<256x128xbf16>
    %cst_20 = arith.constant dense<0.000000e+00> : vector<16x128xf32>
    %30 = tpu.matmul %28, %29, %cst_20 {dimension_numbers = #tpu.dot_dimension_numbers<[1], [0], [0], [1], [0, 0, 1, 1], [], []>} : vector<16x256xbf16>, vector<256x128xbf16>, vector<16x128xf32> -> vector<16x128xf32>
    %c0_21 = arith.constant 0 : index
    %c0_22 = arith.constant 0 : index
    %31 = vector.load %arg9[%c0_21, %c0_22] : memref<1x128xf32, #tpu.memory_space<vmem>>, vector<1x128xf32>
    %32 = vector.broadcast %31 : vector<1x128xf32> to vector<16x128xf32>
    %33 = arith.addf %30, %32 : vector<16x128xf32>
    %34 = vector.extract_strided_slice %33 {offsets = [0, 0], sizes = [16, 1], strides = [1, 1]} : vector<16x128xf32> to vector<16x1xf32>
    %cst_23 = arith.constant 0.000000e+00 : f32
    %35 = vector.broadcast %cst_23 : f32 to vector<16x1xf32>
    %36 = arith.subf %35, %34 : vector<16x1xf32>
    %37 = math.exp %36 : vector<16x1xf32>
    %cst_24 = arith.constant 1.000000e+00 : f32
    %38 = vector.broadcast %cst_24 : f32 to vector<16x1xf32>
    %39 = arith.addf %38, %37 : vector<16x1xf32>
    %cst_25 = arith.constant 1.000000e+00 : f32
    %40 = vector.broadcast %cst_25 : f32 to vector<16x1xf32>
    %41 = arith.divf %40, %39 : vector<16x1xf32>
    %c0_26 = arith.constant 0 : index
    %c0_27 = arith.constant 0 : index
    %42 = vector.load %arg10[%c0_26, %c0_27] : memref<16x1xf32, #tpu.memory_space<vmem>>, vector<16x1xf32>
    tpu.vector_store %arg10[%c0_26, %c0_27], %41 {strides = array<i32>} : memref<16x1xf32, #tpu.memory_space<vmem>>, vector<16x1xf32>,
    return
  }
  func.func @transform_0(%arg0: i32) -> (i32, i32) {
    %c0_i32 = arith.constant 0 : i32
    %c0_i32_0 = arith.constant 0 : i32
    return %arg0, %c0_i32 : i32, i32
  }
  func.func @transform_1(%arg0: i32) -> (i32, i32) {
    %c0_i32 = arith.constant 0 : i32
    %c0_i32_0 = arith.constant 0 : i32
    %c0_i32_1 = arith.constant 0 : i32
    return %c0_i32, %c0_i32_0 : i32, i32
  }
  func.func @transform_2(%arg0: i32) -> (i32, i32) {
    %c0_i32 = arith.constant 0 : i32
    %c0_i32_0 = arith.constant 0 : i32
    %c0_i32_1 = arith.constant 0 : i32
    return %c0_i32, %c0_i32_0 : i32, i32
  }
  func.func @transform_3(%arg0: i32) -> (i32, i32) {
    %c0_i32 = arith.constant 0 : i32
    %c0_i32_0 = arith.constant 0 : i32
    %c0_i32_1 = arith.constant 0 : i32
    return %c0_i32, %c0_i32_0 : i32, i32
  }
  func.func @transform_4(%arg0: i32) -> (i32, i32) {
    %c0_i32 = arith.constant 0 : i32
    %c0_i32_0 = arith.constant 0 : i32
    %c0_i32_1 = arith.constant 0 : i32
    return %c0_i32, %c0_i32_0 : i32, i32
  }
  func.func @transform_5(%arg0: i32) -> (i32, i32) {
    %c0_i32 = arith.constant 0 : i32
    %c0_i32_0 = arith.constant 0 : i32
    %c0_i32_1 = arith.constant 0 : i32
    return %c0_i32, %c0_i32_0 : i32, i32
  }
  func.func @transform_6(%arg0: i32) -> (i32, i32) {
    %c0_i32 = arith.constant 0 : i32
    %c0_i32_0 = arith.constant 0 : i32
    %c0_i32_1 = arith.constant 0 : i32
    return %c0_i32, %c0_i32_0 : i32, i32
  }
  func.func @transform_7(%arg0: i32) -> (i32, i32) {
    %c0_i32 = arith.constant 0 : i32
    %c0_i32_0 = arith.constant 0 : i32
    %c0_i32_1 = arith.constant 0 : i32
    return %c0_i32, %c0_i32_0 : i32, i32
  }
  func.func @transform_8(%arg0: i32) -> (i32, i32) {
    %c0_i32 = arith.constant 0 : i32
    %c0_i32_0 = arith.constant 0 : i32
    %c0_i32_1 = arith.constant 0 : i32
    return %c0_i32, %c0_i32_0 : i32, i32
  }
  func.func @transform_9(%arg0: i32) -> (i32, i32) {
    %c0_i32 = arith.constant 0 : i32
    %c0_i32_0 = arith.constant 0 : i32
    return %arg0, %c0_i32 : i32, i32
  }
}

module attributes {stable_mosaic.version = 11 : i64} {
  func.func @discriminator_kernel(%arg0: i32, %arg1: memref<16x784xf32, #tpu.memory_space<vmem>>, %arg2: memref<784x1024xbf16, #tpu.memory_space<vmem>>, %arg3: memref<1x1024xf32, #tpu.memory_space<vmem>>, %arg4: memref<1024x512xbf16, #tpu.memory_space<vmem>>, %arg5: memref<1x512xf32, #tpu.memory_space<vmem>>, %arg6: memref<512x256xbf16, #tpu.memory_space<vmem>>, %arg7: memref<1x256xf32, #tpu.memory_space<vmem>>, %arg8: memref<256x128xbf16, #tpu.memory_space<vmem>>, %arg9: memref<1x128xf32, #tpu.memory_space<vmem>>, %arg10: memref<16x1xf32, #tpu.memory_space<vmem>>) attributes {dimension_semantics = [#tpu.dimension_semantics<parallel>], iteration_bounds = array<i64: 1>, scalar_prefetch = 0 : i64, scratch_operands = 0 : i64, tpu.core_type = #tpu.core_type<tc>, window_params = [{transform_indices = @transform_0, window_bounds = array<i64: 16, 784>}, {pipeline_mode = #tpu.pipeline_mode<synchronous>, transform_indices = @transform_1, window_bounds = array<i64: 784, 1024>}, {pipeline_mode = #tpu.pipeline_mode<synchronous>, transform_indices = @transform_2, window_bounds = array<i64: 1, 1024>}, {pipeline_mode = #tpu.pipeline_mode<synchronous>, transform_indices = @transform_3, window_bounds = array<i64: 1024, 512>}, {pipeline_mode = #tpu.pipeline_mode<synchronous>, transform_indices = @transform_4, window_bounds = array<i64: 1, 512>}, {pipeline_mode = #tpu.pipeline_mode<synchronous>, transform_indices = @transform_5, window_bounds = array<i64: 512, 256>}, {pipeline_mode = #tpu.pipeline_mode<synchronous>, transform_indices = @transform_6, window_bounds = array<i64: 1, 256>}, {pipeline_mode = #tpu.pipeline_mode<synchronous>, transform_indices = @transform_7, window_bounds = array<i64: 256, 128>}, {pipeline_mode = #tpu.pipeline_mode<synchronous>, transform_indices = @transform_8, window_bounds = array<i64: 1, 128>}, {transform_indices = @transform_9, window_bounds = array<i64: 16, 1>}]} {
    %c0 = arith.constant 0 : index
    %c0_0 = arith.constant 0 : index
    %0 = vector.load %arg1[%c0, %c0_0] : memref<16x784xf32, #tpu.memory_space<vmem>>, vector<16x784xf32>
    %1 = arith.truncf %0 : vector<16x784xf32> to vector<16x784xbf16>
    %c0_1 = arith.constant 0 : index
    %c0_2 = arith.constant 0 : index
    %2 = vector.load %arg2[%c0_1, %c0_2] : memref<784x1024xbf16, #tpu.memory_space<vmem>>, vector<784x1024xbf16>
    %cst = arith.constant dense<0.000000e+00> : vector<16x1024xf32>
    %3 = tpu.matmul %1, %2, %cst {dimension_numbers = #tpu.dot_dimension_numbers<[1], [0], [0], [1], [0, 0, 1, 1], [], []>} : vector<16x784xbf16>, vector<784x1024xbf16>, vector<16x1024xf32> -> vector<16x1024xf32>
    %c0_3 = arith.constant 0 : index
    %c0_4 = arith.constant 0 : index
    %4 = vector.load %arg3[%c0_3, %c0_4] : memref<1x1024xf32, #tpu.memory_space<vmem>>, vector<1x1024xf32>
    %5 = vector.broadcast %4 : vector<1x1024xf32> to vector<16x1024xf32>
    %6 = arith.addf %3, %5 : vector<16x1024xf32>
    %cst_5 = arith.constant 2.000000e-01 : f32
    %7 = vector.broadcast %cst_5 : f32 to vector<16x1024xf32>
    %8 = arith.mulf %7, %6 : vector<16x1024xf32>
    %9 = arith.maximumf %6, %8 : vector<16x1024xf32>
    %10 = arith.truncf %9 : vector<16x1024xf32> to vector<16x1024xbf16>
    %c0_6 = arith.constant 0 : index
    %c0_7 = arith.constant 0 : index
    %11 = vector.load %arg4[%c0_6, %c0_7] : memref<1024x512xbf16, #tpu.memory_space<vmem>>, vector<1024x512xbf16>
    %cst_8 = arith.constant dense<0.000000e+00> : vector<16x512xf32>
    %12 = tpu.matmul %10, %11, %cst_8 {dimension_numbers = #tpu.dot_dimension_numbers<[1], [0], [0], [1], [0, 0, 1, 1], [], []>} : vector<16x1024xbf16>, vector<1024x512xbf16>, vector<16x512xf32> -> vector<16x512xf32>
    %c0_9 = arith.constant 0 : index
    %c0_10 = arith.constant 0 : index
    %13 = vector.load %arg5[%c0_9, %c0_10] : memref<1x512xf32, #tpu.memory_space<vmem>>, vector<1x512xf32>
    %14 = vector.broadcast %13 : vector<1x512xf32> to vector<16x512xf32>
    %15 = arith.addf %12, %14 : vector<16x512xf32>
    %cst_11 = arith.constant 2.000000e-01 : f32
    %16 = vector.broadcast %cst_11 : f32 to vector<16x512xf32>
    %17 = arith.mulf %16, %15 : vector<16x512xf32>
    %18 = arith.maximumf %15, %17 : vector<16x512xf32>
    %19 = arith.truncf %18 : vector<16x512xf32> to vector<16x512xbf16>
    %c0_12 = arith.constant 0 : index
    %c0_13 = arith.constant 0 : index
    %20 = vector.load %arg6[%c0_12, %c0_13] : memref<512x256xbf16, #tpu.memory_space<vmem>>, vector<512x256xbf16>
    %cst_14 = arith.constant dense<0.000000e+00> : vector<16x256xf32>
    %21 = tpu.matmul %19, %20, %cst_14 {dimension_numbers = #tpu.dot_dimension_numbers<[1], [0], [0], [1], [0, 0, 1, 1], [], []>} : vector<16x512xbf16>, vector<512x256xbf16>, vector<16x256xf32> -> vector<16x256xf32>
    %c0_15 = arith.constant 0 : index
    %c0_16 = arith.constant 0 : index
    %22 = vector.load %arg7[%c0_15, %c0_16] : memref<1x256xf32, #tpu.memory_space<vmem>>, vector<1x256xf32>
    %23 = vector.broadcast %22 : vector<1x256xf32> to vector<16x256xf32>
    %24 = arith.addf %21, %23 : vector<16x256xf32>
    %cst_17 = arith.constant 2.000000e-01 : f32
    %25 = vector.broadcast %cst_17 : f32 to vector<16x256xf32>
    %26 = arith.mulf %25, %24 : vector<16x256xf32>
    %27 = arith.maximumf %24, %26 : vector<16x256xf32>
    %28 = arith.truncf %27 : vector<16x256xf32> to vector<16x256xbf16>
    %c0_18 = arith.constant 0 : index
    %c0_19 = arith.constant 0 : index
    %29 = vector.load %arg8[%c0_18, %c0_19] : memref<256x128xbf16, #tpu.memory_space<vmem>>, vector<256x128xbf16>
    %cst_20 = arith.constant dense<0.000000e+00> : vector<16x128xf32>
    %30 = tpu.matmul %28, %29, %cst_20 {dimension_numbers = #tpu.dot_dimension_numbers<[1], [0], [0], [1], [0, 0, 1, 1], [], []>} : vector<16x256xbf16>, vector<256x128xbf16>, vector<16x128xf32> -> vector<16x128xf32>
    %c0_21 = arith.constant 0 : index
    %c0_22 = arith.constant 0 : index
    %31 = vector.load %arg9[%c0_21, %c0_22] : memref<1x128xf32, #tpu.memory_space<vmem>>, vector<1x128xf32>
    %32 = vector.broadcast %31 : vector<1x128xf32> to vector<16x128xf32>
    %33 = arith.addf %30, %32 : vector<16x128xf32>
    %34 = vector.extract_strided_slice %33 {offsets = [0, 0], sizes = [16, 1], strides = [1, 1]} : vector<16x128xf32> to vector<16x1xf32>
    %cst_23 = arith.constant 0.000000e+00 : f32
    %35 = vector.broadcast %cst_23 : f32 to vector<16x1xf32>
    %36 = arith.subf %35, %34 : vector<16x1xf32>
    %37 = math.exp %36 : vector<16x1xf32>
    %cst_24 = arith.constant 1.000000e+00 : f32
    %38 = vector.broadcast %cst_24 : f32 to vector<16x1xf32>
    %39 = arith.addf %38, %37 : vector<16x1xf32>
    %cst_25 = arith.constant 1.000000e+00 : f32
    %40 = vector.broadcast %cst_25 : f32 to vector<16x1xf32>
    %41 = arith.divf %40, %39 : vector<16x1xf32>
    %c0_26 = arith.constant 0 : index
    %c0_27 = arith.constant 0 : index
    %42 = vector.load %arg10[%c0_26, %c0_27] : memref<16x1xf32, #tpu.memory_space<vmem>>, vector<16x1xf32>
    tpu.vector_store %arg10[%c0_26, %c0_27], %41 {strides = array<i32>} : memref<16x1xf32, #tpu.memory_space<vmem>>, vector<16x1xf32>,
    return
  }
  func.func @transform_0(%arg0: i32) -> (i32, i32) {
    %c0_i32 = arith.constant 0 : i32
    %c0_i32_0 = arith.constant 0 : i32
    return %arg0, %c0_i32 : i32, i32
  }
  func.func @transform_1(%arg0: i32) -> (i32, i32) {
    %c0_i32 = arith.constant 0 : i32
    %c0_i32_0 = arith.constant 0 : i32
    %c0_i32_1 = arith.constant 0 : i32
    return %c0_i32, %c0_i32_0 : i32, i32
  }
  func.func @transform_2(%arg0: i32) -> (i32, i32) {
    %c0_i32 = arith.constant 0 : i32
    %c0_i32_0 = arith.constant 0 : i32
    %c0_i32_1 = arith.constant 0 : i32
    return %c0_i32, %c0_i32_0 : i32, i32
  }
  func.func @transform_3(%arg0: i32) -> (i32, i32) {
    %c0_i32 = arith.constant 0 : i32
    %c0_i32_0 = arith.constant 0 : i32
    %c0_i32_1 = arith.constant 0 : i32
    return %c0_i32, %c0_i32_0 : i32, i32
  }
  func.func @transform_4(%arg0: i32) -> (i32, i32) {
    %c0_i32 = arith.constant 0 : i32
    %c0_i32_0 = arith.constant 0 : i32
    %c0_i32_1 = arith.constant 0 : i32
    return %c0_i32, %c0_i32_0 : i32, i32
  }
  func.func @transform_5(%arg0: i32) -> (i32, i32) {
    %c0_i32 = arith.constant 0 : i32
    %c0_i32_0 = arith.constant 0 : i32
    %c0_i32_1 = arith.constant 0 : i32
    return %c0_i32, %c0_i32_0 : i32, i32
  }
  func.func @transform_6(%arg0: i32) -> (i32, i32) {
    %c0_i32 = arith.constant 0 : i32
    %c0_i32_0 = arith.constant 0 : i32
    %c0_i32_1 = arith.constant 0 : i32
    return %c0_i32, %c0_i32_0 : i32, i32
  }
  func.func @transform_7(%arg0: i32) -> (i32, i32) {
    %c0_i32 = arith.constant 0 : i32
    %c0_i32_0 = arith.constant 0 : i32
    %c0_i32_1 = arith.constant 0 : i32
    return %c0_i32, %c0_i32_0 : i32, i32
  }
  func.func @transform_8(%arg0: i32) -> (i32, i32) {
    %c0_i32 = arith.constant 0 : i32
    %c0_i32_0 = arith.constant 0 : i32
    %c0_i32_1 = arith.constant 0 : i32
    return %c0_i32, %c0_i32_0 : i32, i32
  }
  func.func @transform_9(%arg0: i32) -> (i32, i32) {
    %c0_i32 = arith.constant 0 : i32
    %c0_i32_0 = arith.constant 0 : i32
    return %arg0, %c0_i32 : i32, i32
  }
}

</mosaic_0001>

<llo_original>
// kernel: tpu_custom_call.1
$region0: #{tpu_custom_call.1}
  #allocation0 [shape = 'u32[]', space=smem, size = 0x4, offset = 0x4, fixed_abs, tag = 'smem constant byte address 0x4 - core index']
  #allocation1 [shape = 'u32[144,128]{1,0:T(1,128)}', space=vmem, size = 0x12000, scoped, tag = 'internal scratch']
  %s0 = inlined_call_operand.hbm [shape: f32[16,784], index: 0, kind: input, shape index: {}]
  %s1 = inlined_call_operand.hbm [shape: bf16[784,1024], index: 1, kind: input, shape index: {}]
  %s2 = inlined_call_operand.hbm [shape: f32[1,1024], index: 2, kind: input, shape index: {}]
  %s3 = inlined_call_operand.hbm [shape: bf16[1024,512], index: 3, kind: input, shape index: {}]
  %s4 = inlined_call_operand.hbm [shape: f32[1,512], index: 4, kind: input, shape index: {}]
  %s5 = inlined_call_operand.hbm [shape: bf16[512,256], index: 5, kind: input, shape index: {}]
  %s6 = inlined_call_operand.hbm [shape: f32[1,256], index: 6, kind: input, shape index: {}]
  %s7 = inlined_call_operand.hbm [shape: bf16[256,128], index: 7, kind: input, shape index: {}]
  %s8 = inlined_call_operand.hbm [shape: f32[1,128], index: 8, kind: input, shape index: {}]
  %s9 = inlined_call_operand.vmem [shape: f32[16,1], index: 9, kind: output, shape index: {}]
  %s10 = sld [smem:[#allocation0]]
  $region82: #{tpu_custom_call.1} parent=0
    _
  %s12 = ssub.s32 1, %s10
  %s13 = scalar_select 0, %s12, %s10
  $region1: #{tpu_custom_call.1} parent=0
    #allocation2 [shape = 'u8[57344]{0}', space=vmem, size = 0xe000, scoped, tag = 'input window, operand 0, single buffered']
    #allocation3 [shape = 's32[1]{0}', space=sflag, size = 0x4, scoped, tag = 'scoped memory for tpu_custom_call.1']
    #allocation4 [shape = 'u8[1605632]{0}', space=vmem, size = 0x188000, scoped, tag = 'input window, operand 1, single buffered']
    #allocation5 [shape = 's32[1]{0}', space=sflag, size = 0x4, scoped, tag = 'scoped memory for tpu_custom_call.1']
    #allocation6 [shape = 'u8[4096]{0}', space=vmem, size = 0x1000, scoped, tag = 'input window, operand 2, single buffered']
    #allocation7 [shape = 'u8[1048576]{0}', space=vmem, size = 0x100000, scoped, tag = 'input window, operand 3, single buffered']
    #allocation8 [shape = 's32[1]{0}', space=sflag, size = 0x4, scoped, tag = 'scoped memory for tpu_custom_call.1']
    #allocation9 [shape = 'u8[2048]{0}', space=vmem, size = 0x800, scoped, tag = 'input window, operand 4, single buffered']
    #allocation10 [shape = 'u8[262144]{0}', space=vmem, size = 0x40000, scoped, tag = 'input window, operand 5, single buffered']
    #allocation11 [shape = 's32[1]{0}', space=sflag, size = 0x4, scoped, tag = 'scoped memory for tpu_custom_call.1']
    #allocation12 [shape = 'u8[1024]{0}', space=vmem, size = 0x400, scoped, tag = 'input window, operand 6, single buffered']
    #allocation13 [shape = 'u8[65536]{0}', space=vmem, size = 0x10000, scoped, tag = 'input window, operand 7, single buffered']
    #allocation14 [shape = 's32[1]{0}', space=sflag, size = 0x4, scoped, tag = 'scoped memory for tpu_custom_call.1']
    #allocation15 [shape = 'u8[512]{0}', space=vmem, size = 0x400, scoped, tag = 'input window, operand 8, single buffered']
    %14 = vsyncpa [#allocation3], 0
    %15 = vsyncpa [#allocation5], 0
    %16 = vsyncpa [#allocation8], 0
    %17 = vsyncpa [#allocation11], 0
    %18 = vsyncpa [#allocation14], 0
    // Predicated region
    $region2: #{tpu_custom_call.1} parent=1 // pred_check
      _
    $region3: #{tpu_custom_call.1} parent=1 // pred_check_branch
      %20 = sbr.rel (0) target = $region5
    $region4: #{tpu_custom_call.1} parent=1 // pred_region
      %s22 = ssub.s32 1792, 1792
      %23 = vsyncadd [#allocation3], %s22
      %s24 = sshll.u32 [#allocation2], 4
      %s25 = int_to_ptr.vmem [resolvable:$true] %s24
      %30 = dma.hbm_to_vmem [thread:$0]  %s0, 1792, %s25, [#allocation3], 896, 896, 56
    $region5: #{tpu_custom_call.1} parent=1 // pred_fallthru
      _
    // Predicated region
    $region6: #{tpu_custom_call.1} parent=1 // pred_check
      _
    $region7: #{tpu_custom_call.1} parent=1 // pred_check_branch
      %32 = sbr.rel (0) target = $region9
    $region8: #{tpu_custom_call.1} parent=1 // pred_region
      %s34 = ssub.s32 50176, 50176
      %35 = vsyncadd [#allocation5], %s34
      %s36 = sshll.u32 [#allocation4], 4
      %s37 = int_to_ptr.vmem [resolvable:$true] %s36
      %42 = dma.hbm_to_vmem [thread:$0]  %s1, 50176, %s37, [#allocation5], 512, 512, 32
    $region9: #{tpu_custom_call.1} parent=1 // pred_fallthru
      _
    // Predicated region
    $region10: #{tpu_custom_call.1} parent=1 // pred_check
      _
    $region11: #{tpu_custom_call.1} parent=1 // pred_check_branch
      %44 = sbr.rel (0) target = $region13
    $region12: #{tpu_custom_call.1} parent=1 // pred_region
      %s46 = ssub.s32 128, 128
      %47 = vsyncadd [#allocation5], %s46
      %s49 = sshll.u32 [#allocation6], 4
      %s50 = int_to_ptr.vmem [resolvable:$true] %s49
      %52 = dma.hbm_to_vmem [thread:$0]  %s2, 128, %s50, [#allocation5]
    $region13: #{tpu_custom_call.1} parent=1 // pred_fallthru
      _
    // Predicated region
    $region14: #{tpu_custom_call.1} parent=1 // pred_check
      _
    $region15: #{tpu_custom_call.1} parent=1 // pred_check_branch
      %54 = sbr.rel (0) target = $region17
    $region16: #{tpu_custom_call.1} parent=1 // pred_region
      %s56 = ssub.s32 32768, 32768
      %57 = vsyncadd [#allocation8], %s56
      %s58 = sshll.u32 [#allocation7], 4
      %s59 = int_to_ptr.vmem [resolvable:$true] %s58
      %64 = dma.hbm_to_vmem [thread:$0]  %s3, 32768, %s59, [#allocation8], 256, 256, 16
    $region17: #{tpu_custom_call.1} parent=1 // pred_fallthru
      _
    // Predicated region
    $region18: #{tpu_custom_call.1} parent=1 // pred_check
      _
    $region19: #{tpu_custom_call.1} parent=1 // pred_check_branch
      %66 = sbr.rel (0) target = $region21
    $region20: #{tpu_custom_call.1} parent=1 // pred_region
      %s68 = ssub.s32 64, 64
      %69 = vsyncadd [#allocation8], %s68
      %s71 = sshll.u32 [#allocation9], 4
      %s72 = int_to_ptr.vmem [resolvable:$true] %s71
      %74 = dma.hbm_to_vmem [thread:$0]  %s4, 64, %s72, [#allocation8]
    $region21: #{tpu_custom_call.1} parent=1 // pred_fallthru
      _
    // Predicated region
    $region22: #{tpu_custom_call.1} parent=1 // pred_check
      _
    $region23: #{tpu_custom_call.1} parent=1 // pred_check_branch
      %76 = sbr.rel (0) target = $region25
    $region24: #{tpu_custom_call.1} parent=1 // pred_region
      %s78 = ssub.s32 8192, 8192
      %79 = vsyncadd [#allocation11], %s78
      %s80 = sshll.u32 [#allocation10], 4
      %s81 = int_to_ptr.vmem [resolvable:$true] %s80
      %86 = dma.hbm_to_vmem [thread:$0]  %s5, 8192, %s81, [#allocation11], 128, 128, 8
    $region25: #{tpu_custom_call.1} parent=1 // pred_fallthru
      _
    // Predicated region
    $region26: #{tpu_custom_call.1} parent=1 // pred_check
      _
    $region27: #{tpu_custom_call.1} parent=1 // pred_check_branch
      %88 = sbr.rel (0) target = $region29
    $region28: #{tpu_custom_call.1} parent=1 // pred_region
      %s90 = ssub.s32 32, 32
      %91 = vsyncadd [#allocation11], %s90
      %s93 = sshll.u32 [#allocation12], 4
      %s94 = int_to_ptr.vmem [resolvable:$true] %s93
      %96 = dma.hbm_to_vmem [thread:$0]  %s6, 32, %s94, [#allocation11]
    $region29: #{tpu_custom_call.1} parent=1 // pred_fallthru
      _
    // Predicated region
    $region30: #{tpu_custom_call.1} parent=1 // pred_check
      _
    $region31: #{tpu_custom_call.1} parent=1 // pred_check_branch
      %98 = sbr.rel (0) target = $region33
    $region32: #{tpu_custom_call.1} parent=1 // pred_region
      %s100 = ssub.s32 2048, 2048
      %101 = vsyncadd [#allocation14], %s100
      %s102 = sshll.u32 [#allocation13], 4
      %s103 = int_to_ptr.vmem [resolvable:$true] %s102
      %108 = dma.hbm_to_vmem [thread:$0]  %s7, 2048, %s103, [#allocation14], 64, 64, 4
    $region33: #{tpu_custom_call.1} parent=1 // pred_fallthru
      _
    // Predicated region
    $region34: #{tpu_custom_call.1} parent=1 // pred_check
      _
    $region35: #{tpu_custom_call.1} parent=1 // pred_check_branch
      %110 = sbr.rel (0) target = $region37
    $region36: #{tpu_custom_call.1} parent=1 // pred_region
      %s112 = ssub.s32 16, 16
      %113 = vsyncadd [#allocation14], %s112
      %s115 = sshll.u32 [#allocation15], 4
      %s116 = int_to_ptr.vmem [resolvable:$true] %s115
      %118 = dma.hbm_to_vmem [thread:$0]  %s8, 16, %s116, [#allocation14]
    $region37: #{tpu_custom_call.1} parent=1 // pred_fallthru
      _
    // Predicated region
    $region38: #{tpu_custom_call.1} parent=1 // pred_check
      _
    $region39: #{tpu_custom_call.1} parent=1 // pred_check_branch
      %120 = sbr.rel (0) target = $region41
    $region40: #{tpu_custom_call.1} parent=1 // pred_region
      %121 = dma.done [#allocation3], 1792
    $region41: #{tpu_custom_call.1} parent=1 // pred_fallthru
      _
    // Predicated region
    $region42: #{tpu_custom_call.1} parent=1 // pred_check
      _
    $region43: #{tpu_custom_call.1} parent=1 // pred_check_branch
      %123 = sbr.rel (0) target = $region45
    $region44: #{tpu_custom_call.1} parent=1 // pred_region
      %124 = dma.done [#allocation5], 50176
    $region45: #{tpu_custom_call.1} parent=1 // pred_fallthru
      _
    // Predicated region
    $region46: #{tpu_custom_call.1} parent=1 // pred_check
      _
    $region47: #{tpu_custom_call.1} parent=1 // pred_check_branch
      %126 = sbr.rel (0) target = $region49
    $region48: #{tpu_custom_call.1} parent=1 // pred_region
      %127 = dma.done [#allocation5], 128
    $region49: #{tpu_custom_call.1} parent=1 // pred_fallthru
      _
    // Predicated region
    $region50: #{tpu_custom_call.1} parent=1 // pred_check
      _
    $region51: #{tpu_custom_call.1} parent=1 // pred_check_branch
      %129 = sbr.rel (0) target = $region53
    $region52: #{tpu_custom_call.1} parent=1 // pred_region
      %130 = dma.done [#allocation8], 32768
    $region53: #{tpu_custom_call.1} parent=1 // pred_fallthru
      _
    // Predicated region
    $region54: #{tpu_custom_call.1} parent=1 // pred_check
      _
    $region55: #{tpu_custom_call.1} parent=1 // pred_check_branch
      %132 = sbr.rel (0) target = $region57
    $region56: #{tpu_custom_call.1} parent=1 // pred_region
      %133 = dma.done [#allocation8], 64
    $region57: #{tpu_custom_call.1} parent=1 // pred_fallthru
      _
    // Predicated region
    $region58: #{tpu_custom_call.1} parent=1 // pred_check
      _
    $region59: #{tpu_custom_call.1} parent=1 // pred_check_branch
      %135 = sbr.rel (0) target = $region61
    $region60: #{tpu_custom_call.1} parent=1 // pred_region
      %136 = dma.done [#allocation11], 8192
    $region61: #{tpu_custom_call.1} parent=1 // pred_fallthru
      _
    // Predicated region
    $region62: #{tpu_custom_call.1} parent=1 // pred_check
      _
    $region63: #{tpu_custom_call.1} parent=1 // pred_check_branch
      %138 = sbr.rel (0) target = $region65
    $region64: #{tpu_custom_call.1} parent=1 // pred_region
      %139 = dma.done [#allocation11], 32
    $region65: #{tpu_custom_call.1} parent=1 // pred_fallthru
      _
    // Predicated region
    $region66: #{tpu_custom_call.1} parent=1 // pred_check
      _
    $region67: #{tpu_custom_call.1} parent=1 // pred_check_branch
      %141 = sbr.rel (0) target = $region69
    $region68: #{tpu_custom_call.1} parent=1 // pred_region
      %142 = dma.done [#allocation14], 2048
    $region69: #{tpu_custom_call.1} parent=1 // pred_fallthru
      _
    // Predicated region
    $region70: #{tpu_custom_call.1} parent=1 // pred_check
      _
    $region71: #{tpu_custom_call.1} parent=1 // pred_check_branch
      %144 = sbr.rel (0) target = $region73
    $region72: #{tpu_custom_call.1} parent=1 // pred_region
      %145 = dma.done [#allocation14], 16
    $region73: #{tpu_custom_call.1} parent=1 // pred_fallthru
      _
    %v147 = vld [vmem:[#allocation2] sm:$0xff]
    %v148 = vld [vmem:[#allocation2 + $0x8] sm:$0xff]
    %v149 = vld [vmem:[#allocation2 + $0x10] sm:$0xff]
    %v150 = vld [vmem:[#allocation2 + $0x18] sm:$0xff]
    %v151 = vld [vmem:[#allocation2 + $0x20] sm:$0xff]
    %v152 = vld [vmem:[#allocation2 + $0x28] sm:$0xff]
    %v153 = vld [vmem:[#allocation2 + $0x30] sm:$0xff]
    %v154 = vld [vmem:[#allocation2 + $0x38] sm:$0xff]
    %v155 = vld [vmem:[#allocation2 + $0x40] sm:$0xff]
    %v156 = vld [vmem:[#allocation2 + $0x48] sm:$0xff]
    %v157 = vld [vmem:[#allocation2 + $0x50] sm:$0xff]
    %v158 = vld [vmem:[#allocation2 + $0x58] sm:$0xff]
    %v159 = vld [vmem:[#allocation2 + $0x60] sm:$0xff]
    %v160 = vld [vmem:[#allocation2 + $0x68] sm:$0xff]
    %v161 = vpack.c.bf16 %v154, %v147
    %v162 = vpack.c.bf16 %v155, %v148
    %v163 = vpack.c.bf16 %v156, %v149
    %v164 = vpack.c.bf16 %v157, %v150
    %v165 = vpack.c.bf16 %v158, %v151
    %v166 = vpack.c.bf16 %v159, %v152
    %v167 = vpack.c.bf16 %v160, %v153
    %v168 = vld [vmem:[#allocation4] sm:$0xff]
    %v169 = vld [vmem:[#allocation4 + $0x8] sm:$0xff]
    %v170 = vld [vmem:[#allocation4 + $0x10] sm:$0xff]
    %v171 = vld [vmem:[#allocation4 + $0x18] sm:$0xff]
    %v172 = vld [vmem:[#allocation4 + $0x20] sm:$0xff]
    %v173 = vld [vmem:[#allocation4 + $0x28] sm:$0xff]
    %v174 = vld [vmem:[#allocation4 + $0x30] sm:$0xff]
    %v175 = vld [vmem:[#allocation4 + $0x38] sm:$0xff]
    %v176 = vld [vmem:[#allocation4 + $0x40] sm:$0xff]
    %v177 = vld [vmem:[#allocation4 + $0x48] sm:$0xff]
    %v178 = vld [vmem:[#allocation4 + $0x50] sm:$0xff]
    %v179 = vld [vmem:[#allocation4 + $0x58] sm:$0xff]
    %v180 = vld [vmem:[#allocation4 + $0x60] sm:$0xff]
    %v181 = vld [vmem:[#allocation4 + $0x68] sm:$0xff]
    %v182 = vld [vmem:[#allocation4 + $0x70] sm:$0xff]
    %v183 = vld [vmem:[#allocation4 + $0x78] sm:$0xff]
    %v184 = vld [vmem:[#allocation4 + $0x80] sm:$0xff]
    %v185 = vld [vmem:[#allocation4 + $0x88] sm:$0xff]
    %v186 = vld [vmem:[#allocation4 + $0x90] sm:$0xff]
    %v187 = vld [vmem:[#allocation4 + $0x98] sm:$0xff]
    %v188 = vld [vmem:[#allocation4 + $0xa0] sm:$0xff]
    %v189 = vld [vmem:[#allocation4 + $0xa8] sm:$0xff]
    %v190 = vld [vmem:[#allocation4 + $0xb0] sm:$0xff]
    %v191 = vld [vmem:[#allocation4 + $0xb8] sm:$0xff]
    %v192 = vld [vmem:[#allocation4 + $0xc0] sm:$0xff]
    %v193 = vld [vmem:[#allocation4 + $0xc8] sm:$0xff]
    %v194 = vld [vmem:[#allocation4 + $0xd0] sm:$0xff]
    %v195 = vld [vmem:[#allocation4 + $0xd8] sm:$0xff]
    %v196 = vld [vmem:[#allocation4 + $0xe0] sm:$0xff]
    %v197 = vld [vmem:[#allocation4 + $0xe8] sm:$0xff]
    %v198 = vld [vmem:[#allocation4 + $0xf0] sm:$0xff]
    %v199 = vld [vmem:[#allocation4 + $0xf8] sm:$0xff]
    %v200 = vld [vmem:[#allocation4 + $0x100] sm:$0xff]
    %v201 = vld [vmem:[#allocation4 + $0x108] sm:$0xff]
    %v202 = vld [vmem:[#allocation4 + $0x110] sm:$0xff]
    %v203 = vld [vmem:[#allocation4 + $0x118] sm:$0xff]
    %v204 = vld [vmem:[#allocation4 + $0x120] sm:$0xff]
    %v205 = vld [vmem:[#allocation4 + $0x128] sm:$0xff]
    %v206 = vld [vmem:[#allocation4 + $0x130] sm:$0xff]
    %v207 = vld [vmem:[#allocation4 + $0x138] sm:$0xff]
    %v208 = vld [vmem:[#allocation4 + $0x140] sm:$0xff]
    %v209 = vld [vmem:[#allocation4 + $0x148] sm:$0xff]
    %v210 = vld [vmem:[#allocation4 + $0x150] sm:$0xff]
    %v211 = vld [vmem:[#allocation4 + $0x158] sm:$0xff]
    %v212 = vld [vmem:[#allocation4 + $0x160] sm:$0xff]
    %v213 = vld [vmem:[#allocation4 + $0x168] sm:$0xff]
    %v214 = vld [vmem:[#allocation4 + $0x170] sm:$0xff]
    %v215 = vld [vmem:[#allocation4 + $0x178] sm:$0xff]
    %v216 = vld [vmem:[#allocation4 + $0x180] sm:$0xff]
    %v217 = vld [vmem:[#allocation4 + $0x188] sm:$0xff]
    %v218 = vld [vmem:[#allocation4 + $0x190] sm:$0xff]
    %v219 = vld [vmem:[#allocation4 + $0x198] sm:$0xff]
    %v220 = vld [vmem:[#allocation4 + $0x1a0] sm:$0xff]
    %v221 = vld [vmem:[#allocation4 + $0x1a8] sm:$0xff]
    %v222 = vld [vmem:[#allocation4 + $0x1b0] sm:$0xff]
    %v223 = vld [vmem:[#allocation4 + $0x1b8] sm:$0xff]
    %v224 = vld [vmem:[#allocation4 + $0x1c0] sm:$0xff]
    %v225 = vld [vmem:[#allocation4 + $0x1c8] sm:$0xff]
    %v226 = vld [vmem:[#allocation4 + $0x1d0] sm:$0xff]
    %v227 = vld [vmem:[#allocation4 + $0x1d8] sm:$0xff]
    %v228 = vld [vmem:[#allocation4 + $0x1e0] sm:$0xff]
    %v229 = vld [vmem:[#allocation4 + $0x1e8] sm:$0xff]
    %v230 = vld [vmem:[#allocation4 + $0x1f0] sm:$0xff]
    %v231 = vld [vmem:[#allocation4 + $0x1f8] sm:$0xff]
    %v232 = vld [vmem:[#allocation4 + $0x200] sm:$0xff]
    %v233 = vld [vmem:[#allocation4 + $0x208] sm:$0xff]
    %v234 = vld [vmem:[#allocation4 + $0x210] sm:$0xff]
    %v235 = vld [vmem:[#allocation4 + $0x218] sm:$0xff]
    %v236 = vld [vmem:[#allocation4 + $0x220] sm:$0xff]
    %v237 = vld [vmem:[#allocation4 + $0x228] sm:$0xff]
    %v238 = vld [vmem:[#allocation4 + $0x230] sm:$0xff]
    %v239 = vld [vmem:[#allocation4 + $0x238] sm:$0xff]
    %v240 = vld [vmem:[#allocation4 + $0x240] sm:$0xff]
    %v241 = vld [vmem:[#allocation4 + $0x248] sm:$0xff]
    %v242 = vld [vmem:[#allocation4 + $0x250] sm:$0xff]
    %v243 = vld [vmem:[#allocation4 + $0x258] sm:$0xff]
    %v244 = vld [vmem:[#allocation4 + $0x260] sm:$0xff]
    %v245 = vld [vmem:[#allocation4 + $0x268] sm:$0xff]
    %v246 = vld [vmem:[#allocation4 + $0x270] sm:$0xff]
    %v247 = vld [vmem:[#allocation4 + $0x278] sm:$0xff]
    %v248 = vld [vmem:[#allocation4 + $0x280] sm:$0xff]
    %v249 = vld [vmem:[#allocation4 + $0x288] sm:$0xff]
    %v250 = vld [vmem:[#allocation4 + $0x290] sm:$0xff]
    %v251 = vld [vmem:[#allocation4 + $0x298] sm:$0xff]
    %v252 = vld [vmem:[#allocation4 + $0x2a0] sm:$0xff]
    %v253 = vld [vmem:[#allocation4 + $0x2a8] sm:$0xff]
    %v254 = vld [vmem:[#allocation4 + $0x2b0] sm:$0xff]
    %v255 = vld [vmem:[#allocation4 + $0x2b8] sm:$0xff]
    %v256 = vld [vmem:[#allocation4 + $0x2c0] sm:$0xff]
    %v257 = vld [vmem:[#allocation4 + $0x2c8] sm:$0xff]
    %v258 = vld [vmem:[#allocation4 + $0x2d0] sm:$0xff]
    %v259 = vld [vmem:[#allocation4 + $0x2d8] sm:$0xff]
    %v260 = vld [vmem:[#allocation4 + $0x2e0] sm:$0xff]
    %v261 = vld [vmem:[#allocation4 + $0x2e8] sm:$0xff]
    %v262 = vld [vmem:[#allocation4 + $0x2f0] sm:$0xff]
    %v263 = vld [vmem:[#allocation4 + $0x2f8] sm:$0xff]
    %v264 = vld [vmem:[#allocation4 + $0x300] sm:$0xff]
    %v265 = vld [vmem:[#allocation4 + $0x308] sm:$0xff]
    %v266 = vld [vmem:[#allocation4 + $0x310] sm:$0xff]
    %v267 = vld [vmem:[#allocation4 + $0x318] sm:$0xff]
    %v268 = vld [vmem:[#allocation4 + $0x320] sm:$0xff]
    %v269 = vld [vmem:[#allocation4 + $0x328] sm:$0xff]
    %v270 = vld [vmem:[#allocation4 + $0x330] sm:$0xff]
    %v271 = vld [vmem:[#allocation4 + $0x338] sm:$0xff]
    %v272 = vld [vmem:[#allocation4 + $0x340] sm:$0xff]
    %v273 = vld [vmem:[#allocation4 + $0x348] sm:$0xff]
    %v274 = vld [vmem:[#allocation4 + $0x350] sm:$0xff]
    %v275 = vld [vmem:[#allocation4 + $0x358] sm:$0xff]
    %v276 = vld [vmem:[#allocation4 + $0x360] sm:$0xff]
    %v277 = vld [vmem:[#allocation4 + $0x368] sm:$0xff]
    %v278 = vld [vmem:[#allocation4 + $0x370] sm:$0xff]
    %v279 = vld [vmem:[#allocation4 + $0x378] sm:$0xff]
    %v280 = vld [vmem:[#allocation4 + $0x380] sm:$0xff]
    %v281 = vld [vmem:[#allocation4 + $0x388] sm:$0xff]
    %v282 = vld [vmem:[#allocation4 + $0x390] sm:$0xff]
    %v283 = vld [vmem:[#allocation4 + $0x398] sm:$0xff]
    %v284 = vld [vmem:[#allocation4 + $0x3a0] sm:$0xff]
    %v285 = vld [vmem:[#allocation4 + $0x3a8] sm:$0xff]
    %v286 = vld [vmem:[#allocation4 + $0x3b0] sm:$0xff]
    %v287 = vld [vmem:[#allocation4 + $0x3b8] sm:$0xff]
    %v288 = vld [vmem:[#allocation4 + $0x3c0] sm:$0xff]
    %v289 = vld [vmem:[#allocation4 + $0x3c8] sm:$0xff]
    %v290 = vld [vmem:[#allocation4 + $0x3d0] sm:$0xff]
    %v291 = vld [vmem:[#allocation4 + $0x3d8] sm:$0xff]
    %v292 = vld [vmem:[#allocation4 + $0x3e0] sm:$0xff]
    %v293 = vld [vmem:[#allocation4 + $0x3e8] sm:$0xff]
    %v294 = vld [vmem:[#allocation4 + $0x3f0] sm:$0xff]
    %v295 = vld [vmem:[#allocation4 + $0x3f8] sm:$0xff]
    %v296 = vld [vmem:[#allocation4 + $0x400] sm:$0xff]
    %v297 = vld [vmem:[#allocation4 + $0x408] sm:$0xff]
    %v298 = vld [vmem:[#allocation4 + $0x410] sm:$0xff]
    %v299 = vld [vmem:[#allocation4 + $0x418] sm:$0xff]
    %v300 = vld [vmem:[#allocation4 + $0x420] sm:$0xff]
    %v301 = vld [vmem:[#allocation4 + $0x428] sm:$0xff]
    %v302 = vld [vmem:[#allocation4 + $0x430] sm:$0xff]
    %v303 = vld [vmem:[#allocation4 + $0x438] sm:$0xff]
    %v304 = vld [vmem:[#allocation4 + $0x440] sm:$0xff]
    %v305 = vld [vmem:[#allocation4 + $0x448] sm:$0xff]
    %v306 = vld [vmem:[#allocation4 + $0x450] sm:$0xff]
    %v307 = vld [vmem:[#allocation4 + $0x458] sm:$0xff]
    %v308 = vld [vmem:[#allocation4 + $0x460] sm:$0xff]
    %v309 = vld [vmem:[#allocation4 + $0x468] sm:$0xff]
    %v310 = vld [vmem:[#allocation4 + $0x470] sm:$0xff]
    %v311 = vld [vmem:[#allocation4 + $0x478] sm:$0xff]
    %v312 = vld [vmem:[#allocation4 + $0x480] sm:$0xff]
    %v313 = vld [vmem:[#allocation4 + $0x488] sm:$0xff]
    %v314 = vld [vmem:[#allocation4 + $0x490] sm:$0xff]
    %v315 = vld [vmem:[#allocation4 + $0x498] sm:$0xff]
    %v316 = vld [vmem:[#allocation4 + $0x4a0] sm:$0xff]
    %v317 = vld [vmem:[#allocation4 + $0x4a8] sm:$0xff]
    %v318 = vld [vmem:[#allocation4 + $0x4b0] sm:$0xff]
    %v319 = vld [vmem:[#allocation4 + $0x4b8] sm:$0xff]
    %v320 = vld [vmem:[#allocation4 + $0x4c0] sm:$0xff]
    %v321 = vld [vmem:[#allocation4 + $0x4c8] sm:$0xff]
    %v322 = vld [vmem:[#allocation4 + $0x4d0] sm:$0xff]
    %v323 = vld [vmem:[#allocation4 + $0x4d8] sm:$0xff]
    %v324 = vld [vmem:[#allocation4 + $0x4e0] sm:$0xff]
    %v325 = vld [vmem:[#allocation4 + $0x4e8] sm:$0xff]
    %v326 = vld [vmem:[#allocation4 + $0x4f0] sm:$0xff]
    %v327 = vld [vmem:[#allocation4 + $0x4f8] sm:$0xff]
    %v328 = vld [vmem:[#allocation4 + $0x500] sm:$0xff]
    %v329 = vld [vmem:[#allocation4 + $0x508] sm:$0xff]
    %v330 = vld [vmem:[#allocation4 + $0x510] sm:$0xff]
    %v331 = vld [vmem:[#allocation4 + $0x518] sm:$0xff]
    %v332 = vld [vmem:[#allocation4 + $0x520] sm:$0xff]
    %v333 = vld [vmem:[#allocation4 + $0x528] sm:$0xff]
    %v334 = vld [vmem:[#allocation4 + $0x530] sm:$0xff]
    %v335 = vld [vmem:[#allocation4 + $0x538] sm:$0xff]
    %v336 = vld [vmem:[#allocation4 + $0x540] sm:$0xff]
    %v337 = vld [vmem:[#allocation4 + $0x548] sm:$0xff]
    %v338 = vld [vmem:[#allocation4 + $0x550] sm:$0xff]
    %v339 = vld [vmem:[#allocation4 + $0x558] sm:$0xff]
    %v340 = vld [vmem:[#allocation4 + $0x560] sm:$0xff]
    %v341 = vld [vmem:[#allocation4 + $0x568] sm:$0xff]
    %v342 = vld [vmem:[#allocation4 + $0x570] sm:$0xff]
    %v343 = vld [vmem:[#allocation4 + $0x578] sm:$0xff]
    %v344 = vld [vmem:[#allocation4 + $0x580] sm:$0xff]
    %v345 = vld [vmem:[#allocation4 + $0x588] sm:$0xff]
    %v346 = vld [vmem:[#allocation4 + $0x590] sm:$0xff]
    %v347 = vld [vmem:[#allocation4 + $0x598] sm:$0xff]
    %v348 = vld [vmem:[#allocation4 + $0x5a0] sm:$0xff]
    %v349 = vld [vmem:[#allocation4 + $0x5a8] sm:$0xff]
    %v350 = vld [vmem:[#allocation4 + $0x5b0] sm:$0xff]
    %v351 = vld [vmem:[#allocation4 + $0x5b8] sm:$0xff]
    %v352 = vld [vmem:[#allocation4 + $0x5c0] sm:$0xff]
    %v353 = vld [vmem:[#allocation4 + $0x5c8] sm:$0xff]
    %v354 = vld [vmem:[#allocation4 + $0x5d0] sm:$0xff]
    %v355 = vld [vmem:[#allocation4 + $0x5d8] sm:$0xff]
    %v356 = vld [vmem:[#allocation4 + $0x5e0] sm:$0xff]
    %v357 = vld [vmem:[#allocation4 + $0x5e8] sm:$0xff]
    %v358 = vld [vmem:[#allocation4 + $0x5f0] sm:$0xff]
    %v359 = vld [vmem:[#allocation4 + $0x5f8] sm:$0xff]
    %v360 = vld [vmem:[#allocation4 + $0x600] sm:$0xff]
    %v361 = vld [vmem:[#allocation4 + $0x608] sm:$0xff]
    %v362 = vld [vmem:[#allocation4 + $0x610] sm:$0xff]
    %v363 = vld [vmem:[#allocation4 + $0x618] sm:$0xff]
    %v364 = vld [vmem:[#allocation4 + $0x620] sm:$0xff]
    %v365 = vld [vmem:[#allocation4 + $0x628] sm:$0xff]
    %v366 = vld [vmem:[#allocation4 + $0x630] sm:$0xff]
    %v367 = vld [vmem:[#allocation4 + $0x638] sm:$0xff]
    %v368 = vld [vmem:[#allocation4 + $0x640] sm:$0xff]
    %v369 = vld [vmem:[#allocation4 + $0x648] sm:$0xff]
    %v370 = vld [vmem:[#allocation4 + $0x650] sm:$0xff]
    %v371 = vld [vmem:[#allocation4 + $0x658] sm:$0xff]
    %v372 = vld [vmem:[#allocation4 + $0x660] sm:$0xff]
    %v373 = vld [vmem:[#allocation4 + $0x668] sm:$0xff]
    %v374 = vld [vmem:[#allocation4 + $0x670] sm:$0xff]
    %v375 = vld [vmem:[#allocation4 + $0x678] sm:$0xff]
    %v376 = vld [vmem:[#allocation4 + $0x680] sm:$0xff]
    %v377 = vld [vmem:[#allocation4 + $0x688] sm:$0xff]
    %v378 = vld [vmem:[#allocation4 + $0x690] sm:$0xff]
    %v379 = vld [vmem:[#allocation4 + $0x698] sm:$0xff]
    %v380 = vld [vmem:[#allocation4 + $0x6a0] sm:$0xff]
    %v381 = vld [vmem:[#allocation4 + $0x6a8] sm:$0xff]
    %v382 = vld [vmem:[#allocation4 + $0x6b0] sm:$0xff]
    %v383 = vld [vmem:[#allocation4 + $0x6b8] sm:$0xff]
    %v384 = vld [vmem:[#allocation4 + $0x6c0] sm:$0xff]
    %v385 = vld [vmem:[#allocation4 + $0x6c8] sm:$0xff]
    %v386 = vld [vmem:[#allocation4 + $0x6d0] sm:$0xff]
    %v387 = vld [vmem:[#allocation4 + $0x6d8] sm:$0xff]
    %v388 = vld [vmem:[#allocation4 + $0x6e0] sm:$0xff]
    %v389 = vld [vmem:[#allocation4 + $0x6e8] sm:$0xff]
    %v390 = vld [vmem:[#allocation4 + $0x6f0] sm:$0xff]
    %v391 = vld [vmem:[#allocation4 + $0x6f8] sm:$0xff]
    %v392 = vld [vmem:[#allocation4 + $0x700] sm:$0xff]
    %v393 = vld [vmem:[#allocation4 + $0x708] sm:$0xff]
    %v394 = vld [vmem:[#allocation4 + $0x710] sm:$0xff]
    %v395 = vld [vmem:[#allocation4 + $0x718] sm:$0xff]
    %v396 = vld [vmem:[#allocation4 + $0x720] sm:$0xff]
    %v397 = vld [vmem:[#allocation4 + $0x728] sm:$0xff]
    %v398 = vld [vmem:[#allocation4 + $0x730] sm:$0xff]
    %v399 = vld [vmem:[#allocation4 + $0x738] sm:$0xff]
    %v400 = vld [vmem:[#allocation4 + $0x740] sm:$0xff]
    %v401 = vld [vmem:[#allocation4 + $0x748] sm:$0xff]
    %v402 = vld [vmem:[#allocation4 + $0x750] sm:$0xff]
    %v403 = vld [vmem:[#allocation4 + $0x758] sm:$0xff]
    %v404 = vld [vmem:[#allocation4 + $0x760] sm:$0xff]
    %v405 = vld [vmem:[#allocation4 + $0x768] sm:$0xff]
    %v406 = vld [vmem:[#allocation4 + $0x770] sm:$0xff]
    %v407 = vld [vmem:[#allocation4 + $0x778] sm:$0xff]
    %v408 = vld [vmem:[#allocation4 + $0x780] sm:$0xff]
    %v409 = vld [vmem:[#allocation4 + $0x788] sm:$0xff]
    %v410 = vld [vmem:[#allocation4 + $0x790] sm:$0xff]
    %v411 = vld [vmem:[#allocation4 + $0x798] sm:$0xff]
    %v412 = vld [vmem:[#allocation4 + $0x7a0] sm:$0xff]
    %v413 = vld [vmem:[#allocation4 + $0x7a8] sm:$0xff]
    %v414 = vld [vmem:[#allocation4 + $0x7b0] sm:$0xff]
    %v415 = vld [vmem:[#allocation4 + $0x7b8] sm:$0xff]
    %v416 = vld [vmem:[#allocation4 + $0x7c0] sm:$0xff]
    %v417 = vld [vmem:[#allocation4 + $0x7c8] sm:$0xff]
    %v418 = vld [vmem:[#allocation4 + $0x7d0] sm:$0xff]
    %v419 = vld [vmem:[#allocation4 + $0x7d8] sm:$0xff]
    %v420 = vld [vmem:[#allocation4 + $0x7e0] sm:$0xff]
    %v421 = vld [vmem:[#allocation4 + $0x7e8] sm:$0xff]
    %v422 = vld [vmem:[#allocation4 + $0x7f0] sm:$0xff]
    %v423 = vld [vmem:[#allocation4 + $0x7f8] sm:$0xff]
    %v424 = vld [vmem:[#allocation4 + $0x800] sm:$0xff]
    %v425 = vld [vmem:[#allocation4 + $0x808] sm:$0xff]
    %v426 = vld [vmem:[#allocation4 + $0x810] sm:$0xff]
    %v427 = vld [vmem:[#allocation4 + $0x818] sm:$0xff]
    %v428 = vld [vmem:[#allocation4 + $0x820] sm:$0xff]
    %v429 = vld [vmem:[#allocation4 + $0x828] sm:$0xff]
    %v430 = vld [vmem:[#allocation4 + $0x830] sm:$0xff]
    %v431 = vld [vmem:[#allocation4 + $0x838] sm:$0xff]
    %v432 = vld [vmem:[#allocation4 + $0x840] sm:$0xff]
    %v433 = vld [vmem:[#allocation4 + $0x848] sm:$0xff]
    %v434 = vld [vmem:[#allocation4 + $0x850] sm:$0xff]
    %v435 = vld [vmem:[#allocation4 + $0x858] sm:$0xff]
    %v436 = vld [vmem:[#allocation4 + $0x860] sm:$0xff]
    %v437 = vld [vmem:[#allocation4 + $0x868] sm:$0xff]
    %v438 = vld [vmem:[#allocation4 + $0x870] sm:$0xff]
    %v439 = vld [vmem:[#allocation4 + $0x878] sm:$0xff]
    %v440 = vld [vmem:[#allocation4 + $0x880] sm:$0xff]
    %v441 = vld [vmem:[#allocation4 + $0x888] sm:$0xff]
    %v442 = vld [vmem:[#allocation4 + $0x890] sm:$0xff]
    %v443 = vld [vmem:[#allocation4 + $0x898] sm:$0xff]
    %v444 = vld [vmem:[#allocation4 + $0x8a0] sm:$0xff]
    %v445 = vld [vmem:[#allocation4 + $0x8a8] sm:$0xff]
    %v446 = vld [vmem:[#allocation4 + $0x8b0] sm:$0xff]
    %v447 = vld [vmem:[#allocation4 + $0x8b8] sm:$0xff]
    %v448 = vld [vmem:[#allocation4 + $0x8c0] sm:$0xff]
    %v449 = vld [vmem:[#allocation4 + $0x8c8] sm:$0xff]
    %v450 = vld [vmem:[#allocation4 + $0x8d0] sm:$0xff]
    %v451 = vld [vmem:[#allocation4 + $0x8d8] sm:$0xff]
    %v452 = vld [vmem:[#allocation4 + $0x8e0] sm:$0xff]
    %v453 = vld [vmem:[#allocation4 + $0x8e8] sm:$0xff]
    %v454 = vld [vmem:[#allocation4 + $0x8f0] sm:$0xff]
    %v455 = vld [vmem:[#allocation4 + $0x8f8] sm:$0xff]
    %v456 = vld [vmem:[#allocation4 + $0x900] sm:$0xff]
    %v457 = vld [vmem:[#allocation4 + $0x908] sm:$0xff]
    %v458 = vld [vmem:[#allocation4 + $0x910] sm:$0xff]
    %v459 = vld [vmem:[#allocation4 + $0x918] sm:$0xff]
    %v460 = vld [vmem:[#allocation4 + $0x920] sm:$0xff]
    %v461 = vld [vmem:[#allocation4 + $0x928] sm:$0xff]
    %v462 = vld [vmem:[#allocation4 + $0x930] sm:$0xff]
    %v463 = vld [vmem:[#allocation4 + $0x938] sm:$0xff]
    %v464 = vld [vmem:[#allocation4 + $0x940] sm:$0xff]
    %v465 = vld [vmem:[#allocation4 + $0x948] sm:$0xff]
    %v466 = vld [vmem:[#allocation4 + $0x950] sm:$0xff]
    %v467 = vld [vmem:[#allocation4 + $0x958] sm:$0xff]
    %v468 = vld [vmem:[#allocation4 + $0x960] sm:$0xff]
    %v469 = vld [vmem:[#allocation4 + $0x968] sm:$0xff]
    %v470 = vld [vmem:[#allocation4 + $0x970] sm:$0xff]
    %v471 = vld [vmem:[#allocation4 + $0x978] sm:$0xff]
    %v472 = vld [vmem:[#allocation4 + $0x980] sm:$0xff]
    %v473 = vld [vmem:[#allocation4 + $0x988] sm:$0xff]
    %v474 = vld [vmem:[#allocation4 + $0x990] sm:$0xff]
    %v475 = vld [vmem:[#allocation4 + $0x998] sm:$0xff]
    %v476 = vld [vmem:[#allocation4 + $0x9a0] sm:$0xff]
    %v477 = vld [vmem:[#allocation4 + $0x9a8] sm:$0xff]
    %v478 = vld [vmem:[#allocation4 + $0x9b0] sm:$0xff]
    %v479 = vld [vmem:[#allocation4 + $0x9b8] sm:$0xff]
    %v480 = vld [vmem:[#allocation4 + $0x9c0] sm:$0xff]
    %v481 = vld [vmem:[#allocation4 + $0x9c8] sm:$0xff]
    %v482 = vld [vmem:[#allocation4 + $0x9d0] sm:$0xff]
    %v483 = vld [vmem:[#allocation4 + $0x9d8] sm:$0xff]
    %v484 = vld [vmem:[#allocation4 + $0x9e0] sm:$0xff]
    %v485 = vld [vmem:[#allocation4 + $0x9e8] sm:$0xff]
    %v486 = vld [vmem:[#allocation4 + $0x9f0] sm:$0xff]
    %v487 = vld [vmem:[#allocation4 + $0x9f8] sm:$0xff]
    %v488 = vld [vmem:[#allocation4 + $0xa00] sm:$0xff]
    %v489 = vld [vmem:[#allocation4 + $0xa08] sm:$0xff]
    %v490 = vld [vmem:[#allocation4 + $0xa10] sm:$0xff]
    %v491 = vld [vmem:[#allocation4 + $0xa18] sm:$0xff]
    %v492 = vld [vmem:[#allocation4 + $0xa20] sm:$0xff]
    %v493 = vld [vmem:[#allocation4 + $0xa28] sm:$0xff]
    %v494 = vld [vmem:[#allocation4 + $0xa30] sm:$0xff]
    %v495 = vld [vmem:[#allocation4 + $0xa38] sm:$0xff]
    %v496 = vld [vmem:[#allocation4 + $0xa40] sm:$0xff]
    %v497 = vld [vmem:[#allocation4 + $0xa48] sm:$0xff]
    %v498 = vld [vmem:[#allocation4 + $0xa50] sm:$0xff]
    %v499 = vld [vmem:[#allocation4 + $0xa58] sm:$0xff]
    %v500 = vld [vmem:[#allocation4 + $0xa60] sm:$0xff]
    %v501 = vld [vmem:[#allocation4 + $0xa68] sm:$0xff]
    %v502 = vld [vmem:[#allocation4 + $0xa70] sm:$0xff]
    %v503 = vld [vmem:[#allocation4 + $0xa78] sm:$0xff]
    %v504 = vld [vmem:[#allocation4 + $0xa80] sm:$0xff]
    %v505 = vld [vmem:[#allocation4 + $0xa88] sm:$0xff]
    %v506 = vld [vmem:[#allocation4 + $0xa90] sm:$0xff]
    %v507 = vld [vmem:[#allocation4 + $0xa98] sm:$0xff]
    %v508 = vld [vmem:[#allocation4 + $0xaa0] sm:$0xff]
    %v509 = vld [vmem:[#allocation4 + $0xaa8] sm:$0xff]
    %v510 = vld [vmem:[#allocation4 + $0xab0] sm:$0xff]
    %v511 = vld [vmem:[#allocation4 + $0xab8] sm:$0xff]
    %v512 = vld [vmem:[#allocation4 + $0xac0] sm:$0xff]
    %v513 = vld [vmem:[#allocation4 + $0xac8] sm:$0xff]
    %v514 = vld [vmem:[#allocation4 + $0xad0] sm:$0xff]
    %v515 = vld [vmem:[#allocation4 + $0xad8] sm:$0xff]
    %v516 = vld [vmem:[#allocation4 + $0xae0] sm:$0xff]
    %v517 = vld [vmem:[#allocation4 + $0xae8] sm:$0xff]
    %v518 = vld [vmem:[#allocation4 + $0xaf0] sm:$0xff]
    %v519 = vld [vmem:[#allocation4 + $0xaf8] sm:$0xff]
    %v520 = vld [vmem:[#allocation4 + $0xb00] sm:$0xff]
    %v521 = vld [vmem:[#allocation4 + $0xb08] sm:$0xff]
    %v522 = vld [vmem:[#allocation4 + $0xb10] sm:$0xff]
    %v523 = vld [vmem:[#allocation4 + $0xb18] sm:$0xff]
    %v524 = vld [vmem:[#allocation4 + $0xb20] sm:$0xff]
    %v525 = vld [vmem:[#allocation4 + $0xb28] sm:$0xff]
    %v526 = vld [vmem:[#allocation4 + $0xb30] sm:$0xff]
    %v527 = vld [vmem:[#allocation4 + $0xb38] sm:$0xff]
    %v528 = vld [vmem:[#allocation4 + $0xb40] sm:$0xff]
    %v529 = vld [vmem:[#allocation4 + $0xb48] sm:$0xff]
    %v530 = vld [vmem:[#allocation4 + $0xb50] sm:$0xff]
    %v531 = vld [vmem:[#allocation4 + $0xb58] sm:$0xff]
    %v532 = vld [vmem:[#allocation4 + $0xb60] sm:$0xff]
    %v533 = vld [vmem:[#allocation4 + $0xb68] sm:$0xff]
    %v534 = vld [vmem:[#allocation4 + $0xb70] sm:$0xff]
    %v535 = vld [vmem:[#allocation4 + $0xb78] sm:$0xff]
    %v536 = vld [vmem:[#allocation4 + $0xb80] sm:$0xff]
    %v537 = vld [vmem:[#allocation4 + $0xb88] sm:$0xff]
    %v538 = vld [vmem:[#allocation4 + $0xb90] sm:$0xff]
    %v539 = vld [vmem:[#allocation4 + $0xb98] sm:$0xff]
    %v540 = vld [vmem:[#allocation4 + $0xba0] sm:$0xff]
    %v541 = vld [vmem:[#allocation4 + $0xba8] sm:$0xff]
    %v542 = vld [vmem:[#allocation4 + $0xbb0] sm:$0xff]
    %v543 = vld [vmem:[#allocation4 + $0xbb8] sm:$0xff]
    %v544 = vld [vmem:[#allocation4 + $0xbc0] sm:$0xff]
    %v545 = vld [vmem:[#allocation4 + $0xbc8] sm:$0xff]
    %v546 = vld [vmem:[#allocation4 + $0xbd0] sm:$0xff]
    %v547 = vld [vmem:[#allocation4 + $0xbd8] sm:$0xff]
    %v548 = vld [vmem:[#allocation4 + $0xbe0] sm:$0xff]
    %v549 = vld [vmem:[#allocation4 + $0xbe8] sm:$0xff]
    %v550 = vld [vmem:[#allocation4 + $0xbf0] sm:$0xff]
    %v551 = vld [vmem:[#allocation4 + $0xbf8] sm:$0xff]
    %v552 = vld [vmem:[#allocation4 + $0xc00] sm:$0xff]
    %v553 = vld [vmem:[#allocation4 + $0xc08] sm:$0xff]
    %v554 = vld [vmem:[#allocation4 + $0xc10] sm:$0xff]
    %v555 = vld [vmem:[#allocation4 + $0xc18] sm:$0xff]
    %v556 = vld [vmem:[#allocation4 + $0xc20] sm:$0xff]
    %v557 = vld [vmem:[#allocation4 + $0xc28] sm:$0xff]
    %v558 = vld [vmem:[#allocation4 + $0xc30] sm:$0xff]
    %v559 = vld [vmem:[#allocation4 + $0xc38] sm:$0xff]
    %v560 = vld [vmem:[#allocation6] sm:$0xff]
    %v562 = vlaneseq
    %v563 = vshrl.u32 %v562, 7
    %v564 = vsub.s32 0, %v563
    %v565 = vrot.slane %v560, %v564
    %v566 = vlaneseq
    %v567 = vshrl.u32 %v566, 7
    %v568 = vsub.s32 1, %v567
    %v569 = vrot.slane %v560, %v568
    %v570 = vlaneseq
    %v571 = vshrl.u32 %v570, 7
    %v572 = vsub.s32 2, %v571
    %v573 = vrot.slane %v560, %v572
    %v574 = vlaneseq
    %v575 = vshrl.u32 %v574, 7
    %v576 = vsub.s32 3, %v575
    %v577 = vrot.slane %v560, %v576
    %v578 = vlaneseq
    %v579 = vshrl.u32 %v578, 7
    %v580 = vsub.s32 4, %v579
    %v581 = vrot.slane %v560, %v580
    %v582 = vlaneseq
    %v583 = vshrl.u32 %v582, 7
    %v584 = vsub.s32 5, %v583
    %v585 = vrot.slane %v560, %v584
    %v586 = vlaneseq
    %v587 = vshrl.u32 %v586, 7
    %v588 = vsub.s32 6, %v587
    %v589 = vrot.slane %v560, %v588
    %v590 = vlaneseq
    %v591 = vshrl.u32 %v590, 7
    %v592 = vsub.s32 7, %v591
    %v593 = vrot.slane %v560, %v592
    %v994 = vunpack.c.l.b16 %v168
    %v995 = vunpack.c.h.b16 %v168
    %v996 = vunpack.c.l.b16 %v169
    %v997 = vunpack.c.h.b16 %v169
    %v998 = vunpack.c.l.b16 %v170
    %v999 = vunpack.c.h.b16 %v170
    %v1000 = vunpack.c.l.b16 %v171
    %v1001 = vunpack.c.h.b16 %v171
    %v1002 = vunpack.c.l.b16 %v172
    %v1003 = vunpack.c.h.b16 %v172
    %v1004 = vunpack.c.l.b16 %v173
    %v1005 = vunpack.c.h.b16 %v173
    %v1006 = vunpack.c.l.b16 %v174
    %v1007 = vunpack.c.h.b16 %v174
    %v1008 = vunpack.c.l.b16 %v175
    %v1009 = vunpack.c.h.b16 %v175
    %v1010 = vunpack.c.l.b16 %v176
    %v1011 = vunpack.c.h.b16 %v176
    %v1012 = vunpack.c.l.b16 %v177
    %v1013 = vunpack.c.h.b16 %v177
    %v1014 = vunpack.c.l.b16 %v178
    %v1015 = vunpack.c.h.b16 %v178
    %v1016 = vunpack.c.l.b16 %v179
    %v1017 = vunpack.c.h.b16 %v179
    %v1018 = vunpack.c.l.b16 %v180
    %v1019 = vunpack.c.h.b16 %v180
    %v1020 = vunpack.c.l.b16 %v181
    %v1021 = vunpack.c.h.b16 %v181
    %v1022 = vunpack.c.l.b16 %v182
    %v1023 = vunpack.c.h.b16 %v182
    %v1024 = vunpack.c.l.b16 %v183
    %v1025 = vunpack.c.h.b16 %v183
    %v1026 = vunpack.c.l.b16 %v184
    %v1027 = vunpack.c.h.b16 %v184
    %v1028 = vunpack.c.l.b16 %v185
    %v1029 = vunpack.c.h.b16 %v185
    %v1030 = vunpack.c.l.b16 %v186
    %v1031 = vunpack.c.h.b16 %v186
    %v1032 = vunpack.c.l.b16 %v187
    %v1033 = vunpack.c.h.b16 %v187
    %v1034 = vunpack.c.l.b16 %v188
    %v1035 = vunpack.c.h.b16 %v188
    %v1036 = vunpack.c.l.b16 %v189
    %v1037 = vunpack.c.h.b16 %v189
    %v1038 = vunpack.c.l.b16 %v190
    %v1039 = vunpack.c.h.b16 %v190
    %v1040 = vunpack.c.l.b16 %v191
    %v1041 = vunpack.c.h.b16 %v191
    %v1042 = vunpack.c.l.b16 %v192
    %v1043 = vunpack.c.h.b16 %v192
    %v1044 = vunpack.c.l.b16 %v193
    %v1045 = vunpack.c.h.b16 %v193
    %v1046 = vunpack.c.l.b16 %v194
    %v1047 = vunpack.c.h.b16 %v194
    %v1048 = vunpack.c.l.b16 %v195
    %v1049 = vunpack.c.h.b16 %v195
    %v1050 = vunpack.c.l.b16 %v196
    %v1051 = vunpack.c.h.b16 %v196
    %v1052 = vunpack.c.l.b16 %v197
    %v1053 = vunpack.c.h.b16 %v197
    %v1054 = vunpack.c.l.b16 %v198
    %v1055 = vunpack.c.h.b16 %v198
    %v1056 = vunpack.c.l.b16 %v199
    %v1057 = vunpack.c.h.b16 %v199
    %v1058 = vunpack.c.l.b16 %v200
    %v1059 = vunpack.c.h.b16 %v200
    %v1060 = vunpack.c.l.b16 %v201
    %v1061 = vunpack.c.h.b16 %v201
    %v1062 = vunpack.c.l.b16 %v202
    %v1063 = vunpack.c.h.b16 %v202
    %v1064 = vunpack.c.l.b16 %v203
    %v1065 = vunpack.c.h.b16 %v203
    %v1066 = vunpack.c.l.b16 %v204
    %v1067 = vunpack.c.h.b16 %v204
    %v1068 = vunpack.c.l.b16 %v205
    %v1069 = vunpack.c.h.b16 %v205
    %v1070 = vunpack.c.l.b16 %v206
    %v1071 = vunpack.c.h.b16 %v206
    %v1072 = vunpack.c.l.b16 %v207
    %v1073 = vunpack.c.h.b16 %v207
    %v1074 = vunpack.c.l.b16 %v208
    %v1075 = vunpack.c.h.b16 %v208
    %v1076 = vunpack.c.l.b16 %v209
    %v1077 = vunpack.c.h.b16 %v209
    %v1078 = vunpack.c.l.b16 %v210
    %v1079 = vunpack.c.h.b16 %v210
    %v1080 = vunpack.c.l.b16 %v211
    %v1081 = vunpack.c.h.b16 %v211
    %v1082 = vunpack.c.l.b16 %v212
    %v1083 = vunpack.c.h.b16 %v212
    %v1084 = vunpack.c.l.b16 %v213
    %v1085 = vunpack.c.h.b16 %v213
    %v1086 = vunpack.c.l.b16 %v214
    %v1087 = vunpack.c.h.b16 %v214
    %v1088 = vunpack.c.l.b16 %v215
    %v1089 = vunpack.c.h.b16 %v215
    %v1090 = vunpack.c.l.b16 %v216
    %v1091 = vunpack.c.h.b16 %v216
    %v1092 = vunpack.c.l.b16 %v217
    %v1093 = vunpack.c.h.b16 %v217
    %v1094 = vunpack.c.l.b16 %v218
    %v1095 = vunpack.c.h.b16 %v218
    %v1096 = vunpack.c.l.b16 %v219
    %v1097 = vunpack.c.h.b16 %v219
    %v1098 = vunpack.c.l.b16 %v220
    %v1099 = vunpack.c.h.b16 %v220
    %v1100 = vunpack.c.l.b16 %v221
    %v1101 = vunpack.c.h.b16 %v221
    %v1102 = vunpack.c.l.b16 %v222
    %v1103 = vunpack.c.h.b16 %v222
    %v1104 = vunpack.c.l.b16 %v223
    %v1105 = vunpack.c.h.b16 %v223
    %v1106 = vunpack.c.l.b16 %v224
    %v1107 = vunpack.c.h.b16 %v224
    %v1108 = vunpack.c.l.b16 %v225
    %v1109 = vunpack.c.h.b16 %v225
    %v1110 = vunpack.c.l.b16 %v226
    %v1111 = vunpack.c.h.b16 %v226
    %v1112 = vunpack.c.l.b16 %v227
    %v1113 = vunpack.c.h.b16 %v227
    %v1114 = vunpack.c.l.b16 %v228
    %v1115 = vunpack.c.h.b16 %v228
    %v1116 = vunpack.c.l.b16 %v229
    %v1117 = vunpack.c.h.b16 %v229
    %v1118 = vunpack.c.l.b16 %v230
    %v1119 = vunpack.c.h.b16 %v230
    %v1120 = vunpack.c.l.b16 %v231
    %v1121 = vunpack.c.h.b16 %v231
    %v1122 = vunpack.c.l.b16 %v232
    %v1123 = vunpack.c.h.b16 %v232
    %v1124 = vunpack.c.l.b16 %v233
    %v1125 = vunpack.c.h.b16 %v233
    %v1126 = vunpack.c.l.b16 %v234
    %v1127 = vunpack.c.h.b16 %v234
    %v1128 = vunpack.c.l.b16 %v235
    %v1129 = vunpack.c.h.b16 %v235
    %v1130 = vunpack.c.l.b16 %v236
    %v1131 = vunpack.c.h.b16 %v236
    %v1132 = vunpack.c.l.b16 %v237
    %v1133 = vunpack.c.h.b16 %v237
    %v1134 = vunpack.c.l.b16 %v238
    %v1135 = vunpack.c.h.b16 %v238
    %v1136 = vunpack.c.l.b16 %v239
    %v1137 = vunpack.c.h.b16 %v239
    %v1138 = vunpack.c.l.b16 %v240
    %v1139 = vunpack.c.h.b16 %v240
    %v1140 = vunpack.c.l.b16 %v241
    %v1141 = vunpack.c.h.b16 %v241
    %v1142 = vunpack.c.l.b16 %v242
    %v1143 = vunpack.c.h.b16 %v242
    %v1144 = vunpack.c.l.b16 %v243
    %v1145 = vunpack.c.h.b16 %v243
    %v1146 = vunpack.c.l.b16 %v244
    %v1147 = vunpack.c.h.b16 %v244
    %v1148 = vunpack.c.l.b16 %v245
    %v1149 = vunpack.c.h.b16 %v245
    %v1150 = vunpack.c.l.b16 %v246
    %v1151 = vunpack.c.h.b16 %v246
    %v1152 = vunpack.c.l.b16 %v247
    %v1153 = vunpack.c.h.b16 %v247
    %v1154 = vunpack.c.l.b16 %v248
    %v1155 = vunpack.c.h.b16 %v248
    %v1156 = vunpack.c.l.b16 %v249
    %v1157 = vunpack.c.h.b16 %v249
    %v1158 = vunpack.c.l.b16 %v250
    %v1159 = vunpack.c.h.b16 %v250
    %v1160 = vunpack.c.l.b16 %v251
    %v1161 = vunpack.c.h.b16 %v251
    %v1162 = vunpack.c.l.b16 %v252
    %v1163 = vunpack.c.h.b16 %v252
    %v1164 = vunpack.c.l.b16 %v253
    %v1165 = vunpack.c.h.b16 %v253
    %v1166 = vunpack.c.l.b16 %v254
    %v1167 = vunpack.c.h.b16 %v254
    %v1168 = vunpack.c.l.b16 %v255
    %v1169 = vunpack.c.h.b16 %v255
    %v1170 = vunpack.c.l.b16 %v256
    %v1171 = vunpack.c.h.b16 %v256
    %v1172 = vunpack.c.l.b16 %v257
    %v1173 = vunpack.c.h.b16 %v257
    %v1174 = vunpack.c.l.b16 %v258
    %v1175 = vunpack.c.h.b16 %v258
    %v1176 = vunpack.c.l.b16 %v259
    %v1177 = vunpack.c.h.b16 %v259
    %v1178 = vunpack.c.l.b16 %v260
    %v1179 = vunpack.c.h.b16 %v260
    %v1180 = vunpack.c.l.b16 %v261
    %v1181 = vunpack.c.h.b16 %v261
    %v1182 = vunpack.c.l.b16 %v262
    %v1183 = vunpack.c.h.b16 %v262
    %v1184 = vunpack.c.l.b16 %v263
    %v1185 = vunpack.c.h.b16 %v263
    %v1186 = vunpack.c.l.b16 %v264
    %v1187 = vunpack.c.h.b16 %v264
    %v1188 = vunpack.c.l.b16 %v265
    %v1189 = vunpack.c.h.b16 %v265
    %v1190 = vunpack.c.l.b16 %v266
    %v1191 = vunpack.c.h.b16 %v266
    %v1192 = vunpack.c.l.b16 %v267
    %v1193 = vunpack.c.h.b16 %v267
    %v1194 = vunpack.c.l.b16 %v268
    %v1195 = vunpack.c.h.b16 %v268
    %v1196 = vunpack.c.l.b16 %v269
    %v1197 = vunpack.c.h.b16 %v269
    %v1198 = vunpack.c.l.b16 %v270
    %v1199 = vunpack.c.h.b16 %v270
    %v1200 = vunpack.c.l.b16 %v271
    %v1201 = vunpack.c.h.b16 %v271
    %v1202 = vunpack.c.l.b16 %v272
    %v1203 = vunpack.c.h.b16 %v272
    %v1204 = vunpack.c.l.b16 %v273
    %v1205 = vunpack.c.h.b16 %v273
    %v1206 = vunpack.c.l.b16 %v274
    %v1207 = vunpack.c.h.b16 %v274
    %v1208 = vunpack.c.l.b16 %v275
    %v1209 = vunpack.c.h.b16 %v275
    %v1210 = vunpack.c.l.b16 %v276
    %v1211 = vunpack.c.h.b16 %v276
    %v1212 = vunpack.c.l.b16 %v277
    %v1213 = vunpack.c.h.b16 %v277
    %v1214 = vunpack.c.l.b16 %v278
    %v1215 = vunpack.c.h.b16 %v278
    %v1216 = vunpack.c.l.b16 %v279
    %v1217 = vunpack.c.h.b16 %v279
    %v1218 = vunpack.c.l.b16 %v280
    %v1219 = vunpack.c.h.b16 %v280
    %v1220 = vunpack.c.l.b16 %v281
    %v1221 = vunpack.c.h.b16 %v281
    %v1222 = vunpack.c.l.b16 %v282
    %v1223 = vunpack.c.h.b16 %v282
    %v1224 = vunpack.c.l.b16 %v283
    %v1225 = vunpack.c.h.b16 %v283
    %v1226 = vunpack.c.l.b16 %v284
    %v1227 = vunpack.c.h.b16 %v284
    %v1228 = vunpack.c.l.b16 %v285
    %v1229 = vunpack.c.h.b16 %v285
    %v1230 = vunpack.c.l.b16 %v286
    %v1231 = vunpack.c.h.b16 %v286
    %v1232 = vunpack.c.l.b16 %v287
    %v1233 = vunpack.c.h.b16 %v287
    %v1234 = vunpack.c.l.b16 %v288
    %v1235 = vunpack.c.h.b16 %v288
    %v1236 = vunpack.c.l.b16 %v289
    %v1237 = vunpack.c.h.b16 %v289
    %v1238 = vunpack.c.l.b16 %v290
    %v1239 = vunpack.c.h.b16 %v290
    %v1240 = vunpack.c.l.b16 %v291
    %v1241 = vunpack.c.h.b16 %v291
    %v1242 = vunpack.c.l.b16 %v292
    %v1243 = vunpack.c.h.b16 %v292
    %v1244 = vunpack.c.l.b16 %v293
    %v1245 = vunpack.c.h.b16 %v293
    %v1246 = vunpack.c.l.b16 %v294
    %v1247 = vunpack.c.h.b16 %v294
    %v1248 = vunpack.c.l.b16 %v295
    %v1249 = vunpack.c.h.b16 %v295
    %v1250 = vunpack.c.l.b16 %v296
    %v1251 = vunpack.c.h.b16 %v296
    %v1252 = vunpack.c.l.b16 %v297
    %v1253 = vunpack.c.h.b16 %v297
    %v1254 = vunpack.c.l.b16 %v298
    %v1255 = vunpack.c.h.b16 %v298
    %v1256 = vunpack.c.l.b16 %v299
    %v1257 = vunpack.c.h.b16 %v299
    %v1258 = vunpack.c.l.b16 %v300
    %v1259 = vunpack.c.h.b16 %v300
    %v1260 = vunpack.c.l.b16 %v301
    %v1261 = vunpack.c.h.b16 %v301
    %v1262 = vunpack.c.l.b16 %v302
    %v1263 = vunpack.c.h.b16 %v302
    %v1264 = vunpack.c.l.b16 %v303
    %v1265 = vunpack.c.h.b16 %v303
    %v1266 = vunpack.c.l.b16 %v304
    %v1267 = vunpack.c.h.b16 %v304
    %v1268 = vunpack.c.l.b16 %v305
    %v1269 = vunpack.c.h.b16 %v305
    %v1270 = vunpack.c.l.b16 %v306
    %v1271 = vunpack.c.h.b16 %v306
    %v1272 = vunpack.c.l.b16 %v307
    %v1273 = vunpack.c.h.b16 %v307
    %v1274 = vunpack.c.l.b16 %v308
    %v1275 = vunpack.c.h.b16 %v308
    %v1276 = vunpack.c.l.b16 %v309
    %v1277 = vunpack.c.h.b16 %v309
    %v1278 = vunpack.c.l.b16 %v310
    %v1279 = vunpack.c.h.b16 %v310
    %v1280 = vunpack.c.l.b16 %v311
    %v1281 = vunpack.c.h.b16 %v311
    %v1282 = vunpack.c.l.b16 %v312
    %v1283 = vunpack.c.h.b16 %v312
    %v1284 = vunpack.c.l.b16 %v313
    %v1285 = vunpack.c.h.b16 %v313
    %v1286 = vunpack.c.l.b16 %v314
    %v1287 = vunpack.c.h.b16 %v314
    %v1288 = vunpack.c.l.b16 %v315
    %v1289 = vunpack.c.h.b16 %v315
    %v1290 = vunpack.c.l.b16 %v316
    %v1291 = vunpack.c.h.b16 %v316
    %v1292 = vunpack.c.l.b16 %v317
    %v1293 = vunpack.c.h.b16 %v317
    %v1294 = vunpack.c.l.b16 %v318
    %v1295 = vunpack.c.h.b16 %v318
    %v1296 = vunpack.c.l.b16 %v319
    %v1297 = vunpack.c.h.b16 %v319
    %v1298 = vunpack.c.l.b16 %v320
    %v1299 = vunpack.c.h.b16 %v320
    %v1300 = vunpack.c.l.b16 %v321
    %v1301 = vunpack.c.h.b16 %v321
    %v1302 = vunpack.c.l.b16 %v322
    %v1303 = vunpack.c.h.b16 %v322
    %v1304 = vunpack.c.l.b16 %v323
    %v1305 = vunpack.c.h.b16 %v323
    %v1306 = vunpack.c.l.b16 %v324
    %v1307 = vunpack.c.h.b16 %v324
    %v1308 = vunpack.c.l.b16 %v325
    %v1309 = vunpack.c.h.b16 %v325
    %v1310 = vunpack.c.l.b16 %v326
    %v1311 = vunpack.c.h.b16 %v326
    %v1312 = vunpack.c.l.b16 %v327
    %v1313 = vunpack.c.h.b16 %v327
    %v1314 = vunpack.c.l.b16 %v328
    %v1315 = vunpack.c.h.b16 %v328
    %v1316 = vunpack.c.l.b16 %v329
    %v1317 = vunpack.c.h.b16 %v329
    %v1318 = vunpack.c.l.b16 %v330
    %v1319 = vunpack.c.h.b16 %v330
    %v1320 = vunpack.c.l.b16 %v331
    %v1321 = vunpack.c.h.b16 %v331
    %v1322 = vunpack.c.l.b16 %v332
    %v1323 = vunpack.c.h.b16 %v332
    %v1324 = vunpack.c.l.b16 %v333
    %v1325 = vunpack.c.h.b16 %v333
    %v1326 = vunpack.c.l.b16 %v334
    %v1327 = vunpack.c.h.b16 %v334
    %v1328 = vunpack.c.l.b16 %v335
    %v1329 = vunpack.c.h.b16 %v335
    %v1330 = vunpack.c.l.b16 %v336
    %v1331 = vunpack.c.h.b16 %v336
    %v1332 = vunpack.c.l.b16 %v337
    %v1333 = vunpack.c.h.b16 %v337
    %v1334 = vunpack.c.l.b16 %v338
    %v1335 = vunpack.c.h.b16 %v338
    %v1336 = vunpack.c.l.b16 %v339
    %v1337 = vunpack.c.h.b16 %v339
    %v1338 = vunpack.c.l.b16 %v340
    %v1339 = vunpack.c.h.b16 %v340
    %v1340 = vunpack.c.l.b16 %v341
    %v1341 = vunpack.c.h.b16 %v341
    %v1342 = vunpack.c.l.b16 %v342
    %v1343 = vunpack.c.h.b16 %v342
    %v1344 = vunpack.c.l.b16 %v343
    %v1345 = vunpack.c.h.b16 %v343
    %v1346 = vunpack.c.l.b16 %v344
    %v1347 = vunpack.c.h.b16 %v344
    %v1348 = vunpack.c.l.b16 %v345
    %v1349 = vunpack.c.h.b16 %v345
    %v1350 = vunpack.c.l.b16 %v346
    %v1351 = vunpack.c.h.b16 %v346
    %v1352 = vunpack.c.l.b16 %v347
    %v1353 = vunpack.c.h.b16 %v347
    %v1354 = vunpack.c.l.b16 %v348
    %v1355 = vunpack.c.h.b16 %v348
    %v1356 = vunpack.c.l.b16 %v349
    %v1357 = vunpack.c.h.b16 %v349
    %v1358 = vunpack.c.l.b16 %v350
    %v1359 = vunpack.c.h.b16 %v350
    %v1360 = vunpack.c.l.b16 %v351
    %v1361 = vunpack.c.h.b16 %v351
    %v1362 = vunpack.c.l.b16 %v352
    %v1363 = vunpack.c.h.b16 %v352
    %v1364 = vunpack.c.l.b16 %v353
    %v1365 = vunpack.c.h.b16 %v353
    %v1366 = vunpack.c.l.b16 %v354
    %v1367 = vunpack.c.h.b16 %v354
    %v1368 = vunpack.c.l.b16 %v355
    %v1369 = vunpack.c.h.b16 %v355
    %v1370 = vunpack.c.l.b16 %v356
    %v1371 = vunpack.c.h.b16 %v356
    %v1372 = vunpack.c.l.b16 %v357
    %v1373 = vunpack.c.h.b16 %v357
    %v1374 = vunpack.c.l.b16 %v358
    %v1375 = vunpack.c.h.b16 %v358
    %v1376 = vunpack.c.l.b16 %v359
    %v1377 = vunpack.c.h.b16 %v359
    %v1378 = vunpack.c.l.b16 %v360
    %v1379 = vunpack.c.h.b16 %v360
    %v1380 = vunpack.c.l.b16 %v361
    %v1381 = vunpack.c.h.b16 %v361
    %v1382 = vunpack.c.l.b16 %v362
    %v1383 = vunpack.c.h.b16 %v362
    %v1384 = vunpack.c.l.b16 %v363
    %v1385 = vunpack.c.h.b16 %v363
    %v1386 = vunpack.c.l.b16 %v364
    %v1387 = vunpack.c.h.b16 %v364
    %v1388 = vunpack.c.l.b16 %v365
    %v1389 = vunpack.c.h.b16 %v365
    %v1390 = vunpack.c.l.b16 %v366
    %v1391 = vunpack.c.h.b16 %v366
    %v1392 = vunpack.c.l.b16 %v367
    %v1393 = vunpack.c.h.b16 %v367
    %v1394 = vunpack.c.l.b16 %v368
    %v1395 = vunpack.c.h.b16 %v368
    %v1396 = vunpack.c.l.b16 %v369
    %v1397 = vunpack.c.h.b16 %v369
    %v1398 = vunpack.c.l.b16 %v370
    %v1399 = vunpack.c.h.b16 %v370
    %v1400 = vunpack.c.l.b16 %v371
    %v1401 = vunpack.c.h.b16 %v371
    %v1402 = vunpack.c.l.b16 %v372
    %v1403 = vunpack.c.h.b16 %v372
    %v1404 = vunpack.c.l.b16 %v373
    %v1405 = vunpack.c.h.b16 %v373
    %v1406 = vunpack.c.l.b16 %v374
    %v1407 = vunpack.c.h.b16 %v374
    %v1408 = vunpack.c.l.b16 %v375
    %v1409 = vunpack.c.h.b16 %v375
    %v1410 = vunpack.c.l.b16 %v376
    %v1411 = vunpack.c.h.b16 %v376
    %v1412 = vunpack.c.l.b16 %v377
    %v1413 = vunpack.c.h.b16 %v377
    %v1414 = vunpack.c.l.b16 %v378
    %v1415 = vunpack.c.h.b16 %v378
    %v1416 = vunpack.c.l.b16 %v379
    %v1417 = vunpack.c.h.b16 %v379
    %v1418 = vunpack.c.l.b16 %v380
    %v1419 = vunpack.c.h.b16 %v380
    %v1420 = vunpack.c.l.b16 %v381
    %v1421 = vunpack.c.h.b16 %v381
    %v1422 = vunpack.c.l.b16 %v382
    %v1423 = vunpack.c.h.b16 %v382
    %v1424 = vunpack.c.l.b16 %v383
    %v1425 = vunpack.c.h.b16 %v383
    %v1426 = vunpack.c.l.b16 %v384
    %v1427 = vunpack.c.h.b16 %v384
    %v1428 = vunpack.c.l.b16 %v385
    %v1429 = vunpack.c.h.b16 %v385
    %v1430 = vunpack.c.l.b16 %v386
    %v1431 = vunpack.c.h.b16 %v386
    %v1432 = vunpack.c.l.b16 %v387
    %v1433 = vunpack.c.h.b16 %v387
    %v1434 = vunpack.c.l.b16 %v388
    %v1435 = vunpack.c.h.b16 %v388
    %v1436 = vunpack.c.l.b16 %v389
    %v1437 = vunpack.c.h.b16 %v389
    %v1438 = vunpack.c.l.b16 %v390
    %v1439 = vunpack.c.h.b16 %v390
    %v1440 = vunpack.c.l.b16 %v391
    %v1441 = vunpack.c.h.b16 %v391
    %v1442 = vunpack.c.l.b16 %v392
    %v1443 = vunpack.c.h.b16 %v392
    %v1444 = vunpack.c.l.b16 %v393
    %v1445 = vunpack.c.h.b16 %v393
    %v1446 = vunpack.c.l.b16 %v394
    %v1447 = vunpack.c.h.b16 %v394
    %v1448 = vunpack.c.l.b16 %v395
    %v1449 = vunpack.c.h.b16 %v395
    %v1450 = vunpack.c.l.b16 %v396
    %v1451 = vunpack.c.h.b16 %v396
    %v1452 = vunpack.c.l.b16 %v397
    %v1453 = vunpack.c.h.b16 %v397
    %v1454 = vunpack.c.l.b16 %v398
    %v1455 = vunpack.c.h.b16 %v398
    %v1456 = vunpack.c.l.b16 %v399
    %v1457 = vunpack.c.h.b16 %v399
    %v1458 = vunpack.c.l.b16 %v400
    %v1459 = vunpack.c.h.b16 %v400
    %v1460 = vunpack.c.l.b16 %v401
    %v1461 = vunpack.c.h.b16 %v401
    %v1462 = vunpack.c.l.b16 %v402
    %v1463 = vunpack.c.h.b16 %v402
    %v1464 = vunpack.c.l.b16 %v403
    %v1465 = vunpack.c.h.b16 %v403
    %v1466 = vunpack.c.l.b16 %v404
    %v1467 = vunpack.c.h.b16 %v404
    %v1468 = vunpack.c.l.b16 %v405
    %v1469 = vunpack.c.h.b16 %v405
    %v1470 = vunpack.c.l.b16 %v406
    %v1471 = vunpack.c.h.b16 %v406
    %v1472 = vunpack.c.l.b16 %v407
    %v1473 = vunpack.c.h.b16 %v407
    %v1474 = vunpack.c.l.b16 %v408
    %v1475 = vunpack.c.h.b16 %v408
    %v1476 = vunpack.c.l.b16 %v409
    %v1477 = vunpack.c.h.b16 %v409
    %v1478 = vunpack.c.l.b16 %v410
    %v1479 = vunpack.c.h.b16 %v410
    %v1480 = vunpack.c.l.b16 %v411
    %v1481 = vunpack.c.h.b16 %v411
    %v1482 = vunpack.c.l.b16 %v412
    %v1483 = vunpack.c.h.b16 %v412
    %v1484 = vunpack.c.l.b16 %v413
    %v1485 = vunpack.c.h.b16 %v413
    %v1486 = vunpack.c.l.b16 %v414
    %v1487 = vunpack.c.h.b16 %v414
    %v1488 = vunpack.c.l.b16 %v415
    %v1489 = vunpack.c.h.b16 %v415
    %v1490 = vunpack.c.l.b16 %v416
    %v1491 = vunpack.c.h.b16 %v416
    %v1492 = vunpack.c.l.b16 %v417
    %v1493 = vunpack.c.h.b16 %v417
    %v1494 = vunpack.c.l.b16 %v418
    %v1495 = vunpack.c.h.b16 %v418
    %v1496 = vunpack.c.l.b16 %v419
    %v1497 = vunpack.c.h.b16 %v419
    %v1498 = vunpack.c.l.b16 %v420
    %v1499 = vunpack.c.h.b16 %v420
    %v1500 = vunpack.c.l.b16 %v421
    %v1501 = vunpack.c.h.b16 %v421
    %v1502 = vunpack.c.l.b16 %v422
    %v1503 = vunpack.c.h.b16 %v422
    %v1504 = vunpack.c.l.b16 %v423
    %v1505 = vunpack.c.h.b16 %v423
    %v1506 = vunpack.c.l.b16 %v424
    %v1507 = vunpack.c.h.b16 %v424
    %v1508 = vunpack.c.l.b16 %v425
    %v1509 = vunpack.c.h.b16 %v425
    %v1510 = vunpack.c.l.b16 %v426
    %v1511 = vunpack.c.h.b16 %v426
    %v1512 = vunpack.c.l.b16 %v427
    %v1513 = vunpack.c.h.b16 %v427
    %v1514 = vunpack.c.l.b16 %v428
    %v1515 = vunpack.c.h.b16 %v428
    %v1516 = vunpack.c.l.b16 %v429
    %v1517 = vunpack.c.h.b16 %v429
    %v1518 = vunpack.c.l.b16 %v430
    %v1519 = vunpack.c.h.b16 %v430
    %v1520 = vunpack.c.l.b16 %v431
    %v1521 = vunpack.c.h.b16 %v431
    %v1522 = vunpack.c.l.b16 %v432
    %v1523 = vunpack.c.h.b16 %v432
    %v1524 = vunpack.c.l.b16 %v433
    %v1525 = vunpack.c.h.b16 %v433
    %v1526 = vunpack.c.l.b16 %v434
    %v1527 = vunpack.c.h.b16 %v434
    %v1528 = vunpack.c.l.b16 %v435
    %v1529 = vunpack.c.h.b16 %v435
    %v1530 = vunpack.c.l.b16 %v436
    %v1531 = vunpack.c.h.b16 %v436
    %v1532 = vunpack.c.l.b16 %v437
    %v1533 = vunpack.c.h.b16 %v437
    %v1534 = vunpack.c.l.b16 %v438
    %v1535 = vunpack.c.h.b16 %v438
    %v1536 = vunpack.c.l.b16 %v439
    %v1537 = vunpack.c.h.b16 %v439
    %v1538 = vunpack.c.l.b16 %v440
    %v1539 = vunpack.c.h.b16 %v440
    %v1540 = vunpack.c.l.b16 %v441
    %v1541 = vunpack.c.h.b16 %v441
    %v1542 = vunpack.c.l.b16 %v442
    %v1543 = vunpack.c.h.b16 %v442
    %v1544 = vunpack.c.l.b16 %v443
    %v1545 = vunpack.c.h.b16 %v443
    %v1546 = vunpack.c.l.b16 %v444
    %v1547 = vunpack.c.h.b16 %v444
    %v1548 = vunpack.c.l.b16 %v445
    %v1549 = vunpack.c.h.b16 %v445
    %v1550 = vunpack.c.l.b16 %v446
    %v1551 = vunpack.c.h.b16 %v446
    %v1552 = vunpack.c.l.b16 %v447
    %v1553 = vunpack.c.h.b16 %v447
    %v1554 = vunpack.c.l.b16 %v448
    %v1555 = vunpack.c.h.b16 %v448
    %v1556 = vunpack.c.l.b16 %v449
    %v1557 = vunpack.c.h.b16 %v449
    %v1558 = vunpack.c.l.b16 %v450
    %v1559 = vunpack.c.h.b16 %v450
    %v1560 = vunpack.c.l.b16 %v451
    %v1561 = vunpack.c.h.b16 %v451
    %v1562 = vunpack.c.l.b16 %v452
    %v1563 = vunpack.c.h.b16 %v452
    %v1564 = vunpack.c.l.b16 %v453
    %v1565 = vunpack.c.h.b16 %v453
    %v1566 = vunpack.c.l.b16 %v454
    %v1567 = vunpack.c.h.b16 %v454
    %v1568 = vunpack.c.l.b16 %v455
    %v1569 = vunpack.c.h.b16 %v455
    %v1570 = vunpack.c.l.b16 %v456
    %v1571 = vunpack.c.h.b16 %v456
    %v1572 = vunpack.c.l.b16 %v457
    %v1573 = vunpack.c.h.b16 %v457
    %v1574 = vunpack.c.l.b16 %v458
    %v1575 = vunpack.c.h.b16 %v458
    %v1576 = vunpack.c.l.b16 %v459
    %v1577 = vunpack.c.h.b16 %v459
    %v1578 = vunpack.c.l.b16 %v460
    %v1579 = vunpack.c.h.b16 %v460
    %v1580 = vunpack.c.l.b16 %v461
    %v1581 = vunpack.c.h.b16 %v461
    %v1582 = vunpack.c.l.b16 %v462
    %v1583 = vunpack.c.h.b16 %v462
    %v1584 = vunpack.c.l.b16 %v463
    %v1585 = vunpack.c.h.b16 %v463
    %v1586 = vunpack.c.l.b16 %v464
    %v1587 = vunpack.c.h.b16 %v464
    %v1588 = vunpack.c.l.b16 %v465
    %v1589 = vunpack.c.h.b16 %v465
    %v1590 = vunpack.c.l.b16 %v466
    %v1591 = vunpack.c.h.b16 %v466
    %v1592 = vunpack.c.l.b16 %v467
    %v1593 = vunpack.c.h.b16 %v467
    %v1594 = vunpack.c.l.b16 %v468
    %v1595 = vunpack.c.h.b16 %v468
    %v1596 = vunpack.c.l.b16 %v469
    %v1597 = vunpack.c.h.b16 %v469
    %v1598 = vunpack.c.l.b16 %v470
    %v1599 = vunpack.c.h.b16 %v470
    %v1600 = vunpack.c.l.b16 %v471
    %v1601 = vunpack.c.h.b16 %v471
    %v1602 = vunpack.c.l.b16 %v472
    %v1603 = vunpack.c.h.b16 %v472
    %v1604 = vunpack.c.l.b16 %v473
    %v1605 = vunpack.c.h.b16 %v473
    %v1606 = vunpack.c.l.b16 %v474
    %v1607 = vunpack.c.h.b16 %v474
    %v1608 = vunpack.c.l.b16 %v475
    %v1609 = vunpack.c.h.b16 %v475
    %v1610 = vunpack.c.l.b16 %v476
    %v1611 = vunpack.c.h.b16 %v476
    %v1612 = vunpack.c.l.b16 %v477
    %v1613 = vunpack.c.h.b16 %v477
    %v1614 = vunpack.c.l.b16 %v478
    %v1615 = vunpack.c.h.b16 %v478
    %v1616 = vunpack.c.l.b16 %v479
    %v1617 = vunpack.c.h.b16 %v479
    %v1618 = vunpack.c.l.b16 %v480
    %v1619 = vunpack.c.h.b16 %v480
    %v1620 = vunpack.c.l.b16 %v481
    %v1621 = vunpack.c.h.b16 %v481
    %v1622 = vunpack.c.l.b16 %v482
    %v1623 = vunpack.c.h.b16 %v482
    %v1624 = vunpack.c.l.b16 %v483
    %v1625 = vunpack.c.h.b16 %v483
    %v1626 = vunpack.c.l.b16 %v484
    %v1627 = vunpack.c.h.b16 %v484
    %v1628 = vunpack.c.l.b16 %v485
    %v1629 = vunpack.c.h.b16 %v485
    %v1630 = vunpack.c.l.b16 %v486
    %v1631 = vunpack.c.h.b16 %v486
    %v1632 = vunpack.c.l.b16 %v487
    %v1633 = vunpack.c.h.b16 %v487
    %v1634 = vunpack.c.l.b16 %v488
    %v1635 = vunpack.c.h.b16 %v488
    %v1636 = vunpack.c.l.b16 %v489
    %v1637 = vunpack.c.h.b16 %v489
    %v1638 = vunpack.c.l.b16 %v490
    %v1639 = vunpack.c.h.b16 %v490
    %v1640 = vunpack.c.l.b16 %v491
    %v1641 = vunpack.c.h.b16 %v491
    %v1642 = vunpack.c.l.b16 %v492
    %v1643 = vunpack.c.h.b16 %v492
    %v1644 = vunpack.c.l.b16 %v493
    %v1645 = vunpack.c.h.b16 %v493
    %v1646 = vunpack.c.l.b16 %v494
    %v1647 = vunpack.c.h.b16 %v494
    %v1648 = vunpack.c.l.b16 %v495
    %v1649 = vunpack.c.h.b16 %v495
    %v1650 = vunpack.c.l.b16 %v496
    %v1651 = vunpack.c.h.b16 %v496
    %v1652 = vunpack.c.l.b16 %v497
    %v1653 = vunpack.c.h.b16 %v497
    %v1654 = vunpack.c.l.b16 %v498
    %v1655 = vunpack.c.h.b16 %v498
    %v1656 = vunpack.c.l.b16 %v499
    %v1657 = vunpack.c.h.b16 %v499
    %v1658 = vunpack.c.l.b16 %v500
    %v1659 = vunpack.c.h.b16 %v500
    %v1660 = vunpack.c.l.b16 %v501
    %v1661 = vunpack.c.h.b16 %v501
    %v1662 = vunpack.c.l.b16 %v502
    %v1663 = vunpack.c.h.b16 %v502
    %v1664 = vunpack.c.l.b16 %v503
    %v1665 = vunpack.c.h.b16 %v503
    %v1666 = vunpack.c.l.b16 %v504
    %v1667 = vunpack.c.h.b16 %v504
    %v1668 = vunpack.c.l.b16 %v505
    %v1669 = vunpack.c.h.b16 %v505
    %v1670 = vunpack.c.l.b16 %v506
    %v1671 = vunpack.c.h.b16 %v506
    %v1672 = vunpack.c.l.b16 %v507
    %v1673 = vunpack.c.h.b16 %v507
    %v1674 = vunpack.c.l.b16 %v508
    %v1675 = vunpack.c.h.b16 %v508
    %v1676 = vunpack.c.l.b16 %v509
    %v1677 = vunpack.c.h.b16 %v509
    %v1678 = vunpack.c.l.b16 %v510
    %v1679 = vunpack.c.h.b16 %v510
    %v1680 = vunpack.c.l.b16 %v511
    %v1681 = vunpack.c.h.b16 %v511
    %v1682 = vunpack.c.l.b16 %v512
    %v1683 = vunpack.c.h.b16 %v512
    %v1684 = vunpack.c.l.b16 %v513
    %v1685 = vunpack.c.h.b16 %v513
    %v1686 = vunpack.c.l.b16 %v514
    %v1687 = vunpack.c.h.b16 %v514
    %v1688 = vunpack.c.l.b16 %v515
    %v1689 = vunpack.c.h.b16 %v515
    %v1690 = vunpack.c.l.b16 %v516
    %v1691 = vunpack.c.h.b16 %v516
    %v1692 = vunpack.c.l.b16 %v517
    %v1693 = vunpack.c.h.b16 %v517
    %v1694 = vunpack.c.l.b16 %v518
    %v1695 = vunpack.c.h.b16 %v518
    %v1696 = vunpack.c.l.b16 %v519
    %v1697 = vunpack.c.h.b16 %v519
    %v1698 = vunpack.c.l.b16 %v520
    %v1699 = vunpack.c.h.b16 %v520
    %v1700 = vunpack.c.l.b16 %v521
    %v1701 = vunpack.c.h.b16 %v521
    %v1702 = vunpack.c.l.b16 %v522
    %v1703 = vunpack.c.h.b16 %v522
    %v1704 = vunpack.c.l.b16 %v523
    %v1705 = vunpack.c.h.b16 %v523
    %v1706 = vunpack.c.l.b16 %v524
    %v1707 = vunpack.c.h.b16 %v524
    %v1708 = vunpack.c.l.b16 %v525
    %v1709 = vunpack.c.h.b16 %v525
    %v1710 = vunpack.c.l.b16 %v526
    %v1711 = vunpack.c.h.b16 %v526
    %v1712 = vunpack.c.l.b16 %v527
    %v1713 = vunpack.c.h.b16 %v527
    %v1714 = vunpack.c.l.b16 %v528
    %v1715 = vunpack.c.h.b16 %v528
    %v1716 = vunpack.c.l.b16 %v529
    %v1717 = vunpack.c.h.b16 %v529
    %v1718 = vunpack.c.l.b16 %v530
    %v1719 = vunpack.c.h.b16 %v530
    %v1720 = vunpack.c.l.b16 %v531
    %v1721 = vunpack.c.h.b16 %v531
    %v1722 = vunpack.c.l.b16 %v532
    %v1723 = vunpack.c.h.b16 %v532
    %v1724 = vunpack.c.l.b16 %v533
    %v1725 = vunpack.c.h.b16 %v533
    %v1726 = vunpack.c.l.b16 %v534
    %v1727 = vunpack.c.h.b16 %v534
    %v1728 = vunpack.c.l.b16 %v535
    %v1729 = vunpack.c.h.b16 %v535
    %v1730 = vunpack.c.l.b16 %v536
    %v1731 = vunpack.c.h.b16 %v536
    %v1732 = vunpack.c.l.b16 %v537
    %v1733 = vunpack.c.h.b16 %v537
    %v1734 = vunpack.c.l.b16 %v538
    %v1735 = vunpack.c.h.b16 %v538
    %v1736 = vunpack.c.l.b16 %v539
    %v1737 = vunpack.c.h.b16 %v539
    %v1738 = vunpack.c.l.b16 %v540
    %v1739 = vunpack.c.h.b16 %v540
    %v1740 = vunpack.c.l.b16 %v541
    %v1741 = vunpack.c.h.b16 %v541
    %v1742 = vunpack.c.l.b16 %v542
    %v1743 = vunpack.c.h.b16 %v542
    %v1744 = vunpack.c.l.b16 %v543
    %v1745 = vunpack.c.h.b16 %v543
    %v1746 = vunpack.c.l.b16 %v544
    %v1747 = vunpack.c.h.b16 %v544
    %v1748 = vunpack.c.l.b16 %v545
    %v1749 = vunpack.c.h.b16 %v545
    %v1750 = vunpack.c.l.b16 %v546
    %v1751 = vunpack.c.h.b16 %v546
    %v1752 = vunpack.c.l.b16 %v547
    %v1753 = vunpack.c.h.b16 %v547
    %v1754 = vunpack.c.l.b16 %v548
    %v1755 = vunpack.c.h.b16 %v548
    %v1756 = vunpack.c.l.b16 %v549
    %v1757 = vunpack.c.h.b16 %v549
    %v1758 = vunpack.c.l.b16 %v550
    %v1759 = vunpack.c.h.b16 %v550
    %v1760 = vunpack.c.l.b16 %v551
    %v1761 = vunpack.c.h.b16 %v551
    %v1762 = vunpack.c.l.b16 %v552
    %v1763 = vunpack.c.h.b16 %v552
    %v1764 = vunpack.c.l.b16 %v553
    %v1765 = vunpack.c.h.b16 %v553
    %v1766 = vunpack.c.l.b16 %v554
    %v1767 = vunpack.c.h.b16 %v554
    %v1768 = vunpack.c.l.b16 %v555
    %v1769 = vunpack.c.h.b16 %v555
    %v1770 = vunpack.c.l.b16 %v556
    %v1771 = vunpack.c.h.b16 %v556
    %v1772 = vunpack.c.l.b16 %v557
    %v1773 = vunpack.c.h.b16 %v557
    %v1774 = vunpack.c.l.b16 %v558
    %v1775 = vunpack.c.h.b16 %v558
    %v1776 = vunpack.c.l.b16 %v559
    %v1777 = vunpack.c.h.b16 %v559
    %v1778 = vpack.c.b16 %v1002, %v994
    %v1779 = vpack.c.b16 %v1003, %v995
    %v1780 = vpack.c.b16 %v1004, %v996
    %v1781 = vpack.c.b16 %v1005, %v997
    %v1782 = vpack.c.b16 %v1006, %v998
    %v1783 = vpack.c.b16 %v1007, %v999
    %v1784 = vpack.c.b16 %v1008, %v1000
    %v1785 = vpack.c.b16 %v1009, %v1001
    %v1786 = vpack.c.b16 %v1018, %v1010
    %v1787 = vpack.c.b16 %v1019, %v1011
    %v1788 = vpack.c.b16 %v1020, %v1012
    %v1789 = vpack.c.b16 %v1021, %v1013
    %v1790 = vpack.c.b16 %v1022, %v1014
    %v1791 = vpack.c.b16 %v1023, %v1015
    %v1792 = vpack.c.b16 %v1024, %v1016
    %v1793 = vpack.c.b16 %v1025, %v1017
    %v1794 = vpack.c.b16 %v1034, %v1026
    %v1795 = vpack.c.b16 %v1035, %v1027
    %v1796 = vpack.c.b16 %v1036, %v1028
    %v1797 = vpack.c.b16 %v1037, %v1029
    %v1798 = vpack.c.b16 %v1038, %v1030
    %v1799 = vpack.c.b16 %v1039, %v1031
    %v1800 = vpack.c.b16 %v1040, %v1032
    %v1801 = vpack.c.b16 %v1041, %v1033
    %v1802 = vpack.c.b16 %v1050, %v1042
    %v1803 = vpack.c.b16 %v1051, %v1043
    %v1804 = vpack.c.b16 %v1052, %v1044
    %v1805 = vpack.c.b16 %v1053, %v1045
    %v1806 = vpack.c.b16 %v1054, %v1046
    %v1807 = vpack.c.b16 %v1055, %v1047
    %v1808 = vpack.c.b16 %v1056, %v1048
    %v1809 = vpack.c.b16 %v1057, %v1049
    %v1810 = vpack.c.b16 %v1066, %v1058
    %v1811 = vpack.c.b16 %v1067, %v1059
    %v1812 = vpack.c.b16 %v1068, %v1060
    %v1813 = vpack.c.b16 %v1069, %v1061
    %v1814 = vpack.c.b16 %v1070, %v1062
    %v1815 = vpack.c.b16 %v1071, %v1063
    %v1816 = vpack.c.b16 %v1072, %v1064
    %v1817 = vpack.c.b16 %v1073, %v1065
    %v1818 = vpack.c.b16 %v1082, %v1074
    %v1819 = vpack.c.b16 %v1083, %v1075
    %v1820 = vpack.c.b16 %v1084, %v1076
    %v1821 = vpack.c.b16 %v1085, %v1077
    %v1822 = vpack.c.b16 %v1086, %v1078
    %v1823 = vpack.c.b16 %v1087, %v1079
    %v1824 = vpack.c.b16 %v1088, %v1080
    %v1825 = vpack.c.b16 %v1089, %v1081
    %v1826 = vpack.c.b16 %v1098, %v1090
    %v1827 = vpack.c.b16 %v1099, %v1091
    %v1828 = vpack.c.b16 %v1100, %v1092
    %v1829 = vpack.c.b16 %v1101, %v1093
    %v1830 = vpack.c.b16 %v1102, %v1094
    %v1831 = vpack.c.b16 %v1103, %v1095
    %v1832 = vpack.c.b16 %v1104, %v1096
    %v1833 = vpack.c.b16 %v1105, %v1097
    %v1834 = vpack.c.b16 %v1114, %v1106
    %v1835 = vpack.c.b16 %v1115, %v1107
    %v1836 = vpack.c.b16 %v1116, %v1108
    %v1837 = vpack.c.b16 %v1117, %v1109
    %v1838 = vpack.c.b16 %v1118, %v1110
    %v1839 = vpack.c.b16 %v1119, %v1111
    %v1840 = vpack.c.b16 %v1120, %v1112
    %v1841 = vpack.c.b16 %v1121, %v1113
    %v1842 = vpack.c.b16 %v1130, %v1122
    %v1843 = vpack.c.b16 %v1131, %v1123
    %v1844 = vpack.c.b16 %v1132, %v1124
    %v1845 = vpack.c.b16 %v1133, %v1125
    %v1846 = vpack.c.b16 %v1134, %v1126
    %v1847 = vpack.c.b16 %v1135, %v1127
    %v1848 = vpack.c.b16 %v1136, %v1128
    %v1849 = vpack.c.b16 %v1137, %v1129
    %v1850 = vpack.c.b16 %v1146, %v1138
    %v1851 = vpack.c.b16 %v1147, %v1139
    %v1852 = vpack.c.b16 %v1148, %v1140
    %v1853 = vpack.c.b16 %v1149, %v1141
    %v1854 = vpack.c.b16 %v1150, %v1142
    %v1855 = vpack.c.b16 %v1151, %v1143
    %v1856 = vpack.c.b16 %v1152, %v1144
    %v1857 = vpack.c.b16 %v1153, %v1145
    %v1858 = vpack.c.b16 %v1162, %v1154
    %v1859 = vpack.c.b16 %v1163, %v1155
    %v1860 = vpack.c.b16 %v1164, %v1156
    %v1861 = vpack.c.b16 %v1165, %v1157
    %v1862 = vpack.c.b16 %v1166, %v1158
    %v1863 = vpack.c.b16 %v1167, %v1159
    %v1864 = vpack.c.b16 %v1168, %v1160
    %v1865 = vpack.c.b16 %v1169, %v1161
    %v1866 = vpack.c.b16 %v1178, %v1170
    %v1867 = vpack.c.b16 %v1179, %v1171
    %v1868 = vpack.c.b16 %v1180, %v1172
    %v1869 = vpack.c.b16 %v1181, %v1173
    %v1870 = vpack.c.b16 %v1182, %v1174
    %v1871 = vpack.c.b16 %v1183, %v1175
    %v1872 = vpack.c.b16 %v1184, %v1176
    %v1873 = vpack.c.b16 %v1185, %v1177
    %v1874 = vpack.c.b16 %v1194, %v1186
    %v1875 = vpack.c.b16 %v1195, %v1187
    %v1876 = vpack.c.b16 %v1196, %v1188
    %v1877 = vpack.c.b16 %v1197, %v1189
    %v1878 = vpack.c.b16 %v1198, %v1190
    %v1879 = vpack.c.b16 %v1199, %v1191
    %v1880 = vpack.c.b16 %v1200, %v1192
    %v1881 = vpack.c.b16 %v1201, %v1193
    %v1882 = vpack.c.b16 %v1210, %v1202
    %v1883 = vpack.c.b16 %v1211, %v1203
    %v1884 = vpack.c.b16 %v1212, %v1204
    %v1885 = vpack.c.b16 %v1213, %v1205
    %v1886 = vpack.c.b16 %v1214, %v1206
    %v1887 = vpack.c.b16 %v1215, %v1207
    %v1888 = vpack.c.b16 %v1216, %v1208
    %v1889 = vpack.c.b16 %v1217, %v1209
    %v1890 = vpack.c.b16 %v1226, %v1218
    %v1891 = vpack.c.b16 %v1227, %v1219
    %v1892 = vpack.c.b16 %v1228, %v1220
    %v1893 = vpack.c.b16 %v1229, %v1221
    %v1894 = vpack.c.b16 %v1230, %v1222
    %v1895 = vpack.c.b16 %v1231, %v1223
    %v1896 = vpack.c.b16 %v1232, %v1224
    %v1897 = vpack.c.b16 %v1233, %v1225
    %v1898 = vpack.c.b16 %v1242, %v1234
    %v1899 = vpack.c.b16 %v1243, %v1235
    %v1900 = vpack.c.b16 %v1244, %v1236
    %v1901 = vpack.c.b16 %v1245, %v1237
    %v1902 = vpack.c.b16 %v1246, %v1238
    %v1903 = vpack.c.b16 %v1247, %v1239
    %v1904 = vpack.c.b16 %v1248, %v1240
    %v1905 = vpack.c.b16 %v1249, %v1241
    %v1906 = vpack.c.b16 %v1258, %v1250
    %v1907 = vpack.c.b16 %v1259, %v1251
    %v1908 = vpack.c.b16 %v1260, %v1252
    %v1909 = vpack.c.b16 %v1261, %v1253
    %v1910 = vpack.c.b16 %v1262, %v1254
    %v1911 = vpack.c.b16 %v1263, %v1255
    %v1912 = vpack.c.b16 %v1264, %v1256
    %v1913 = vpack.c.b16 %v1265, %v1257
    %v1914 = vpack.c.b16 %v1274, %v1266
    %v1915 = vpack.c.b16 %v1275, %v1267
    %v1916 = vpack.c.b16 %v1276, %v1268
    %v1917 = vpack.c.b16 %v1277, %v1269
    %v1918 = vpack.c.b16 %v1278, %v1270
    %v1919 = vpack.c.b16 %v1279, %v1271
    %v1920 = vpack.c.b16 %v1280, %v1272
    %v1921 = vpack.c.b16 %v1281, %v1273
    %v1922 = vpack.c.b16 %v1290, %v1282
    %v1923 = vpack.c.b16 %v1291, %v1283
    %v1924 = vpack.c.b16 %v1292, %v1284
    %v1925 = vpack.c.b16 %v1293, %v1285
    %v1926 = vpack.c.b16 %v1294, %v1286
    %v1927 = vpack.c.b16 %v1295, %v1287
    %v1928 = vpack.c.b16 %v1296, %v1288
    %v1929 = vpack.c.b16 %v1297, %v1289
    %v1930 = vpack.c.b16 %v1306, %v1298
    %v1931 = vpack.c.b16 %v1307, %v1299
    %v1932 = vpack.c.b16 %v1308, %v1300
    %v1933 = vpack.c.b16 %v1309, %v1301
    %v1934 = vpack.c.b16 %v1310, %v1302
    %v1935 = vpack.c.b16 %v1311, %v1303
    %v1936 = vpack.c.b16 %v1312, %v1304
    %v1937 = vpack.c.b16 %v1313, %v1305
    %v1938 = vpack.c.b16 %v1322, %v1314
    %v1939 = vpack.c.b16 %v1323, %v1315
    %v1940 = vpack.c.b16 %v1324, %v1316
    %v1941 = vpack.c.b16 %v1325, %v1317
    %v1942 = vpack.c.b16 %v1326, %v1318
    %v1943 = vpack.c.b16 %v1327, %v1319
    %v1944 = vpack.c.b16 %v1328, %v1320
    %v1945 = vpack.c.b16 %v1329, %v1321
    %v1946 = vpack.c.b16 %v1338, %v1330
    %v1947 = vpack.c.b16 %v1339, %v1331
    %v1948 = vpack.c.b16 %v1340, %v1332
    %v1949 = vpack.c.b16 %v1341, %v1333
    %v1950 = vpack.c.b16 %v1342, %v1334
    %v1951 = vpack.c.b16 %v1343, %v1335
    %v1952 = vpack.c.b16 %v1344, %v1336
    %v1953 = vpack.c.b16 %v1345, %v1337
    %v1954 = vpack.c.b16 %v1354, %v1346
    %v1955 = vpack.c.b16 %v1355, %v1347
    %v1956 = vpack.c.b16 %v1356, %v1348
    %v1957 = vpack.c.b16 %v1357, %v1349
    %v1958 = vpack.c.b16 %v1358, %v1350
    %v1959 = vpack.c.b16 %v1359, %v1351
    %v1960 = vpack.c.b16 %v1360, %v1352
    %v1961 = vpack.c.b16 %v1361, %v1353
    %v1962 = vpack.c.b16 %v1370, %v1362
    %v1963 = vpack.c.b16 %v1371, %v1363
    %v1964 = vpack.c.b16 %v1372, %v1364
    %v1965 = vpack.c.b16 %v1373, %v1365
    %v1966 = vpack.c.b16 %v1374, %v1366
    %v1967 = vpack.c.b16 %v1375, %v1367
    %v1968 = vpack.c.b16 %v1376, %v1368
    %v1969 = vpack.c.b16 %v1377, %v1369
    %v1970 = vpack.c.b16 %v1386, %v1378
    %v1971 = vpack.c.b16 %v1387, %v1379
    %v1972 = vpack.c.b16 %v1388, %v1380
    %v1973 = vpack.c.b16 %v1389, %v1381
    %v1974 = vpack.c.b16 %v1390, %v1382
    %v1975 = vpack.c.b16 %v1391, %v1383
    %v1976 = vpack.c.b16 %v1392, %v1384
    %v1977 = vpack.c.b16 %v1393, %v1385
    %v1978 = vpack.c.b16 %v1402, %v1394
    %v1979 = vpack.c.b16 %v1403, %v1395
    %v1980 = vpack.c.b16 %v1404, %v1396
    %v1981 = vpack.c.b16 %v1405, %v1397
    %v1982 = vpack.c.b16 %v1406, %v1398
    %v1983 = vpack.c.b16 %v1407, %v1399
    %v1984 = vpack.c.b16 %v1408, %v1400
    %v1985 = vpack.c.b16 %v1409, %v1401
    %v1986 = vpack.c.b16 %v1418, %v1410
    %v1987 = vpack.c.b16 %v1419, %v1411
    %v1988 = vpack.c.b16 %v1420, %v1412
    %v1989 = vpack.c.b16 %v1421, %v1413
    %v1990 = vpack.c.b16 %v1422, %v1414
    %v1991 = vpack.c.b16 %v1423, %v1415
    %v1992 = vpack.c.b16 %v1424, %v1416
    %v1993 = vpack.c.b16 %v1425, %v1417
    %v1994 = vpack.c.b16 %v1434, %v1426
    %v1995 = vpack.c.b16 %v1435, %v1427
    %v1996 = vpack.c.b16 %v1436, %v1428
    %v1997 = vpack.c.b16 %v1437, %v1429
    %v1998 = vpack.c.b16 %v1438, %v1430
    %v1999 = vpack.c.b16 %v1439, %v1431
    %v2000 = vpack.c.b16 %v1440, %v1432
    %v2001 = vpack.c.b16 %v1441, %v1433
    %v2002 = vpack.c.b16 %v1450, %v1442
    %v2003 = vpack.c.b16 %v1451, %v1443
    %v2004 = vpack.c.b16 %v1452, %v1444
    %v2005 = vpack.c.b16 %v1453, %v1445
    %v2006 = vpack.c.b16 %v1454, %v1446
    %v2007 = vpack.c.b16 %v1455, %v1447
    %v2008 = vpack.c.b16 %v1456, %v1448
    %v2009 = vpack.c.b16 %v1457, %v1449
    %v2010 = vpack.c.b16 %v1466, %v1458
    %v2011 = vpack.c.b16 %v1467, %v1459
    %v2012 = vpack.c.b16 %v1468, %v1460
    %v2013 = vpack.c.b16 %v1469, %v1461
    %v2014 = vpack.c.b16 %v1470, %v1462
    %v2015 = vpack.c.b16 %v1471, %v1463
    %v2016 = vpack.c.b16 %v1472, %v1464
    %v2017 = vpack.c.b16 %v1473, %v1465
    %v2018 = vpack.c.b16 %v1482, %v1474
    %v2019 = vpack.c.b16 %v1483, %v1475
    %v2020 = vpack.c.b16 %v1484, %v1476
    %v2021 = vpack.c.b16 %v1485, %v1477
    %v2022 = vpack.c.b16 %v1486, %v1478
    %v2023 = vpack.c.b16 %v1487, %v1479
    %v2024 = vpack.c.b16 %v1488, %v1480
    %v2025 = vpack.c.b16 %v1489, %v1481
    %v2026 = vpack.c.b16 %v1498, %v1490
    %v2027 = vpack.c.b16 %v1499, %v1491
    %v2028 = vpack.c.b16 %v1500, %v1492
    %v2029 = vpack.c.b16 %v1501, %v1493
    %v2030 = vpack.c.b16 %v1502, %v1494
    %v2031 = vpack.c.b16 %v1503, %v1495
    %v2032 = vpack.c.b16 %v1504, %v1496
    %v2033 = vpack.c.b16 %v1505, %v1497
    %v2034 = vpack.c.b16 %v1514, %v1506
    %v2035 = vpack.c.b16 %v1515, %v1507
    %v2036 = vpack.c.b16 %v1516, %v1508
    %v2037 = vpack.c.b16 %v1517, %v1509
    %v2038 = vpack.c.b16 %v1518, %v1510
    %v2039 = vpack.c.b16 %v1519, %v1511
    %v2040 = vpack.c.b16 %v1520, %v1512
    %v2041 = vpack.c.b16 %v1521, %v1513
    %v2042 = vpack.c.b16 %v1530, %v1522
    %v2043 = vpack.c.b16 %v1531, %v1523
    %v2044 = vpack.c.b16 %v1532, %v1524
    %v2045 = vpack.c.b16 %v1533, %v1525
    %v2046 = vpack.c.b16 %v1534, %v1526
    %v2047 = vpack.c.b16 %v1535, %v1527
    %v2048 = vpack.c.b16 %v1536, %v1528
    %v2049 = vpack.c.b16 %v1537, %v1529
    %v2050 = vpack.c.b16 %v1546, %v1538
    %v2051 = vpack.c.b16 %v1547, %v1539
    %v2052 = vpack.c.b16 %v1548, %v1540
    %v2053 = vpack.c.b16 %v1549, %v1541
    %v2054 = vpack.c.b16 %v1550, %v1542
    %v2055 = vpack.c.b16 %v1551, %v1543
    %v2056 = vpack.c.b16 %v1552, %v1544
    %v2057 = vpack.c.b16 %v1553, %v1545
    %v2058 = vpack.c.b16 %v1562, %v1554
    %v2059 = vpack.c.b16 %v1563, %v1555
    %v2060 = vpack.c.b16 %v1564, %v1556
    %v2061 = vpack.c.b16 %v1565, %v1557
    %v2062 = vpack.c.b16 %v1566, %v1558
    %v2063 = vpack.c.b16 %v1567, %v1559
    %v2064 = vpack.c.b16 %v1568, %v1560
    %v2065 = vpack.c.b16 %v1569, %v1561
    %v2066 = vpack.c.b16 %v1578, %v1570
    %v2067 = vpack.c.b16 %v1579, %v1571
    %v2068 = vpack.c.b16 %v1580, %v1572
    %v2069 = vpack.c.b16 %v1581, %v1573
    %v2070 = vpack.c.b16 %v1582, %v1574
    %v2071 = vpack.c.b16 %v1583, %v1575
    %v2072 = vpack.c.b16 %v1584, %v1576
    %v2073 = vpack.c.b16 %v1585, %v1577
    %v2074 = vpack.c.b16 %v1594, %v1586
    %v2075 = vpack.c.b16 %v1595, %v1587
    %v2076 = vpack.c.b16 %v1596, %v1588
    %v2077 = vpack.c.b16 %v1597, %v1589
    %v2078 = vpack.c.b16 %v1598, %v1590
    %v2079 = vpack.c.b16 %v1599, %v1591
    %v2080 = vpack.c.b16 %v1600, %v1592
    %v2081 = vpack.c.b16 %v1601, %v1593
    %v2082 = vpack.c.b16 %v1610, %v1602
    %v2083 = vpack.c.b16 %v1611, %v1603
    %v2084 = vpack.c.b16 %v1612, %v1604
    %v2085 = vpack.c.b16 %v1613, %v1605
    %v2086 = vpack.c.b16 %v1614, %v1606
    %v2087 = vpack.c.b16 %v1615, %v1607
    %v2088 = vpack.c.b16 %v1616, %v1608
    %v2089 = vpack.c.b16 %v1617, %v1609
    %v2090 = vpack.c.b16 %v1626, %v1618
    %v2091 = vpack.c.b16 %v1627, %v1619
    %v2092 = vpack.c.b16 %v1628, %v1620
    %v2093 = vpack.c.b16 %v1629, %v1621
    %v2094 = vpack.c.b16 %v1630, %v1622
    %v2095 = vpack.c.b16 %v1631, %v1623
    %v2096 = vpack.c.b16 %v1632, %v1624
    %v2097 = vpack.c.b16 %v1633, %v1625
    %v2098 = vpack.c.b16 %v1642, %v1634
    %v2099 = vpack.c.b16 %v1643, %v1635
    %v2100 = vpack.c.b16 %v1644, %v1636
    %v2101 = vpack.c.b16 %v1645, %v1637
    %v2102 = vpack.c.b16 %v1646, %v1638
    %v2103 = vpack.c.b16 %v1647, %v1639
    %v2104 = vpack.c.b16 %v1648, %v1640
    %v2105 = vpack.c.b16 %v1649, %v1641
    %v2106 = vpack.c.b16 %v1658, %v1650
    %v2107 = vpack.c.b16 %v1659, %v1651
    %v2108 = vpack.c.b16 %v1660, %v1652
    %v2109 = vpack.c.b16 %v1661, %v1653
    %v2110 = vpack.c.b16 %v1662, %v1654
    %v2111 = vpack.c.b16 %v1663, %v1655
    %v2112 = vpack.c.b16 %v1664, %v1656
    %v2113 = vpack.c.b16 %v1665, %v1657
    %v2114 = vpack.c.b16 %v1674, %v1666
    %v2115 = vpack.c.b16 %v1675, %v1667
    %v2116 = vpack.c.b16 %v1676, %v1668
    %v2117 = vpack.c.b16 %v1677, %v1669
    %v2118 = vpack.c.b16 %v1678, %v1670
    %v2119 = vpack.c.b16 %v1679, %v1671
    %v2120 = vpack.c.b16 %v1680, %v1672
    %v2121 = vpack.c.b16 %v1681, %v1673
    %v2122 = vpack.c.b16 %v1690, %v1682
    %v2123 = vpack.c.b16 %v1691, %v1683
    %v2124 = vpack.c.b16 %v1692, %v1684
    %v2125 = vpack.c.b16 %v1693, %v1685
    %v2126 = vpack.c.b16 %v1694, %v1686
    %v2127 = vpack.c.b16 %v1695, %v1687
    %v2128 = vpack.c.b16 %v1696, %v1688
    %v2129 = vpack.c.b16 %v1697, %v1689
    %v2130 = vpack.c.b16 %v1706, %v1698
    %v2131 = vpack.c.b16 %v1707, %v1699
    %v2132 = vpack.c.b16 %v1708, %v1700
    %v2133 = vpack.c.b16 %v1709, %v1701
    %v2134 = vpack.c.b16 %v1710, %v1702
    %v2135 = vpack.c.b16 %v1711, %v1703
    %v2136 = vpack.c.b16 %v1712, %v1704
    %v2137 = vpack.c.b16 %v1713, %v1705
    %v2138 = vpack.c.b16 %v1722, %v1714
    %v2139 = vpack.c.b16 %v1723, %v1715
    %v2140 = vpack.c.b16 %v1724, %v1716
    %v2141 = vpack.c.b16 %v1725, %v1717
    %v2142 = vpack.c.b16 %v1726, %v1718
    %v2143 = vpack.c.b16 %v1727, %v1719
    %v2144 = vpack.c.b16 %v1728, %v1720
    %v2145 = vpack.c.b16 %v1729, %v1721
    %v2146 = vpack.c.b16 %v1738, %v1730
    %v2147 = vpack.c.b16 %v1739, %v1731
    %v2148 = vpack.c.b16 %v1740, %v1732
    %v2149 = vpack.c.b16 %v1741, %v1733
    %v2150 = vpack.c.b16 %v1742, %v1734
    %v2151 = vpack.c.b16 %v1743, %v1735
    %v2152 = vpack.c.b16 %v1744, %v1736
    %v2153 = vpack.c.b16 %v1745, %v1737
    %v2154 = vpack.c.b16 %v1754, %v1746
    %v2155 = vpack.c.b16 %v1755, %v1747
    %v2156 = vpack.c.b16 %v1756, %v1748
    %v2157 = vpack.c.b16 %v1757, %v1749
    %v2158 = vpack.c.b16 %v1758, %v1750
    %v2159 = vpack.c.b16 %v1759, %v1751
    %v2160 = vpack.c.b16 %v1760, %v1752
    %v2161 = vpack.c.b16 %v1761, %v1753
    %v2162 = vpack.c.b16 %v1770, %v1762
    %v2163 = vpack.c.b16 %v1771, %v1763
    %v2164 = vpack.c.b16 %v1772, %v1764
    %v2165 = vpack.c.b16 %v1773, %v1765
    %v2166 = vpack.c.b16 %v1774, %v1766
    %v2167 = vpack.c.b16 %v1775, %v1767
    %v2168 = vpack.c.b16 %v1776, %v1768
    %v2169 = vpack.c.b16 %v1777, %v1769
    %vm2562 = vcmask 130048
    %v2564 = vsel %vm2562, %v167, 0
    %2566 = vmatprep.subr.bf16.mxu0 %v1835
    %2567 = vmatpush1.bf16.msra.mxu0 %v1834
    %2568 = vmatprep.subr.bf16.mxu0 %v1827
    %2569 = vmatpush1.bf16.msra.mxu0 %v1826
    %2570 = vmatprep.subr.bf16.mxu0 %v1819
    %2571 = vmatpush1.bf16.msra.mxu0 %v1818
    %2572 = vmatprep.subr.bf16.mxu0 %v1811
    %2573 = vmatpush1.bf16.msra.mxu0 %v1810
    %2574 = vmatprep.subr.bf16.mxu0 %v1803
    %2575 = vmatpush1.bf16.msra.mxu0 %v1802
    %2576 = vmatprep.subr.bf16.mxu0 %v1795
    %2577 = vmatpush1.bf16.msra.mxu0 %v1794
    %2578 = vmatprep.subr.bf16.mxu0 %v1787
    %2579 = vmatpush1.bf16.msra.mxu0 %v1786
    %2580 = vmatprep.subr.bf16.mxu0 %v1779
    %2581 = vmatpush1.bf16.msra.mxu0 %v1778
    %2582 = vmatprep.subr.bf16.mxu0 %v1899
    %2583 = vmatpush2.bf16.msra.mxu0 %v1898
    %2584 = vmatprep.subr.bf16.mxu0 %v1891
    %2585 = vmatpush2.bf16.msra.mxu0 %v1890
    %2586 = vmatprep.subr.bf16.mxu0 %v1883
    %2587 = vmatpush2.bf16.msra.mxu0 %v1882
    %2588 = vmatprep.subr.bf16.mxu0 %v1875
    %2589 = vmatpush2.bf16.msra.mxu0 %v1874
    %2590 = vmatprep.subr.bf16.mxu0 %v1867
    %2591 = vmatpush2.bf16.msra.mxu0 %v1866
    %2592 = vmatprep.subr.bf16.mxu0 %v1859
    %2593 = vmatpush2.bf16.msra.mxu0 %v1858
    %2594 = vmatprep.subr.bf16.mxu0 %v1851
    %2595 = vmatpush2.bf16.msra.mxu0 %v1850
    %2596 = vmatprep.subr.bf16.mxu0 %v1843
    %2597 = vmatpush2.bf16.msra.mxu0 %v1842
    %2598 = vmatprep.mubr.bf16.mxu0 %v162
    %2599 = vmatmul.mubr.bf16.gmra.mxu0 %v161
    %v2600 = vpop.f32.mrf.mxu0
    %v2601 = vadd.f32 %v565, %v2600
    %v2602 = vpop.f32.mrf.mxu0
    %v2603 = vadd.f32 %v569, %v2602
    %v2604 = vpop.f32.mrf.mxu0
    %v2605 = vadd.f32 %v565, %v2604
    %v2606 = vpop.f32.mrf.mxu0
    %v2607 = vadd.f32 %v569, %v2606
    %2608 = vdwg.mxu0
    %2609 = vmatprep.subr.bf16.mxu0 %v1963
    %2610 = vmatpush1.bf16.msra.mxu0 %v1962
    %2611 = vmatprep.subr.bf16.mxu0 %v1955
    %2612 = vmatpush1.bf16.msra.mxu0 %v1954
    %2613 = vmatprep.subr.bf16.mxu0 %v1947
    %2614 = vmatpush1.bf16.msra.mxu0 %v1946
    %2615 = vmatprep.subr.bf16.mxu0 %v1939
    %2616 = vmatpush1.bf16.msra.mxu0 %v1938
    %2617 = vmatprep.subr.bf16.mxu0 %v1931
    %2618 = vmatpush1.bf16.msra.mxu0 %v1930
    %2619 = vmatprep.subr.bf16.mxu0 %v1923
    %2620 = vmatpush1.bf16.msra.mxu0 %v1922
    %2621 = vmatprep.subr.bf16.mxu0 %v1915
    %2622 = vmatpush1.bf16.msra.mxu0 %v1914
    %2623 = vmatprep.subr.bf16.mxu0 %v1907
    %2624 = vmatpush1.bf16.msra.mxu0 %v1906
    %2625 = vmatprep.subr.bf16.mxu0 %v2027
    %2626 = vmatpush2.bf16.msra.mxu0 %v2026
    %2627 = vmatprep.subr.bf16.mxu0 %v2019
    %2628 = vmatpush2.bf16.msra.mxu0 %v2018
    %2629 = vmatprep.subr.bf16.mxu0 %v2011
    %2630 = vmatpush2.bf16.msra.mxu0 %v2010
    %2631 = vmatprep.subr.bf16.mxu0 %v2003
    %2632 = vmatpush2.bf16.msra.mxu0 %v2002
    %2633 = vmatprep.subr.bf16.mxu0 %v1995
    %2634 = vmatpush2.bf16.msra.mxu0 %v1994
    %2635 = vmatprep.subr.bf16.mxu0 %v1987
    %2636 = vmatpush2.bf16.msra.mxu0 %v1986
    %2637 = vmatprep.subr.bf16.mxu0 %v1979
    %2638 = vmatpush2.bf16.msra.mxu0 %v1978
    %2639 = vmatprep.subr.bf16.mxu0 %v1971
    %2640 = vmatpush2.bf16.msra.mxu0 %v1970
    %2641 = vmatprep.mubr.bf16.mxu0 %v164
    %2642 = vmatmul.mubr.bf16.gmra.mxu0 %v163
    %v2643 = vpop.f32.mrf.mxu0
    %v2644 = vadd.f32 %v2601, %v2643
    %v2645 = vpop.f32.mrf.mxu0
    %v2646 = vadd.f32 %v2603, %v2645
    %v2647 = vpop.f32.mrf.mxu0
    %v2648 = vadd.f32 %v2605, %v2647
    %v2649 = vpop.f32.mrf.mxu0
    %v2650 = vadd.f32 %v2607, %v2649
    %2651 = vdwg.mxu0
    %2652 = vmatprep.subr.bf16.mxu0 %v2091
    %2653 = vmatpush1.bf16.msra.mxu0 %v2090
    %2654 = vmatprep.subr.bf16.mxu0 %v2083
    %2655 = vmatpush1.bf16.msra.mxu0 %v2082
    %2656 = vmatprep.subr.bf16.mxu0 %v2075
    %2657 = vmatpush1.bf16.msra.mxu0 %v2074
    %2658 = vmatprep.subr.bf16.mxu0 %v2067
    %2659 = vmatpush1.bf16.msra.mxu0 %v2066
    %2660 = vmatprep.subr.bf16.mxu0 %v2059
    %2661 = vmatpush1.bf16.msra.mxu0 %v2058
    %2662 = vmatprep.subr.bf16.mxu0 %v2051
    %2663 = vmatpush1.bf16.msra.mxu0 %v2050
    %2664 = vmatprep.subr.bf16.mxu0 %v2043
    %2665 = vmatpush1.bf16.msra.mxu0 %v2042
    %2666 = vmatprep.subr.bf16.mxu0 %v2035
    %2667 = vmatpush1.bf16.msra.mxu0 %v2034
    %2668 = vmatprep.subr.bf16.mxu0 %v2155
    %2669 = vmatpush2.bf16.msra.mxu0 %v2154
    %2670 = vmatprep.subr.bf16.mxu0 %v2147
    %2671 = vmatpush2.bf16.msra.mxu0 %v2146
    %2672 = vmatprep.subr.bf16.mxu0 %v2139
    %2673 = vmatpush2.bf16.msra.mxu0 %v2138
    %2674 = vmatprep.subr.bf16.mxu0 %v2131
    %2675 = vmatpush2.bf16.msra.mxu0 %v2130
    %2676 = vmatprep.subr.bf16.mxu0 %v2123
    %2677 = vmatpush2.bf16.msra.mxu0 %v2122
    %2678 = vmatprep.subr.bf16.mxu0 %v2115
    %2679 = vmatpush2.bf16.msra.mxu0 %v2114
    %2680 = vmatprep.subr.bf16.mxu0 %v2107
    %2681 = vmatpush2.bf16.msra.mxu0 %v2106
    %2682 = vmatprep.subr.bf16.mxu0 %v2099
    %2683 = vmatpush2.bf16.msra.mxu0 %v2098
    %2684 = vmatprep.mubr.bf16.mxu0 %v166
    %2685 = vmatmul.mubr.bf16.gmra.mxu0 %v165
    %v2686 = vpop.f32.mrf.mxu0
    %v2687 = vadd.f32 %v2644, %v2686
    %v2688 = vpop.f32.mrf.mxu0
    %v2689 = vadd.f32 %v2646, %v2688
    %v2690 = vpop.f32.mrf.mxu0
    %v2691 = vadd.f32 %v2648, %v2690
    %v2692 = vpop.f32.mrf.mxu0
    %v2693 = vadd.f32 %v2650, %v2692
    %2694 = vdwg.mxu0
    %2695 = vmatprep.subr.bf16.mxu0 0
    %2696 = vmatpush1.bf16.msra.mxu0 0
    %2697 = vmatprep.subr.bf16.mxu0 0
    %2698 = vmatpush1.bf16.msra.mxu0 0
    %2699 = vmatprep.subr.bf16.mxu0 0
    %2700 = vmatpush1.bf16.msra.mxu0 0
    %2701 = vmatprep.subr.bf16.mxu0 0
    %2702 = vmatpush1.bf16.msra.mxu0 0
    %2703 = vmatprep.subr.bf16.mxu0 0
    %2704 = vmatpush1.bf16.msra.mxu0 0
    %2705 = vmatprep.subr.bf16.mxu0 0
    %2706 = vmatpush1.bf16.msra.mxu0 0
    %2707 = vmatprep.subr.bf16.mxu0 0
    %2708 = vmatpush1.bf16.msra.mxu0 0
    %2709 = vmatprep.subr.bf16.mxu0 %v2163
    %2710 = vmatpush1.bf16.msra.mxu0 %v2162
    %2711 = vmatprep.subr.bf16.mxu0 0
    %2712 = vmatpush2.bf16.msra.mxu0 0
    %2713 = vmatprep.subr.bf16.mxu0 0
    %2714 = vmatpush2.bf16.msra.mxu0 0
    %2715 = vmatprep.subr.bf16.mxu0 0
    %2716 = vmatpush2.bf16.msra.mxu0 0
    %2717 = vmatprep.subr.bf16.mxu0 0
    %2718 = vmatpush2.bf16.msra.mxu0 0
    %2719 = vmatprep.subr.bf16.mxu0 0
    %2720 = vmatpush2.bf16.msra.mxu0 0
    %2721 = vmatprep.subr.bf16.mxu0 0
    %2722 = vmatpush2.bf16.msra.mxu0 0
    %2723 = vmatprep.subr.bf16.mxu0 0
    %2724 = vmatpush2.bf16.msra.mxu0 0
    %2725 = vmatprep.subr.bf16.mxu0 0
    %2726 = vmatpush2.bf16.msra.mxu0 0
    %2727 = vmatprep.mubr.bf16.mxu0 0
    %2728 = vmatmul.mubr.bf16.gmra.mxu0 %v2564
    %v2729 = vpop.f32.mrf.mxu0
    %v2730 = vadd.f32 %v2687, %v2729
    %v2731 = vpop.f32.mrf.mxu0
    %v2732 = vadd.f32 %v2689, %v2731
    %v2733 = vpop.f32.mrf.mxu0
    %v2734 = vadd.f32 %v2691, %v2733
    %v2735 = vpop.f32.mrf.mxu0
    %v2736 = vadd.f32 %v2693, %v2735
    %2737 = vdwg.mxu0
    %2738 = vmatprep.subr.bf16.mxu0 %v1837
    %2739 = vmatpush1.bf16.msra.mxu0 %v1836
    %2740 = vmatprep.subr.bf16.mxu0 %v1829
    %2741 = vmatpush1.bf16.msra.mxu0 %v1828
    %2742 = vmatprep.subr.bf16.mxu0 %v1821
    %2743 = vmatpush1.bf16.msra.mxu0 %v1820
    %2744 = vmatprep.subr.bf16.mxu0 %v1813
    %2745 = vmatpush1.bf16.msra.mxu0 %v1812
    %2746 = vmatprep.subr.bf16.mxu0 %v1805
    %2747 = vmatpush1.bf16.msra.mxu0 %v1804
    %2748 = vmatprep.subr.bf16.mxu0 %v1797
    %2749 = vmatpush1.bf16.msra.mxu0 %v1796
    %2750 = vmatprep.subr.bf16.mxu0 %v1789
    %2751 = vmatpush1.bf16.msra.mxu0 %v1788
    %2752 = vmatprep.subr.bf16.mxu0 %v1781
    %2753 = vmatpush1.bf16.msra.mxu0 %v1780
    %2754 = vmatprep.subr.bf16.mxu0 %v1901
    %2755 = vmatpush2.bf16.msra.mxu0 %v1900
    %2756 = vmatprep.subr.bf16.mxu0 %v1893
    %2757 = vmatpush2.bf16.msra.mxu0 %v1892
    %2758 = vmatprep.subr.bf16.mxu0 %v1885
    %2759 = vmatpush2.bf16.msra.mxu0 %v1884
    %2760 = vmatprep.subr.bf16.mxu0 %v1877
    %2761 = vmatpush2.bf16.msra.mxu0 %v1876
    %2762 = vmatprep.subr.bf16.mxu0 %v1869
    %2763 = vmatpush2.bf16.msra.mxu0 %v1868
    %2764 = vmatprep.subr.bf16.mxu0 %v1861
    %2765 = vmatpush2.bf16.msra.mxu0 %v1860
    %2766 = vmatprep.subr.bf16.mxu0 %v1853
    %2767 = vmatpush2.bf16.msra.mxu0 %v1852
    %2768 = vmatprep.subr.bf16.mxu0 %v1845
    %2769 = vmatpush2.bf16.msra.mxu0 %v1844
    %2770 = vmatprep.mubr.bf16.mxu0 %v162
    %2771 = vmatmul.mubr.bf16.gmra.mxu0 %v161
    %v2772 = vpop.f32.mrf.mxu0
    %v2773 = vadd.f32 %v573, %v2772
    %v2774 = vpop.f32.mrf.mxu0
    %v2775 = vadd.f32 %v577, %v2774
    %v2776 = vpop.f32.mrf.mxu0
    %v2777 = vadd.f32 %v573, %v2776
    %v2778 = vpop.f32.mrf.mxu0
    %v2779 = vadd.f32 %v577, %v2778
    %2780 = vdwg.mxu0
    %2781 = vmatprep.subr.bf16.mxu0 %v1965
    %2782 = vmatpush1.bf16.msra.mxu0 %v1964
    %2783 = vmatprep.subr.bf16.mxu0 %v1957
    %2784 = vmatpush1.bf16.msra.mxu0 %v1956
    %2785 = vmatprep.subr.bf16.mxu0 %v1949
    %2786 = vmatpush1.bf16.msra.mxu0 %v1948
    %2787 = vmatprep.subr.bf16.mxu0 %v1941
    %2788 = vmatpush1.bf16.msra.mxu0 %v1940
    %2789 = vmatprep.subr.bf16.mxu0 %v1933
    %2790 = vmatpush1.bf16.msra.mxu0 %v1932
    %2791 = vmatprep.subr.bf16.mxu0 %v1925
    %2792 = vmatpush1.bf16.msra.mxu0 %v1924
    %2793 = vmatprep.subr.bf16.mxu0 %v1917
    %2794 = vmatpush1.bf16.msra.mxu0 %v1916
    %2795 = vmatprep.subr.bf16.mxu0 %v1909
    %2796 = vmatpush1.bf16.msra.mxu0 %v1908
    %2797 = vmatprep.subr.bf16.mxu0 %v2029
    %2798 = vmatpush2.bf16.msra.mxu0 %v2028
    %2799 = vmatprep.subr.bf16.mxu0 %v2021
    %2800 = vmatpush2.bf16.msra.mxu0 %v2020
    %2801 = vmatprep.subr.bf16.mxu0 %v2013
    %2802 = vmatpush2.bf16.msra.mxu0 %v2012
    %2803 = vmatprep.subr.bf16.mxu0 %v2005
    %2804 = vmatpush2.bf16.msra.mxu0 %v2004
    %2805 = vmatprep.subr.bf16.mxu0 %v1997
    %2806 = vmatpush2.bf16.msra.mxu0 %v1996
    %2807 = vmatprep.subr.bf16.mxu0 %v1989
    %2808 = vmatpush2.bf16.msra.mxu0 %v1988
    %2809 = vmatprep.subr.bf16.mxu0 %v1981
    %2810 = vmatpush2.bf16.msra.mxu0 %v1980
    %2811 = vmatprep.subr.bf16.mxu0 %v1973
    %2812 = vmatpush2.bf16.msra.mxu0 %v1972
    %2813 = vmatprep.mubr.bf16.mxu0 %v164
    %2814 = vmatmul.mubr.bf16.gmra.mxu0 %v163
    %v2815 = vpop.f32.mrf.mxu0
    %v2816 = vadd.f32 %v2773, %v2815
    %v2817 = vpop.f32.mrf.mxu0
    %v2818 = vadd.f32 %v2775, %v2817
    %v2819 = vpop.f32.mrf.mxu0
    %v2820 = vadd.f32 %v2777, %v2819
    %v2821 = vpop.f32.mrf.mxu0
    %v2822 = vadd.f32 %v2779, %v2821
    %2823 = vdwg.mxu0
    %2824 = vmatprep.subr.bf16.mxu0 %v2093
    %2825 = vmatpush1.bf16.msra.mxu0 %v2092
    %2826 = vmatprep.subr.bf16.mxu0 %v2085
    %2827 = vmatpush1.bf16.msra.mxu0 %v2084
    %2828 = vmatprep.subr.bf16.mxu0 %v2077
    %2829 = vmatpush1.bf16.msra.mxu0 %v2076
    %2830 = vmatprep.subr.bf16.mxu0 %v2069
    %2831 = vmatpush1.bf16.msra.mxu0 %v2068
    %2832 = vmatprep.subr.bf16.mxu0 %v2061
    %2833 = vmatpush1.bf16.msra.mxu0 %v2060
    %2834 = vmatprep.subr.bf16.mxu0 %v2053
    %2835 = vmatpush1.bf16.msra.mxu0 %v2052
    %2836 = vmatprep.subr.bf16.mxu0 %v2045
    %2837 = vmatpush1.bf16.msra.mxu0 %v2044
    %2838 = vmatprep.subr.bf16.mxu0 %v2037
    %2839 = vmatpush1.bf16.msra.mxu0 %v2036
    %2840 = vmatprep.subr.bf16.mxu0 %v2157
    %2841 = vmatpush2.bf16.msra.mxu0 %v2156
    %2842 = vmatprep.subr.bf16.mxu0 %v2149
    %2843 = vmatpush2.bf16.msra.mxu0 %v2148
    %2844 = vmatprep.subr.bf16.mxu0 %v2141
    %2845 = vmatpush2.bf16.msra.mxu0 %v2140
    %2846 = vmatprep.subr.bf16.mxu0 %v2133
    %2847 = vmatpush2.bf16.msra.mxu0 %v2132
    %2848 = vmatprep.subr.bf16.mxu0 %v2125
    %2849 = vmatpush2.bf16.msra.mxu0 %v2124
    %2850 = vmatprep.subr.bf16.mxu0 %v2117
    %2851 = vmatpush2.bf16.msra.mxu0 %v2116
    %2852 = vmatprep.subr.bf16.mxu0 %v2109
    %2853 = vmatpush2.bf16.msra.mxu0 %v2108
    %2854 = vmatprep.subr.bf16.mxu0 %v2101
    %2855 = vmatpush2.bf16.msra.mxu0 %v2100
    %2856 = vmatprep.mubr.bf16.mxu0 %v166
    %2857 = vmatmul.mubr.bf16.gmra.mxu0 %v165
    %v2858 = vpop.f32.mrf.mxu0
    %v2859 = vadd.f32 %v2816, %v2858
    %v2860 = vpop.f32.mrf.mxu0
    %v2861 = vadd.f32 %v2818, %v2860
    %v2862 = vpop.f32.mrf.mxu0
    %v2863 = vadd.f32 %v2820, %v2862
    %v2864 = vpop.f32.mrf.mxu0
    %v2865 = vadd.f32 %v2822, %v2864
    %2866 = vdwg.mxu0
    %2867 = vmatprep.subr.bf16.mxu0 0
    %2868 = vmatpush1.bf16.msra.mxu0 0
    %2869 = vmatprep.subr.bf16.mxu0 0
    %2870 = vmatpush1.bf16.msra.mxu0 0
    %2871 = vmatprep.subr.bf16.mxu0 0
    %2872 = vmatpush1.bf16.msra.mxu0 0
    %2873 = vmatprep.subr.bf16.mxu0 0
    %2874 = vmatpush1.bf16.msra.mxu0 0
    %2875 = vmatprep.subr.bf16.mxu0 0
    %2876 = vmatpush1.bf16.msra.mxu0 0
    %2877 = vmatprep.subr.bf16.mxu0 0
    %2878 = vmatpush1.bf16.msra.mxu0 0
    %2879 = vmatprep.subr.bf16.mxu0 0
    %2880 = vmatpush1.bf16.msra.mxu0 0
    %2881 = vmatprep.subr.bf16.mxu0 %v2165
    %2882 = vmatpush1.bf16.msra.mxu0 %v2164
    %2883 = vmatprep.subr.bf16.mxu0 0
    %2884 = vmatpush2.bf16.msra.mxu0 0
    %2885 = vmatprep.subr.bf16.mxu0 0
    %2886 = vmatpush2.bf16.msra.mxu0 0
    %2887 = vmatprep.subr.bf16.mxu0 0
    %2888 = vmatpush2.bf16.msra.mxu0 0
    %2889 = vmatprep.subr.bf16.mxu0 0
    %2890 = vmatpush2.bf16.msra.mxu0 0
    %2891 = vmatprep.subr.bf16.mxu0 0
    %2892 = vmatpush2.bf16.msra.mxu0 0
    %2893 = vmatprep.subr.bf16.mxu0 0
    %2894 = vmatpush2.bf16.msra.mxu0 0
    %2895 = vmatprep.subr.bf16.mxu0 0
    %2896 = vmatpush2.bf16.msra.mxu0 0
    %2897 = vmatprep.subr.bf16.mxu0 0
    %2898 = vmatpush2.bf16.msra.mxu0 0
    %2899 = vmatprep.mubr.bf16.mxu0 0
    %2900 = vmatmul.mubr.bf16.gmra.mxu0 %v2564
    %v2901 = vpop.f32.mrf.mxu0
    %v2902 = vadd.f32 %v2859, %v2901
    %v2903 = vpop.f32.mrf.mxu0
    %v2904 = vadd.f32 %v2861, %v2903
    %v2905 = vpop.f32.mrf.mxu0
    %v2906 = vadd.f32 %v2863, %v2905
    %v2907 = vpop.f32.mrf.mxu0
    %v2908 = vadd.f32 %v2865, %v2907
    %2909 = vdwg.mxu0
    %2910 = vmatprep.subr.bf16.mxu0 %v1839
    %2911 = vmatpush1.bf16.msra.mxu0 %v1838
    %2912 = vmatprep.subr.bf16.mxu0 %v1831
    %2913 = vmatpush1.bf16.msra.mxu0 %v1830
    %2914 = vmatprep.subr.bf16.mxu0 %v1823
    %2915 = vmatpush1.bf16.msra.mxu0 %v1822
    %2916 = vmatprep.subr.bf16.mxu0 %v1815
    %2917 = vmatpush1.bf16.msra.mxu0 %v1814
    %2918 = vmatprep.subr.bf16.mxu0 %v1807
    %2919 = vmatpush1.bf16.msra.mxu0 %v1806
    %2920 = vmatprep.subr.bf16.mxu0 %v1799
    %2921 = vmatpush1.bf16.msra.mxu0 %v1798
    %2922 = vmatprep.subr.bf16.mxu0 %v1791
    %2923 = vmatpush1.bf16.msra.mxu0 %v1790
    %2924 = vmatprep.subr.bf16.mxu0 %v1783
    %2925 = vmatpush1.bf16.msra.mxu0 %v1782
    %2926 = vmatprep.subr.bf16.mxu0 %v1903
    %2927 = vmatpush2.bf16.msra.mxu0 %v1902
    %2928 = vmatprep.subr.bf16.mxu0 %v1895
    %2929 = vmatpush2.bf16.msra.mxu0 %v1894
    %2930 = vmatprep.subr.bf16.mxu0 %v1887
    %2931 = vmatpush2.bf16.msra.mxu0 %v1886
    %2932 = vmatprep.subr.bf16.mxu0 %v1879
    %2933 = vmatpush2.bf16.msra.mxu0 %v1878
    %2934 = vmatprep.subr.bf16.mxu0 %v1871
    %2935 = vmatpush2.bf16.msra.mxu0 %v1870
    %2936 = vmatprep.subr.bf16.mxu0 %v1863
    %2937 = vmatpush2.bf16.msra.mxu0 %v1862
    %2938 = vmatprep.subr.bf16.mxu0 %v1855
    %2939 = vmatpush2.bf16.msra.mxu0 %v1854
    %2940 = vmatprep.subr.bf16.mxu0 %v1847
    %2941 = vmatpush2.bf16.msra.mxu0 %v1846
    %2942 = vmatprep.mubr.bf16.mxu0 %v162
    %2943 = vmatmul.mubr.bf16.gmra.mxu0 %v161
    %v2944 = vpop.f32.mrf.mxu0
    %v2945 = vadd.f32 %v581, %v2944
    %v2946 = vpop.f32.mrf.mxu0
    %v2947 = vadd.f32 %v585, %v2946
    %v2948 = vpop.f32.mrf.mxu0
    %v2949 = vadd.f32 %v581, %v2948
    %v2950 = vpop.f32.mrf.mxu0
    %v2951 = vadd.f32 %v585, %v2950
    %2952 = vdwg.mxu0
    %2953 = vmatprep.subr.bf16.mxu0 %v1967
    %2954 = vmatpush1.bf16.msra.mxu0 %v1966
    %2955 = vmatprep.subr.bf16.mxu0 %v1959
    %2956 = vmatpush1.bf16.msra.mxu0 %v1958
    %2957 = vmatprep.subr.bf16.mxu0 %v1951
    %2958 = vmatpush1.bf16.msra.mxu0 %v1950
    %2959 = vmatprep.subr.bf16.mxu0 %v1943
    %2960 = vmatpush1.bf16.msra.mxu0 %v1942
    %2961 = vmatprep.subr.bf16.mxu0 %v1935
    %2962 = vmatpush1.bf16.msra.mxu0 %v1934
    %2963 = vmatprep.subr.bf16.mxu0 %v1927
    %2964 = vmatpush1.bf16.msra.mxu0 %v1926
    %2965 = vmatprep.subr.bf16.mxu0 %v1919
    %2966 = vmatpush1.bf16.msra.mxu0 %v1918
    %2967 = vmatprep.subr.bf16.mxu0 %v1911
    %2968 = vmatpush1.bf16.msra.mxu0 %v1910
    %2969 = vmatprep.subr.bf16.mxu0 %v2031
    %2970 = vmatpush2.bf16.msra.mxu0 %v2030
    %2971 = vmatprep.subr.bf16.mxu0 %v2023
    %2972 = vmatpush2.bf16.msra.mxu0 %v2022
    %2973 = vmatprep.subr.bf16.mxu0 %v2015
    %2974 = vmatpush2.bf16.msra.mxu0 %v2014
    %2975 = vmatprep.subr.bf16.mxu0 %v2007
    %2976 = vmatpush2.bf16.msra.mxu0 %v2006
    %2977 = vmatprep.subr.bf16.mxu0 %v1999
    %2978 = vmatpush2.bf16.msra.mxu0 %v1998
    %2979 = vmatprep.subr.bf16.mxu0 %v1991
    %2980 = vmatpush2.bf16.msra.mxu0 %v1990
    %2981 = vmatprep.subr.bf16.mxu0 %v1983
    %2982 = vmatpush2.bf16.msra.mxu0 %v1982
    %2983 = vmatprep.subr.bf16.mxu0 %v1975
    %2984 = vmatpush2.bf16.msra.mxu0 %v1974
    %2985 = vmatprep.mubr.bf16.mxu0 %v164
    %2986 = vmatmul.mubr.bf16.gmra.mxu0 %v163
    %v2987 = vpop.f32.mrf.mxu0
    %v2988 = vadd.f32 %v2945, %v2987
    %v2989 = vpop.f32.mrf.mxu0
    %v2990 = vadd.f32 %v2947, %v2989
    %v2991 = vpop.f32.mrf.mxu0
    %v2992 = vadd.f32 %v2949, %v2991
    %v2993 = vpop.f32.mrf.mxu0
    %v2994 = vadd.f32 %v2951, %v2993
    %2995 = vdwg.mxu0
    %2996 = vmatprep.subr.bf16.mxu0 %v2095
    %2997 = vmatpush1.bf16.msra.mxu0 %v2094
    %2998 = vmatprep.subr.bf16.mxu0 %v2087
    %2999 = vmatpush1.bf16.msra.mxu0 %v2086
    %3000 = vmatprep.subr.bf16.mxu0 %v2079
    %3001 = vmatpush1.bf16.msra.mxu0 %v2078
    %3002 = vmatprep.subr.bf16.mxu0 %v2071
    %3003 = vmatpush1.bf16.msra.mxu0 %v2070
    %3004 = vmatprep.subr.bf16.mxu0 %v2063
    %3005 = vmatpush1.bf16.msra.mxu0 %v2062
    %3006 = vmatprep.subr.bf16.mxu0 %v2055
    %3007 = vmatpush1.bf16.msra.mxu0 %v2054
    %3008 = vmatprep.subr.bf16.mxu0 %v2047
    %3009 = vmatpush1.bf16.msra.mxu0 %v2046
    %3010 = vmatprep.subr.bf16.mxu0 %v2039
    %3011 = vmatpush1.bf16.msra.mxu0 %v2038
    %3012 = vmatprep.subr.bf16.mxu0 %v2159
    %3013 = vmatpush2.bf16.msra.mxu0 %v2158
    %3014 = vmatprep.subr.bf16.mxu0 %v2151
    %3015 = vmatpush2.bf16.msra.mxu0 %v2150
    %3016 = vmatprep.subr.bf16.mxu0 %v2143
    %3017 = vmatpush2.bf16.msra.mxu0 %v2142
    %3018 = vmatprep.subr.bf16.mxu0 %v2135
    %3019 = vmatpush2.bf16.msra.mxu0 %v2134
    %3020 = vmatprep.subr.bf16.mxu0 %v2127
    %3021 = vmatpush2.bf16.msra.mxu0 %v2126
    %3022 = vmatprep.subr.bf16.mxu0 %v2119
    %3023 = vmatpush2.bf16.msra.mxu0 %v2118
    %3024 = vmatprep.subr.bf16.mxu0 %v2111
    %3025 = vmatpush2.bf16.msra.mxu0 %v2110
    %3026 = vmatprep.subr.bf16.mxu0 %v2103
    %3027 = vmatpush2.bf16.msra.mxu0 %v2102
    %3028 = vmatprep.mubr.bf16.mxu0 %v166
    %3029 = vmatmul.mubr.bf16.gmra.mxu0 %v165
    %v3030 = vpop.f32.mrf.mxu0
    %v3031 = vadd.f32 %v2988, %v3030
    %v3032 = vpop.f32.mrf.mxu0
    %v3033 = vadd.f32 %v2990, %v3032
    %v3034 = vpop.f32.mrf.mxu0
    %v3035 = vadd.f32 %v2992, %v3034
    %v3036 = vpop.f32.mrf.mxu0
    %v3037 = vadd.f32 %v2994, %v3036
    %3038 = vdwg.mxu0
    %3039 = vmatprep.subr.bf16.mxu0 0
    %3040 = vmatpush1.bf16.msra.mxu0 0
    %3041 = vmatprep.subr.bf16.mxu0 0
    %3042 = vmatpush1.bf16.msra.mxu0 0
    %3043 = vmatprep.subr.bf16.mxu0 0
    %3044 = vmatpush1.bf16.msra.mxu0 0
    %3045 = vmatprep.subr.bf16.mxu0 0
    %3046 = vmatpush1.bf16.msra.mxu0 0
    %3047 = vmatprep.subr.bf16.mxu0 0
    %3048 = vmatpush1.bf16.msra.mxu0 0
    %3049 = vmatprep.subr.bf16.mxu0 0
    %3050 = vmatpush1.bf16.msra.mxu0 0
    %3051 = vmatprep.subr.bf16.mxu0 0
    %3052 = vmatpush1.bf16.msra.mxu0 0
    %3053 = vmatprep.subr.bf16.mxu0 %v2167
    %3054 = vmatpush1.bf16.msra.mxu0 %v2166
    %3055 = vmatprep.subr.bf16.mxu0 0
    %3056 = vmatpush2.bf16.msra.mxu0 0
    %3057 = vmatprep.subr.bf16.mxu0 0
    %3058 = vmatpush2.bf16.msra.mxu0 0
    %3059 = vmatprep.subr.bf16.mxu0 0
    %3060 = vmatpush2.bf16.msra.mxu0 0
    %3061 = vmatprep.subr.bf16.mxu0 0
    %3062 = vmatpush2.bf16.msra.mxu0 0
    %3063 = vmatprep.subr.bf16.mxu0 0
    %3064 = vmatpush2.bf16.msra.mxu0 0
    %3065 = vmatprep.subr.bf16.mxu0 0
    %3066 = vmatpush2.bf16.msra.mxu0 0
    %3067 = vmatprep.subr.bf16.mxu0 0
    %3068 = vmatpush2.bf16.msra.mxu0 0
    %3069 = vmatprep.subr.bf16.mxu0 0
    %3070 = vmatpush2.bf16.msra.mxu0 0
    %3071 = vmatprep.mubr.bf16.mxu0 0
    %3072 = vmatmul.mubr.bf16.gmra.mxu0 %v2564
    %v3073 = vpop.f32.mrf.mxu0
    %v3074 = vadd.f32 %v3031, %v3073
    %v3075 = vpop.f32.mrf.mxu0
    %v3076 = vadd.f32 %v3033, %v3075
    %v3077 = vpop.f32.mrf.mxu0
    %v3078 = vadd.f32 %v3035, %v3077
    %v3079 = vpop.f32.mrf.mxu0
    %v3080 = vadd.f32 %v3037, %v3079
    %3081 = vdwg.mxu0
    %3082 = vmatprep.subr.bf16.mxu0 %v1841
    %3083 = vmatpush1.bf16.msra.mxu0 %v1840
    %3084 = vmatprep.subr.bf16.mxu0 %v1833
    %3085 = vmatpush1.bf16.msra.mxu0 %v1832
    %3086 = vmatprep.subr.bf16.mxu0 %v1825
    %3087 = vmatpush1.bf16.msra.mxu0 %v1824
    %3088 = vmatprep.subr.bf16.mxu0 %v1817
    %3089 = vmatpush1.bf16.msra.mxu0 %v1816
    %3090 = vmatprep.subr.bf16.mxu0 %v1809
    %3091 = vmatpush1.bf16.msra.mxu0 %v1808
    %3092 = vmatprep.subr.bf16.mxu0 %v1801
    %3093 = vmatpush1.bf16.msra.mxu0 %v1800
    %3094 = vmatprep.subr.bf16.mxu0 %v1793
    %3095 = vmatpush1.bf16.msra.mxu0 %v1792
    %3096 = vmatprep.subr.bf16.mxu0 %v1785
    %3097 = vmatpush1.bf16.msra.mxu0 %v1784
    %3098 = vmatprep.subr.bf16.mxu0 %v1905
    %3099 = vmatpush2.bf16.msra.mxu0 %v1904
    %3100 = vmatprep.subr.bf16.mxu0 %v1897
    %3101 = vmatpush2.bf16.msra.mxu0 %v1896
    %3102 = vmatprep.subr.bf16.mxu0 %v1889
    %3103 = vmatpush2.bf16.msra.mxu0 %v1888
    %3104 = vmatprep.subr.bf16.mxu0 %v1881
    %3105 = vmatpush2.bf16.msra.mxu0 %v1880
    %3106 = vmatprep.subr.bf16.mxu0 %v1873
    %3107 = vmatpush2.bf16.msra.mxu0 %v1872
    %3108 = vmatprep.subr.bf16.mxu0 %v1865
    %3109 = vmatpush2.bf16.msra.mxu0 %v1864
    %3110 = vmatprep.subr.bf16.mxu0 %v1857
    %3111 = vmatpush2.bf16.msra.mxu0 %v1856
    %3112 = vmatprep.subr.bf16.mxu0 %v1849
    %3113 = vmatpush2.bf16.msra.mxu0 %v1848
    %3114 = vmatprep.mubr.bf16.mxu0 %v162
    %3115 = vmatmul.mubr.bf16.gmra.mxu0 %v161
    %v3116 = vpop.f32.mrf.mxu0
    %v3117 = vadd.f32 %v589, %v3116
    %v3118 = vpop.f32.mrf.mxu0
    %v3119 = vadd.f32 %v593, %v3118
    %v3120 = vpop.f32.mrf.mxu0
    %v3121 = vadd.f32 %v589, %v3120
    %v3122 = vpop.f32.mrf.mxu0
    %v3123 = vadd.f32 %v593, %v3122
    %3124 = vdwg.mxu0
    %3125 = vmatprep.subr.bf16.mxu0 %v1969
    %3126 = vmatpush1.bf16.msra.mxu0 %v1968
    %3127 = vmatprep.subr.bf16.mxu0 %v1961
    %3128 = vmatpush1.bf16.msra.mxu0 %v1960
    %3129 = vmatprep.subr.bf16.mxu0 %v1953
    %3130 = vmatpush1.bf16.msra.mxu0 %v1952
    %3131 = vmatprep.subr.bf16.mxu0 %v1945
    %3132 = vmatpush1.bf16.msra.mxu0 %v1944
    %3133 = vmatprep.subr.bf16.mxu0 %v1937
    %3134 = vmatpush1.bf16.msra.mxu0 %v1936
    %3135 = vmatprep.subr.bf16.mxu0 %v1929
    %3136 = vmatpush1.bf16.msra.mxu0 %v1928
    %3137 = vmatprep.subr.bf16.mxu0 %v1921
    %3138 = vmatpush1.bf16.msra.mxu0 %v1920
    %3139 = vmatprep.subr.bf16.mxu0 %v1913
    %3140 = vmatpush1.bf16.msra.mxu0 %v1912
    %3141 = vmatprep.subr.bf16.mxu0 %v2033
    %3142 = vmatpush2.bf16.msra.mxu0 %v2032
    %3143 = vmatprep.subr.bf16.mxu0 %v2025
    %3144 = vmatpush2.bf16.msra.mxu0 %v2024
    %3145 = vmatprep.subr.bf16.mxu0 %v2017
    %3146 = vmatpush2.bf16.msra.mxu0 %v2016
    %3147 = vmatprep.subr.bf16.mxu0 %v2009
    %3148 = vmatpush2.bf16.msra.mxu0 %v2008
    %3149 = vmatprep.subr.bf16.mxu0 %v2001
    %3150 = vmatpush2.bf16.msra.mxu0 %v2000
    %3151 = vmatprep.subr.bf16.mxu0 %v1993
    %3152 = vmatpush2.bf16.msra.mxu0 %v1992
    %3153 = vmatprep.subr.bf16.mxu0 %v1985
    %3154 = vmatpush2.bf16.msra.mxu0 %v1984
    %3155 = vmatprep.subr.bf16.mxu0 %v1977
    %3156 = vmatpush2.bf16.msra.mxu0 %v1976
    %3157 = vmatprep.mubr.bf16.mxu0 %v164
    %3158 = vmatmul.mubr.bf16.gmra.mxu0 %v163
    %v3159 = vpop.f32.mrf.mxu0
    %v3160 = vadd.f32 %v3117, %v3159
    %v3161 = vpop.f32.mrf.mxu0
    %v3162 = vadd.f32 %v3119, %v3161
    %v3163 = vpop.f32.mrf.mxu0
    %v3164 = vadd.f32 %v3121, %v3163
    %v3165 = vpop.f32.mrf.mxu0
    %v3166 = vadd.f32 %v3123, %v3165
    %3167 = vdwg.mxu0
    %3168 = vmatprep.subr.bf16.mxu0 %v2097
    %3169 = vmatpush1.bf16.msra.mxu0 %v2096
    %3170 = vmatprep.subr.bf16.mxu0 %v2089
    %3171 = vmatpush1.bf16.msra.mxu0 %v2088
    %3172 = vmatprep.subr.bf16.mxu0 %v2081
    %3173 = vmatpush1.bf16.msra.mxu0 %v2080
    %3174 = vmatprep.subr.bf16.mxu0 %v2073
    %3175 = vmatpush1.bf16.msra.mxu0 %v2072
    %3176 = vmatprep.subr.bf16.mxu0 %v2065
    %3177 = vmatpush1.bf16.msra.mxu0 %v2064
    %3178 = vmatprep.subr.bf16.mxu0 %v2057
    %3179 = vmatpush1.bf16.msra.mxu0 %v2056
    %3180 = vmatprep.subr.bf16.mxu0 %v2049
    %3181 = vmatpush1.bf16.msra.mxu0 %v2048
    %3182 = vmatprep.subr.bf16.mxu0 %v2041
    %3183 = vmatpush1.bf16.msra.mxu0 %v2040
    %3184 = vmatprep.subr.bf16.mxu0 %v2161
    %3185 = vmatpush2.bf16.msra.mxu0 %v2160
    %3186 = vmatprep.subr.bf16.mxu0 %v2153
    %3187 = vmatpush2.bf16.msra.mxu0 %v2152
    %3188 = vmatprep.subr.bf16.mxu0 %v2145
    %3189 = vmatpush2.bf16.msra.mxu0 %v2144
    %3190 = vmatprep.subr.bf16.mxu0 %v2137
    %3191 = vmatpush2.bf16.msra.mxu0 %v2136
    %3192 = vmatprep.subr.bf16.mxu0 %v2129
    %3193 = vmatpush2.bf16.msra.mxu0 %v2128
    %3194 = vmatprep.subr.bf16.mxu0 %v2121
    %3195 = vmatpush2.bf16.msra.mxu0 %v2120
    %3196 = vmatprep.subr.bf16.mxu0 %v2113
    %3197 = vmatpush2.bf16.msra.mxu0 %v2112
    %3198 = vmatprep.subr.bf16.mxu0 %v2105
    %3199 = vmatpush2.bf16.msra.mxu0 %v2104
    %3200 = vmatprep.mubr.bf16.mxu0 %v166
    %3201 = vmatmul.mubr.bf16.gmra.mxu0 %v165
    %v3202 = vpop.f32.mrf.mxu0
    %v3203 = vadd.f32 %v3160, %v3202
    %v3204 = vpop.f32.mrf.mxu0
    %v3205 = vadd.f32 %v3162, %v3204
    %v3206 = vpop.f32.mrf.mxu0
    %v3207 = vadd.f32 %v3164, %v3206
    %v3208 = vpop.f32.mrf.mxu0
    %v3209 = vadd.f32 %v3166, %v3208
    %3210 = vdwg.mxu0
    %3211 = vmatprep.subr.bf16.mxu0 0
    %3212 = vmatpush1.bf16.msra.mxu0 0
    %3213 = vmatprep.subr.bf16.mxu0 0
    %3214 = vmatpush1.bf16.msra.mxu0 0
    %3215 = vmatprep.subr.bf16.mxu0 0
    %3216 = vmatpush1.bf16.msra.mxu0 0
    %3217 = vmatprep.subr.bf16.mxu0 0
    %3218 = vmatpush1.bf16.msra.mxu0 0
    %3219 = vmatprep.subr.bf16.mxu0 0
    %3220 = vmatpush1.bf16.msra.mxu0 0
    %3221 = vmatprep.subr.bf16.mxu0 0
    %3222 = vmatpush1.bf16.msra.mxu0 0
    %3223 = vmatprep.subr.bf16.mxu0 0
    %3224 = vmatpush1.bf16.msra.mxu0 0
    %3225 = vmatprep.subr.bf16.mxu0 %v2169
    %3226 = vmatpush1.bf16.msra.mxu0 %v2168
    %3227 = vmatprep.subr.bf16.mxu0 0
    %3228 = vmatpush2.bf16.msra.mxu0 0
    %3229 = vmatprep.subr.bf16.mxu0 0
    %3230 = vmatpush2.bf16.msra.mxu0 0
    %3231 = vmatprep.subr.bf16.mxu0 0
    %3232 = vmatpush2.bf16.msra.mxu0 0
    %3233 = vmatprep.subr.bf16.mxu0 0
    %3234 = vmatpush2.bf16.msra.mxu0 0
    %3235 = vmatprep.subr.bf16.mxu0 0
    %3236 = vmatpush2.bf16.msra.mxu0 0
    %3237 = vmatprep.subr.bf16.mxu0 0
    %3238 = vmatpush2.bf16.msra.mxu0 0
    %3239 = vmatprep.subr.bf16.mxu0 0
    %3240 = vmatpush2.bf16.msra.mxu0 0
    %3241 = vmatprep.subr.bf16.mxu0 0
    %3242 = vmatpush2.bf16.msra.mxu0 0
    %3243 = vmatprep.mubr.bf16.mxu0 0
    %3244 = vmatmul.mubr.bf16.gmra.mxu0 %v2564
    %v3245 = vpop.f32.mrf.mxu0
    %v3246 = vadd.f32 %v3203, %v3245
    %v3247 = vpop.f32.mrf.mxu0
    %v3248 = vadd.f32 %v3205, %v3247
    %v3249 = vpop.f32.mrf.mxu0
    %v3250 = vadd.f32 %v3207, %v3249
    %v3251 = vpop.f32.mrf.mxu0
    %v3252 = vadd.f32 %v3209, %v3251
    %3253 = vdwg.mxu0
    %v3254 = vmul.f32 %v2730, 0.2
    %v3255 = vmul.f32 %v2732, 0.2
    %v3256 = vmul.f32 %v2902, 0.2
    %v3257 = vmul.f32 %v2904, 0.2
    %v3258 = vmul.f32 %v3074, 0.2
    %v3259 = vmul.f32 %v3076, 0.2
    %v3260 = vmul.f32 %v3246, 0.2
    %v3261 = vmul.f32 %v3248, 0.2
    %v3262 = vmul.f32 %v2734, 0.2
    %v3263 = vmul.f32 %v2736, 0.2
    %v3264 = vmul.f32 %v2906, 0.2
    %v3265 = vmul.f32 %v2908, 0.2
    %v3266 = vmul.f32 %v3078, 0.2
    %v3267 = vmul.f32 %v3080, 0.2
    %v3268 = vmul.f32 %v3250, 0.2
    %v3269 = vmul.f32 %v3252, 0.2
    %v3270 = vmax.f32 %v2730, %v3254
    %v3271 = vmax.f32 %v2732, %v3255
    %v3272 = vmax.f32 %v2902, %v3256
    %v3273 = vmax.f32 %v2904, %v3257
    %v3274 = vmax.f32 %v3074, %v3258
    %v3275 = vmax.f32 %v3076, %v3259
    %v3276 = vmax.f32 %v3246, %v3260
    %v3277 = vmax.f32 %v3248, %v3261
    %v3278 = vmax.f32 %v2734, %v3262
    %v3279 = vmax.f32 %v2736, %v3263
    %v3280 = vmax.f32 %v2906, %v3264
    %v3281 = vmax.f32 %v2908, %v3265
    %v3282 = vmax.f32 %v3078, %v3266
    %v3283 = vmax.f32 %v3080, %v3267
    %v3284 = vmax.f32 %v3250, %v3268
    %v3285 = vmax.f32 %v3252, %v3269
    %v3286 = vpack.c.bf16 %v3278, %v3270
    %v3287 = vpack.c.bf16 %v3279, %v3271
    %v3288 = vpack.c.bf16 %v3280, %v3272
    %v3289 = vpack.c.bf16 %v3281, %v3273
    %v3290 = vpack.c.bf16 %v3282, %v3274
    %v3291 = vpack.c.bf16 %v3283, %v3275
    %v3292 = vpack.c.bf16 %v3284, %v3276
    %v3293 = vpack.c.bf16 %v3285, %v3277
    %v3294 = vld [vmem:[#allocation7] sm:$0xff]
    %v3295 = vld [vmem:[#allocation7 + $0x8] sm:$0xff]
    %v3296 = vld [vmem:[#allocation7 + $0x10] sm:$0xff]
    %v3297 = vld [vmem:[#allocation7 + $0x18] sm:$0xff]
    %v3298 = vld [vmem:[#allocation7 + $0x20] sm:$0xff]
    %v3299 = vld [vmem:[#allocation7 + $0x28] sm:$0xff]
    %v3300 = vld [vmem:[#allocation7 + $0x30] sm:$0xff]
    %v3301 = vld [vmem:[#allocation7 + $0x38] sm:$0xff]
    %v3302 = vld [vmem:[#allocation7 + $0x40] sm:$0xff]
    %v3303 = vld [vmem:[#allocation7 + $0x48] sm:$0xff]
    %v3304 = vld [vmem:[#allocation7 + $0x50] sm:$0xff]
    %v3305 = vld [vmem:[#allocation7 + $0x58] sm:$0xff]
    %v3306 = vld [vmem:[#allocation7 + $0x60] sm:$0xff]
    %v3307 = vld [vmem:[#allocation7 + $0x68] sm:$0xff]
    %v3308 = vld [vmem:[#allocation7 + $0x70] sm:$0xff]
    %v3309 = vld [vmem:[#allocation7 + $0x78] sm:$0xff]
    %v3310 = vld [vmem:[#allocation7 + $0x80] sm:$0xff]
    %v3311 = vld [vmem:[#allocation7 + $0x88] sm:$0xff]
    %v3312 = vld [vmem:[#allocation7 + $0x90] sm:$0xff]
    %v3313 = vld [vmem:[#allocation7 + $0x98] sm:$0xff]
    %v3314 = vld [vmem:[#allocation7 + $0xa0] sm:$0xff]
    %v3315 = vld [vmem:[#allocation7 + $0xa8] sm:$0xff]
    %v3316 = vld [vmem:[#allocation7 + $0xb0] sm:$0xff]
    %v3317 = vld [vmem:[#allocation7 + $0xb8] sm:$0xff]
    %v3318 = vld [vmem:[#allocation7 + $0xc0] sm:$0xff]
    %v3319 = vld [vmem:[#allocation7 + $0xc8] sm:$0xff]
    %v3320 = vld [vmem:[#allocation7 + $0xd0] sm:$0xff]
    %v3321 = vld [vmem:[#allocation7 + $0xd8] sm:$0xff]
    %v3322 = vld [vmem:[#allocation7 + $0xe0] sm:$0xff]
    %v3323 = vld [vmem:[#allocation7 + $0xe8] sm:$0xff]
    %v3324 = vld [vmem:[#allocation7 + $0xf0] sm:$0xff]
    %v3325 = vld [vmem:[#allocation7 + $0xf8] sm:$0xff]
    %v3326 = vld [vmem:[#allocation7 + $0x100] sm:$0xff]
    %v3327 = vld [vmem:[#allocation7 + $0x108] sm:$0xff]
    %v3328 = vld [vmem:[#allocation7 + $0x110] sm:$0xff]
    %v3329 = vld [vmem:[#allocation7 + $0x118] sm:$0xff]
    %v3330 = vld [vmem:[#allocation7 + $0x120] sm:$0xff]
    %v3331 = vld [vmem:[#allocation7 + $0x128] sm:$0xff]
    %v3332 = vld [vmem:[#allocation7 + $0x130] sm:$0xff]
    %v3333 = vld [vmem:[#allocation7 + $0x138] sm:$0xff]
    %v3334 = vld [vmem:[#allocation7 + $0x140] sm:$0xff]
    %v3335 = vld [vmem:[#allocation7 + $0x148] sm:$0xff]
    %v3336 = vld [vmem:[#allocation7 + $0x150] sm:$0xff]
    %v3337 = vld [vmem:[#allocation7 + $0x158] sm:$0xff]
    %v3338 = vld [vmem:[#allocation7 + $0x160] sm:$0xff]
    %v3339 = vld [vmem:[#allocation7 + $0x168] sm:$0xff]
    %v3340 = vld [vmem:[#allocation7 + $0x170] sm:$0xff]
    %v3341 = vld [vmem:[#allocation7 + $0x178] sm:$0xff]
    %v3342 = vld [vmem:[#allocation7 + $0x180] sm:$0xff]
    %v3343 = vld [vmem:[#allocation7 + $0x188] sm:$0xff]
    %v3344 = vld [vmem:[#allocation7 + $0x190] sm:$0xff]
    %v3345 = vld [vmem:[#allocation7 + $0x198] sm:$0xff]
    %v3346 = vld [vmem:[#allocation7 + $0x1a0] sm:$0xff]
    %v3347 = vld [vmem:[#allocation7 + $0x1a8] sm:$0xff]
    %v3348 = vld [vmem:[#allocation7 + $0x1b0] sm:$0xff]
    %v3349 = vld [vmem:[#allocation7 + $0x1b8] sm:$0xff]
    %v3350 = vld [vmem:[#allocation7 + $0x1c0] sm:$0xff]
    %v3351 = vld [vmem:[#allocation7 + $0x1c8] sm:$0xff]
    %v3352 = vld [vmem:[#allocation7 + $0x1d0] sm:$0xff]
    %v3353 = vld [vmem:[#allocation7 + $0x1d8] sm:$0xff]
    %v3354 = vld [vmem:[#allocation7 + $0x1e0] sm:$0xff]
    %v3355 = vld [vmem:[#allocation7 + $0x1e8] sm:$0xff]
    %v3356 = vld [vmem:[#allocation7 + $0x1f0] sm:$0xff]
    %v3357 = vld [vmem:[#allocation7 + $0x1f8] sm:$0xff]
    %v3358 = vld [vmem:[#allocation7 + $0x200] sm:$0xff]
    %v3359 = vld [vmem:[#allocation7 + $0x208] sm:$0xff]
    %v3360 = vld [vmem:[#allocation7 + $0x210] sm:$0xff]
    %v3361 = vld [vmem:[#allocation7 + $0x218] sm:$0xff]
    %v3362 = vld [vmem:[#allocation7 + $0x220] sm:$0xff]
    %v3363 = vld [vmem:[#allocation7 + $0x228] sm:$0xff]
    %v3364 = vld [vmem:[#allocation7 + $0x230] sm:$0xff]
    %v3365 = vld [vmem:[#allocation7 + $0x238] sm:$0xff]
    %v3366 = vld [vmem:[#allocation7 + $0x240] sm:$0xff]
    %v3367 = vld [vmem:[#allocation7 + $0x248] sm:$0xff]
    %v3368 = vld [vmem:[#allocation7 + $0x250] sm:$0xff]
    %v3369 = vld [vmem:[#allocation7 + $0x258] sm:$0xff]
    %v3370 = vld [vmem:[#allocation7 + $0x260] sm:$0xff]
    %v3371 = vld [vmem:[#allocation7 + $0x268] sm:$0xff]
    %v3372 = vld [vmem:[#allocation7 + $0x270] sm:$0xff]
    %v3373 = vld [vmem:[#allocation7 + $0x278] sm:$0xff]
    %v3374 = vld [vmem:[#allocation7 + $0x280] sm:$0xff]
    %v3375 = vld [vmem:[#allocation7 + $0x288] sm:$0xff]
    %v3376 = vld [vmem:[#allocation7 + $0x290] sm:$0xff]
    %v3377 = vld [vmem:[#allocation7 + $0x298] sm:$0xff]
    %v3378 = vld [vmem:[#allocation7 + $0x2a0] sm:$0xff]
    %v3379 = vld [vmem:[#allocation7 + $0x2a8] sm:$0xff]
    %v3380 = vld [vmem:[#allocation7 + $0x2b0] sm:$0xff]
    %v3381 = vld [vmem:[#allocation7 + $0x2b8] sm:$0xff]
    %v3382 = vld [vmem:[#allocation7 + $0x2c0] sm:$0xff]
    %v3383 = vld [vmem:[#allocation7 + $0x2c8] sm:$0xff]
    %v3384 = vld [vmem:[#allocation7 + $0x2d0] sm:$0xff]
    %v3385 = vld [vmem:[#allocation7 + $0x2d8] sm:$0xff]
    %v3386 = vld [vmem:[#allocation7 + $0x2e0] sm:$0xff]
    %v3387 = vld [vmem:[#allocation7 + $0x2e8] sm:$0xff]
    %v3388 = vld [vmem:[#allocation7 + $0x2f0] sm:$0xff]
    %v3389 = vld [vmem:[#allocation7 + $0x2f8] sm:$0xff]
    %v3390 = vld [vmem:[#allocation7 + $0x300] sm:$0xff]
    %v3391 = vld [vmem:[#allocation7 + $0x308] sm:$0xff]
    %v3392 = vld [vmem:[#allocation7 + $0x310] sm:$0xff]
    %v3393 = vld [vmem:[#allocation7 + $0x318] sm:$0xff]
    %v3394 = vld [vmem:[#allocation7 + $0x320] sm:$0xff]
    %v3395 = vld [vmem:[#allocation7 + $0x328] sm:$0xff]
    %v3396 = vld [vmem:[#allocation7 + $0x330] sm:$0xff]
    %v3397 = vld [vmem:[#allocation7 + $0x338] sm:$0xff]
    %v3398 = vld [vmem:[#allocation7 + $0x340] sm:$0xff]
    %v3399 = vld [vmem:[#allocation7 + $0x348] sm:$0xff]
    %v3400 = vld [vmem:[#allocation7 + $0x350] sm:$0xff]
    %v3401 = vld [vmem:[#allocation7 + $0x358] sm:$0xff]
    %v3402 = vld [vmem:[#allocation7 + $0x360] sm:$0xff]
    %v3403 = vld [vmem:[#allocation7 + $0x368] sm:$0xff]
    %v3404 = vld [vmem:[#allocation7 + $0x370] sm:$0xff]
    %v3405 = vld [vmem:[#allocation7 + $0x378] sm:$0xff]
    %v3406 = vld [vmem:[#allocation7 + $0x380] sm:$0xff]
    %v3407 = vld [vmem:[#allocation7 + $0x388] sm:$0xff]
    %v3408 = vld [vmem:[#allocation7 + $0x390] sm:$0xff]
    %v3409 = vld [vmem:[#allocation7 + $0x398] sm:$0xff]
    %v3410 = vld [vmem:[#allocation7 + $0x3a0] sm:$0xff]
    %v3411 = vld [vmem:[#allocation7 + $0x3a8] sm:$0xff]
    %v3412 = vld [vmem:[#allocation7 + $0x3b0] sm:$0xff]
    %v3413 = vld [vmem:[#allocation7 + $0x3b8] sm:$0xff]
    %v3414 = vld [vmem:[#allocation7 + $0x3c0] sm:$0xff]
    %v3415 = vld [vmem:[#allocation7 + $0x3c8] sm:$0xff]
    %v3416 = vld [vmem:[#allocation7 + $0x3d0] sm:$0xff]
    %v3417 = vld [vmem:[#allocation7 + $0x3d8] sm:$0xff]
    %v3418 = vld [vmem:[#allocation7 + $0x3e0] sm:$0xff]
    %v3419 = vld [vmem:[#allocation7 + $0x3e8] sm:$0xff]
    %v3420 = vld [vmem:[#allocation7 + $0x3f0] sm:$0xff]
    %v3421 = vld [vmem:[#allocation7 + $0x3f8] sm:$0xff]
    %v3422 = vld [vmem:[#allocation7 + $0x400] sm:$0xff]
    %v3423 = vld [vmem:[#allocation7 + $0x408] sm:$0xff]
    %v3424 = vld [vmem:[#allocation7 + $0x410] sm:$0xff]
    %v3425 = vld [vmem:[#allocation7 + $0x418] sm:$0xff]
    %v3426 = vld [vmem:[#allocation7 + $0x420] sm:$0xff]
    %v3427 = vld [vmem:[#allocation7 + $0x428] sm:$0xff]
    %v3428 = vld [vmem:[#allocation7 + $0x430] sm:$0xff]
    %v3429 = vld [vmem:[#allocation7 + $0x438] sm:$0xff]
    %v3430 = vld [vmem:[#allocation7 + $0x440] sm:$0xff]
    %v3431 = vld [vmem:[#allocation7 + $0x448] sm:$0xff]
    %v3432 = vld [vmem:[#allocation7 + $0x450] sm:$0xff]
    %v3433 = vld [vmem:[#allocation7 + $0x458] sm:$0xff]
    %v3434 = vld [vmem:[#allocation7 + $0x460] sm:$0xff]
    %v3435 = vld [vmem:[#allocation7 + $0x468] sm:$0xff]
    %v3436 = vld [vmem:[#allocation7 + $0x470] sm:$0xff]
    %v3437 = vld [vmem:[#allocation7 + $0x478] sm:$0xff]
    %v3438 = vld [vmem:[#allocation7 + $0x480] sm:$0xff]
    %v3439 = vld [vmem:[#allocation7 + $0x488] sm:$0xff]
    %v3440 = vld [vmem:[#allocation7 + $0x490] sm:$0xff]
    %v3441 = vld [vmem:[#allocation7 + $0x498] sm:$0xff]
    %v3442 = vld [vmem:[#allocation7 + $0x4a0] sm:$0xff]
    %v3443 = vld [vmem:[#allocation7 + $0x4a8] sm:$0xff]
    %v3444 = vld [vmem:[#allocation7 + $0x4b0] sm:$0xff]
    %v3445 = vld [vmem:[#allocation7 + $0x4b8] sm:$0xff]
    %v3446 = vld [vmem:[#allocation7 + $0x4c0] sm:$0xff]
    %v3447 = vld [vmem:[#allocation7 + $0x4c8] sm:$0xff]
    %v3448 = vld [vmem:[#allocation7 + $0x4d0] sm:$0xff]
    %v3449 = vld [vmem:[#allocation7 + $0x4d8] sm:$0xff]
    %v3450 = vld [vmem:[#allocation7 + $0x4e0] sm:$0xff]
    %v3451 = vld [vmem:[#allocation7 + $0x4e8] sm:$0xff]
    %v3452 = vld [vmem:[#allocation7 + $0x4f0] sm:$0xff]
    %v3453 = vld [vmem:[#allocation7 + $0x4f8] sm:$0xff]
    %v3454 = vld [vmem:[#allocation7 + $0x500] sm:$0xff]
    %v3455 = vld [vmem:[#allocation7 + $0x508] sm:$0xff]
    %v3456 = vld [vmem:[#allocation7 + $0x510] sm:$0xff]
    %v3457 = vld [vmem:[#allocation7 + $0x518] sm:$0xff]
    %v3458 = vld [vmem:[#allocation7 + $0x520] sm:$0xff]
    %v3459 = vld [vmem:[#allocation7 + $0x528] sm:$0xff]
    %v3460 = vld [vmem:[#allocation7 + $0x530] sm:$0xff]
    %v3461 = vld [vmem:[#allocation7 + $0x538] sm:$0xff]
    %v3462 = vld [vmem:[#allocation7 + $0x540] sm:$0xff]
    %v3463 = vld [vmem:[#allocation7 + $0x548] sm:$0xff]
    %v3464 = vld [vmem:[#allocation7 + $0x550] sm:$0xff]
    %v3465 = vld [vmem:[#allocation7 + $0x558] sm:$0xff]
    %v3466 = vld [vmem:[#allocation7 + $0x560] sm:$0xff]
    %v3467 = vld [vmem:[#allocation7 + $0x568] sm:$0xff]
    %v3468 = vld [vmem:[#allocation7 + $0x570] sm:$0xff]
    %v3469 = vld [vmem:[#allocation7 + $0x578] sm:$0xff]
    %v3470 = vld [vmem:[#allocation7 + $0x580] sm:$0xff]
    %v3471 = vld [vmem:[#allocation7 + $0x588] sm:$0xff]
    %v3472 = vld [vmem:[#allocation7 + $0x590] sm:$0xff]
    %v3473 = vld [vmem:[#allocation7 + $0x598] sm:$0xff]
    %v3474 = vld [vmem:[#allocation7 + $0x5a0] sm:$0xff]
    %v3475 = vld [vmem:[#allocation7 + $0x5a8] sm:$0xff]
    %v3476 = vld [vmem:[#allocation7 + $0x5b0] sm:$0xff]
    %v3477 = vld [vmem:[#allocation7 + $0x5b8] sm:$0xff]
    %v3478 = vld [vmem:[#allocation7 + $0x5c0] sm:$0xff]
    %v3479 = vld [vmem:[#allocation7 + $0x5c8] sm:$0xff]
    %v3480 = vld [vmem:[#allocation7 + $0x5d0] sm:$0xff]
    %v3481 = vld [vmem:[#allocation7 + $0x5d8] sm:$0xff]
    %v3482 = vld [vmem:[#allocation7 + $0x5e0] sm:$0xff]
    %v3483 = vld [vmem:[#allocation7 + $0x5e8] sm:$0xff]
    %v3484 = vld [vmem:[#allocation7 + $0x5f0] sm:$0xff]
    %v3485 = vld [vmem:[#allocation7 + $0x5f8] sm:$0xff]
    %v3486 = vld [vmem:[#allocation7 + $0x600] sm:$0xff]
    %v3487 = vld [vmem:[#allocation7 + $0x608] sm:$0xff]
    %v3488 = vld [vmem:[#allocation7 + $0x610] sm:$0xff]
    %v3489 = vld [vmem:[#allocation7 + $0x618] sm:$0xff]
    %v3490 = vld [vmem:[#allocation7 + $0x620] sm:$0xff]
    %v3491 = vld [vmem:[#allocation7 + $0x628] sm:$0xff]
    %v3492 = vld [vmem:[#allocation7 + $0x630] sm:$0xff]
    %v3493 = vld [vmem:[#allocation7 + $0x638] sm:$0xff]
    %v3494 = vld [vmem:[#allocation7 + $0x640] sm:$0xff]
    %v3495 = vld [vmem:[#allocation7 + $0x648] sm:$0xff]
    %v3496 = vld [vmem:[#allocation7 + $0x650] sm:$0xff]
    %v3497 = vld [vmem:[#allocation7 + $0x658] sm:$0xff]
    %v3498 = vld [vmem:[#allocation7 + $0x660] sm:$0xff]
    %v3499 = vld [vmem:[#allocation7 + $0x668] sm:$0xff]
    %v3500 = vld [vmem:[#allocation7 + $0x670] sm:$0xff]
    %v3501 = vld [vmem:[#allocation7 + $0x678] sm:$0xff]
    %v3502 = vld [vmem:[#allocation7 + $0x680] sm:$0xff]
    %v3503 = vld [vmem:[#allocation7 + $0x688] sm:$0xff]
    %v3504 = vld [vmem:[#allocation7 + $0x690] sm:$0xff]
    %v3505 = vld [vmem:[#allocation7 + $0x698] sm:$0xff]
    %v3506 = vld [vmem:[#allocation7 + $0x6a0] sm:$0xff]
    %v3507 = vld [vmem:[#allocation7 + $0x6a8] sm:$0xff]
    %v3508 = vld [vmem:[#allocation7 + $0x6b0] sm:$0xff]
    %v3509 = vld [vmem:[#allocation7 + $0x6b8] sm:$0xff]
    %v3510 = vld [vmem:[#allocation7 + $0x6c0] sm:$0xff]
    %v3511 = vld [vmem:[#allocation7 + $0x6c8] sm:$0xff]
    %v3512 = vld [vmem:[#allocation7 + $0x6d0] sm:$0xff]
    %v3513 = vld [vmem:[#allocation7 + $0x6d8] sm:$0xff]
    %v3514 = vld [vmem:[#allocation7 + $0x6e0] sm:$0xff]
    %v3515 = vld [vmem:[#allocation7 + $0x6e8] sm:$0xff]
    %v3516 = vld [vmem:[#allocation7 + $0x6f0] sm:$0xff]
    %v3517 = vld [vmem:[#allocation7 + $0x6f8] sm:$0xff]
    %v3518 = vld [vmem:[#allocation7 + $0x700] sm:$0xff]
    %v3519 = vld [vmem:[#allocation7 + $0x708] sm:$0xff]
    %v3520 = vld [vmem:[#allocation7 + $0x710] sm:$0xff]
    %v3521 = vld [vmem:[#allocation7 + $0x718] sm:$0xff]
    %v3522 = vld [vmem:[#allocation7 + $0x720] sm:$0xff]
    %v3523 = vld [vmem:[#allocation7 + $0x728] sm:$0xff]
    %v3524 = vld [vmem:[#allocation7 + $0x730] sm:$0xff]
    %v3525 = vld [vmem:[#allocation7 + $0x738] sm:$0xff]
    %v3526 = vld [vmem:[#allocation7 + $0x740] sm:$0xff]
    %v3527 = vld [vmem:[#allocation7 + $0x748] sm:$0xff]
    %v3528 = vld [vmem:[#allocation7 + $0x750] sm:$0xff]
    %v3529 = vld [vmem:[#allocation7 + $0x758] sm:$0xff]
    %v3530 = vld [vmem:[#allocation7 + $0x760] sm:$0xff]
    %v3531 = vld [vmem:[#allocation7 + $0x768] sm:$0xff]
    %v3532 = vld [vmem:[#allocation7 + $0x770] sm:$0xff]
    %v3533 = vld [vmem:[#allocation7 + $0x778] sm:$0xff]
    %v3534 = vld [vmem:[#allocation7 + $0x780] sm:$0xff]
    %v3535 = vld [vmem:[#allocation7 + $0x788] sm:$0xff]
    %v3536 = vld [vmem:[#allocation7 + $0x790] sm:$0xff]
    %v3537 = vld [vmem:[#allocation7 + $0x798] sm:$0xff]
    %v3538 = vld [vmem:[#allocation7 + $0x7a0] sm:$0xff]
    %v3539 = vld [vmem:[#allocation7 + $0x7a8] sm:$0xff]
    %v3540 = vld [vmem:[#allocation7 + $0x7b0] sm:$0xff]
    %v3541 = vld [vmem:[#allocation7 + $0x7b8] sm:$0xff]
    %v3542 = vld [vmem:[#allocation7 + $0x7c0] sm:$0xff]
    %v3543 = vld [vmem:[#allocation7 + $0x7c8] sm:$0xff]
    %v3544 = vld [vmem:[#allocation7 + $0x7d0] sm:$0xff]
    %v3545 = vld [vmem:[#allocation7 + $0x7d8] sm:$0xff]
    %v3546 = vld [vmem:[#allocation7 + $0x7e0] sm:$0xff]
    %v3547 = vld [vmem:[#allocation7 + $0x7e8] sm:$0xff]
    %v3548 = vld [vmem:[#allocation7 + $0x7f0] sm:$0xff]
    %v3549 = vld [vmem:[#allocation7 + $0x7f8] sm:$0xff]
    %v3550 = vld [vmem:[#allocation9] sm:$0xf]
    %v3552 = vlaneseq
    %v3553 = vshrl.u32 %v3552, 7
    %v3554 = vsub.s32 0, %v3553
    %v3555 = vrot.slane %v3550, %v3554
    %v3556 = vlaneseq
    %v3557 = vshrl.u32 %v3556, 7
    %v3558 = vsub.s32 1, %v3557
    %v3559 = vrot.slane %v3550, %v3558
    %v3560 = vlaneseq
    %v3561 = vshrl.u32 %v3560, 7
    %v3562 = vsub.s32 2, %v3561
    %v3563 = vrot.slane %v3550, %v3562
    %v3564 = vlaneseq
    %v3565 = vshrl.u32 %v3564, 7
    %v3566 = vsub.s32 3, %v3565
    %v3567 = vrot.slane %v3550, %v3566
    %v3828 = vunpack.c.l.b16 %v3294
    %v3829 = vunpack.c.h.b16 %v3294
    %v3830 = vunpack.c.l.b16 %v3295
    %v3831 = vunpack.c.h.b16 %v3295
    %v3832 = vunpack.c.l.b16 %v3296
    %v3833 = vunpack.c.h.b16 %v3296
    %v3834 = vunpack.c.l.b16 %v3297
    %v3835 = vunpack.c.h.b16 %v3297
    %v3836 = vunpack.c.l.b16 %v3298
    %v3837 = vunpack.c.h.b16 %v3298
    %v3838 = vunpack.c.l.b16 %v3299
    %v3839 = vunpack.c.h.b16 %v3299
    %v3840 = vunpack.c.l.b16 %v3300
    %v3841 = vunpack.c.h.b16 %v3300
    %v3842 = vunpack.c.l.b16 %v3301
    %v3843 = vunpack.c.h.b16 %v3301
    %v3844 = vunpack.c.l.b16 %v3302
    %v3845 = vunpack.c.h.b16 %v3302
    %v3846 = vunpack.c.l.b16 %v3303
    %v3847 = vunpack.c.h.b16 %v3303
    %v3848 = vunpack.c.l.b16 %v3304
    %v3849 = vunpack.c.h.b16 %v3304
    %v3850 = vunpack.c.l.b16 %v3305
    %v3851 = vunpack.c.h.b16 %v3305
    %v3852 = vunpack.c.l.b16 %v3306
    %v3853 = vunpack.c.h.b16 %v3306
    %v3854 = vunpack.c.l.b16 %v3307
    %v3855 = vunpack.c.h.b16 %v3307
    %v3856 = vunpack.c.l.b16 %v3308
    %v3857 = vunpack.c.h.b16 %v3308
    %v3858 = vunpack.c.l.b16 %v3309
    %v3859 = vunpack.c.h.b16 %v3309
    %v3860 = vunpack.c.l.b16 %v3310
    %v3861 = vunpack.c.h.b16 %v3310
    %v3862 = vunpack.c.l.b16 %v3311
    %v3863 = vunpack.c.h.b16 %v3311
    %v3864 = vunpack.c.l.b16 %v3312
    %v3865 = vunpack.c.h.b16 %v3312
    %v3866 = vunpack.c.l.b16 %v3313
    %v3867 = vunpack.c.h.b16 %v3313
    %v3868 = vunpack.c.l.b16 %v3314
    %v3869 = vunpack.c.h.b16 %v3314
    %v3870 = vunpack.c.l.b16 %v3315
    %v3871 = vunpack.c.h.b16 %v3315
    %v3872 = vunpack.c.l.b16 %v3316
    %v3873 = vunpack.c.h.b16 %v3316
    %v3874 = vunpack.c.l.b16 %v3317
    %v3875 = vunpack.c.h.b16 %v3317
    %v3876 = vunpack.c.l.b16 %v3318
    %v3877 = vunpack.c.h.b16 %v3318
    %v3878 = vunpack.c.l.b16 %v3319
    %v3879 = vunpack.c.h.b16 %v3319
    %v3880 = vunpack.c.l.b16 %v3320
    %v3881 = vunpack.c.h.b16 %v3320
    %v3882 = vunpack.c.l.b16 %v3321
    %v3883 = vunpack.c.h.b16 %v3321
    %v3884 = vunpack.c.l.b16 %v3322
    %v3885 = vunpack.c.h.b16 %v3322
    %v3886 = vunpack.c.l.b16 %v3323
    %v3887 = vunpack.c.h.b16 %v3323
    %v3888 = vunpack.c.l.b16 %v3324
    %v3889 = vunpack.c.h.b16 %v3324
    %v3890 = vunpack.c.l.b16 %v3325
    %v3891 = vunpack.c.h.b16 %v3325
    %v3892 = vunpack.c.l.b16 %v3326
    %v3893 = vunpack.c.h.b16 %v3326
    %v3894 = vunpack.c.l.b16 %v3327
    %v3895 = vunpack.c.h.b16 %v3327
    %v3896 = vunpack.c.l.b16 %v3328
    %v3897 = vunpack.c.h.b16 %v3328
    %v3898 = vunpack.c.l.b16 %v3329
    %v3899 = vunpack.c.h.b16 %v3329
    %v3900 = vunpack.c.l.b16 %v3330
    %v3901 = vunpack.c.h.b16 %v3330
    %v3902 = vunpack.c.l.b16 %v3331
    %v3903 = vunpack.c.h.b16 %v3331
    %v3904 = vunpack.c.l.b16 %v3332
    %v3905 = vunpack.c.h.b16 %v3332
    %v3906 = vunpack.c.l.b16 %v3333
    %v3907 = vunpack.c.h.b16 %v3333
    %v3908 = vunpack.c.l.b16 %v3334
    %v3909 = vunpack.c.h.b16 %v3334
    %v3910 = vunpack.c.l.b16 %v3335
    %v3911 = vunpack.c.h.b16 %v3335
    %v3912 = vunpack.c.l.b16 %v3336
    %v3913 = vunpack.c.h.b16 %v3336
    %v3914 = vunpack.c.l.b16 %v3337
    %v3915 = vunpack.c.h.b16 %v3337
    %v3916 = vunpack.c.l.b16 %v3338
    %v3917 = vunpack.c.h.b16 %v3338
    %v3918 = vunpack.c.l.b16 %v3339
    %v3919 = vunpack.c.h.b16 %v3339
    %v3920 = vunpack.c.l.b16 %v3340
    %v3921 = vunpack.c.h.b16 %v3340
    %v3922 = vunpack.c.l.b16 %v3341
    %v3923 = vunpack.c.h.b16 %v3341
    %v3924 = vunpack.c.l.b16 %v3342
    %v3925 = vunpack.c.h.b16 %v3342
    %v3926 = vunpack.c.l.b16 %v3343
    %v3927 = vunpack.c.h.b16 %v3343
    %v3928 = vunpack.c.l.b16 %v3344
    %v3929 = vunpack.c.h.b16 %v3344
    %v3930 = vunpack.c.l.b16 %v3345
    %v3931 = vunpack.c.h.b16 %v3345
    %v3932 = vunpack.c.l.b16 %v3346
    %v3933 = vunpack.c.h.b16 %v3346
    %v3934 = vunpack.c.l.b16 %v3347
    %v3935 = vunpack.c.h.b16 %v3347
    %v3936 = vunpack.c.l.b16 %v3348
    %v3937 = vunpack.c.h.b16 %v3348
    %v3938 = vunpack.c.l.b16 %v3349
    %v3939 = vunpack.c.h.b16 %v3349
    %v3940 = vunpack.c.l.b16 %v3350
    %v3941 = vunpack.c.h.b16 %v3350
    %v3942 = vunpack.c.l.b16 %v3351
    %v3943 = vunpack.c.h.b16 %v3351
    %v3944 = vunpack.c.l.b16 %v3352
    %v3945 = vunpack.c.h.b16 %v3352
    %v3946 = vunpack.c.l.b16 %v3353
    %v3947 = vunpack.c.h.b16 %v3353
    %v3948 = vunpack.c.l.b16 %v3354
    %v3949 = vunpack.c.h.b16 %v3354
    %v3950 = vunpack.c.l.b16 %v3355
    %v3951 = vunpack.c.h.b16 %v3355
    %v3952 = vunpack.c.l.b16 %v3356
    %v3953 = vunpack.c.h.b16 %v3356
    %v3954 = vunpack.c.l.b16 %v3357
    %v3955 = vunpack.c.h.b16 %v3357
    %v3956 = vunpack.c.l.b16 %v3358
    %v3957 = vunpack.c.h.b16 %v3358
    %v3958 = vunpack.c.l.b16 %v3359
    %v3959 = vunpack.c.h.b16 %v3359
    %v3960 = vunpack.c.l.b16 %v3360
    %v3961 = vunpack.c.h.b16 %v3360
    %v3962 = vunpack.c.l.b16 %v3361
    %v3963 = vunpack.c.h.b16 %v3361
    %v3964 = vunpack.c.l.b16 %v3362
    %v3965 = vunpack.c.h.b16 %v3362
    %v3966 = vunpack.c.l.b16 %v3363
    %v3967 = vunpack.c.h.b16 %v3363
    %v3968 = vunpack.c.l.b16 %v3364
    %v3969 = vunpack.c.h.b16 %v3364
    %v3970 = vunpack.c.l.b16 %v3365
    %v3971 = vunpack.c.h.b16 %v3365
    %v3972 = vunpack.c.l.b16 %v3366
    %v3973 = vunpack.c.h.b16 %v3366
    %v3974 = vunpack.c.l.b16 %v3367
    %v3975 = vunpack.c.h.b16 %v3367
    %v3976 = vunpack.c.l.b16 %v3368
    %v3977 = vunpack.c.h.b16 %v3368
    %v3978 = vunpack.c.l.b16 %v3369
    %v3979 = vunpack.c.h.b16 %v3369
    %v3980 = vunpack.c.l.b16 %v3370
    %v3981 = vunpack.c.h.b16 %v3370
    %v3982 = vunpack.c.l.b16 %v3371
    %v3983 = vunpack.c.h.b16 %v3371
    %v3984 = vunpack.c.l.b16 %v3372
    %v3985 = vunpack.c.h.b16 %v3372
    %v3986 = vunpack.c.l.b16 %v3373
    %v3987 = vunpack.c.h.b16 %v3373
    %v3988 = vunpack.c.l.b16 %v3374
    %v3989 = vunpack.c.h.b16 %v3374
    %v3990 = vunpack.c.l.b16 %v3375
    %v3991 = vunpack.c.h.b16 %v3375
    %v3992 = vunpack.c.l.b16 %v3376
    %v3993 = vunpack.c.h.b16 %v3376
    %v3994 = vunpack.c.l.b16 %v3377
    %v3995 = vunpack.c.h.b16 %v3377
    %v3996 = vunpack.c.l.b16 %v3378
    %v3997 = vunpack.c.h.b16 %v3378
    %v3998 = vunpack.c.l.b16 %v3379
    %v3999 = vunpack.c.h.b16 %v3379
    %v4000 = vunpack.c.l.b16 %v3380
    %v4001 = vunpack.c.h.b16 %v3380
    %v4002 = vunpack.c.l.b16 %v3381
    %v4003 = vunpack.c.h.b16 %v3381
    %v4004 = vunpack.c.l.b16 %v3382
    %v4005 = vunpack.c.h.b16 %v3382
    %v4006 = vunpack.c.l.b16 %v3383
    %v4007 = vunpack.c.h.b16 %v3383
    %v4008 = vunpack.c.l.b16 %v3384
    %v4009 = vunpack.c.h.b16 %v3384
    %v4010 = vunpack.c.l.b16 %v3385
    %v4011 = vunpack.c.h.b16 %v3385
    %v4012 = vunpack.c.l.b16 %v3386
    %v4013 = vunpack.c.h.b16 %v3386
    %v4014 = vunpack.c.l.b16 %v3387
    %v4015 = vunpack.c.h.b16 %v3387
    %v4016 = vunpack.c.l.b16 %v3388
    %v4017 = vunpack.c.h.b16 %v3388
    %v4018 = vunpack.c.l.b16 %v3389
    %v4019 = vunpack.c.h.b16 %v3389
    %v4020 = vunpack.c.l.b16 %v3390
    %v4021 = vunpack.c.h.b16 %v3390
    %v4022 = vunpack.c.l.b16 %v3391
    %v4023 = vunpack.c.h.b16 %v3391
    %v4024 = vunpack.c.l.b16 %v3392
    %v4025 = vunpack.c.h.b16 %v3392
    %v4026 = vunpack.c.l.b16 %v3393
    %v4027 = vunpack.c.h.b16 %v3393
    %v4028 = vunpack.c.l.b16 %v3394
    %v4029 = vunpack.c.h.b16 %v3394
    %v4030 = vunpack.c.l.b16 %v3395
    %v4031 = vunpack.c.h.b16 %v3395
    %v4032 = vunpack.c.l.b16 %v3396
    %v4033 = vunpack.c.h.b16 %v3396
    %v4034 = vunpack.c.l.b16 %v3397
    %v4035 = vunpack.c.h.b16 %v3397
    %v4036 = vunpack.c.l.b16 %v3398
    %v4037 = vunpack.c.h.b16 %v3398
    %v4038 = vunpack.c.l.b16 %v3399
    %v4039 = vunpack.c.h.b16 %v3399
    %v4040 = vunpack.c.l.b16 %v3400
    %v4041 = vunpack.c.h.b16 %v3400
    %v4042 = vunpack.c.l.b16 %v3401
    %v4043 = vunpack.c.h.b16 %v3401
    %v4044 = vunpack.c.l.b16 %v3402
    %v4045 = vunpack.c.h.b16 %v3402
    %v4046 = vunpack.c.l.b16 %v3403
    %v4047 = vunpack.c.h.b16 %v3403
    %v4048 = vunpack.c.l.b16 %v3404
    %v4049 = vunpack.c.h.b16 %v3404
    %v4050 = vunpack.c.l.b16 %v3405
    %v4051 = vunpack.c.h.b16 %v3405
    %v4052 = vunpack.c.l.b16 %v3406
    %v4053 = vunpack.c.h.b16 %v3406
    %v4054 = vunpack.c.l.b16 %v3407
    %v4055 = vunpack.c.h.b16 %v3407
    %v4056 = vunpack.c.l.b16 %v3408
    %v4057 = vunpack.c.h.b16 %v3408
    %v4058 = vunpack.c.l.b16 %v3409
    %v4059 = vunpack.c.h.b16 %v3409
    %v4060 = vunpack.c.l.b16 %v3410
    %v4061 = vunpack.c.h.b16 %v3410
    %v4062 = vunpack.c.l.b16 %v3411
    %v4063 = vunpack.c.h.b16 %v3411
    %v4064 = vunpack.c.l.b16 %v3412
    %v4065 = vunpack.c.h.b16 %v3412
    %v4066 = vunpack.c.l.b16 %v3413
    %v4067 = vunpack.c.h.b16 %v3413
    %v4068 = vunpack.c.l.b16 %v3414
    %v4069 = vunpack.c.h.b16 %v3414
    %v4070 = vunpack.c.l.b16 %v3415
    %v4071 = vunpack.c.h.b16 %v3415
    %v4072 = vunpack.c.l.b16 %v3416
    %v4073 = vunpack.c.h.b16 %v3416
    %v4074 = vunpack.c.l.b16 %v3417
    %v4075 = vunpack.c.h.b16 %v3417
    %v4076 = vunpack.c.l.b16 %v3418
    %v4077 = vunpack.c.h.b16 %v3418
    %v4078 = vunpack.c.l.b16 %v3419
    %v4079 = vunpack.c.h.b16 %v3419
    %v4080 = vunpack.c.l.b16 %v3420
    %v4081 = vunpack.c.h.b16 %v3420
    %v4082 = vunpack.c.l.b16 %v3421
    %v4083 = vunpack.c.h.b16 %v3421
    %v4084 = vunpack.c.l.b16 %v3422
    %v4085 = vunpack.c.h.b16 %v3422
    %v4086 = vunpack.c.l.b16 %v3423
    %v4087 = vunpack.c.h.b16 %v3423
    %v4088 = vunpack.c.l.b16 %v3424
    %v4089 = vunpack.c.h.b16 %v3424
    %v4090 = vunpack.c.l.b16 %v3425
    %v4091 = vunpack.c.h.b16 %v3425
    %v4092 = vunpack.c.l.b16 %v3426
    %v4093 = vunpack.c.h.b16 %v3426
    %v4094 = vunpack.c.l.b16 %v3427
    %v4095 = vunpack.c.h.b16 %v3427
    %v4096 = vunpack.c.l.b16 %v3428
    %v4097 = vunpack.c.h.b16 %v3428
    %v4098 = vunpack.c.l.b16 %v3429
    %v4099 = vunpack.c.h.b16 %v3429
    %v4100 = vunpack.c.l.b16 %v3430
    %v4101 = vunpack.c.h.b16 %v3430
    %v4102 = vunpack.c.l.b16 %v3431
    %v4103 = vunpack.c.h.b16 %v3431
    %v4104 = vunpack.c.l.b16 %v3432
    %v4105 = vunpack.c.h.b16 %v3432
    %v4106 = vunpack.c.l.b16 %v3433
    %v4107 = vunpack.c.h.b16 %v3433
    %v4108 = vunpack.c.l.b16 %v3434
    %v4109 = vunpack.c.h.b16 %v3434
    %v4110 = vunpack.c.l.b16 %v3435
    %v4111 = vunpack.c.h.b16 %v3435
    %v4112 = vunpack.c.l.b16 %v3436
    %v4113 = vunpack.c.h.b16 %v3436
    %v4114 = vunpack.c.l.b16 %v3437
    %v4115 = vunpack.c.h.b16 %v3437
    %v4116 = vunpack.c.l.b16 %v3438
    %v4117 = vunpack.c.h.b16 %v3438
    %v4118 = vunpack.c.l.b16 %v3439
    %v4119 = vunpack.c.h.b16 %v3439
    %v4120 = vunpack.c.l.b16 %v3440
    %v4121 = vunpack.c.h.b16 %v3440
    %v4122 = vunpack.c.l.b16 %v3441
    %v4123 = vunpack.c.h.b16 %v3441
    %v4124 = vunpack.c.l.b16 %v3442
    %v4125 = vunpack.c.h.b16 %v3442
    %v4126 = vunpack.c.l.b16 %v3443
    %v4127 = vunpack.c.h.b16 %v3443
    %v4128 = vunpack.c.l.b16 %v3444
    %v4129 = vunpack.c.h.b16 %v3444
    %v4130 = vunpack.c.l.b16 %v3445
    %v4131 = vunpack.c.h.b16 %v3445
    %v4132 = vunpack.c.l.b16 %v3446
    %v4133 = vunpack.c.h.b16 %v3446
    %v4134 = vunpack.c.l.b16 %v3447
    %v4135 = vunpack.c.h.b16 %v3447
    %v4136 = vunpack.c.l.b16 %v3448
    %v4137 = vunpack.c.h.b16 %v3448
    %v4138 = vunpack.c.l.b16 %v3449
    %v4139 = vunpack.c.h.b16 %v3449
    %v4140 = vunpack.c.l.b16 %v3450
    %v4141 = vunpack.c.h.b16 %v3450
    %v4142 = vunpack.c.l.b16 %v3451
    %v4143 = vunpack.c.h.b16 %v3451
    %v4144 = vunpack.c.l.b16 %v3452
    %v4145 = vunpack.c.h.b16 %v3452
    %v4146 = vunpack.c.l.b16 %v3453
    %v4147 = vunpack.c.h.b16 %v3453
    %v4148 = vunpack.c.l.b16 %v3454
    %v4149 = vunpack.c.h.b16 %v3454
    %v4150 = vunpack.c.l.b16 %v3455
    %v4151 = vunpack.c.h.b16 %v3455
    %v4152 = vunpack.c.l.b16 %v3456
    %v4153 = vunpack.c.h.b16 %v3456
    %v4154 = vunpack.c.l.b16 %v3457
    %v4155 = vunpack.c.h.b16 %v3457
    %v4156 = vunpack.c.l.b16 %v3458
    %v4157 = vunpack.c.h.b16 %v3458
    %v4158 = vunpack.c.l.b16 %v3459
    %v4159 = vunpack.c.h.b16 %v3459
    %v4160 = vunpack.c.l.b16 %v3460
    %v4161 = vunpack.c.h.b16 %v3460
    %v4162 = vunpack.c.l.b16 %v3461
    %v4163 = vunpack.c.h.b16 %v3461
    %v4164 = vunpack.c.l.b16 %v3462
    %v4165 = vunpack.c.h.b16 %v3462
    %v4166 = vunpack.c.l.b16 %v3463
    %v4167 = vunpack.c.h.b16 %v3463
    %v4168 = vunpack.c.l.b16 %v3464
    %v4169 = vunpack.c.h.b16 %v3464
    %v4170 = vunpack.c.l.b16 %v3465
    %v4171 = vunpack.c.h.b16 %v3465
    %v4172 = vunpack.c.l.b16 %v3466
    %v4173 = vunpack.c.h.b16 %v3466
    %v4174 = vunpack.c.l.b16 %v3467
    %v4175 = vunpack.c.h.b16 %v3467
    %v4176 = vunpack.c.l.b16 %v3468
    %v4177 = vunpack.c.h.b16 %v3468
    %v4178 = vunpack.c.l.b16 %v3469
    %v4179 = vunpack.c.h.b16 %v3469
    %v4180 = vunpack.c.l.b16 %v3470
    %v4181 = vunpack.c.h.b16 %v3470
    %v4182 = vunpack.c.l.b16 %v3471
    %v4183 = vunpack.c.h.b16 %v3471
    %v4184 = vunpack.c.l.b16 %v3472
    %v4185 = vunpack.c.h.b16 %v3472
    %v4186 = vunpack.c.l.b16 %v3473
    %v4187 = vunpack.c.h.b16 %v3473
    %v4188 = vunpack.c.l.b16 %v3474
    %v4189 = vunpack.c.h.b16 %v3474
    %v4190 = vunpack.c.l.b16 %v3475
    %v4191 = vunpack.c.h.b16 %v3475
    %v4192 = vunpack.c.l.b16 %v3476
    %v4193 = vunpack.c.h.b16 %v3476
    %v4194 = vunpack.c.l.b16 %v3477
    %v4195 = vunpack.c.h.b16 %v3477
    %v4196 = vunpack.c.l.b16 %v3478
    %v4197 = vunpack.c.h.b16 %v3478
    %v4198 = vunpack.c.l.b16 %v3479
    %v4199 = vunpack.c.h.b16 %v3479
    %v4200 = vunpack.c.l.b16 %v3480
    %v4201 = vunpack.c.h.b16 %v3480
    %v4202 = vunpack.c.l.b16 %v3481
    %v4203 = vunpack.c.h.b16 %v3481
    %v4204 = vunpack.c.l.b16 %v3482
    %v4205 = vunpack.c.h.b16 %v3482
    %v4206 = vunpack.c.l.b16 %v3483
    %v4207 = vunpack.c.h.b16 %v3483
    %v4208 = vunpack.c.l.b16 %v3484
    %v4209 = vunpack.c.h.b16 %v3484
    %v4210 = vunpack.c.l.b16 %v3485
    %v4211 = vunpack.c.h.b16 %v3485
    %v4212 = vunpack.c.l.b16 %v3486
    %v4213 = vunpack.c.h.b16 %v3486
    %v4214 = vunpack.c.l.b16 %v3487
    %v4215 = vunpack.c.h.b16 %v3487
    %v4216 = vunpack.c.l.b16 %v3488
    %v4217 = vunpack.c.h.b16 %v3488
    %v4218 = vunpack.c.l.b16 %v3489
    %v4219 = vunpack.c.h.b16 %v3489
    %v4220 = vunpack.c.l.b16 %v3490
    %v4221 = vunpack.c.h.b16 %v3490
    %v4222 = vunpack.c.l.b16 %v3491
    %v4223 = vunpack.c.h.b16 %v3491
    %v4224 = vunpack.c.l.b16 %v3492
    %v4225 = vunpack.c.h.b16 %v3492
    %v4226 = vunpack.c.l.b16 %v3493
    %v4227 = vunpack.c.h.b16 %v3493
    %v4228 = vunpack.c.l.b16 %v3494
    %v4229 = vunpack.c.h.b16 %v3494
    %v4230 = vunpack.c.l.b16 %v3495
    %v4231 = vunpack.c.h.b16 %v3495
    %v4232 = vunpack.c.l.b16 %v3496
    %v4233 = vunpack.c.h.b16 %v3496
    %v4234 = vunpack.c.l.b16 %v3497
    %v4235 = vunpack.c.h.b16 %v3497
    %v4236 = vunpack.c.l.b16 %v3498
    %v4237 = vunpack.c.h.b16 %v3498
    %v4238 = vunpack.c.l.b16 %v3499
    %v4239 = vunpack.c.h.b16 %v3499
    %v4240 = vunpack.c.l.b16 %v3500
    %v4241 = vunpack.c.h.b16 %v3500
    %v4242 = vunpack.c.l.b16 %v3501
    %v4243 = vunpack.c.h.b16 %v3501
    %v4244 = vunpack.c.l.b16 %v3502
    %v4245 = vunpack.c.h.b16 %v3502
    %v4246 = vunpack.c.l.b16 %v3503
    %v4247 = vunpack.c.h.b16 %v3503
    %v4248 = vunpack.c.l.b16 %v3504
    %v4249 = vunpack.c.h.b16 %v3504
    %v4250 = vunpack.c.l.b16 %v3505
    %v4251 = vunpack.c.h.b16 %v3505
    %v4252 = vunpack.c.l.b16 %v3506
    %v4253 = vunpack.c.h.b16 %v3506
    %v4254 = vunpack.c.l.b16 %v3507
    %v4255 = vunpack.c.h.b16 %v3507
    %v4256 = vunpack.c.l.b16 %v3508
    %v4257 = vunpack.c.h.b16 %v3508
    %v4258 = vunpack.c.l.b16 %v3509
    %v4259 = vunpack.c.h.b16 %v3509
    %v4260 = vunpack.c.l.b16 %v3510
    %v4261 = vunpack.c.h.b16 %v3510
    %v4262 = vunpack.c.l.b16 %v3511
    %v4263 = vunpack.c.h.b16 %v3511
    %v4264 = vunpack.c.l.b16 %v3512
    %v4265 = vunpack.c.h.b16 %v3512
    %v4266 = vunpack.c.l.b16 %v3513
    %v4267 = vunpack.c.h.b16 %v3513
    %v4268 = vunpack.c.l.b16 %v3514
    %v4269 = vunpack.c.h.b16 %v3514
    %v4270 = vunpack.c.l.b16 %v3515
    %v4271 = vunpack.c.h.b16 %v3515
    %v4272 = vunpack.c.l.b16 %v3516
    %v4273 = vunpack.c.h.b16 %v3516
    %v4274 = vunpack.c.l.b16 %v3517
    %v4275 = vunpack.c.h.b16 %v3517
    %v4276 = vunpack.c.l.b16 %v3518
    %v4277 = vunpack.c.h.b16 %v3518
    %v4278 = vunpack.c.l.b16 %v3519
    %v4279 = vunpack.c.h.b16 %v3519
    %v4280 = vunpack.c.l.b16 %v3520
    %v4281 = vunpack.c.h.b16 %v3520
    %v4282 = vunpack.c.l.b16 %v3521
    %v4283 = vunpack.c.h.b16 %v3521
    %v4284 = vunpack.c.l.b16 %v3522
    %v4285 = vunpack.c.h.b16 %v3522
    %v4286 = vunpack.c.l.b16 %v3523
    %v4287 = vunpack.c.h.b16 %v3523
    %v4288 = vunpack.c.l.b16 %v3524
    %v4289 = vunpack.c.h.b16 %v3524
    %v4290 = vunpack.c.l.b16 %v3525
    %v4291 = vunpack.c.h.b16 %v3525
    %v4292 = vunpack.c.l.b16 %v3526
    %v4293 = vunpack.c.h.b16 %v3526
    %v4294 = vunpack.c.l.b16 %v3527
    %v4295 = vunpack.c.h.b16 %v3527
    %v4296 = vunpack.c.l.b16 %v3528
    %v4297 = vunpack.c.h.b16 %v3528
    %v4298 = vunpack.c.l.b16 %v3529
    %v4299 = vunpack.c.h.b16 %v3529
    %v4300 = vunpack.c.l.b16 %v3530
    %v4301 = vunpack.c.h.b16 %v3530
    %v4302 = vunpack.c.l.b16 %v3531
    %v4303 = vunpack.c.h.b16 %v3531
    %v4304 = vunpack.c.l.b16 %v3532
    %v4305 = vunpack.c.h.b16 %v3532
    %v4306 = vunpack.c.l.b16 %v3533
    %v4307 = vunpack.c.h.b16 %v3533
    %v4308 = vunpack.c.l.b16 %v3534
    %v4309 = vunpack.c.h.b16 %v3534
    %v4310 = vunpack.c.l.b16 %v3535
    %v4311 = vunpack.c.h.b16 %v3535
    %v4312 = vunpack.c.l.b16 %v3536
    %v4313 = vunpack.c.h.b16 %v3536
    %v4314 = vunpack.c.l.b16 %v3537
    %v4315 = vunpack.c.h.b16 %v3537
    %v4316 = vunpack.c.l.b16 %v3538
    %v4317 = vunpack.c.h.b16 %v3538
    %v4318 = vunpack.c.l.b16 %v3539
    %v4319 = vunpack.c.h.b16 %v3539
    %v4320 = vunpack.c.l.b16 %v3540
    %v4321 = vunpack.c.h.b16 %v3540
    %v4322 = vunpack.c.l.b16 %v3541
    %v4323 = vunpack.c.h.b16 %v3541
    %v4324 = vunpack.c.l.b16 %v3542
    %v4325 = vunpack.c.h.b16 %v3542
    %v4326 = vunpack.c.l.b16 %v3543
    %v4327 = vunpack.c.h.b16 %v3543
    %v4328 = vunpack.c.l.b16 %v3544
    %v4329 = vunpack.c.h.b16 %v3544
    %v4330 = vunpack.c.l.b16 %v3545
    %v4331 = vunpack.c.h.b16 %v3545
    %v4332 = vunpack.c.l.b16 %v3546
    %v4333 = vunpack.c.h.b16 %v3546
    %v4334 = vunpack.c.l.b16 %v3547
    %v4335 = vunpack.c.h.b16 %v3547
    %v4336 = vunpack.c.l.b16 %v3548
    %v4337 = vunpack.c.h.b16 %v3548
    %v4338 = vunpack.c.l.b16 %v3549
    %v4339 = vunpack.c.h.b16 %v3549
    %v4340 = vpack.c.b16 %v3832, %v3828
    %v4341 = vpack.c.b16 %v3833, %v3829
    %v4342 = vpack.c.b16 %v3834, %v3830
    %v4343 = vpack.c.b16 %v3835, %v3831
    %v4344 = vpack.c.b16 %v3840, %v3836
    %v4345 = vpack.c.b16 %v3841, %v3837
    %v4346 = vpack.c.b16 %v3842, %v3838
    %v4347 = vpack.c.b16 %v3843, %v3839
    %v4348 = vpack.c.b16 %v3848, %v3844
    %v4349 = vpack.c.b16 %v3849, %v3845
    %v4350 = vpack.c.b16 %v3850, %v3846
    %v4351 = vpack.c.b16 %v3851, %v3847
    %v4352 = vpack.c.b16 %v3856, %v3852
    %v4353 = vpack.c.b16 %v3857, %v3853
    %v4354 = vpack.c.b16 %v3858, %v3854
    %v4355 = vpack.c.b16 %v3859, %v3855
    %v4356 = vpack.c.b16 %v3864, %v3860
    %v4357 = vpack.c.b16 %v3865, %v3861
    %v4358 = vpack.c.b16 %v3866, %v3862
    %v4359 = vpack.c.b16 %v3867, %v3863
    %v4360 = vpack.c.b16 %v3872, %v3868
    %v4361 = vpack.c.b16 %v3873, %v3869
    %v4362 = vpack.c.b16 %v3874, %v3870
    %v4363 = vpack.c.b16 %v3875, %v3871
    %v4364 = vpack.c.b16 %v3880, %v3876
    %v4365 = vpack.c.b16 %v3881, %v3877
    %v4366 = vpack.c.b16 %v3882, %v3878
    %v4367 = vpack.c.b16 %v3883, %v3879
    %v4368 = vpack.c.b16 %v3888, %v3884
    %v4369 = vpack.c.b16 %v3889, %v3885
    %v4370 = vpack.c.b16 %v3890, %v3886
    %v4371 = vpack.c.b16 %v3891, %v3887
    %v4372 = vpack.c.b16 %v3896, %v3892
    %v4373 = vpack.c.b16 %v3897, %v3893
    %v4374 = vpack.c.b16 %v3898, %v3894
    %v4375 = vpack.c.b16 %v3899, %v3895
    %v4376 = vpack.c.b16 %v3904, %v3900
    %v4377 = vpack.c.b16 %v3905, %v3901
    %v4378 = vpack.c.b16 %v3906, %v3902
    %v4379 = vpack.c.b16 %v3907, %v3903
    %v4380 = vpack.c.b16 %v3912, %v3908
    %v4381 = vpack.c.b16 %v3913, %v3909
    %v4382 = vpack.c.b16 %v3914, %v3910
    %v4383 = vpack.c.b16 %v3915, %v3911
    %v4384 = vpack.c.b16 %v3920, %v3916
    %v4385 = vpack.c.b16 %v3921, %v3917
    %v4386 = vpack.c.b16 %v3922, %v3918
    %v4387 = vpack.c.b16 %v3923, %v3919
    %v4388 = vpack.c.b16 %v3928, %v3924
    %v4389 = vpack.c.b16 %v3929, %v3925
    %v4390 = vpack.c.b16 %v3930, %v3926
    %v4391 = vpack.c.b16 %v3931, %v3927
    %v4392 = vpack.c.b16 %v3936, %v3932
    %v4393 = vpack.c.b16 %v3937, %v3933
    %v4394 = vpack.c.b16 %v3938, %v3934
    %v4395 = vpack.c.b16 %v3939, %v3935
    %v4396 = vpack.c.b16 %v3944, %v3940
    %v4397 = vpack.c.b16 %v3945, %v3941
    %v4398 = vpack.c.b16 %v3946, %v3942
    %v4399 = vpack.c.b16 %v3947, %v3943
    %v4400 = vpack.c.b16 %v3952, %v3948
    %v4401 = vpack.c.b16 %v3953, %v3949
    %v4402 = vpack.c.b16 %v3954, %v3950
    %v4403 = vpack.c.b16 %v3955, %v3951
    %v4404 = vpack.c.b16 %v3960, %v3956
    %v4405 = vpack.c.b16 %v3961, %v3957
    %v4406 = vpack.c.b16 %v3962, %v3958
    %v4407 = vpack.c.b16 %v3963, %v3959
    %v4408 = vpack.c.b16 %v3968, %v3964
    %v4409 = vpack.c.b16 %v3969, %v3965
    %v4410 = vpack.c.b16 %v3970, %v3966
    %v4411 = vpack.c.b16 %v3971, %v3967
    %v4412 = vpack.c.b16 %v3976, %v3972
    %v4413 = vpack.c.b16 %v3977, %v3973
    %v4414 = vpack.c.b16 %v3978, %v3974
    %v4415 = vpack.c.b16 %v3979, %v3975
    %v4416 = vpack.c.b16 %v3984, %v3980
    %v4417 = vpack.c.b16 %v3985, %v3981
    %v4418 = vpack.c.b16 %v3986, %v3982
    %v4419 = vpack.c.b16 %v3987, %v3983
    %v4420 = vpack.c.b16 %v3992, %v3988
    %v4421 = vpack.c.b16 %v3993, %v3989
    %v4422 = vpack.c.b16 %v3994, %v3990
    %v4423 = vpack.c.b16 %v3995, %v3991
    %v4424 = vpack.c.b16 %v4000, %v3996
    %v4425 = vpack.c.b16 %v4001, %v3997
    %v4426 = vpack.c.b16 %v4002, %v3998
    %v4427 = vpack.c.b16 %v4003, %v3999
    %v4428 = vpack.c.b16 %v4008, %v4004
    %v4429 = vpack.c.b16 %v4009, %v4005
    %v4430 = vpack.c.b16 %v4010, %v4006
    %v4431 = vpack.c.b16 %v4011, %v4007
    %v4432 = vpack.c.b16 %v4016, %v4012
    %v4433 = vpack.c.b16 %v4017, %v4013
    %v4434 = vpack.c.b16 %v4018, %v4014
    %v4435 = vpack.c.b16 %v4019, %v4015
    %v4436 = vpack.c.b16 %v4024, %v4020
    %v4437 = vpack.c.b16 %v4025, %v4021
    %v4438 = vpack.c.b16 %v4026, %v4022
    %v4439 = vpack.c.b16 %v4027, %v4023
    %v4440 = vpack.c.b16 %v4032, %v4028
    %v4441 = vpack.c.b16 %v4033, %v4029
    %v4442 = vpack.c.b16 %v4034, %v4030
    %v4443 = vpack.c.b16 %v4035, %v4031
    %v4444 = vpack.c.b16 %v4040, %v4036
    %v4445 = vpack.c.b16 %v4041, %v4037
    %v4446 = vpack.c.b16 %v4042, %v4038
    %v4447 = vpack.c.b16 %v4043, %v4039
    %v4448 = vpack.c.b16 %v4048, %v4044
    %v4449 = vpack.c.b16 %v4049, %v4045
    %v4450 = vpack.c.b16 %v4050, %v4046
    %v4451 = vpack.c.b16 %v4051, %v4047
    %v4452 = vpack.c.b16 %v4056, %v4052
    %v4453 = vpack.c.b16 %v4057, %v4053
    %v4454 = vpack.c.b16 %v4058, %v4054
    %v4455 = vpack.c.b16 %v4059, %v4055
    %v4456 = vpack.c.b16 %v4064, %v4060
    %v4457 = vpack.c.b16 %v4065, %v4061
    %v4458 = vpack.c.b16 %v4066, %v4062
    %v4459 = vpack.c.b16 %v4067, %v4063
    %v4460 = vpack.c.b16 %v4072, %v4068
    %v4461 = vpack.c.b16 %v4073, %v4069
    %v4462 = vpack.c.b16 %v4074, %v4070
    %v4463 = vpack.c.b16 %v4075, %v4071
    %v4464 = vpack.c.b16 %v4080, %v4076
    %v4465 = vpack.c.b16 %v4081, %v4077
    %v4466 = vpack.c.b16 %v4082, %v4078
    %v4467 = vpack.c.b16 %v4083, %v4079
    %v4468 = vpack.c.b16 %v4088, %v4084
    %v4469 = vpack.c.b16 %v4089, %v4085
    %v4470 = vpack.c.b16 %v4090, %v4086
    %v4471 = vpack.c.b16 %v4091, %v4087
    %v4472 = vpack.c.b16 %v4096, %v4092
    %v4473 = vpack.c.b16 %v4097, %v4093
    %v4474 = vpack.c.b16 %v4098, %v4094
    %v4475 = vpack.c.b16 %v4099, %v4095
    %v4476 = vpack.c.b16 %v4104, %v4100
    %v4477 = vpack.c.b16 %v4105, %v4101
    %v4478 = vpack.c.b16 %v4106, %v4102
    %v4479 = vpack.c.b16 %v4107, %v4103
    %v4480 = vpack.c.b16 %v4112, %v4108
    %v4481 = vpack.c.b16 %v4113, %v4109
    %v4482 = vpack.c.b16 %v4114, %v4110
    %v4483 = vpack.c.b16 %v4115, %v4111
    %v4484 = vpack.c.b16 %v4120, %v4116
    %v4485 = vpack.c.b16 %v4121, %v4117
    %v4486 = vpack.c.b16 %v4122, %v4118
    %v4487 = vpack.c.b16 %v4123, %v4119
    %v4488 = vpack.c.b16 %v4128, %v4124
    %v4489 = vpack.c.b16 %v4129, %v4125
    %v4490 = vpack.c.b16 %v4130, %v4126
    %v4491 = vpack.c.b16 %v4131, %v4127
    %v4492 = vpack.c.b16 %v4136, %v4132
    %v4493 = vpack.c.b16 %v4137, %v4133
    %v4494 = vpack.c.b16 %v4138, %v4134
    %v4495 = vpack.c.b16 %v4139, %v4135
    %v4496 = vpack.c.b16 %v4144, %v4140
    %v4497 = vpack.c.b16 %v4145, %v4141
    %v4498 = vpack.c.b16 %v4146, %v4142
    %v4499 = vpack.c.b16 %v4147, %v4143
    %v4500 = vpack.c.b16 %v4152, %v4148
    %v4501 = vpack.c.b16 %v4153, %v4149
    %v4502 = vpack.c.b16 %v4154, %v4150
    %v4503 = vpack.c.b16 %v4155, %v4151
    %v4504 = vpack.c.b16 %v4160, %v4156
    %v4505 = vpack.c.b16 %v4161, %v4157
    %v4506 = vpack.c.b16 %v4162, %v4158
    %v4507 = vpack.c.b16 %v4163, %v4159
    %v4508 = vpack.c.b16 %v4168, %v4164
    %v4509 = vpack.c.b16 %v4169, %v4165
    %v4510 = vpack.c.b16 %v4170, %v4166
    %v4511 = vpack.c.b16 %v4171, %v4167
    %v4512 = vpack.c.b16 %v4176, %v4172
    %v4513 = vpack.c.b16 %v4177, %v4173
    %v4514 = vpack.c.b16 %v4178, %v4174
    %v4515 = vpack.c.b16 %v4179, %v4175
    %v4516 = vpack.c.b16 %v4184, %v4180
    %v4517 = vpack.c.b16 %v4185, %v4181
    %v4518 = vpack.c.b16 %v4186, %v4182
    %v4519 = vpack.c.b16 %v4187, %v4183
    %v4520 = vpack.c.b16 %v4192, %v4188
    %v4521 = vpack.c.b16 %v4193, %v4189
    %v4522 = vpack.c.b16 %v4194, %v4190
    %v4523 = vpack.c.b16 %v4195, %v4191
    %v4524 = vpack.c.b16 %v4200, %v4196
    %v4525 = vpack.c.b16 %v4201, %v4197
    %v4526 = vpack.c.b16 %v4202, %v4198
    %v4527 = vpack.c.b16 %v4203, %v4199
    %v4528 = vpack.c.b16 %v4208, %v4204
    %v4529 = vpack.c.b16 %v4209, %v4205
    %v4530 = vpack.c.b16 %v4210, %v4206
    %v4531 = vpack.c.b16 %v4211, %v4207
    %v4532 = vpack.c.b16 %v4216, %v4212
    %v4533 = vpack.c.b16 %v4217, %v4213
    %v4534 = vpack.c.b16 %v4218, %v4214
    %v4535 = vpack.c.b16 %v4219, %v4215
    %v4536 = vpack.c.b16 %v4224, %v4220
    %v4537 = vpack.c.b16 %v4225, %v4221
    %v4538 = vpack.c.b16 %v4226, %v4222
    %v4539 = vpack.c.b16 %v4227, %v4223
    %v4540 = vpack.c.b16 %v4232, %v4228
    %v4541 = vpack.c.b16 %v4233, %v4229
    %v4542 = vpack.c.b16 %v4234, %v4230
    %v4543 = vpack.c.b16 %v4235, %v4231
    %v4544 = vpack.c.b16 %v4240, %v4236
    %v4545 = vpack.c.b16 %v4241, %v4237
    %v4546 = vpack.c.b16 %v4242, %v4238
    %v4547 = vpack.c.b16 %v4243, %v4239
    %v4548 = vpack.c.b16 %v4248, %v4244
    %v4549 = vpack.c.b16 %v4249, %v4245
    %v4550 = vpack.c.b16 %v4250, %v4246
    %v4551 = vpack.c.b16 %v4251, %v4247
    %v4552 = vpack.c.b16 %v4256, %v4252
    %v4553 = vpack.c.b16 %v4257, %v4253
    %v4554 = vpack.c.b16 %v4258, %v4254
    %v4555 = vpack.c.b16 %v4259, %v4255
    %v4556 = vpack.c.b16 %v4264, %v4260
    %v4557 = vpack.c.b16 %v4265, %v4261
    %v4558 = vpack.c.b16 %v4266, %v4262
    %v4559 = vpack.c.b16 %v4267, %v4263
    %v4560 = vpack.c.b16 %v4272, %v4268
    %v4561 = vpack.c.b16 %v4273, %v4269
    %v4562 = vpack.c.b16 %v4274, %v4270
    %v4563 = vpack.c.b16 %v4275, %v4271
    %v4564 = vpack.c.b16 %v4280, %v4276
    %v4565 = vpack.c.b16 %v4281, %v4277
    %v4566 = vpack.c.b16 %v4282, %v4278
    %v4567 = vpack.c.b16 %v4283, %v4279
    %v4568 = vpack.c.b16 %v4288, %v4284
    %v4569 = vpack.c.b16 %v4289, %v4285
    %v4570 = vpack.c.b16 %v4290, %v4286
    %v4571 = vpack.c.b16 %v4291, %v4287
    %v4572 = vpack.c.b16 %v4296, %v4292
    %v4573 = vpack.c.b16 %v4297, %v4293
    %v4574 = vpack.c.b16 %v4298, %v4294
    %v4575 = vpack.c.b16 %v4299, %v4295
    %v4576 = vpack.c.b16 %v4304, %v4300
    %v4577 = vpack.c.b16 %v4305, %v4301
    %v4578 = vpack.c.b16 %v4306, %v4302
    %v4579 = vpack.c.b16 %v4307, %v4303
    %v4580 = vpack.c.b16 %v4312, %v4308
    %v4581 = vpack.c.b16 %v4313, %v4309
    %v4582 = vpack.c.b16 %v4314, %v4310
    %v4583 = vpack.c.b16 %v4315, %v4311
    %v4584 = vpack.c.b16 %v4320, %v4316
    %v4585 = vpack.c.b16 %v4321, %v4317
    %v4586 = vpack.c.b16 %v4322, %v4318
    %v4587 = vpack.c.b16 %v4323, %v4319
    %v4588 = vpack.c.b16 %v4328, %v4324
    %v4589 = vpack.c.b16 %v4329, %v4325
    %v4590 = vpack.c.b16 %v4330, %v4326
    %v4591 = vpack.c.b16 %v4331, %v4327
    %v4592 = vpack.c.b16 %v4336, %v4332
    %v4593 = vpack.c.b16 %v4337, %v4333
    %v4594 = vpack.c.b16 %v4338, %v4334
    %v4595 = vpack.c.b16 %v4339, %v4335
    %4852 = vmatprep.subr.bf16.mxu0 %v4369
    %4853 = vmatpush1.bf16.msra.mxu0 %v4368
    %4854 = vmatprep.subr.bf16.mxu0 %v4365
    %4855 = vmatpush1.bf16.msra.mxu0 %v4364
    %4856 = vmatprep.subr.bf16.mxu0 %v4361
    %4857 = vmatpush1.bf16.msra.mxu0 %v4360
    %4858 = vmatprep.subr.bf16.mxu0 %v4357
    %4859 = vmatpush1.bf16.msra.mxu0 %v4356
    %4860 = vmatprep.subr.bf16.mxu0 %v4353
    %4861 = vmatpush1.bf16.msra.mxu0 %v4352
    %4862 = vmatprep.subr.bf16.mxu0 %v4349
    %4863 = vmatpush1.bf16.msra.mxu0 %v4348
    %4864 = vmatprep.subr.bf16.mxu0 %v4345
    %4865 = vmatpush1.bf16.msra.mxu0 %v4344
    %4866 = vmatprep.subr.bf16.mxu0 %v4341
    %4867 = vmatpush1.bf16.msra.mxu0 %v4340
    %4868 = vmatprep.subr.bf16.mxu0 %v4401
    %4869 = vmatpush2.bf16.msra.mxu0 %v4400
    %4870 = vmatprep.subr.bf16.mxu0 %v4397
    %4871 = vmatpush2.bf16.msra.mxu0 %v4396
    %4872 = vmatprep.subr.bf16.mxu0 %v4393
    %4873 = vmatpush2.bf16.msra.mxu0 %v4392
    %4874 = vmatprep.subr.bf16.mxu0 %v4389
    %4875 = vmatpush2.bf16.msra.mxu0 %v4388
    %4876 = vmatprep.subr.bf16.mxu0 %v4385
    %4877 = vmatpush2.bf16.msra.mxu0 %v4384
    %4878 = vmatprep.subr.bf16.mxu0 %v4381
    %4879 = vmatpush2.bf16.msra.mxu0 %v4380
    %4880 = vmatprep.subr.bf16.mxu0 %v4377
    %4881 = vmatpush2.bf16.msra.mxu0 %v4376
    %4882 = vmatprep.subr.bf16.mxu0 %v4373
    %4883 = vmatpush2.bf16.msra.mxu0 %v4372
    %4884 = vmatprep.mubr.bf16.mxu0 %v3287
    %4885 = vmatmul.mubr.bf16.gmra.mxu0 %v3286
    %v4886 = vpop.f32.mrf.mxu0
    %v4887 = vadd.f32 %v3555, %v4886
    %v4888 = vpop.f32.mrf.mxu0
    %v4889 = vadd.f32 %v3559, %v4888
    %v4890 = vpop.f32.mrf.mxu0
    %v4891 = vadd.f32 %v3555, %v4890
    %v4892 = vpop.f32.mrf.mxu0
    %v4893 = vadd.f32 %v3559, %v4892
    %4894 = vdwg.mxu0
    %4895 = vmatprep.subr.bf16.mxu0 %v4433
    %4896 = vmatpush1.bf16.msra.mxu0 %v4432
    %4897 = vmatprep.subr.bf16.mxu0 %v4429
    %4898 = vmatpush1.bf16.msra.mxu0 %v4428
    %4899 = vmatprep.subr.bf16.mxu0 %v4425
    %4900 = vmatpush1.bf16.msra.mxu0 %v4424
    %4901 = vmatprep.subr.bf16.mxu0 %v4421
    %4902 = vmatpush1.bf16.msra.mxu0 %v4420
    %4903 = vmatprep.subr.bf16.mxu0 %v4417
    %4904 = vmatpush1.bf16.msra.mxu0 %v4416
    %4905 = vmatprep.subr.bf16.mxu0 %v4413
    %4906 = vmatpush1.bf16.msra.mxu0 %v4412
    %4907 = vmatprep.subr.bf16.mxu0 %v4409
    %4908 = vmatpush1.bf16.msra.mxu0 %v4408
    %4909 = vmatprep.subr.bf16.mxu0 %v4405
    %4910 = vmatpush1.bf16.msra.mxu0 %v4404
    %4911 = vmatprep.subr.bf16.mxu0 %v4465
    %4912 = vmatpush2.bf16.msra.mxu0 %v4464
    %4913 = vmatprep.subr.bf16.mxu0 %v4461
    %4914 = vmatpush2.bf16.msra.mxu0 %v4460
    %4915 = vmatprep.subr.bf16.mxu0 %v4457
    %4916 = vmatpush2.bf16.msra.mxu0 %v4456
    %4917 = vmatprep.subr.bf16.mxu0 %v4453
    %4918 = vmatpush2.bf16.msra.mxu0 %v4452
    %4919 = vmatprep.subr.bf16.mxu0 %v4449
    %4920 = vmatpush2.bf16.msra.mxu0 %v4448
    %4921 = vmatprep.subr.bf16.mxu0 %v4445
    %4922 = vmatpush2.bf16.msra.mxu0 %v4444
    %4923 = vmatprep.subr.bf16.mxu0 %v4441
    %4924 = vmatpush2.bf16.msra.mxu0 %v4440
    %4925 = vmatprep.subr.bf16.mxu0 %v4437
    %4926 = vmatpush2.bf16.msra.mxu0 %v4436
    %4927 = vmatprep.mubr.bf16.mxu0 %v3289
    %4928 = vmatmul.mubr.bf16.gmra.mxu0 %v3288
    %v4929 = vpop.f32.mrf.mxu0
    %v4930 = vadd.f32 %v4887, %v4929
    %v4931 = vpop.f32.mrf.mxu0
    %v4932 = vadd.f32 %v4889, %v4931
    %v4933 = vpop.f32.mrf.mxu0
    %v4934 = vadd.f32 %v4891, %v4933
    %v4935 = vpop.f32.mrf.mxu0
    %v4936 = vadd.f32 %v4893, %v4935
    %4937 = vdwg.mxu0
    %4938 = vmatprep.subr.bf16.mxu0 %v4497
    %4939 = vmatpush1.bf16.msra.mxu0 %v4496
    %4940 = vmatprep.subr.bf16.mxu0 %v4493
    %4941 = vmatpush1.bf16.msra.mxu0 %v4492
    %4942 = vmatprep.subr.bf16.mxu0 %v4489
    %4943 = vmatpush1.bf16.msra.mxu0 %v4488
    %4944 = vmatprep.subr.bf16.mxu0 %v4485
    %4945 = vmatpush1.bf16.msra.mxu0 %v4484
    %4946 = vmatprep.subr.bf16.mxu0 %v4481
    %4947 = vmatpush1.bf16.msra.mxu0 %v4480
    %4948 = vmatprep.subr.bf16.mxu0 %v4477
    %4949 = vmatpush1.bf16.msra.mxu0 %v4476
    %4950 = vmatprep.subr.bf16.mxu0 %v4473
    %4951 = vmatpush1.bf16.msra.mxu0 %v4472
    %4952 = vmatprep.subr.bf16.mxu0 %v4469
    %4953 = vmatpush1.bf16.msra.mxu0 %v4468
    %4954 = vmatprep.subr.bf16.mxu0 %v4529
    %4955 = vmatpush2.bf16.msra.mxu0 %v4528
    %4956 = vmatprep.subr.bf16.mxu0 %v4525
    %4957 = vmatpush2.bf16.msra.mxu0 %v4524
    %4958 = vmatprep.subr.bf16.mxu0 %v4521
    %4959 = vmatpush2.bf16.msra.mxu0 %v4520
    %4960 = vmatprep.subr.bf16.mxu0 %v4517
    %4961 = vmatpush2.bf16.msra.mxu0 %v4516
    %4962 = vmatprep.subr.bf16.mxu0 %v4513
    %4963 = vmatpush2.bf16.msra.mxu0 %v4512
    %4964 = vmatprep.subr.bf16.mxu0 %v4509
    %4965 = vmatpush2.bf16.msra.mxu0 %v4508
    %4966 = vmatprep.subr.bf16.mxu0 %v4505
    %4967 = vmatpush2.bf16.msra.mxu0 %v4504
    %4968 = vmatprep.subr.bf16.mxu0 %v4501
    %4969 = vmatpush2.bf16.msra.mxu0 %v4500
    %4970 = vmatprep.mubr.bf16.mxu0 %v3291
    %4971 = vmatmul.mubr.bf16.gmra.mxu0 %v3290
    %v4972 = vpop.f32.mrf.mxu0
    %v4973 = vadd.f32 %v4930, %v4972
    %v4974 = vpop.f32.mrf.mxu0
    %v4975 = vadd.f32 %v4932, %v4974
    %v4976 = vpop.f32.mrf.mxu0
    %v4977 = vadd.f32 %v4934, %v4976
    %v4978 = vpop.f32.mrf.mxu0
    %v4979 = vadd.f32 %v4936, %v4978
    %4980 = vdwg.mxu0
    %4981 = vmatprep.subr.bf16.mxu0 %v4561
    %4982 = vmatpush1.bf16.msra.mxu0 %v4560
    %4983 = vmatprep.subr.bf16.mxu0 %v4557
    %4984 = vmatpush1.bf16.msra.mxu0 %v4556
    %4985 = vmatprep.subr.bf16.mxu0 %v4553
    %4986 = vmatpush1.bf16.msra.mxu0 %v4552
    %4987 = vmatprep.subr.bf16.mxu0 %v4549
    %4988 = vmatpush1.bf16.msra.mxu0 %v4548
    %4989 = vmatprep.subr.bf16.mxu0 %v4545
    %4990 = vmatpush1.bf16.msra.mxu0 %v4544
    %4991 = vmatprep.subr.bf16.mxu0 %v4541
    %4992 = vmatpush1.bf16.msra.mxu0 %v4540
    %4993 = vmatprep.subr.bf16.mxu0 %v4537
    %4994 = vmatpush1.bf16.msra.mxu0 %v4536
    %4995 = vmatprep.subr.bf16.mxu0 %v4533
    %4996 = vmatpush1.bf16.msra.mxu0 %v4532
    %4997 = vmatprep.subr.bf16.mxu0 %v4593
    %4998 = vmatpush2.bf16.msra.mxu0 %v4592
    %4999 = vmatprep.subr.bf16.mxu0 %v4589
    %5000 = vmatpush2.bf16.msra.mxu0 %v4588
    %5001 = vmatprep.subr.bf16.mxu0 %v4585
    %5002 = vmatpush2.bf16.msra.mxu0 %v4584
    %5003 = vmatprep.subr.bf16.mxu0 %v4581
    %5004 = vmatpush2.bf16.msra.mxu0 %v4580
    %5005 = vmatprep.subr.bf16.mxu0 %v4577
    %5006 = vmatpush2.bf16.msra.mxu0 %v4576
    %5007 = vmatprep.subr.bf16.mxu0 %v4573
    %5008 = vmatpush2.bf16.msra.mxu0 %v4572
    %5009 = vmatprep.subr.bf16.mxu0 %v4569
    %5010 = vmatpush2.bf16.msra.mxu0 %v4568
    %5011 = vmatprep.subr.bf16.mxu0 %v4565
    %5012 = vmatpush2.bf16.msra.mxu0 %v4564
    %5013 = vmatprep.mubr.bf16.mxu0 %v3293
    %5014 = vmatmul.mubr.bf16.gmra.mxu0 %v3292
    %v5015 = vpop.f32.mrf.mxu0
    %v5016 = vadd.f32 %v4973, %v5015
    %v5017 = vpop.f32.mrf.mxu0
    %v5018 = vadd.f32 %v4975, %v5017
    %v5019 = vpop.f32.mrf.mxu0
    %v5020 = vadd.f32 %v4977, %v5019
    %v5021 = vpop.f32.mrf.mxu0
    %v5022 = vadd.f32 %v4979, %v5021
    %5023 = vdwg.mxu0
    %5024 = vmatprep.subr.bf16.mxu0 %v4371
    %5025 = vmatpush1.bf16.msra.mxu0 %v4370
    %5026 = vmatprep.subr.bf16.mxu0 %v4367
    %5027 = vmatpush1.bf16.msra.mxu0 %v4366
    %5028 = vmatprep.subr.bf16.mxu0 %v4363
    %5029 = vmatpush1.bf16.msra.mxu0 %v4362
    %5030 = vmatprep.subr.bf16.mxu0 %v4359
    %5031 = vmatpush1.bf16.msra.mxu0 %v4358
    %5032 = vmatprep.subr.bf16.mxu0 %v4355
    %5033 = vmatpush1.bf16.msra.mxu0 %v4354
    %5034 = vmatprep.subr.bf16.mxu0 %v4351
    %5035 = vmatpush1.bf16.msra.mxu0 %v4350
    %5036 = vmatprep.subr.bf16.mxu0 %v4347
    %5037 = vmatpush1.bf16.msra.mxu0 %v4346
    %5038 = vmatprep.subr.bf16.mxu0 %v4343
    %5039 = vmatpush1.bf16.msra.mxu0 %v4342
    %5040 = vmatprep.subr.bf16.mxu0 %v4403
    %5041 = vmatpush2.bf16.msra.mxu0 %v4402
    %5042 = vmatprep.subr.bf16.mxu0 %v4399
    %5043 = vmatpush2.bf16.msra.mxu0 %v4398
    %5044 = vmatprep.subr.bf16.mxu0 %v4395
    %5045 = vmatpush2.bf16.msra.mxu0 %v4394
    %5046 = vmatprep.subr.bf16.mxu0 %v4391
    %5047 = vmatpush2.bf16.msra.mxu0 %v4390
    %5048 = vmatprep.subr.bf16.mxu0 %v4387
    %5049 = vmatpush2.bf16.msra.mxu0 %v4386
    %5050 = vmatprep.subr.bf16.mxu0 %v4383
    %5051 = vmatpush2.bf16.msra.mxu0 %v4382
    %5052 = vmatprep.subr.bf16.mxu0 %v4379
    %5053 = vmatpush2.bf16.msra.mxu0 %v4378
    %5054 = vmatprep.subr.bf16.mxu0 %v4375
    %5055 = vmatpush2.bf16.msra.mxu0 %v4374
    %5056 = vmatprep.mubr.bf16.mxu0 %v3287
    %5057 = vmatmul.mubr.bf16.gmra.mxu0 %v3286
    %v5058 = vpop.f32.mrf.mxu0
    %v5059 = vadd.f32 %v3563, %v5058
    %v5060 = vpop.f32.mrf.mxu0
    %v5061 = vadd.f32 %v3567, %v5060
    %v5062 = vpop.f32.mrf.mxu0
    %v5063 = vadd.f32 %v3563, %v5062
    %v5064 = vpop.f32.mrf.mxu0
    %v5065 = vadd.f32 %v3567, %v5064
    %5066 = vdwg.mxu0
    %5067 = vmatprep.subr.bf16.mxu0 %v4435
    %5068 = vmatpush1.bf16.msra.mxu0 %v4434
    %5069 = vmatprep.subr.bf16.mxu0 %v4431
    %5070 = vmatpush1.bf16.msra.mxu0 %v4430
    %5071 = vmatprep.subr.bf16.mxu0 %v4427
    %5072 = vmatpush1.bf16.msra.mxu0 %v4426
    %5073 = vmatprep.subr.bf16.mxu0 %v4423
    %5074 = vmatpush1.bf16.msra.mxu0 %v4422
    %5075 = vmatprep.subr.bf16.mxu0 %v4419
    %5076 = vmatpush1.bf16.msra.mxu0 %v4418
    %5077 = vmatprep.subr.bf16.mxu0 %v4415
    %5078 = vmatpush1.bf16.msra.mxu0 %v4414
    %5079 = vmatprep.subr.bf16.mxu0 %v4411
    %5080 = vmatpush1.bf16.msra.mxu0 %v4410
    %5081 = vmatprep.subr.bf16.mxu0 %v4407
    %5082 = vmatpush1.bf16.msra.mxu0 %v4406
    %5083 = vmatprep.subr.bf16.mxu0 %v4467
    %5084 = vmatpush2.bf16.msra.mxu0 %v4466
    %5085 = vmatprep.subr.bf16.mxu0 %v4463
    %5086 = vmatpush2.bf16.msra.mxu0 %v4462
    %5087 = vmatprep.subr.bf16.mxu0 %v4459
    %5088 = vmatpush2.bf16.msra.mxu0 %v4458
    %5089 = vmatprep.subr.bf16.mxu0 %v4455
    %5090 = vmatpush2.bf16.msra.mxu0 %v4454
    %5091 = vmatprep.subr.bf16.mxu0 %v4451
    %5092 = vmatpush2.bf16.msra.mxu0 %v4450
    %5093 = vmatprep.subr.bf16.mxu0 %v4447
    %5094 = vmatpush2.bf16.msra.mxu0 %v4446
    %5095 = vmatprep.subr.bf16.mxu0 %v4443
    %5096 = vmatpush2.bf16.msra.mxu0 %v4442
    %5097 = vmatprep.subr.bf16.mxu0 %v4439
    %5098 = vmatpush2.bf16.msra.mxu0 %v4438
    %5099 = vmatprep.mubr.bf16.mxu0 %v3289
    %5100 = vmatmul.mubr.bf16.gmra.mxu0 %v3288
    %v5101 = vpop.f32.mrf.mxu0
    %v5102 = vadd.f32 %v5059, %v5101
    %v5103 = vpop.f32.mrf.mxu0
    %v5104 = vadd.f32 %v5061, %v5103
    %v5105 = vpop.f32.mrf.mxu0
    %v5106 = vadd.f32 %v5063, %v5105
    %v5107 = vpop.f32.mrf.mxu0
    %v5108 = vadd.f32 %v5065, %v5107
    %5109 = vdwg.mxu0
    %5110 = vmatprep.subr.bf16.mxu0 %v4499
    %5111 = vmatpush1.bf16.msra.mxu0 %v4498
    %5112 = vmatprep.subr.bf16.mxu0 %v4495
    %5113 = vmatpush1.bf16.msra.mxu0 %v4494
    %5114 = vmatprep.subr.bf16.mxu0 %v4491
    %5115 = vmatpush1.bf16.msra.mxu0 %v4490
    %5116 = vmatprep.subr.bf16.mxu0 %v4487
    %5117 = vmatpush1.bf16.msra.mxu0 %v4486
    %5118 = vmatprep.subr.bf16.mxu0 %v4483
    %5119 = vmatpush1.bf16.msra.mxu0 %v4482
    %5120 = vmatprep.subr.bf16.mxu0 %v4479
    %5121 = vmatpush1.bf16.msra.mxu0 %v4478
    %5122 = vmatprep.subr.bf16.mxu0 %v4475
    %5123 = vmatpush1.bf16.msra.mxu0 %v4474
    %5124 = vmatprep.subr.bf16.mxu0 %v4471
    %5125 = vmatpush1.bf16.msra.mxu0 %v4470
    %5126 = vmatprep.subr.bf16.mxu0 %v4531
    %5127 = vmatpush2.bf16.msra.mxu0 %v4530
    %5128 = vmatprep.subr.bf16.mxu0 %v4527
    %5129 = vmatpush2.bf16.msra.mxu0 %v4526
    %5130 = vmatprep.subr.bf16.mxu0 %v4523
    %5131 = vmatpush2.bf16.msra.mxu0 %v4522
    %5132 = vmatprep.subr.bf16.mxu0 %v4519
    %5133 = vmatpush2.bf16.msra.mxu0 %v4518
    %5134 = vmatprep.subr.bf16.mxu0 %v4515
    %5135 = vmatpush2.bf16.msra.mxu0 %v4514
    %5136 = vmatprep.subr.bf16.mxu0 %v4511
    %5137 = vmatpush2.bf16.msra.mxu0 %v4510
    %5138 = vmatprep.subr.bf16.mxu0 %v4507
    %5139 = vmatpush2.bf16.msra.mxu0 %v4506
    %5140 = vmatprep.subr.bf16.mxu0 %v4503
    %5141 = vmatpush2.bf16.msra.mxu0 %v4502
    %5142 = vmatprep.mubr.bf16.mxu0 %v3291
    %5143 = vmatmul.mubr.bf16.gmra.mxu0 %v3290
    %v5144 = vpop.f32.mrf.mxu0
    %v5145 = vadd.f32 %v5102, %v5144
    %v5146 = vpop.f32.mrf.mxu0
    %v5147 = vadd.f32 %v5104, %v5146
    %v5148 = vpop.f32.mrf.mxu0
    %v5149 = vadd.f32 %v5106, %v5148
    %v5150 = vpop.f32.mrf.mxu0
    %v5151 = vadd.f32 %v5108, %v5150
    %5152 = vdwg.mxu0
    %5153 = vmatprep.subr.bf16.mxu0 %v4563
    %5154 = vmatpush1.bf16.msra.mxu0 %v4562
    %5155 = vmatprep.subr.bf16.mxu0 %v4559
    %5156 = vmatpush1.bf16.msra.mxu0 %v4558
    %5157 = vmatprep.subr.bf16.mxu0 %v4555
    %5158 = vmatpush1.bf16.msra.mxu0 %v4554
    %5159 = vmatprep.subr.bf16.mxu0 %v4551
    %5160 = vmatpush1.bf16.msra.mxu0 %v4550
    %5161 = vmatprep.subr.bf16.mxu0 %v4547
    %5162 = vmatpush1.bf16.msra.mxu0 %v4546
    %5163 = vmatprep.subr.bf16.mxu0 %v4543
    %5164 = vmatpush1.bf16.msra.mxu0 %v4542
    %5165 = vmatprep.subr.bf16.mxu0 %v4539
    %5166 = vmatpush1.bf16.msra.mxu0 %v4538
    %5167 = vmatprep.subr.bf16.mxu0 %v4535
    %5168 = vmatpush1.bf16.msra.mxu0 %v4534
    %5169 = vmatprep.subr.bf16.mxu0 %v4595
    %5170 = vmatpush2.bf16.msra.mxu0 %v4594
    %5171 = vmatprep.subr.bf16.mxu0 %v4591
    %5172 = vmatpush2.bf16.msra.mxu0 %v4590
    %5173 = vmatprep.subr.bf16.mxu0 %v4587
    %5174 = vmatpush2.bf16.msra.mxu0 %v4586
    %5175 = vmatprep.subr.bf16.mxu0 %v4583
    %5176 = vmatpush2.bf16.msra.mxu0 %v4582
    %5177 = vmatprep.subr.bf16.mxu0 %v4579
    %5178 = vmatpush2.bf16.msra.mxu0 %v4578
    %5179 = vmatprep.subr.bf16.mxu0 %v4575
    %5180 = vmatpush2.bf16.msra.mxu0 %v4574
    %5181 = vmatprep.subr.bf16.mxu0 %v4571
    %5182 = vmatpush2.bf16.msra.mxu0 %v4570
    %5183 = vmatprep.subr.bf16.mxu0 %v4567
    %5184 = vmatpush2.bf16.msra.mxu0 %v4566
    %5185 = vmatprep.mubr.bf16.mxu0 %v3293
    %5186 = vmatmul.mubr.bf16.gmra.mxu0 %v3292
    %v5187 = vpop.f32.mrf.mxu0
    %v5188 = vadd.f32 %v5145, %v5187
    %v5189 = vpop.f32.mrf.mxu0
    %v5190 = vadd.f32 %v5147, %v5189
    %v5191 = vpop.f32.mrf.mxu0
    %v5192 = vadd.f32 %v5149, %v5191
    %v5193 = vpop.f32.mrf.mxu0
    %v5194 = vadd.f32 %v5151, %v5193
    %5195 = vdwg.mxu0
    %v5196 = vmul.f32 %v5016, 0.2
    %v5197 = vmul.f32 %v5018, 0.2
    %v5198 = vmul.f32 %v5188, 0.2
    %v5199 = vmul.f32 %v5190, 0.2
    %v5200 = vmul.f32 %v5020, 0.2
    %v5201 = vmul.f32 %v5022, 0.2
    %v5202 = vmul.f32 %v5192, 0.2
    %v5203 = vmul.f32 %v5194, 0.2
    %v5204 = vmax.f32 %v5016, %v5196
    %v5205 = vmax.f32 %v5018, %v5197
    %v5206 = vmax.f32 %v5188, %v5198
    %v5207 = vmax.f32 %v5190, %v5199
    %v5208 = vmax.f32 %v5020, %v5200
    %v5209 = vmax.f32 %v5022, %v5201
    %v5210 = vmax.f32 %v5192, %v5202
    %v5211 = vmax.f32 %v5194, %v5203
    %v5212 = vpack.c.bf16 %v5208, %v5204
    %v5213 = vpack.c.bf16 %v5209, %v5205
    %v5214 = vpack.c.bf16 %v5210, %v5206
    %v5215 = vpack.c.bf16 %v5211, %v5207
    %v5216 = vld [vmem:[#allocation10] sm:$0xff]
    %v5217 = vld [vmem:[#allocation10 + $0x8] sm:$0xff]
    %v5218 = vld [vmem:[#allocation10 + $0x10] sm:$0xff]
    %v5219 = vld [vmem:[#allocation10 + $0x18] sm:$0xff]
    %v5220 = vld [vmem:[#allocation10 + $0x20] sm:$0xff]
    %v5221 = vld [vmem:[#allocation10 + $0x28] sm:$0xff]
    %v5222 = vld [vmem:[#allocation10 + $0x30] sm:$0xff]
    %v5223 = vld [vmem:[#allocation10 + $0x38] sm:$0xff]
    %v5224 = vld [vmem:[#allocation10 + $0x40] sm:$0xff]
    %v5225 = vld [vmem:[#allocation10 + $0x48] sm:$0xff]
    %v5226 = vld [vmem:[#allocation10 + $0x50] sm:$0xff]
    %v5227 = vld [vmem:[#allocation10 + $0x58] sm:$0xff]
    %v5228 = vld [vmem:[#allocation10 + $0x60] sm:$0xff]
    %v5229 = vld [vmem:[#allocation10 + $0x68] sm:$0xff]
    %v5230 = vld [vmem:[#allocation10 + $0x70] sm:$0xff]
    %v5231 = vld [vmem:[#allocation10 + $0x78] sm:$0xff]
    %v5232 = vld [vmem:[#allocation10 + $0x80] sm:$0xff]
    %v5233 = vld [vmem:[#allocation10 + $0x88] sm:$0xff]
    %v5234 = vld [vmem:[#allocation10 + $0x90] sm:$0xff]
    %v5235 = vld [vmem:[#allocation10 + $0x98] sm:$0xff]
    %v5236 = vld [vmem:[#allocation10 + $0xa0] sm:$0xff]
    %v5237 = vld [vmem:[#allocation10 + $0xa8] sm:$0xff]
    %v5238 = vld [vmem:[#allocation10 + $0xb0] sm:$0xff]
    %v5239 = vld [vmem:[#allocation10 + $0xb8] sm:$0xff]
    %v5240 = vld [vmem:[#allocation10 + $0xc0] sm:$0xff]
    %v5241 = vld [vmem:[#allocation10 + $0xc8] sm:$0xff]
    %v5242 = vld [vmem:[#allocation10 + $0xd0] sm:$0xff]
    %v5243 = vld [vmem:[#allocation10 + $0xd8] sm:$0xff]
    %v5244 = vld [vmem:[#allocation10 + $0xe0] sm:$0xff]
    %v5245 = vld [vmem:[#allocation10 + $0xe8] sm:$0xff]
    %v5246 = vld [vmem:[#allocation10 + $0xf0] sm:$0xff]
    %v5247 = vld [vmem:[#allocation10 + $0xf8] sm:$0xff]
    %v5248 = vld [vmem:[#allocation10 + $0x100] sm:$0xff]
    %v5249 = vld [vmem:[#allocation10 + $0x108] sm:$0xff]
    %v5250 = vld [vmem:[#allocation10 + $0x110] sm:$0xff]
    %v5251 = vld [vmem:[#allocation10 + $0x118] sm:$0xff]
    %v5252 = vld [vmem:[#allocation10 + $0x120] sm:$0xff]
    %v5253 = vld [vmem:[#allocation10 + $0x128] sm:$0xff]
    %v5254 = vld [vmem:[#allocation10 + $0x130] sm:$0xff]
    %v5255 = vld [vmem:[#allocation10 + $0x138] sm:$0xff]
    %v5256 = vld [vmem:[#allocation10 + $0x140] sm:$0xff]
    %v5257 = vld [vmem:[#allocation10 + $0x148] sm:$0xff]
    %v5258 = vld [vmem:[#allocation10 + $0x150] sm:$0xff]
    %v5259 = vld [vmem:[#allocation10 + $0x158] sm:$0xff]
    %v5260 = vld [vmem:[#allocation10 + $0x160] sm:$0xff]
    %v5261 = vld [vmem:[#allocation10 + $0x168] sm:$0xff]
    %v5262 = vld [vmem:[#allocation10 + $0x170] sm:$0xff]
    %v5263 = vld [vmem:[#allocation10 + $0x178] sm:$0xff]
    %v5264 = vld [vmem:[#allocation10 + $0x180] sm:$0xff]
    %v5265 = vld [vmem:[#allocation10 + $0x188] sm:$0xff]
    %v5266 = vld [vmem:[#allocation10 + $0x190] sm:$0xff]
    %v5267 = vld [vmem:[#allocation10 + $0x198] sm:$0xff]
    %v5268 = vld [vmem:[#allocation10 + $0x1a0] sm:$0xff]
    %v5269 = vld [vmem:[#allocation10 + $0x1a8] sm:$0xff]
    %v5270 = vld [vmem:[#allocation10 + $0x1b0] sm:$0xff]
    %v5271 = vld [vmem:[#allocation10 + $0x1b8] sm:$0xff]
    %v5272 = vld [vmem:[#allocation10 + $0x1c0] sm:$0xff]
    %v5273 = vld [vmem:[#allocation10 + $0x1c8] sm:$0xff]
    %v5274 = vld [vmem:[#allocation10 + $0x1d0] sm:$0xff]
    %v5275 = vld [vmem:[#allocation10 + $0x1d8] sm:$0xff]
    %v5276 = vld [vmem:[#allocation10 + $0x1e0] sm:$0xff]
    %v5277 = vld [vmem:[#allocation10 + $0x1e8] sm:$0xff]
    %v5278 = vld [vmem:[#allocation10 + $0x1f0] sm:$0xff]
    %v5279 = vld [vmem:[#allocation10 + $0x1f8] sm:$0xff]
    %v5280 = vld [vmem:[#allocation12] sm:$0x3]
    %v5282 = vlaneseq
    %v5283 = vshrl.u32 %v5282, 7
    %v5284 = vsub.s32 0, %v5283
    %v5285 = vrot.slane %v5280, %v5284
    %v5286 = vlaneseq
    %v5287 = vshrl.u32 %v5286, 7
    %v5288 = vsub.s32 1, %v5287
    %v5289 = vrot.slane %v5280, %v5288
    %v5356 = vunpack.c.l.b16 %v5216
    %v5357 = vunpack.c.h.b16 %v5216
    %v5358 = vunpack.c.l.b16 %v5217
    %v5359 = vunpack.c.h.b16 %v5217
    %v5360 = vunpack.c.l.b16 %v5218
    %v5361 = vunpack.c.h.b16 %v5218
    %v5362 = vunpack.c.l.b16 %v5219
    %v5363 = vunpack.c.h.b16 %v5219
    %v5364 = vunpack.c.l.b16 %v5220
    %v5365 = vunpack.c.h.b16 %v5220
    %v5366 = vunpack.c.l.b16 %v5221
    %v5367 = vunpack.c.h.b16 %v5221
    %v5368 = vunpack.c.l.b16 %v5222
    %v5369 = vunpack.c.h.b16 %v5222
    %v5370 = vunpack.c.l.b16 %v5223
    %v5371 = vunpack.c.h.b16 %v5223
    %v5372 = vunpack.c.l.b16 %v5224
    %v5373 = vunpack.c.h.b16 %v5224
    %v5374 = vunpack.c.l.b16 %v5225
    %v5375 = vunpack.c.h.b16 %v5225
    %v5376 = vunpack.c.l.b16 %v5226
    %v5377 = vunpack.c.h.b16 %v5226
    %v5378 = vunpack.c.l.b16 %v5227
    %v5379 = vunpack.c.h.b16 %v5227
    %v5380 = vunpack.c.l.b16 %v5228
    %v5381 = vunpack.c.h.b16 %v5228
    %v5382 = vunpack.c.l.b16 %v5229
    %v5383 = vunpack.c.h.b16 %v5229
    %v5384 = vunpack.c.l.b16 %v5230
    %v5385 = vunpack.c.h.b16 %v5230
    %v5386 = vunpack.c.l.b16 %v5231
    %v5387 = vunpack.c.h.b16 %v5231
    %v5388 = vunpack.c.l.b16 %v5232
    %v5389 = vunpack.c.h.b16 %v5232
    %v5390 = vunpack.c.l.b16 %v5233
    %v5391 = vunpack.c.h.b16 %v5233
    %v5392 = vunpack.c.l.b16 %v5234
    %v5393 = vunpack.c.h.b16 %v5234
    %v5394 = vunpack.c.l.b16 %v5235
    %v5395 = vunpack.c.h.b16 %v5235
    %v5396 = vunpack.c.l.b16 %v5236
    %v5397 = vunpack.c.h.b16 %v5236
    %v5398 = vunpack.c.l.b16 %v5237
    %v5399 = vunpack.c.h.b16 %v5237
    %v5400 = vunpack.c.l.b16 %v5238
    %v5401 = vunpack.c.h.b16 %v5238
    %v5402 = vunpack.c.l.b16 %v5239
    %v5403 = vunpack.c.h.b16 %v5239
    %v5404 = vunpack.c.l.b16 %v5240
    %v5405 = vunpack.c.h.b16 %v5240
    %v5406 = vunpack.c.l.b16 %v5241
    %v5407 = vunpack.c.h.b16 %v5241
    %v5408 = vunpack.c.l.b16 %v5242
    %v5409 = vunpack.c.h.b16 %v5242
    %v5410 = vunpack.c.l.b16 %v5243
    %v5411 = vunpack.c.h.b16 %v5243
    %v5412 = vunpack.c.l.b16 %v5244
    %v5413 = vunpack.c.h.b16 %v5244
    %v5414 = vunpack.c.l.b16 %v5245
    %v5415 = vunpack.c.h.b16 %v5245
    %v5416 = vunpack.c.l.b16 %v5246
    %v5417 = vunpack.c.h.b16 %v5246
    %v5418 = vunpack.c.l.b16 %v5247
    %v5419 = vunpack.c.h.b16 %v5247
    %v5420 = vunpack.c.l.b16 %v5248
    %v5421 = vunpack.c.h.b16 %v5248
    %v5422 = vunpack.c.l.b16 %v5249
    %v5423 = vunpack.c.h.b16 %v5249
    %v5424 = vunpack.c.l.b16 %v5250
    %v5425 = vunpack.c.h.b16 %v5250
    %v5426 = vunpack.c.l.b16 %v5251
    %v5427 = vunpack.c.h.b16 %v5251
    %v5428 = vunpack.c.l.b16 %v5252
    %v5429 = vunpack.c.h.b16 %v5252
    %v5430 = vunpack.c.l.b16 %v5253
    %v5431 = vunpack.c.h.b16 %v5253
    %v5432 = vunpack.c.l.b16 %v5254
    %v5433 = vunpack.c.h.b16 %v5254
    %v5434 = vunpack.c.l.b16 %v5255
    %v5435 = vunpack.c.h.b16 %v5255
    %v5436 = vunpack.c.l.b16 %v5256
    %v5437 = vunpack.c.h.b16 %v5256
    %v5438 = vunpack.c.l.b16 %v5257
    %v5439 = vunpack.c.h.b16 %v5257
    %v5440 = vunpack.c.l.b16 %v5258
    %v5441 = vunpack.c.h.b16 %v5258
    %v5442 = vunpack.c.l.b16 %v5259
    %v5443 = vunpack.c.h.b16 %v5259
    %v5444 = vunpack.c.l.b16 %v5260
    %v5445 = vunpack.c.h.b16 %v5260
    %v5446 = vunpack.c.l.b16 %v5261
    %v5447 = vunpack.c.h.b16 %v5261
    %v5448 = vunpack.c.l.b16 %v5262
    %v5449 = vunpack.c.h.b16 %v5262
    %v5450 = vunpack.c.l.b16 %v5263
    %v5451 = vunpack.c.h.b16 %v5263
    %v5452 = vunpack.c.l.b16 %v5264
    %v5453 = vunpack.c.h.b16 %v5264
    %v5454 = vunpack.c.l.b16 %v5265
    %v5455 = vunpack.c.h.b16 %v5265
    %v5456 = vunpack.c.l.b16 %v5266
    %v5457 = vunpack.c.h.b16 %v5266
    %v5458 = vunpack.c.l.b16 %v5267
    %v5459 = vunpack.c.h.b16 %v5267
    %v5460 = vunpack.c.l.b16 %v5268
    %v5461 = vunpack.c.h.b16 %v5268
    %v5462 = vunpack.c.l.b16 %v5269
    %v5463 = vunpack.c.h.b16 %v5269
    %v5464 = vunpack.c.l.b16 %v5270
    %v5465 = vunpack.c.h.b16 %v5270
    %v5466 = vunpack.c.l.b16 %v5271
    %v5467 = vunpack.c.h.b16 %v5271
    %v5468 = vunpack.c.l.b16 %v5272
    %v5469 = vunpack.c.h.b16 %v5272
    %v5470 = vunpack.c.l.b16 %v5273
    %v5471 = vunpack.c.h.b16 %v5273
    %v5472 = vunpack.c.l.b16 %v5274
    %v5473 = vunpack.c.h.b16 %v5274
    %v5474 = vunpack.c.l.b16 %v5275
    %v5475 = vunpack.c.h.b16 %v5275
    %v5476 = vunpack.c.l.b16 %v5276
    %v5477 = vunpack.c.h.b16 %v5276
    %v5478 = vunpack.c.l.b16 %v5277
    %v5479 = vunpack.c.h.b16 %v5277
    %v5480 = vunpack.c.l.b16 %v5278
    %v5481 = vunpack.c.h.b16 %v5278
    %v5482 = vunpack.c.l.b16 %v5279
    %v5483 = vunpack.c.h.b16 %v5279
    %v5484 = vpack.c.b16 %v5358, %v5356
    %v5485 = vpack.c.b16 %v5359, %v5357
    %v5486 = vpack.c.b16 %v5362, %v5360
    %v5487 = vpack.c.b16 %v5363, %v5361
    %v5488 = vpack.c.b16 %v5366, %v5364
    %v5489 = vpack.c.b16 %v5367, %v5365
    %v5490 = vpack.c.b16 %v5370, %v5368
    %v5491 = vpack.c.b16 %v5371, %v5369
    %v5492 = vpack.c.b16 %v5374, %v5372
    %v5493 = vpack.c.b16 %v5375, %v5373
    %v5494 = vpack.c.b16 %v5378, %v5376
    %v5495 = vpack.c.b16 %v5379, %v5377
    %v5496 = vpack.c.b16 %v5382, %v5380
    %v5497 = vpack.c.b16 %v5383, %v5381
    %v5498 = vpack.c.b16 %v5386, %v5384
    %v5499 = vpack.c.b16 %v5387, %v5385
    %v5500 = vpack.c.b16 %v5390, %v5388
    %v5501 = vpack.c.b16 %v5391, %v5389
    %v5502 = vpack.c.b16 %v5394, %v5392
    %v5503 = vpack.c.b16 %v5395, %v5393
    %v5504 = vpack.c.b16 %v5398, %v5396
    %v5505 = vpack.c.b16 %v5399, %v5397
    %v5506 = vpack.c.b16 %v5402, %v5400
    %v5507 = vpack.c.b16 %v5403, %v5401
    %v5508 = vpack.c.b16 %v5406, %v5404
    %v5509 = vpack.c.b16 %v5407, %v5405
    %v5510 = vpack.c.b16 %v5410, %v5408
    %v5511 = vpack.c.b16 %v5411, %v5409
    %v5512 = vpack.c.b16 %v5414, %v5412
    %v5513 = vpack.c.b16 %v5415, %v5413
    %v5514 = vpack.c.b16 %v5418, %v5416
    %v5515 = vpack.c.b16 %v5419, %v5417
    %v5516 = vpack.c.b16 %v5422, %v5420
    %v5517 = vpack.c.b16 %v5423, %v5421
    %v5518 = vpack.c.b16 %v5426, %v5424
    %v5519 = vpack.c.b16 %v5427, %v5425
    %v5520 = vpack.c.b16 %v5430, %v5428
    %v5521 = vpack.c.b16 %v5431, %v5429
    %v5522 = vpack.c.b16 %v5434, %v5432
    %v5523 = vpack.c.b16 %v5435, %v5433
    %v5524 = vpack.c.b16 %v5438, %v5436
    %v5525 = vpack.c.b16 %v5439, %v5437
    %v5526 = vpack.c.b16 %v5442, %v5440
    %v5527 = vpack.c.b16 %v5443, %v5441
    %v5528 = vpack.c.b16 %v5446, %v5444
    %v5529 = vpack.c.b16 %v5447, %v5445
    %v5530 = vpack.c.b16 %v5450, %v5448
    %v5531 = vpack.c.b16 %v5451, %v5449
    %v5532 = vpack.c.b16 %v5454, %v5452
    %v5533 = vpack.c.b16 %v5455, %v5453
    %v5534 = vpack.c.b16 %v5458, %v5456
    %v5535 = vpack.c.b16 %v5459, %v5457
    %v5536 = vpack.c.b16 %v5462, %v5460
    %v5537 = vpack.c.b16 %v5463, %v5461
    %v5538 = vpack.c.b16 %v5466, %v5464
    %v5539 = vpack.c.b16 %v5467, %v5465
    %v5540 = vpack.c.b16 %v5470, %v5468
    %v5541 = vpack.c.b16 %v5471, %v5469
    %v5542 = vpack.c.b16 %v5474, %v5472
    %v5543 = vpack.c.b16 %v5475, %v5473
    %v5544 = vpack.c.b16 %v5478, %v5476
    %v5545 = vpack.c.b16 %v5479, %v5477
    %v5546 = vpack.c.b16 %v5482, %v5480
    %v5547 = vpack.c.b16 %v5483, %v5481
    %5612 = vmatprep.subr.bf16.mxu0 %v5499
    %5613 = vmatpush1.bf16.msra.mxu0 %v5498
    %5614 = vmatprep.subr.bf16.mxu0 %v5497
    %5615 = vmatpush1.bf16.msra.mxu0 %v5496
    %5616 = vmatprep.subr.bf16.mxu0 %v5495
    %5617 = vmatpush1.bf16.msra.mxu0 %v5494
    %5618 = vmatprep.subr.bf16.mxu0 %v5493
    %5619 = vmatpush1.bf16.msra.mxu0 %v5492
    %5620 = vmatprep.subr.bf16.mxu0 %v5491
    %5621 = vmatpush1.bf16.msra.mxu0 %v5490
    %5622 = vmatprep.subr.bf16.mxu0 %v5489
    %5623 = vmatpush1.bf16.msra.mxu0 %v5488
    %5624 = vmatprep.subr.bf16.mxu0 %v5487
    %5625 = vmatpush1.bf16.msra.mxu0 %v5486
    %5626 = vmatprep.subr.bf16.mxu0 %v5485
    %5627 = vmatpush1.bf16.msra.mxu0 %v5484
    %5628 = vmatprep.subr.bf16.mxu0 %v5515
    %5629 = vmatpush2.bf16.msra.mxu0 %v5514
    %5630 = vmatprep.subr.bf16.mxu0 %v5513
    %5631 = vmatpush2.bf16.msra.mxu0 %v5512
    %5632 = vmatprep.subr.bf16.mxu0 %v5511
    %5633 = vmatpush2.bf16.msra.mxu0 %v5510
    %5634 = vmatprep.subr.bf16.mxu0 %v5509
    %5635 = vmatpush2.bf16.msra.mxu0 %v5508
    %5636 = vmatprep.subr.bf16.mxu0 %v5507
    %5637 = vmatpush2.bf16.msra.mxu0 %v5506
    %5638 = vmatprep.subr.bf16.mxu0 %v5505
    %5639 = vmatpush2.bf16.msra.mxu0 %v5504
    %5640 = vmatprep.subr.bf16.mxu0 %v5503
    %5641 = vmatpush2.bf16.msra.mxu0 %v5502
    %5642 = vmatprep.subr.bf16.mxu0 %v5501
    %5643 = vmatpush2.bf16.msra.mxu0 %v5500
    %5644 = vmatprep.mubr.bf16.mxu0 %v5213
    %5645 = vmatmul.mubr.bf16.gmra.mxu0 %v5212
    %v5646 = vpop.f32.mrf.mxu0
    %v5647 = vadd.f32 %v5285, %v5646
    %v5648 = vpop.f32.mrf.mxu0
    %v5649 = vadd.f32 %v5289, %v5648
    %v5650 = vpop.f32.mrf.mxu0
    %v5651 = vadd.f32 %v5285, %v5650
    %v5652 = vpop.f32.mrf.mxu0
    %v5653 = vadd.f32 %v5289, %v5652
    %5654 = vdwg.mxu0
    %5655 = vmatprep.subr.bf16.mxu0 %v5531
    %5656 = vmatpush1.bf16.msra.mxu0 %v5530
    %5657 = vmatprep.subr.bf16.mxu0 %v5529
    %5658 = vmatpush1.bf16.msra.mxu0 %v5528
    %5659 = vmatprep.subr.bf16.mxu0 %v5527
    %5660 = vmatpush1.bf16.msra.mxu0 %v5526
    %5661 = vmatprep.subr.bf16.mxu0 %v5525
    %5662 = vmatpush1.bf16.msra.mxu0 %v5524
    %5663 = vmatprep.subr.bf16.mxu0 %v5523
    %5664 = vmatpush1.bf16.msra.mxu0 %v5522
    %5665 = vmatprep.subr.bf16.mxu0 %v5521
    %5666 = vmatpush1.bf16.msra.mxu0 %v5520
    %5667 = vmatprep.subr.bf16.mxu0 %v5519
    %5668 = vmatpush1.bf16.msra.mxu0 %v5518
    %5669 = vmatprep.subr.bf16.mxu0 %v5517
    %5670 = vmatpush1.bf16.msra.mxu0 %v5516
    %5671 = vmatprep.subr.bf16.mxu0 %v5547
    %5672 = vmatpush2.bf16.msra.mxu0 %v5546
    %5673 = vmatprep.subr.bf16.mxu0 %v5545
    %5674 = vmatpush2.bf16.msra.mxu0 %v5544
    %5675 = vmatprep.subr.bf16.mxu0 %v5543
    %5676 = vmatpush2.bf16.msra.mxu0 %v5542
    %5677 = vmatprep.subr.bf16.mxu0 %v5541
    %5678 = vmatpush2.bf16.msra.mxu0 %v5540
    %5679 = vmatprep.subr.bf16.mxu0 %v5539
    %5680 = vmatpush2.bf16.msra.mxu0 %v5538
    %5681 = vmatprep.subr.bf16.mxu0 %v5537
    %5682 = vmatpush2.bf16.msra.mxu0 %v5536
    %5683 = vmatprep.subr.bf16.mxu0 %v5535
    %5684 = vmatpush2.bf16.msra.mxu0 %v5534
    %5685 = vmatprep.subr.bf16.mxu0 %v5533
    %5686 = vmatpush2.bf16.msra.mxu0 %v5532
    %5687 = vmatprep.mubr.bf16.mxu0 %v5215
    %5688 = vmatmul.mubr.bf16.gmra.mxu0 %v5214
    %v5689 = vpop.f32.mrf.mxu0
    %v5690 = vadd.f32 %v5647, %v5689
    %v5691 = vpop.f32.mrf.mxu0
    %v5692 = vadd.f32 %v5649, %v5691
    %v5693 = vpop.f32.mrf.mxu0
    %v5694 = vadd.f32 %v5651, %v5693
    %v5695 = vpop.f32.mrf.mxu0
    %v5696 = vadd.f32 %v5653, %v5695
    %5697 = vdwg.mxu0
    %v5698 = vmul.f32 %v5690, 0.2
    %v5699 = vmul.f32 %v5692, 0.2
    %v5700 = vmul.f32 %v5694, 0.2
    %v5701 = vmul.f32 %v5696, 0.2
    %v5702 = vmax.f32 %v5690, %v5698
    %v5703 = vmax.f32 %v5692, %v5699
    %v5704 = vmax.f32 %v5694, %v5700
    %v5705 = vmax.f32 %v5696, %v5701
    %v5706 = vpack.c.bf16 %v5704, %v5702
    %v5707 = vpack.c.bf16 %v5705, %v5703
    %v5708 = vld [vmem:[#allocation13] sm:$0xf]
    %v5709 = vld [vmem:[#allocation13 + $0x4] sm:$0xf]
    %v5710 = vld [vmem:[#allocation13 + $0x8] sm:$0xf]
    %v5711 = vld [vmem:[#allocation13 + $0xc] sm:$0xf]
    %v5712 = vld [vmem:[#allocation13 + $0x10] sm:$0xf]
    %v5713 = vld [vmem:[#allocation13 + $0x14] sm:$0xf]
    %v5714 = vld [vmem:[#allocation13 + $0x18] sm:$0xf]
    %v5715 = vld [vmem:[#allocation13 + $0x1c] sm:$0xf]
    %v5716 = vld [vmem:[#allocation13 + $0x20] sm:$0xf]
    %v5717 = vld [vmem:[#allocation13 + $0x24] sm:$0xf]
    %v5718 = vld [vmem:[#allocation13 + $0x28] sm:$0xf]
    %v5719 = vld [vmem:[#allocation13 + $0x2c] sm:$0xf]
    %v5720 = vld [vmem:[#allocation13 + $0x30] sm:$0xf]
    %v5721 = vld [vmem:[#allocation13 + $0x34] sm:$0xf]
    %v5722 = vld [vmem:[#allocation13 + $0x38] sm:$0xf]
    %v5723 = vld [vmem:[#allocation13 + $0x3c] sm:$0xf]
    %v5724 = vld [vmem:[#allocation13 + $0x40] sm:$0xf]
    %v5725 = vld [vmem:[#allocation13 + $0x44] sm:$0xf]
    %v5726 = vld [vmem:[#allocation13 + $0x48] sm:$0xf]
    %v5727 = vld [vmem:[#allocation13 + $0x4c] sm:$0xf]
    %v5728 = vld [vmem:[#allocation13 + $0x50] sm:$0xf]
    %v5729 = vld [vmem:[#allocation13 + $0x54] sm:$0xf]
    %v5730 = vld [vmem:[#allocation13 + $0x58] sm:$0xf]
    %v5731 = vld [vmem:[#allocation13 + $0x5c] sm:$0xf]
    %v5732 = vld [vmem:[#allocation13 + $0x60] sm:$0xf]
    %v5733 = vld [vmem:[#allocation13 + $0x64] sm:$0xf]
    %v5734 = vld [vmem:[#allocation13 + $0x68] sm:$0xf]
    %v5735 = vld [vmem:[#allocation13 + $0x6c] sm:$0xf]
    %v5736 = vld [vmem:[#allocation13 + $0x70] sm:$0xf]
    %v5737 = vld [vmem:[#allocation13 + $0x74] sm:$0xf]
    %v5738 = vld [vmem:[#allocation13 + $0x78] sm:$0xf]
    %v5739 = vld [vmem:[#allocation13 + $0x7c] sm:$0xf]
    %v5740 = vld [vmem:[#allocation15] sm:$0x1]
    %v5742 = vlaneseq
    %v5743 = vshrl.u32 %v5742, 7
    %v5744 = vsub.s32 0, %v5743
    %v5745 = vrot.slane %v5740, %v5744
    %v5779 = vunpack.c.l.b16 %v5708
    %v5780 = vunpack.c.l.b16 %v5709
    %v5781 = vunpack.c.l.b16 %v5710
    %v5782 = vunpack.c.l.b16 %v5711
    %v5783 = vunpack.c.l.b16 %v5712
    %v5784 = vunpack.c.l.b16 %v5713
    %v5785 = vunpack.c.l.b16 %v5714
    %v5786 = vunpack.c.l.b16 %v5715
    %v5787 = vunpack.c.l.b16 %v5716
    %v5788 = vunpack.c.l.b16 %v5717
    %v5789 = vunpack.c.l.b16 %v5718
    %v5790 = vunpack.c.l.b16 %v5719
    %v5791 = vunpack.c.l.b16 %v5720
    %v5792 = vunpack.c.l.b16 %v5721
    %v5793 = vunpack.c.l.b16 %v5722
    %v5794 = vunpack.c.l.b16 %v5723
    %v5795 = vunpack.c.l.b16 %v5724
    %v5796 = vunpack.c.l.b16 %v5725
    %v5797 = vunpack.c.l.b16 %v5726
    %v5798 = vunpack.c.l.b16 %v5727
    %v5799 = vunpack.c.l.b16 %v5728
    %v5800 = vunpack.c.l.b16 %v5729
    %v5801 = vunpack.c.l.b16 %v5730
    %v5802 = vunpack.c.l.b16 %v5731
    %v5803 = vunpack.c.l.b16 %v5732
    %v5804 = vunpack.c.l.b16 %v5733
    %v5805 = vunpack.c.l.b16 %v5734
    %v5806 = vunpack.c.l.b16 %v5735
    %v5807 = vunpack.c.l.b16 %v5736
    %v5808 = vunpack.c.l.b16 %v5737
    %v5809 = vunpack.c.l.b16 %v5738
    %v5810 = vunpack.c.l.b16 %v5739
    %v5811 = vpack.c.b16 %v5780, %v5779
    %v5812 = vpack.c.b16 %v5782, %v5781
    %v5813 = vpack.c.b16 %v5784, %v5783
    %v5814 = vpack.c.b16 %v5786, %v5785
    %v5815 = vpack.c.b16 %v5788, %v5787
    %v5816 = vpack.c.b16 %v5790, %v5789
    %v5817 = vpack.c.b16 %v5792, %v5791
    %v5818 = vpack.c.b16 %v5794, %v5793
    %v5819 = vpack.c.b16 %v5796, %v5795
    %v5820 = vpack.c.b16 %v5798, %v5797
    %v5821 = vpack.c.b16 %v5800, %v5799
    %v5822 = vpack.c.b16 %v5802, %v5801
    %v5823 = vpack.c.b16 %v5804, %v5803
    %v5824 = vpack.c.b16 %v5806, %v5805
    %v5825 = vpack.c.b16 %v5808, %v5807
    %v5826 = vpack.c.b16 %v5810, %v5809
    %5843 = vmatprep.subr.bf16.mxu0 0
    %5844 = vmatpush1.bf16.msra.mxu0 %v5818
    %5845 = vmatprep.subr.bf16.mxu0 0
    %5846 = vmatpush1.bf16.msra.mxu0 %v5817
    %5847 = vmatprep.subr.bf16.mxu0 0
    %5848 = vmatpush1.bf16.msra.mxu0 %v5816
    %5849 = vmatprep.subr.bf16.mxu0 0
    %5850 = vmatpush1.bf16.msra.mxu0 %v5815
    %5851 = vmatprep.subr.bf16.mxu0 0
    %5852 = vmatpush1.bf16.msra.mxu0 %v5814
    %5853 = vmatprep.subr.bf16.mxu0 0
    %5854 = vmatpush1.bf16.msra.mxu0 %v5813
    %5855 = vmatprep.subr.bf16.mxu0 0
    %5856 = vmatpush1.bf16.msra.mxu0 %v5812
    %5857 = vmatprep.subr.bf16.mxu0 0
    %5858 = vmatpush1.bf16.msra.mxu0 %v5811
    %5859 = vmatprep.subr.bf16.mxu0 0
    %5860 = vmatpush2.bf16.msra.mxu0 %v5826
    %5861 = vmatprep.subr.bf16.mxu0 0
    %5862 = vmatpush2.bf16.msra.mxu0 %v5825
    %5863 = vmatprep.subr.bf16.mxu0 0
    %5864 = vmatpush2.bf16.msra.mxu0 %v5824
    %5865 = vmatprep.subr.bf16.mxu0 0
    %5866 = vmatpush2.bf16.msra.mxu0 %v5823
    %5867 = vmatprep.subr.bf16.mxu0 0
    %5868 = vmatpush2.bf16.msra.mxu0 %v5822
    %5869 = vmatprep.subr.bf16.mxu0 0
    %5870 = vmatpush2.bf16.msra.mxu0 %v5821
    %5871 = vmatprep.subr.bf16.mxu0 0
    %5872 = vmatpush2.bf16.msra.mxu0 %v5820
    %5873 = vmatprep.subr.bf16.mxu0 0
    %5874 = vmatpush2.bf16.msra.mxu0 %v5819
    %5875 = vmatprep.mubr.bf16.mxu0 %v5707
    %5876 = vmatmul.mubr.bf16.gmra.mxu0 %v5706
    %v5877 = vpop.f32.mrf.mxu0
    %v5878 = vadd.f32 %v5745, %v5877
    %v5879 = vpop.f32.mrf.mxu0
    %v5880 = vpop.f32.mrf.mxu0
    %v5881 = vadd.f32 %v5745, %v5880
    %v5882 = vpop.f32.mrf.mxu0
    %5883 = vdwg.mxu0
    %v5884 = vsub.f32 0.0, %v5878
    %v5885 = vsub.f32 0.0, %v5881
    %v5886 = vmul.f32 %v5884, 1.442695
    %v5887 = vpow.pop %v5886
    %v5888 = vmul.f32 %v5885, 1.442695
    %v5889 = vpow.pop %v5888
    %v5890 = vadd.f32 %v5887, 1.0
    %v5891 = vadd.f32 %v5889, 1.0
    %v5892 = vrcp.pop %v5890
    %v5893 = vmul.f32 1.0, %v5892
    %v5894 = vrcp.pop %v5891
    %v5895 = vmul.f32 1.0, %v5894
    %vm5896 = vcmask 7168
    %5897 = vst.msk [vmem:[%s9] sm:$0xff] %vm5896, %v5893
    %5898 = vst.msk [vmem:[%s9 + $0x8] sm:$0xff] %vm5896, %v5895
    // Predicated region
    $region74: #{tpu_custom_call.1} parent=1 // pred_check
      _
    $region75: #{tpu_custom_call.1} parent=1 // pred_check_branch
      %5900 = sbr.rel (0) target = $region77
    $region76: #{tpu_custom_call.1} parent=1 // pred_region
      _
    $region77: #{tpu_custom_call.1} parent=1 // pred_fallthru
      _
    // Predicated region
    $region78: #{tpu_custom_call.1} parent=1 // pred_check
      _
    $region79: #{tpu_custom_call.1} parent=1 // pred_check_branch
      %5902 = sbr.rel (0) target = $region81
    $region80: #{tpu_custom_call.1} parent=1 // pred_region
      _
    $region81: #{tpu_custom_call.1} parent=1 // pred_fallthru
      _
    %5903 = vsyncpa [#allocation3], 1
    %5904 = vsyncpa [#allocation5], 1
    %5905 = vsyncpa [#allocation8], 1
    %5906 = vsyncpa [#allocation11], 1
    %5907 = vsyncpa [#allocation14], 1

// kernel: tpu_custom_call.1
$region0: #{tpu_custom_call.1}
  #allocation0 [shape = 'u32[]', space=smem, size = 0x4, offset = 0x4, fixed_abs, tag = 'smem constant byte address 0x4 - core index']
  #allocation1 [shape = 'u32[144,128]{1,0:T(1,128)}', space=vmem, size = 0x12000, scoped, tag = 'internal scratch']
  %s0 = inlined_call_operand.hbm [shape: f32[16,784], index: 0, kind: input, shape index: {}]
  %s1 = inlined_call_operand.hbm [shape: bf16[784,1024], index: 1, kind: input, shape index: {}]
  %s2 = inlined_call_operand.hbm [shape: f32[1,1024], index: 2, kind: input, shape index: {}]
  %s3 = inlined_call_operand.hbm [shape: bf16[1024,512], index: 3, kind: input, shape index: {}]
  %s4 = inlined_call_operand.hbm [shape: f32[1,512], index: 4, kind: input, shape index: {}]
  %s5 = inlined_call_operand.hbm [shape: bf16[512,256], index: 5, kind: input, shape index: {}]
  %s6 = inlined_call_operand.hbm [shape: f32[1,256], index: 6, kind: input, shape index: {}]
  %s7 = inlined_call_operand.hbm [shape: bf16[256,128], index: 7, kind: input, shape index: {}]
  %s8 = inlined_call_operand.hbm [shape: f32[1,128], index: 8, kind: input, shape index: {}]
  %s9 = inlined_call_operand.vmem [shape: f32[16,1], index: 9, kind: output, shape index: {}]
  %s10 = sld [smem:[#allocation0]]
  $region82: #{tpu_custom_call.1} parent=0
    _
  %s12 = ssub.s32 1, %s10
  %s13 = scalar_select 0, %s12, %s10
  $region1: #{tpu_custom_call.1} parent=0
    #allocation2 [shape = 'u8[57344]{0}', space=vmem, size = 0xe000, scoped, tag = 'input window, operand 0, single buffered']
    #allocation3 [shape = 's32[1]{0}', space=sflag, size = 0x4, scoped, tag = 'scoped memory for tpu_custom_call.1']
    #allocation4 [shape = 'u8[1605632]{0}', space=vmem, size = 0x188000, scoped, tag = 'input window, operand 1, single buffered']
    #allocation5 [shape = 's32[1]{0}', space=sflag, size = 0x4, scoped, tag = 'scoped memory for tpu_custom_call.1']
    #allocation6 [shape = 'u8[4096]{0}', space=vmem, size = 0x1000, scoped, tag = 'input window, operand 2, single buffered']
    #allocation7 [shape = 'u8[1048576]{0}', space=vmem, size = 0x100000, scoped, tag = 'input window, operand 3, single buffered']
    #allocation8 [shape = 's32[1]{0}', space=sflag, size = 0x4, scoped, tag = 'scoped memory for tpu_custom_call.1']
    #allocation9 [shape = 'u8[2048]{0}', space=vmem, size = 0x800, scoped, tag = 'input window, operand 4, single buffered']
    #allocation10 [shape = 'u8[262144]{0}', space=vmem, size = 0x40000, scoped, tag = 'input window, operand 5, single buffered']
    #allocation11 [shape = 's32[1]{0}', space=sflag, size = 0x4, scoped, tag = 'scoped memory for tpu_custom_call.1']
    #allocation12 [shape = 'u8[1024]{0}', space=vmem, size = 0x400, scoped, tag = 'input window, operand 6, single buffered']
    #allocation13 [shape = 'u8[65536]{0}', space=vmem, size = 0x10000, scoped, tag = 'input window, operand 7, single buffered']
    #allocation14 [shape = 's32[1]{0}', space=sflag, size = 0x4, scoped, tag = 'scoped memory for tpu_custom_call.1']
    #allocation15 [shape = 'u8[512]{0}', space=vmem, size = 0x400, scoped, tag = 'input window, operand 8, single buffered']
    %14 = vsyncpa [#allocation3], 0
    %15 = vsyncpa [#allocation5], 0
    %16 = vsyncpa [#allocation8], 0
    %17 = vsyncpa [#allocation11], 0
    %18 = vsyncpa [#allocation14], 0
    // Predicated region
    $region2: #{tpu_custom_call.1} parent=1 // pred_check
      _
    $region3: #{tpu_custom_call.1} parent=1 // pred_check_branch
      %20 = sbr.rel (0) target = $region5
    $region4: #{tpu_custom_call.1} parent=1 // pred_region
      %s22 = ssub.s32 1792, 1792
      %23 = vsyncadd [#allocation3], %s22
      %s24 = sshll.u32 [#allocation2], 4
      %s25 = int_to_ptr.vmem [resolvable:$true] %s24
      %30 = dma.hbm_to_vmem [thread:$0]  %s0, 1792, %s25, [#allocation3], 896, 896, 56
    $region5: #{tpu_custom_call.1} parent=1 // pred_fallthru
      _
    // Predicated region
    $region6: #{tpu_custom_call.1} parent=1 // pred_check
      _
    $region7: #{tpu_custom_call.1} parent=1 // pred_check_branch
      %32 = sbr.rel (0) target = $region9
    $region8: #{tpu_custom_call.1} parent=1 // pred_region
      %s34 = ssub.s32 50176, 50176
      %35 = vsyncadd [#allocation5], %s34
      %s36 = sshll.u32 [#allocation4], 4
      %s37 = int_to_ptr.vmem [resolvable:$true] %s36
      %42 = dma.hbm_to_vmem [thread:$0]  %s1, 50176, %s37, [#allocation5], 512, 512, 32
    $region9: #{tpu_custom_call.1} parent=1 // pred_fallthru
      _
    // Predicated region
    $region10: #{tpu_custom_call.1} parent=1 // pred_check
      _
    $region11: #{tpu_custom_call.1} parent=1 // pred_check_branch
      %44 = sbr.rel (0) target = $region13
    $region12: #{tpu_custom_call.1} parent=1 // pred_region
      %s46 = ssub.s32 128, 128
      %47 = vsyncadd [#allocation5], %s46
      %s49 = sshll.u32 [#allocation6], 4
      %s50 = int_to_ptr.vmem [resolvable:$true] %s49
      %52 = dma.hbm_to_vmem [thread:$0]  %s2, 128, %s50, [#allocation5]
    $region13: #{tpu_custom_call.1} parent=1 // pred_fallthru
      _
    // Predicated region
    $region14: #{tpu_custom_call.1} parent=1 // pred_check
      _
    $region15: #{tpu_custom_call.1} parent=1 // pred_check_branch
      %54 = sbr.rel (0) target = $region17
    $region16: #{tpu_custom_call.1} parent=1 // pred_region
      %s56 = ssub.s32 32768, 32768
      %57 = vsyncadd [#allocation8], %s56
      %s58 = sshll.u32 [#allocation7], 4
      %s59 = int_to_ptr.vmem [resolvable:$true] %s58
      %64 = dma.hbm_to_vmem [thread:$0]  %s3, 32768, %s59, [#allocation8], 256, 256, 16
    $region17: #{tpu_custom_call.1} parent=1 // pred_fallthru
      _
    // Predicated region
    $region18: #{tpu_custom_call.1} parent=1 // pred_check
      _
    $region19: #{tpu_custom_call.1} parent=1 // pred_check_branch
      %66 = sbr.rel (0) target = $region21
    $region20: #{tpu_custom_call.1} parent=1 // pred_region
      %s68 = ssub.s32 64, 64
      %69 = vsyncadd [#allocation8], %s68
      %s71 = sshll.u32 [#allocation9], 4
      %s72 = int_to_ptr.vmem [resolvable:$true] %s71
      %74 = dma.hbm_to_vmem [thread:$0]  %s4, 64, %s72, [#allocation8]
    $region21: #{tpu_custom_call.1} parent=1 // pred_fallthru
      _
    // Predicated region
    $region22: #{tpu_custom_call.1} parent=1 // pred_check
      _
    $region23: #{tpu_custom_call.1} parent=1 // pred_check_branch
      %76 = sbr.rel (0) target = $region25
    $region24: #{tpu_custom_call.1} parent=1 // pred_region
      %s78 = ssub.s32 8192, 8192
      %79 = vsyncadd [#allocation11], %s78
      %s80 = sshll.u32 [#allocation10], 4
      %s81 = int_to_ptr.vmem [resolvable:$true] %s80
      %86 = dma.hbm_to_vmem [thread:$0]  %s5, 8192, %s81, [#allocation11], 128, 128, 8
    $region25: #{tpu_custom_call.1} parent=1 // pred_fallthru
      _
    // Predicated region
    $region26: #{tpu_custom_call.1} parent=1 // pred_check
      _
    $region27: #{tpu_custom_call.1} parent=1 // pred_check_branch
      %88 = sbr.rel (0) target = $region29
    $region28: #{tpu_custom_call.1} parent=1 // pred_region
      %s90 = ssub.s32 32, 32
      %91 = vsyncadd [#allocation11], %s90
      %s93 = sshll.u32 [#allocation12], 4
      %s94 = int_to_ptr.vmem [resolvable:$true] %s93
      %96 = dma.hbm_to_vmem [thread:$0]  %s6, 32, %s94, [#allocation11]
    $region29: #{tpu_custom_call.1} parent=1 // pred_fallthru
      _
    // Predicated region
    $region30: #{tpu_custom_call.1} parent=1 // pred_check
      _
    $region31: #{tpu_custom_call.1} parent=1 // pred_check_branch
      %98 = sbr.rel (0) target = $region33
    $region32: #{tpu_custom_call.1} parent=1 // pred_region
      %s100 = ssub.s32 2048, 2048
      %101 = vsyncadd [#allocation14], %s100
      %s102 = sshll.u32 [#allocation13], 4
      %s103 = int_to_ptr.vmem [resolvable:$true] %s102
      %108 = dma.hbm_to_vmem [thread:$0]  %s7, 2048, %s103, [#allocation14], 64, 64, 4
    $region33: #{tpu_custom_call.1} parent=1 // pred_fallthru
      _
    // Predicated region
    $region34: #{tpu_custom_call.1} parent=1 // pred_check
      _
    $region35: #{tpu_custom_call.1} parent=1 // pred_check_branch
      %110 = sbr.rel (0) target = $region37
    $region36: #{tpu_custom_call.1} parent=1 // pred_region
      %s112 = ssub.s32 16, 16
      %113 = vsyncadd [#allocation14], %s112
      %s115 = sshll.u32 [#allocation15], 4
      %s116 = int_to_ptr.vmem [resolvable:$true] %s115
      %118 = dma.hbm_to_vmem [thread:$0]  %s8, 16, %s116, [#allocation14]
    $region37: #{tpu_custom_call.1} parent=1 // pred_fallthru
      _
    // Predicated region
    $region38: #{tpu_custom_call.1} parent=1 // pred_check
      _
    $region39: #{tpu_custom_call.1} parent=1 // pred_check_branch
      %120 = sbr.rel (0) target = $region41
    $region40: #{tpu_custom_call.1} parent=1 // pred_region
      %121 = dma.done [#allocation3], 1792
    $region41: #{tpu_custom_call.1} parent=1 // pred_fallthru
      _
    // Predicated region
    $region42: #{tpu_custom_call.1} parent=1 // pred_check
      _
    $region43: #{tpu_custom_call.1} parent=1 // pred_check_branch
      %123 = sbr.rel (0) target = $region45
    $region44: #{tpu_custom_call.1} parent=1 // pred_region
      %124 = dma.done [#allocation5], 50176
    $region45: #{tpu_custom_call.1} parent=1 // pred_fallthru
      _
    // Predicated region
    $region46: #{tpu_custom_call.1} parent=1 // pred_check
      _
    $region47: #{tpu_custom_call.1} parent=1 // pred_check_branch
      %126 = sbr.rel (0) target = $region49
    $region48: #{tpu_custom_call.1} parent=1 // pred_region
      %127 = dma.done [#allocation5], 128
    $region49: #{tpu_custom_call.1} parent=1 // pred_fallthru
      _
    // Predicated region
    $region50: #{tpu_custom_call.1} parent=1 // pred_check
      _
    $region51: #{tpu_custom_call.1} parent=1 // pred_check_branch
      %129 = sbr.rel (0) target = $region53
    $region52: #{tpu_custom_call.1} parent=1 // pred_region
      %130 = dma.done [#allocation8], 32768
    $region53: #{tpu_custom_call.1} parent=1 // pred_fallthru
      _
    // Predicated region
    $region54: #{tpu_custom_call.1} parent=1 // pred_check
      _
    $region55: #{tpu_custom_call.1} parent=1 // pred_check_branch
      %132 = sbr.rel (0) target = $region57
    $region56: #{tpu_custom_call.1} parent=1 // pred_region
      %133 = dma.done [#allocation8], 64
    $region57: #{tpu_custom_call.1} parent=1 // pred_fallthru
      _
    // Predicated region
    $region58: #{tpu_custom_call.1} parent=1 // pred_check
      _
    $region59: #{tpu_custom_call.1} parent=1 // pred_check_branch
      %135 = sbr.rel (0) target = $region61
    $region60: #{tpu_custom_call.1} parent=1 // pred_region
      %136 = dma.done [#allocation11], 8192
    $region61: #{tpu_custom_call.1} parent=1 // pred_fallthru
      _
    // Predicated region
    $region62: #{tpu_custom_call.1} parent=1 // pred_check
      _
    $region63: #{tpu_custom_call.1} parent=1 // pred_check_branch
      %138 = sbr.rel (0) target = $region65
    $region64: #{tpu_custom_call.1} parent=1 // pred_region
      %139 = dma.done [#allocation11], 32
    $region65: #{tpu_custom_call.1} parent=1 // pred_fallthru
      _
    // Predicated region
    $region66: #{tpu_custom_call.1} parent=1 // pred_check
      _
    $region67: #{tpu_custom_call.1} parent=1 // pred_check_branch
      %141 = sbr.rel (0) target = $region69
    $region68: #{tpu_custom_call.1} parent=1 // pred_region
      %142 = dma.done [#allocation14], 2048
    $region69: #{tpu_custom_call.1} parent=1 // pred_fallthru
      _
    // Predicated region
    $region70: #{tpu_custom_call.1} parent=1 // pred_check
      _
    $region71: #{tpu_custom_call.1} parent=1 // pred_check_branch
      %144 = sbr.rel (0) target = $region73
    $region72: #{tpu_custom_call.1} parent=1 // pred_region
      %145 = dma.done [#allocation14], 16
    $region73: #{tpu_custom_call.1} parent=1 // pred_fallthru
      _
    %v147 = vld [vmem:[#allocation2] sm:$0xff]
    %v148 = vld [vmem:[#allocation2 + $0x8] sm:$0xff]
    %v149 = vld [vmem:[#allocation2 + $0x10] sm:$0xff]
    %v150 = vld [vmem:[#allocation2 + $0x18] sm:$0xff]
    %v151 = vld [vmem:[#allocation2 + $0x20] sm:$0xff]
    %v152 = vld [vmem:[#allocation2 + $0x28] sm:$0xff]
    %v153 = vld [vmem:[#allocation2 + $0x30] sm:$0xff]
    %v154 = vld [vmem:[#allocation2 + $0x38] sm:$0xff]
    %v155 = vld [vmem:[#allocation2 + $0x40] sm:$0xff]
    %v156 = vld [vmem:[#allocation2 + $0x48] sm:$0xff]
    %v157 = vld [vmem:[#allocation2 + $0x50] sm:$0xff]
    %v158 = vld [vmem:[#allocation2 + $0x58] sm:$0xff]
    %v159 = vld [vmem:[#allocation2 + $0x60] sm:$0xff]
    %v160 = vld [vmem:[#allocation2 + $0x68] sm:$0xff]
    %v161 = vpack.c.bf16 %v154, %v147
    %v162 = vpack.c.bf16 %v155, %v148
    %v163 = vpack.c.bf16 %v156, %v149
    %v164 = vpack.c.bf16 %v157, %v150
    %v165 = vpack.c.bf16 %v158, %v151
    %v166 = vpack.c.bf16 %v159, %v152
    %v167 = vpack.c.bf16 %v160, %v153
    %v168 = vld [vmem:[#allocation4] sm:$0xff]
    %v169 = vld [vmem:[#allocation4 + $0x8] sm:$0xff]
    %v170 = vld [vmem:[#allocation4 + $0x10] sm:$0xff]
    %v171 = vld [vmem:[#allocation4 + $0x18] sm:$0xff]
    %v172 = vld [vmem:[#allocation4 + $0x20] sm:$0xff]
    %v173 = vld [vmem:[#allocation4 + $0x28] sm:$0xff]
    %v174 = vld [vmem:[#allocation4 + $0x30] sm:$0xff]
    %v175 = vld [vmem:[#allocation4 + $0x38] sm:$0xff]
    %v176 = vld [vmem:[#allocation4 + $0x40] sm:$0xff]
    %v177 = vld [vmem:[#allocation4 + $0x48] sm:$0xff]
    %v178 = vld [vmem:[#allocation4 + $0x50] sm:$0xff]
    %v179 = vld [vmem:[#allocation4 + $0x58] sm:$0xff]
    %v180 = vld [vmem:[#allocation4 + $0x60] sm:$0xff]
    %v181 = vld [vmem:[#allocation4 + $0x68] sm:$0xff]
    %v182 = vld [vmem:[#allocation4 + $0x70] sm:$0xff]
    %v183 = vld [vmem:[#allocation4 + $0x78] sm:$0xff]
    %v184 = vld [vmem:[#allocation4 + $0x80] sm:$0xff]
    %v185 = vld [vmem:[#allocation4 + $0x88] sm:$0xff]
    %v186 = vld [vmem:[#allocation4 + $0x90] sm:$0xff]
    %v187 = vld [vmem:[#allocation4 + $0x98] sm:$0xff]
    %v188 = vld [vmem:[#allocation4 + $0xa0] sm:$0xff]
    %v189 = vld [vmem:[#allocation4 + $0xa8] sm:$0xff]
    %v190 = vld [vmem:[#allocation4 + $0xb0] sm:$0xff]
    %v191 = vld [vmem:[#allocation4 + $0xb8] sm:$0xff]
    %v192 = vld [vmem:[#allocation4 + $0xc0] sm:$0xff]
    %v193 = vld [vmem:[#allocation4 + $0xc8] sm:$0xff]
    %v194 = vld [vmem:[#allocation4 + $0xd0] sm:$0xff]
    %v195 = vld [vmem:[#allocation4 + $0xd8] sm:$0xff]
    %v196 = vld [vmem:[#allocation4 + $0xe0] sm:$0xff]
    %v197 = vld [vmem:[#allocation4 + $0xe8] sm:$0xff]
    %v198 = vld [vmem:[#allocation4 + $0xf0] sm:$0xff]
    %v199 = vld [vmem:[#allocation4 + $0xf8] sm:$0xff]
    %v200 = vld [vmem:[#allocation4 + $0x100] sm:$0xff]
    %v201 = vld [vmem:[#allocation4 + $0x108] sm:$0xff]
    %v202 = vld [vmem:[#allocation4 + $0x110] sm:$0xff]
    %v203 = vld [vmem:[#allocation4 + $0x118] sm:$0xff]
    %v204 = vld [vmem:[#allocation4 + $0x120] sm:$0xff]
    %v205 = vld [vmem:[#allocation4 + $0x128] sm:$0xff]
    %v206 = vld [vmem:[#allocation4 + $0x130] sm:$0xff]
    %v207 = vld [vmem:[#allocation4 + $0x138] sm:$0xff]
    %v208 = vld [vmem:[#allocation4 + $0x140] sm:$0xff]
    %v209 = vld [vmem:[#allocation4 + $0x148] sm:$0xff]
    %v210 = vld [vmem:[#allocation4 + $0x150] sm:$0xff]
    %v211 = vld [vmem:[#allocation4 + $0x158] sm:$0xff]
    %v212 = vld [vmem:[#allocation4 + $0x160] sm:$0xff]
    %v213 = vld [vmem:[#allocation4 + $0x168] sm:$0xff]
    %v214 = vld [vmem:[#allocation4 + $0x170] sm:$0xff]
    %v215 = vld [vmem:[#allocation4 + $0x178] sm:$0xff]
    %v216 = vld [vmem:[#allocation4 + $0x180] sm:$0xff]
    %v217 = vld [vmem:[#allocation4 + $0x188] sm:$0xff]
    %v218 = vld [vmem:[#allocation4 + $0x190] sm:$0xff]
    %v219 = vld [vmem:[#allocation4 + $0x198] sm:$0xff]
    %v220 = vld [vmem:[#allocation4 + $0x1a0] sm:$0xff]
    %v221 = vld [vmem:[#allocation4 + $0x1a8] sm:$0xff]
    %v222 = vld [vmem:[#allocation4 + $0x1b0] sm:$0xff]
    %v223 = vld [vmem:[#allocation4 + $0x1b8] sm:$0xff]
    %v224 = vld [vmem:[#allocation4 + $0x1c0] sm:$0xff]
    %v225 = vld [vmem:[#allocation4 + $0x1c8] sm:$0xff]
    %v226 = vld [vmem:[#allocation4 + $0x1d0] sm:$0xff]
    %v227 = vld [vmem:[#allocation4 + $0x1d8] sm:$0xff]
    %v228 = vld [vmem:[#allocation4 + $0x1e0] sm:$0xff]
    %v229 = vld [vmem:[#allocation4 + $0x1e8] sm:$0xff]
    %v230 = vld [vmem:[#allocation4 + $0x1f0] sm:$0xff]
    %v231 = vld [vmem:[#allocation4 + $0x1f8] sm:$0xff]
    %v232 = vld [vmem:[#allocation4 + $0x200] sm:$0xff]
    %v233 = vld [vmem:[#allocation4 + $0x208] sm:$0xff]
    %v234 = vld [vmem:[#allocation4 + $0x210] sm:$0xff]
    %v235 = vld [vmem:[#allocation4 + $0x218] sm:$0xff]
    %v236 = vld [vmem:[#allocation4 + $0x220] sm:$0xff]
    %v237 = vld [vmem:[#allocation4 + $0x228] sm:$0xff]
    %v238 = vld [vmem:[#allocation4 + $0x230] sm:$0xff]
    %v239 = vld [vmem:[#allocation4 + $0x238] sm:$0xff]
    %v240 = vld [vmem:[#allocation4 + $0x240] sm:$0xff]
    %v241 = vld [vmem:[#allocation4 + $0x248] sm:$0xff]
    %v242 = vld [vmem:[#allocation4 + $0x250] sm:$0xff]
    %v243 = vld [vmem:[#allocation4 + $0x258] sm:$0xff]
    %v244 = vld [vmem:[#allocation4 + $0x260] sm:$0xff]
    %v245 = vld [vmem:[#allocation4 + $0x268] sm:$0xff]
    %v246 = vld [vmem:[#allocation4 + $0x270] sm:$0xff]
    %v247 = vld [vmem:[#allocation4 + $0x278] sm:$0xff]
    %v248 = vld [vmem:[#allocation4 + $0x280] sm:$0xff]
    %v249 = vld [vmem:[#allocation4 + $0x288] sm:$0xff]
    %v250 = vld [vmem:[#allocation4 + $0x290] sm:$0xff]
    %v251 = vld [vmem:[#allocation4 + $0x298] sm:$0xff]
    %v252 = vld [vmem:[#allocation4 + $0x2a0] sm:$0xff]
    %v253 = vld [vmem:[#allocation4 + $0x2a8] sm:$0xff]
    %v254 = vld [vmem:[#allocation4 + $0x2b0] sm:$0xff]
    %v255 = vld [vmem:[#allocation4 + $0x2b8] sm:$0xff]
    %v256 = vld [vmem:[#allocation4 + $0x2c0] sm:$0xff]
    %v257 = vld [vmem:[#allocation4 + $0x2c8] sm:$0xff]
    %v258 = vld [vmem:[#allocation4 + $0x2d0] sm:$0xff]
    %v259 = vld [vmem:[#allocation4 + $0x2d8] sm:$0xff]
    %v260 = vld [vmem:[#allocation4 + $0x2e0] sm:$0xff]
    %v261 = vld [vmem:[#allocation4 + $0x2e8] sm:$0xff]
    %v262 = vld [vmem:[#allocation4 + $0x2f0] sm:$0xff]
    %v263 = vld [vmem:[#allocation4 + $0x2f8] sm:$0xff]
    %v264 = vld [vmem:[#allocation4 + $0x300] sm:$0xff]
    %v265 = vld [vmem:[#allocation4 + $0x308] sm:$0xff]
    %v266 = vld [vmem:[#allocation4 + $0x310] sm:$0xff]
    %v267 = vld [vmem:[#allocation4 + $0x318] sm:$0xff]
    %v268 = vld [vmem:[#allocation4 + $0x320] sm:$0xff]
    %v269 = vld [vmem:[#allocation4 + $0x328] sm:$0xff]
    %v270 = vld [vmem:[#allocation4 + $0x330] sm:$0xff]
    %v271 = vld [vmem:[#allocation4 + $0x338] sm:$0xff]
    %v272 = vld [vmem:[#allocation4 + $0x340] sm:$0xff]
    %v273 = vld [vmem:[#allocation4 + $0x348] sm:$0xff]
    %v274 = vld [vmem:[#allocation4 + $0x350] sm:$0xff]
    %v275 = vld [vmem:[#allocation4 + $0x358] sm:$0xff]
    %v276 = vld [vmem:[#allocation4 + $0x360] sm:$0xff]
    %v277 = vld [vmem:[#allocation4 + $0x368] sm:$0xff]
    %v278 = vld [vmem:[#allocation4 + $0x370] sm:$0xff]
    %v279 = vld [vmem:[#allocation4 + $0x378] sm:$0xff]
    %v280 = vld [vmem:[#allocation4 + $0x380] sm:$0xff]
    %v281 = vld [vmem:[#allocation4 + $0x388] sm:$0xff]
    %v282 = vld [vmem:[#allocation4 + $0x390] sm:$0xff]
    %v283 = vld [vmem:[#allocation4 + $0x398] sm:$0xff]
    %v284 = vld [vmem:[#allocation4 + $0x3a0] sm:$0xff]
    %v285 = vld [vmem:[#allocation4 + $0x3a8] sm:$0xff]
    %v286 = vld [vmem:[#allocation4 + $0x3b0] sm:$0xff]
    %v287 = vld [vmem:[#allocation4 + $0x3b8] sm:$0xff]
    %v288 = vld [vmem:[#allocation4 + $0x3c0] sm:$0xff]
    %v289 = vld [vmem:[#allocation4 + $0x3c8] sm:$0xff]
    %v290 = vld [vmem:[#allocation4 + $0x3d0] sm:$0xff]
    %v291 = vld [vmem:[#allocation4 + $0x3d8] sm:$0xff]
    %v292 = vld [vmem:[#allocation4 + $0x3e0] sm:$0xff]
    %v293 = vld [vmem:[#allocation4 + $0x3e8] sm:$0xff]
    %v294 = vld [vmem:[#allocation4 + $0x3f0] sm:$0xff]
    %v295 = vld [vmem:[#allocation4 + $0x3f8] sm:$0xff]
    %v296 = vld [vmem:[#allocation4 + $0x400] sm:$0xff]
    %v297 = vld [vmem:[#allocation4 + $0x408] sm:$0xff]
    %v298 = vld [vmem:[#allocation4 + $0x410] sm:$0xff]
    %v299 = vld [vmem:[#allocation4 + $0x418] sm:$0xff]
    %v300 = vld [vmem:[#allocation4 + $0x420] sm:$0xff]
    %v301 = vld [vmem:[#allocation4 + $0x428] sm:$0xff]
    %v302 = vld [vmem:[#allocation4 + $0x430] sm:$0xff]
    %v303 = vld [vmem:[#allocation4 + $0x438] sm:$0xff]
    %v304 = vld [vmem:[#allocation4 + $0x440] sm:$0xff]
    %v305 = vld [vmem:[#allocation4 + $0x448] sm:$0xff]
    %v306 = vld [vmem:[#allocation4 + $0x450] sm:$0xff]
    %v307 = vld [vmem:[#allocation4 + $0x458] sm:$0xff]
    %v308 = vld [vmem:[#allocation4 + $0x460] sm:$0xff]
    %v309 = vld [vmem:[#allocation4 + $0x468] sm:$0xff]
    %v310 = vld [vmem:[#allocation4 + $0x470] sm:$0xff]
    %v311 = vld [vmem:[#allocation4 + $0x478] sm:$0xff]
    %v312 = vld [vmem:[#allocation4 + $0x480] sm:$0xff]
    %v313 = vld [vmem:[#allocation4 + $0x488] sm:$0xff]
    %v314 = vld [vmem:[#allocation4 + $0x490] sm:$0xff]
    %v315 = vld [vmem:[#allocation4 + $0x498] sm:$0xff]
    %v316 = vld [vmem:[#allocation4 + $0x4a0] sm:$0xff]
    %v317 = vld [vmem:[#allocation4 + $0x4a8] sm:$0xff]
    %v318 = vld [vmem:[#allocation4 + $0x4b0] sm:$0xff]
    %v319 = vld [vmem:[#allocation4 + $0x4b8] sm:$0xff]
    %v320 = vld [vmem:[#allocation4 + $0x4c0] sm:$0xff]
    %v321 = vld [vmem:[#allocation4 + $0x4c8] sm:$0xff]
    %v322 = vld [vmem:[#allocation4 + $0x4d0] sm:$0xff]
    %v323 = vld [vmem:[#allocation4 + $0x4d8] sm:$0xff]
    %v324 = vld [vmem:[#allocation4 + $0x4e0] sm:$0xff]
    %v325 = vld [vmem:[#allocation4 + $0x4e8] sm:$0xff]
    %v326 = vld [vmem:[#allocation4 + $0x4f0] sm:$0xff]
    %v327 = vld [vmem:[#allocation4 + $0x4f8] sm:$0xff]
    %v328 = vld [vmem:[#allocation4 + $0x500] sm:$0xff]
    %v329 = vld [vmem:[#allocation4 + $0x508] sm:$0xff]
    %v330 = vld [vmem:[#allocation4 + $0x510] sm:$0xff]
    %v331 = vld [vmem:[#allocation4 + $0x518] sm:$0xff]
    %v332 = vld [vmem:[#allocation4 + $0x520] sm:$0xff]
    %v333 = vld [vmem:[#allocation4 + $0x528] sm:$0xff]
    %v334 = vld [vmem:[#allocation4 + $0x530] sm:$0xff]
    %v335 = vld [vmem:[#allocation4 + $0x538] sm:$0xff]
    %v336 = vld [vmem:[#allocation4 + $0x540] sm:$0xff]
    %v337 = vld [vmem:[#allocation4 + $0x548] sm:$0xff]
    %v338 = vld [vmem:[#allocation4 + $0x550] sm:$0xff]
    %v339 = vld [vmem:[#allocation4 + $0x558] sm:$0xff]
    %v340 = vld [vmem:[#allocation4 + $0x560] sm:$0xff]
    %v341 = vld [vmem:[#allocation4 + $0x568] sm:$0xff]
    %v342 = vld [vmem:[#allocation4 + $0x570] sm:$0xff]
    %v343 = vld [vmem:[#allocation4 + $0x578] sm:$0xff]
    %v344 = vld [vmem:[#allocation4 + $0x580] sm:$0xff]
    %v345 = vld [vmem:[#allocation4 + $0x588] sm:$0xff]
    %v346 = vld [vmem:[#allocation4 + $0x590] sm:$0xff]
    %v347 = vld [vmem:[#allocation4 + $0x598] sm:$0xff]
    %v348 = vld [vmem:[#allocation4 + $0x5a0] sm:$0xff]
    %v349 = vld [vmem:[#allocation4 + $0x5a8] sm:$0xff]
    %v350 = vld [vmem:[#allocation4 + $0x5b0] sm:$0xff]
    %v351 = vld [vmem:[#allocation4 + $0x5b8] sm:$0xff]
    %v352 = vld [vmem:[#allocation4 + $0x5c0] sm:$0xff]
    %v353 = vld [vmem:[#allocation4 + $0x5c8] sm:$0xff]
    %v354 = vld [vmem:[#allocation4 + $0x5d0] sm:$0xff]
    %v355 = vld [vmem:[#allocation4 + $0x5d8] sm:$0xff]
    %v356 = vld [vmem:[#allocation4 + $0x5e0] sm:$0xff]
    %v357 = vld [vmem:[#allocation4 + $0x5e8] sm:$0xff]
    %v358 = vld [vmem:[#allocation4 + $0x5f0] sm:$0xff]
    %v359 = vld [vmem:[#allocation4 + $0x5f8] sm:$0xff]
    %v360 = vld [vmem:[#allocation4 + $0x600] sm:$0xff]
    %v361 = vld [vmem:[#allocation4 + $0x608] sm:$0xff]
    %v362 = vld [vmem:[#allocation4 + $0x610] sm:$0xff]
    %v363 = vld [vmem:[#allocation4 + $0x618] sm:$0xff]
    %v364 = vld [vmem:[#allocation4 + $0x620] sm:$0xff]
    %v365 = vld [vmem:[#allocation4 + $0x628] sm:$0xff]
    %v366 = vld [vmem:[#allocation4 + $0x630] sm:$0xff]
    %v367 = vld [vmem:[#allocation4 + $0x638] sm:$0xff]
    %v368 = vld [vmem:[#allocation4 + $0x640] sm:$0xff]
    %v369 = vld [vmem:[#allocation4 + $0x648] sm:$0xff]
    %v370 = vld [vmem:[#allocation4 + $0x650] sm:$0xff]
    %v371 = vld [vmem:[#allocation4 + $0x658] sm:$0xff]
    %v372 = vld [vmem:[#allocation4 + $0x660] sm:$0xff]
    %v373 = vld [vmem:[#allocation4 + $0x668] sm:$0xff]
    %v374 = vld [vmem:[#allocation4 + $0x670] sm:$0xff]
    %v375 = vld [vmem:[#allocation4 + $0x678] sm:$0xff]
    %v376 = vld [vmem:[#allocation4 + $0x680] sm:$0xff]
    %v377 = vld [vmem:[#allocation4 + $0x688] sm:$0xff]
    %v378 = vld [vmem:[#allocation4 + $0x690] sm:$0xff]
    %v379 = vld [vmem:[#allocation4 + $0x698] sm:$0xff]
    %v380 = vld [vmem:[#allocation4 + $0x6a0] sm:$0xff]
    %v381 = vld [vmem:[#allocation4 + $0x6a8] sm:$0xff]
    %v382 = vld [vmem:[#allocation4 + $0x6b0] sm:$0xff]
    %v383 = vld [vmem:[#allocation4 + $0x6b8] sm:$0xff]
    %v384 = vld [vmem:[#allocation4 + $0x6c0] sm:$0xff]
    %v385 = vld [vmem:[#allocation4 + $0x6c8] sm:$0xff]
    %v386 = vld [vmem:[#allocation4 + $0x6d0] sm:$0xff]
    %v387 = vld [vmem:[#allocation4 + $0x6d8] sm:$0xff]
    %v388 = vld [vmem:[#allocation4 + $0x6e0] sm:$0xff]
    %v389 = vld [vmem:[#allocation4 + $0x6e8] sm:$0xff]
    %v390 = vld [vmem:[#allocation4 + $0x6f0] sm:$0xff]
    %v391 = vld [vmem:[#allocation4 + $0x6f8] sm:$0xff]
    %v392 = vld [vmem:[#allocation4 + $0x700] sm:$0xff]
    %v393 = vld [vmem:[#allocation4 + $0x708] sm:$0xff]
    %v394 = vld [vmem:[#allocation4 + $0x710] sm:$0xff]
    %v395 = vld [vmem:[#allocation4 + $0x718] sm:$0xff]
    %v396 = vld [vmem:[#allocation4 + $0x720] sm:$0xff]
    %v397 = vld [vmem:[#allocation4 + $0x728] sm:$0xff]
    %v398 = vld [vmem:[#allocation4 + $0x730] sm:$0xff]
    %v399 = vld [vmem:[#allocation4 + $0x738] sm:$0xff]
    %v400 = vld [vmem:[#allocation4 + $0x740] sm:$0xff]
    %v401 = vld [vmem:[#allocation4 + $0x748] sm:$0xff]
    %v402 = vld [vmem:[#allocation4 + $0x750] sm:$0xff]
    %v403 = vld [vmem:[#allocation4 + $0x758] sm:$0xff]
    %v404 = vld [vmem:[#allocation4 + $0x760] sm:$0xff]
    %v405 = vld [vmem:[#allocation4 + $0x768] sm:$0xff]
    %v406 = vld [vmem:[#allocation4 + $0x770] sm:$0xff]
    %v407 = vld [vmem:[#allocation4 + $0x778] sm:$0xff]
    %v408 = vld [vmem:[#allocation4 + $0x780] sm:$0xff]
    %v409 = vld [vmem:[#allocation4 + $0x788] sm:$0xff]
    %v410 = vld [vmem:[#allocation4 + $0x790] sm:$0xff]
    %v411 = vld [vmem:[#allocation4 + $0x798] sm:$0xff]
    %v412 = vld [vmem:[#allocation4 + $0x7a0] sm:$0xff]
    %v413 = vld [vmem:[#allocation4 + $0x7a8] sm:$0xff]
    %v414 = vld [vmem:[#allocation4 + $0x7b0] sm:$0xff]
    %v415 = vld [vmem:[#allocation4 + $0x7b8] sm:$0xff]
    %v416 = vld [vmem:[#allocation4 + $0x7c0] sm:$0xff]
    %v417 = vld [vmem:[#allocation4 + $0x7c8] sm:$0xff]
    %v418 = vld [vmem:[#allocation4 + $0x7d0] sm:$0xff]
    %v419 = vld [vmem:[#allocation4 + $0x7d8] sm:$0xff]
    %v420 = vld [vmem:[#allocation4 + $0x7e0] sm:$0xff]
    %v421 = vld [vmem:[#allocation4 + $0x7e8] sm:$0xff]
    %v422 = vld [vmem:[#allocation4 + $0x7f0] sm:$0xff]
    %v423 = vld [vmem:[#allocation4 + $0x7f8] sm:$0xff]
    %v424 = vld [vmem:[#allocation4 + $0x800] sm:$0xff]
    %v425 = vld [vmem:[#allocation4 + $0x808] sm:$0xff]
    %v426 = vld [vmem:[#allocation4 + $0x810] sm:$0xff]
    %v427 = vld [vmem:[#allocation4 + $0x818] sm:$0xff]
    %v428 = vld [vmem:[#allocation4 + $0x820] sm:$0xff]
    %v429 = vld [vmem:[#allocation4 + $0x828] sm:$0xff]
    %v430 = vld [vmem:[#allocation4 + $0x830] sm:$0xff]
    %v431 = vld [vmem:[#allocation4 + $0x838] sm:$0xff]
    %v432 = vld [vmem:[#allocation4 + $0x840] sm:$0xff]
    %v433 = vld [vmem:[#allocation4 + $0x848] sm:$0xff]
    %v434 = vld [vmem:[#allocation4 + $0x850] sm:$0xff]
    %v435 = vld [vmem:[#allocation4 + $0x858] sm:$0xff]
    %v436 = vld [vmem:[#allocation4 + $0x860] sm:$0xff]
    %v437 = vld [vmem:[#allocation4 + $0x868] sm:$0xff]
    %v438 = vld [vmem:[#allocation4 + $0x870] sm:$0xff]
    %v439 = vld [vmem:[#allocation4 + $0x878] sm:$0xff]
    %v440 = vld [vmem:[#allocation4 + $0x880] sm:$0xff]
    %v441 = vld [vmem:[#allocation4 + $0x888] sm:$0xff]
    %v442 = vld [vmem:[#allocation4 + $0x890] sm:$0xff]
    %v443 = vld [vmem:[#allocation4 + $0x898] sm:$0xff]
    %v444 = vld [vmem:[#allocation4 + $0x8a0] sm:$0xff]
    %v445 = vld [vmem:[#allocation4 + $0x8a8] sm:$0xff]
    %v446 = vld [vmem:[#allocation4 + $0x8b0] sm:$0xff]
    %v447 = vld [vmem:[#allocation4 + $0x8b8] sm:$0xff]
    %v448 = vld [vmem:[#allocation4 + $0x8c0] sm:$0xff]
    %v449 = vld [vmem:[#allocation4 + $0x8c8] sm:$0xff]
    %v450 = vld [vmem:[#allocation4 + $0x8d0] sm:$0xff]
    %v451 = vld [vmem:[#allocation4 + $0x8d8] sm:$0xff]
    %v452 = vld [vmem:[#allocation4 + $0x8e0] sm:$0xff]
    %v453 = vld [vmem:[#allocation4 + $0x8e8] sm:$0xff]
    %v454 = vld [vmem:[#allocation4 + $0x8f0] sm:$0xff]
    %v455 = vld [vmem:[#allocation4 + $0x8f8] sm:$0xff]
    %v456 = vld [vmem:[#allocation4 + $0x900] sm:$0xff]
    %v457 = vld [vmem:[#allocation4 + $0x908] sm:$0xff]
    %v458 = vld [vmem:[#allocation4 + $0x910] sm:$0xff]
    %v459 = vld [vmem:[#allocation4 + $0x918] sm:$0xff]
    %v460 = vld [vmem:[#allocation4 + $0x920] sm:$0xff]
    %v461 = vld [vmem:[#allocation4 + $0x928] sm:$0xff]
    %v462 = vld [vmem:[#allocation4 + $0x930] sm:$0xff]
    %v463 = vld [vmem:[#allocation4 + $0x938] sm:$0xff]
    %v464 = vld [vmem:[#allocation4 + $0x940] sm:$0xff]
    %v465 = vld [vmem:[#allocation4 + $0x948] sm:$0xff]
    %v466 = vld [vmem:[#allocation4 + $0x950] sm:$0xff]
    %v467 = vld [vmem:[#allocation4 + $0x958] sm:$0xff]
    %v468 = vld [vmem:[#allocation4 + $0x960] sm:$0xff]
    %v469 = vld [vmem:[#allocation4 + $0x968] sm:$0xff]
    %v470 = vld [vmem:[#allocation4 + $0x970] sm:$0xff]
    %v471 = vld [vmem:[#allocation4 + $0x978] sm:$0xff]
    %v472 = vld [vmem:[#allocation4 + $0x980] sm:$0xff]
    %v473 = vld [vmem:[#allocation4 + $0x988] sm:$0xff]
    %v474 = vld [vmem:[#allocation4 + $0x990] sm:$0xff]
    %v475 = vld [vmem:[#allocation4 + $0x998] sm:$0xff]
    %v476 = vld [vmem:[#allocation4 + $0x9a0] sm:$0xff]
    %v477 = vld [vmem:[#allocation4 + $0x9a8] sm:$0xff]
    %v478 = vld [vmem:[#allocation4 + $0x9b0] sm:$0xff]
    %v479 = vld [vmem:[#allocation4 + $0x9b8] sm:$0xff]
    %v480 = vld [vmem:[#allocation4 + $0x9c0] sm:$0xff]
    %v481 = vld [vmem:[#allocation4 + $0x9c8] sm:$0xff]
    %v482 = vld [vmem:[#allocation4 + $0x9d0] sm:$0xff]
    %v483 = vld [vmem:[#allocation4 + $0x9d8] sm:$0xff]
    %v484 = vld [vmem:[#allocation4 + $0x9e0] sm:$0xff]
    %v485 = vld [vmem:[#allocation4 + $0x9e8] sm:$0xff]
    %v486 = vld [vmem:[#allocation4 + $0x9f0] sm:$0xff]
    %v487 = vld [vmem:[#allocation4 + $0x9f8] sm:$0xff]
    %v488 = vld [vmem:[#allocation4 + $0xa00] sm:$0xff]
    %v489 = vld [vmem:[#allocation4 + $0xa08] sm:$0xff]
    %v490 = vld [vmem:[#allocation4 + $0xa10] sm:$0xff]
    %v491 = vld [vmem:[#allocation4 + $0xa18] sm:$0xff]
    %v492 = vld [vmem:[#allocation4 + $0xa20] sm:$0xff]
    %v493 = vld [vmem:[#allocation4 + $0xa28] sm:$0xff]
    %v494 = vld [vmem:[#allocation4 + $0xa30] sm:$0xff]
    %v495 = vld [vmem:[#allocation4 + $0xa38] sm:$0xff]
    %v496 = vld [vmem:[#allocation4 + $0xa40] sm:$0xff]
    %v497 = vld [vmem:[#allocation4 + $0xa48] sm:$0xff]
    %v498 = vld [vmem:[#allocation4 + $0xa50] sm:$0xff]
    %v499 = vld [vmem:[#allocation4 + $0xa58] sm:$0xff]
    %v500 = vld [vmem:[#allocation4 + $0xa60] sm:$0xff]
    %v501 = vld [vmem:[#allocation4 + $0xa68] sm:$0xff]
    %v502 = vld [vmem:[#allocation4 + $0xa70] sm:$0xff]
    %v503 = vld [vmem:[#allocation4 + $0xa78] sm:$0xff]
    %v504 = vld [vmem:[#allocation4 + $0xa80] sm:$0xff]
    %v505 = vld [vmem:[#allocation4 + $0xa88] sm:$0xff]
    %v506 = vld [vmem:[#allocation4 + $0xa90] sm:$0xff]
    %v507 = vld [vmem:[#allocation4 + $0xa98] sm:$0xff]
    %v508 = vld [vmem:[#allocation4 + $0xaa0] sm:$0xff]
    %v509 = vld [vmem:[#allocation4 + $0xaa8] sm:$0xff]
    %v510 = vld [vmem:[#allocation4 + $0xab0] sm:$0xff]
    %v511 = vld [vmem:[#allocation4 + $0xab8] sm:$0xff]
    %v512 = vld [vmem:[#allocation4 + $0xac0] sm:$0xff]
    %v513 = vld [vmem:[#allocation4 + $0xac8] sm:$0xff]
    %v514 = vld [vmem:[#allocation4 + $0xad0] sm:$0xff]
    %v515 = vld [vmem:[#allocation4 + $0xad8] sm:$0xff]
    %v516 = vld [vmem:[#allocation4 + $0xae0] sm:$0xff]
    %v517 = vld [vmem:[#allocation4 + $0xae8] sm:$0xff]
    %v518 = vld [vmem:[#allocation4 + $0xaf0] sm:$0xff]
    %v519 = vld [vmem:[#allocation4 + $0xaf8] sm:$0xff]
    %v520 = vld [vmem:[#allocation4 + $0xb00] sm:$0xff]
    %v521 = vld [vmem:[#allocation4 + $0xb08] sm:$0xff]
    %v522 = vld [vmem:[#allocation4 + $0xb10] sm:$0xff]
    %v523 = vld [vmem:[#allocation4 + $0xb18] sm:$0xff]
    %v524 = vld [vmem:[#allocation4 + $0xb20] sm:$0xff]
    %v525 = vld [vmem:[#allocation4 + $0xb28] sm:$0xff]
    %v526 = vld [vmem:[#allocation4 + $0xb30] sm:$0xff]
    %v527 = vld [vmem:[#allocation4 + $0xb38] sm:$0xff]
    %v528 = vld [vmem:[#allocation4 + $0xb40] sm:$0xff]
    %v529 = vld [vmem:[#allocation4 + $0xb48] sm:$0xff]
    %v530 = vld [vmem:[#allocation4 + $0xb50] sm:$0xff]
    %v531 = vld [vmem:[#allocation4 + $0xb58] sm:$0xff]
    %v532 = vld [vmem:[#allocation4 + $0xb60] sm:$0xff]
    %v533 = vld [vmem:[#allocation4 + $0xb68] sm:$0xff]
    %v534 = vld [vmem:[#allocation4 + $0xb70] sm:$0xff]
    %v535 = vld [vmem:[#allocation4 + $0xb78] sm:$0xff]
    %v536 = vld [vmem:[#allocation4 + $0xb80] sm:$0xff]
    %v537 = vld [vmem:[#allocation4 + $0xb88] sm:$0xff]
    %v538 = vld [vmem:[#allocation4 + $0xb90] sm:$0xff]
    %v539 = vld [vmem:[#allocation4 + $0xb98] sm:$0xff]
    %v540 = vld [vmem:[#allocation4 + $0xba0] sm:$0xff]
    %v541 = vld [vmem:[#allocation4 + $0xba8] sm:$0xff]
    %v542 = vld [vmem:[#allocation4 + $0xbb0] sm:$0xff]
    %v543 = vld [vmem:[#allocation4 + $0xbb8] sm:$0xff]
    %v544 = vld [vmem:[#allocation4 + $0xbc0] sm:$0xff]
    %v545 = vld [vmem:[#allocation4 + $0xbc8] sm:$0xff]
    %v546 = vld [vmem:[#allocation4 + $0xbd0] sm:$0xff]
    %v547 = vld [vmem:[#allocation4 + $0xbd8] sm:$0xff]
    %v548 = vld [vmem:[#allocation4 + $0xbe0] sm:$0xff]
    %v549 = vld [vmem:[#allocation4 + $0xbe8] sm:$0xff]
    %v550 = vld [vmem:[#allocation4 + $0xbf0] sm:$0xff]
    %v551 = vld [vmem:[#allocation4 + $0xbf8] sm:$0xff]
    %v552 = vld [vmem:[#allocation4 + $0xc00] sm:$0xff]
    %v553 = vld [vmem:[#allocation4 + $0xc08] sm:$0xff]
    %v554 = vld [vmem:[#allocation4 + $0xc10] sm:$0xff]
    %v555 = vld [vmem:[#allocation4 + $0xc18] sm:$0xff]
    %v556 = vld [vmem:[#allocation4 + $0xc20] sm:$0xff]
    %v557 = vld [vmem:[#allocation4 + $0xc28] sm:$0xff]
    %v558 = vld [vmem:[#allocation4 + $0xc30] sm:$0xff]
    %v559 = vld [vmem:[#allocation4 + $0xc38] sm:$0xff]
    %v560 = vld [vmem:[#allocation6] sm:$0xff]
    %v562 = vlaneseq
    %v563 = vshrl.u32 %v562, 7
    %v564 = vsub.s32 0, %v563
    %v565 = vrot.slane %v560, %v564
    %v566 = vlaneseq
    %v567 = vshrl.u32 %v566, 7
    %v568 = vsub.s32 1, %v567
    %v569 = vrot.slane %v560, %v568
    %v570 = vlaneseq
    %v571 = vshrl.u32 %v570, 7
    %v572 = vsub.s32 2, %v571
    %v573 = vrot.slane %v560, %v572
    %v574 = vlaneseq
    %v575 = vshrl.u32 %v574, 7
    %v576 = vsub.s32 3, %v575
    %v577 = vrot.slane %v560, %v576
    %v578 = vlaneseq
    %v579 = vshrl.u32 %v578, 7
    %v580 = vsub.s32 4, %v579
    %v581 = vrot.slane %v560, %v580
    %v582 = vlaneseq
    %v583 = vshrl.u32 %v582, 7
    %v584 = vsub.s32 5, %v583
    %v585 = vrot.slane %v560, %v584
    %v586 = vlaneseq
    %v587 = vshrl.u32 %v586, 7
    %v588 = vsub.s32 6, %v587
    %v589 = vrot.slane %v560, %v588
    %v590 = vlaneseq
    %v591 = vshrl.u32 %v590, 7
    %v592 = vsub.s32 7, %v591
    %v593 = vrot.slane %v560, %v592
    %v994 = vunpack.c.l.b16 %v168
    %v995 = vunpack.c.h.b16 %v168
    %v996 = vunpack.c.l.b16 %v169
    %v997 = vunpack.c.h.b16 %v169
    %v998 = vunpack.c.l.b16 %v170
    %v999 = vunpack.c.h.b16 %v170
    %v1000 = vunpack.c.l.b16 %v171
    %v1001 = vunpack.c.h.b16 %v171
    %v1002 = vunpack.c.l.b16 %v172
    %v1003 = vunpack.c.h.b16 %v172
    %v1004 = vunpack.c.l.b16 %v173
    %v1005 = vunpack.c.h.b16 %v173
    %v1006 = vunpack.c.l.b16 %v174
    %v1007 = vunpack.c.h.b16 %v174
    %v1008 = vunpack.c.l.b16 %v175
    %v1009 = vunpack.c.h.b16 %v175
    %v1010 = vunpack.c.l.b16 %v176
    %v1011 = vunpack.c.h.b16 %v176
    %v1012 = vunpack.c.l.b16 %v177
    %v1013 = vunpack.c.h.b16 %v177
    %v1014 = vunpack.c.l.b16 %v178
    %v1015 = vunpack.c.h.b16 %v178
    %v1016 = vunpack.c.l.b16 %v179
    %v1017 = vunpack.c.h.b16 %v179
    %v1018 = vunpack.c.l.b16 %v180
    %v1019 = vunpack.c.h.b16 %v180
    %v1020 = vunpack.c.l.b16 %v181
    %v1021 = vunpack.c.h.b16 %v181
    %v1022 = vunpack.c.l.b16 %v182
    %v1023 = vunpack.c.h.b16 %v182
    %v1024 = vunpack.c.l.b16 %v183
    %v1025 = vunpack.c.h.b16 %v183
    %v1026 = vunpack.c.l.b16 %v184
    %v1027 = vunpack.c.h.b16 %v184
    %v1028 = vunpack.c.l.b16 %v185
    %v1029 = vunpack.c.h.b16 %v185
    %v1030 = vunpack.c.l.b16 %v186
    %v1031 = vunpack.c.h.b16 %v186
    %v1032 = vunpack.c.l.b16 %v187
    %v1033 = vunpack.c.h.b16 %v187
    %v1034 = vunpack.c.l.b16 %v188
    %v1035 = vunpack.c.h.b16 %v188
    %v1036 = vunpack.c.l.b16 %v189
    %v1037 = vunpack.c.h.b16 %v189
    %v1038 = vunpack.c.l.b16 %v190
    %v1039 = vunpack.c.h.b16 %v190
    %v1040 = vunpack.c.l.b16 %v191
    %v1041 = vunpack.c.h.b16 %v191
    %v1042 = vunpack.c.l.b16 %v192
    %v1043 = vunpack.c.h.b16 %v192
    %v1044 = vunpack.c.l.b16 %v193
    %v1045 = vunpack.c.h.b16 %v193
    %v1046 = vunpack.c.l.b16 %v194
    %v1047 = vunpack.c.h.b16 %v194
    %v1048 = vunpack.c.l.b16 %v195
    %v1049 = vunpack.c.h.b16 %v195
    %v1050 = vunpack.c.l.b16 %v196
    %v1051 = vunpack.c.h.b16 %v196
    %v1052 = vunpack.c.l.b16 %v197
    %v1053 = vunpack.c.h.b16 %v197
    %v1054 = vunpack.c.l.b16 %v198
    %v1055 = vunpack.c.h.b16 %v198
    %v1056 = vunpack.c.l.b16 %v199
    %v1057 = vunpack.c.h.b16 %v199
    %v1058 = vunpack.c.l.b16 %v200
    %v1059 = vunpack.c.h.b16 %v200
    %v1060 = vunpack.c.l.b16 %v201
    %v1061 = vunpack.c.h.b16 %v201
    %v1062 = vunpack.c.l.b16 %v202
    %v1063 = vunpack.c.h.b16 %v202
    %v1064 = vunpack.c.l.b16 %v203
    %v1065 = vunpack.c.h.b16 %v203
    %v1066 = vunpack.c.l.b16 %v204
    %v1067 = vunpack.c.h.b16 %v204
    %v1068 = vunpack.c.l.b16 %v205
    %v1069 = vunpack.c.h.b16 %v205
    %v1070 = vunpack.c.l.b16 %v206
    %v1071 = vunpack.c.h.b16 %v206
    %v1072 = vunpack.c.l.b16 %v207
    %v1073 = vunpack.c.h.b16 %v207
    %v1074 = vunpack.c.l.b16 %v208
    %v1075 = vunpack.c.h.b16 %v208
    %v1076 = vunpack.c.l.b16 %v209
    %v1077 = vunpack.c.h.b16 %v209
    %v1078 = vunpack.c.l.b16 %v210
    %v1079 = vunpack.c.h.b16 %v210
    %v1080 = vunpack.c.l.b16 %v211
    %v1081 = vunpack.c.h.b16 %v211
    %v1082 = vunpack.c.l.b16 %v212
    %v1083 = vunpack.c.h.b16 %v212
    %v1084 = vunpack.c.l.b16 %v213
    %v1085 = vunpack.c.h.b16 %v213
    %v1086 = vunpack.c.l.b16 %v214
    %v1087 = vunpack.c.h.b16 %v214
    %v1088 = vunpack.c.l.b16 %v215
    %v1089 = vunpack.c.h.b16 %v215
    %v1090 = vunpack.c.l.b16 %v216
    %v1091 = vunpack.c.h.b16 %v216
    %v1092 = vunpack.c.l.b16 %v217
    %v1093 = vunpack.c.h.b16 %v217
    %v1094 = vunpack.c.l.b16 %v218
    %v1095 = vunpack.c.h.b16 %v218
    %v1096 = vunpack.c.l.b16 %v219
    %v1097 = vunpack.c.h.b16 %v219
    %v1098 = vunpack.c.l.b16 %v220
    %v1099 = vunpack.c.h.b16 %v220
    %v1100 = vunpack.c.l.b16 %v221
    %v1101 = vunpack.c.h.b16 %v221
    %v1102 = vunpack.c.l.b16 %v222
    %v1103 = vunpack.c.h.b16 %v222
    %v1104 = vunpack.c.l.b16 %v223
    %v1105 = vunpack.c.h.b16 %v223
    %v1106 = vunpack.c.l.b16 %v224
    %v1107 = vunpack.c.h.b16 %v224
    %v1108 = vunpack.c.l.b16 %v225
    %v1109 = vunpack.c.h.b16 %v225
    %v1110 = vunpack.c.l.b16 %v226
    %v1111 = vunpack.c.h.b16 %v226
    %v1112 = vunpack.c.l.b16 %v227
    %v1113 = vunpack.c.h.b16 %v227
    %v1114 = vunpack.c.l.b16 %v228
    %v1115 = vunpack.c.h.b16 %v228
    %v1116 = vunpack.c.l.b16 %v229
    %v1117 = vunpack.c.h.b16 %v229
    %v1118 = vunpack.c.l.b16 %v230
    %v1119 = vunpack.c.h.b16 %v230
    %v1120 = vunpack.c.l.b16 %v231
    %v1121 = vunpack.c.h.b16 %v231
    %v1122 = vunpack.c.l.b16 %v232
    %v1123 = vunpack.c.h.b16 %v232
    %v1124 = vunpack.c.l.b16 %v233
    %v1125 = vunpack.c.h.b16 %v233
    %v1126 = vunpack.c.l.b16 %v234
    %v1127 = vunpack.c.h.b16 %v234
    %v1128 = vunpack.c.l.b16 %v235
    %v1129 = vunpack.c.h.b16 %v235
    %v1130 = vunpack.c.l.b16 %v236
    %v1131 = vunpack.c.h.b16 %v236
    %v1132 = vunpack.c.l.b16 %v237
    %v1133 = vunpack.c.h.b16 %v237
    %v1134 = vunpack.c.l.b16 %v238
    %v1135 = vunpack.c.h.b16 %v238
    %v1136 = vunpack.c.l.b16 %v239
    %v1137 = vunpack.c.h.b16 %v239
    %v1138 = vunpack.c.l.b16 %v240
    %v1139 = vunpack.c.h.b16 %v240
    %v1140 = vunpack.c.l.b16 %v241
    %v1141 = vunpack.c.h.b16 %v241
    %v1142 = vunpack.c.l.b16 %v242
    %v1143 = vunpack.c.h.b16 %v242
    %v1144 = vunpack.c.l.b16 %v243
    %v1145 = vunpack.c.h.b16 %v243
    %v1146 = vunpack.c.l.b16 %v244
    %v1147 = vunpack.c.h.b16 %v244
    %v1148 = vunpack.c.l.b16 %v245
    %v1149 = vunpack.c.h.b16 %v245
    %v1150 = vunpack.c.l.b16 %v246
    %v1151 = vunpack.c.h.b16 %v246
    %v1152 = vunpack.c.l.b16 %v247
    %v1153 = vunpack.c.h.b16 %v247
    %v1154 = vunpack.c.l.b16 %v248
    %v1155 = vunpack.c.h.b16 %v248
    %v1156 = vunpack.c.l.b16 %v249
    %v1157 = vunpack.c.h.b16 %v249
    %v1158 = vunpack.c.l.b16 %v250
    %v1159 = vunpack.c.h.b16 %v250
    %v1160 = vunpack.c.l.b16 %v251
    %v1161 = vunpack.c.h.b16 %v251
    %v1162 = vunpack.c.l.b16 %v252
    %v1163 = vunpack.c.h.b16 %v252
    %v1164 = vunpack.c.l.b16 %v253
    %v1165 = vunpack.c.h.b16 %v253
    %v1166 = vunpack.c.l.b16 %v254
    %v1167 = vunpack.c.h.b16 %v254
    %v1168 = vunpack.c.l.b16 %v255
    %v1169 = vunpack.c.h.b16 %v255
    %v1170 = vunpack.c.l.b16 %v256
    %v1171 = vunpack.c.h.b16 %v256
    %v1172 = vunpack.c.l.b16 %v257
    %v1173 = vunpack.c.h.b16 %v257
    %v1174 = vunpack.c.l.b16 %v258
    %v1175 = vunpack.c.h.b16 %v258
    %v1176 = vunpack.c.l.b16 %v259
    %v1177 = vunpack.c.h.b16 %v259
    %v1178 = vunpack.c.l.b16 %v260
    %v1179 = vunpack.c.h.b16 %v260
    %v1180 = vunpack.c.l.b16 %v261
    %v1181 = vunpack.c.h.b16 %v261
    %v1182 = vunpack.c.l.b16 %v262
    %v1183 = vunpack.c.h.b16 %v262
    %v1184 = vunpack.c.l.b16 %v263
    %v1185 = vunpack.c.h.b16 %v263
    %v1186 = vunpack.c.l.b16 %v264
    %v1187 = vunpack.c.h.b16 %v264
    %v1188 = vunpack.c.l.b16 %v265
    %v1189 = vunpack.c.h.b16 %v265
    %v1190 = vunpack.c.l.b16 %v266
    %v1191 = vunpack.c.h.b16 %v266
    %v1192 = vunpack.c.l.b16 %v267
    %v1193 = vunpack.c.h.b16 %v267
    %v1194 = vunpack.c.l.b16 %v268
    %v1195 = vunpack.c.h.b16 %v268
    %v1196 = vunpack.c.l.b16 %v269
    %v1197 = vunpack.c.h.b16 %v269
    %v1198 = vunpack.c.l.b16 %v270
    %v1199 = vunpack.c.h.b16 %v270
    %v1200 = vunpack.c.l.b16 %v271
    %v1201 = vunpack.c.h.b16 %v271
    %v1202 = vunpack.c.l.b16 %v272
    %v1203 = vunpack.c.h.b16 %v272
    %v1204 = vunpack.c.l.b16 %v273
    %v1205 = vunpack.c.h.b16 %v273
    %v1206 = vunpack.c.l.b16 %v274
    %v1207 = vunpack.c.h.b16 %v274
    %v1208 = vunpack.c.l.b16 %v275
    %v1209 = vunpack.c.h.b16 %v275
    %v1210 = vunpack.c.l.b16 %v276
    %v1211 = vunpack.c.h.b16 %v276
    %v1212 = vunpack.c.l.b16 %v277
    %v1213 = vunpack.c.h.b16 %v277
    %v1214 = vunpack.c.l.b16 %v278
    %v1215 = vunpack.c.h.b16 %v278
    %v1216 = vunpack.c.l.b16 %v279
    %v1217 = vunpack.c.h.b16 %v279
    %v1218 = vunpack.c.l.b16 %v280
    %v1219 = vunpack.c.h.b16 %v280
    %v1220 = vunpack.c.l.b16 %v281
    %v1221 = vunpack.c.h.b16 %v281
    %v1222 = vunpack.c.l.b16 %v282
    %v1223 = vunpack.c.h.b16 %v282
    %v1224 = vunpack.c.l.b16 %v283
    %v1225 = vunpack.c.h.b16 %v283
    %v1226 = vunpack.c.l.b16 %v284
    %v1227 = vunpack.c.h.b16 %v284
    %v1228 = vunpack.c.l.b16 %v285
    %v1229 = vunpack.c.h.b16 %v285
    %v1230 = vunpack.c.l.b16 %v286
    %v1231 = vunpack.c.h.b16 %v286
    %v1232 = vunpack.c.l.b16 %v287
    %v1233 = vunpack.c.h.b16 %v287
    %v1234 = vunpack.c.l.b16 %v288
    %v1235 = vunpack.c.h.b16 %v288
    %v1236 = vunpack.c.l.b16 %v289
    %v1237 = vunpack.c.h.b16 %v289
    %v1238 = vunpack.c.l.b16 %v290
    %v1239 = vunpack.c.h.b16 %v290
    %v1240 = vunpack.c.l.b16 %v291
    %v1241 = vunpack.c.h.b16 %v291
    %v1242 = vunpack.c.l.b16 %v292
    %v1243 = vunpack.c.h.b16 %v292
    %v1244 = vunpack.c.l.b16 %v293
    %v1245 = vunpack.c.h.b16 %v293
    %v1246 = vunpack.c.l.b16 %v294
    %v1247 = vunpack.c.h.b16 %v294
    %v1248 = vunpack.c.l.b16 %v295
    %v1249 = vunpack.c.h.b16 %v295
    %v1250 = vunpack.c.l.b16 %v296
    %v1251 = vunpack.c.h.b16 %v296
    %v1252 = vunpack.c.l.b16 %v297
    %v1253 = vunpack.c.h.b16 %v297
    %v1254 = vunpack.c.l.b16 %v298
    %v1255 = vunpack.c.h.b16 %v298
    %v1256 = vunpack.c.l.b16 %v299
    %v1257 = vunpack.c.h.b16 %v299
    %v1258 = vunpack.c.l.b16 %v300
    %v1259 = vunpack.c.h.b16 %v300
    %v1260 = vunpack.c.l.b16 %v301
    %v1261 = vunpack.c.h.b16 %v301
    %v1262 = vunpack.c.l.b16 %v302
    %v1263 = vunpack.c.h.b16 %v302
    %v1264 = vunpack.c.l.b16 %v303
    %v1265 = vunpack.c.h.b16 %v303
    %v1266 = vunpack.c.l.b16 %v304
    %v1267 = vunpack.c.h.b16 %v304
    %v1268 = vunpack.c.l.b16 %v305
    %v1269 = vunpack.c.h.b16 %v305
    %v1270 = vunpack.c.l.b16 %v306
    %v1271 = vunpack.c.h.b16 %v306
    %v1272 = vunpack.c.l.b16 %v307
    %v1273 = vunpack.c.h.b16 %v307
    %v1274 = vunpack.c.l.b16 %v308
    %v1275 = vunpack.c.h.b16 %v308
    %v1276 = vunpack.c.l.b16 %v309
    %v1277 = vunpack.c.h.b16 %v309
    %v1278 = vunpack.c.l.b16 %v310
    %v1279 = vunpack.c.h.b16 %v310
    %v1280 = vunpack.c.l.b16 %v311
    %v1281 = vunpack.c.h.b16 %v311
    %v1282 = vunpack.c.l.b16 %v312
    %v1283 = vunpack.c.h.b16 %v312
    %v1284 = vunpack.c.l.b16 %v313
    %v1285 = vunpack.c.h.b16 %v313
    %v1286 = vunpack.c.l.b16 %v314
    %v1287 = vunpack.c.h.b16 %v314
    %v1288 = vunpack.c.l.b16 %v315
    %v1289 = vunpack.c.h.b16 %v315
    %v1290 = vunpack.c.l.b16 %v316
    %v1291 = vunpack.c.h.b16 %v316
    %v1292 = vunpack.c.l.b16 %v317
    %v1293 = vunpack.c.h.b16 %v317
    %v1294 = vunpack.c.l.b16 %v318
    %v1295 = vunpack.c.h.b16 %v318
    %v1296 = vunpack.c.l.b16 %v319
    %v1297 = vunpack.c.h.b16 %v319
    %v1298 = vunpack.c.l.b16 %v320
    %v1299 = vunpack.c.h.b16 %v320
    %v1300 = vunpack.c.l.b16 %v321
    %v1301 = vunpack.c.h.b16 %v321
    %v1302 = vunpack.c.l.b16 %v322
    %v1303 = vunpack.c.h.b16 %v322
    %v1304 = vunpack.c.l.b16 %v323
    %v1305 = vunpack.c.h.b16 %v323
    %v1306 = vunpack.c.l.b16 %v324
    %v1307 = vunpack.c.h.b16 %v324
    %v1308 = vunpack.c.l.b16 %v325
    %v1309 = vunpack.c.h.b16 %v325
    %v1310 = vunpack.c.l.b16 %v326
    %v1311 = vunpack.c.h.b16 %v326
    %v1312 = vunpack.c.l.b16 %v327
    %v1313 = vunpack.c.h.b16 %v327
    %v1314 = vunpack.c.l.b16 %v328
    %v1315 = vunpack.c.h.b16 %v328
    %v1316 = vunpack.c.l.b16 %v329
    %v1317 = vunpack.c.h.b16 %v329
    %v1318 = vunpack.c.l.b16 %v330
    %v1319 = vunpack.c.h.b16 %v330
    %v1320 = vunpack.c.l.b16 %v331
    %v1321 = vunpack.c.h.b16 %v331
    %v1322 = vunpack.c.l.b16 %v332
    %v1323 = vunpack.c.h.b16 %v332
    %v1324 = vunpack.c.l.b16 %v333
    %v1325 = vunpack.c.h.b16 %v333
    %v1326 = vunpack.c.l.b16 %v334
    %v1327 = vunpack.c.h.b16 %v334
    %v1328 = vunpack.c.l.b16 %v335
    %v1329 = vunpack.c.h.b16 %v335
    %v1330 = vunpack.c.l.b16 %v336
    %v1331 = vunpack.c.h.b16 %v336
    %v1332 = vunpack.c.l.b16 %v337
    %v1333 = vunpack.c.h.b16 %v337
    %v1334 = vunpack.c.l.b16 %v338
    %v1335 = vunpack.c.h.b16 %v338
    %v1336 = vunpack.c.l.b16 %v339
    %v1337 = vunpack.c.h.b16 %v339
    %v1338 = vunpack.c.l.b16 %v340
    %v1339 = vunpack.c.h.b16 %v340
    %v1340 = vunpack.c.l.b16 %v341
    %v1341 = vunpack.c.h.b16 %v341
    %v1342 = vunpack.c.l.b16 %v342
    %v1343 = vunpack.c.h.b16 %v342
    %v1344 = vunpack.c.l.b16 %v343
    %v1345 = vunpack.c.h.b16 %v343
    %v1346 = vunpack.c.l.b16 %v344
    %v1347 = vunpack.c.h.b16 %v344
    %v1348 = vunpack.c.l.b16 %v345
    %v1349 = vunpack.c.h.b16 %v345
    %v1350 = vunpack.c.l.b16 %v346
    %v1351 = vunpack.c.h.b16 %v346
    %v1352 = vunpack.c.l.b16 %v347
    %v1353 = vunpack.c.h.b16 %v347
    %v1354 = vunpack.c.l.b16 %v348
    %v1355 = vunpack.c.h.b16 %v348
    %v1356 = vunpack.c.l.b16 %v349
    %v1357 = vunpack.c.h.b16 %v349
    %v1358 = vunpack.c.l.b16 %v350
    %v1359 = vunpack.c.h.b16 %v350
    %v1360 = vunpack.c.l.b16 %v351
    %v1361 = vunpack.c.h.b16 %v351
    %v1362 = vunpack.c.l.b16 %v352
    %v1363 = vunpack.c.h.b16 %v352
    %v1364 = vunpack.c.l.b16 %v353
    %v1365 = vunpack.c.h.b16 %v353
    %v1366 = vunpack.c.l.b16 %v354
    %v1367 = vunpack.c.h.b16 %v354
    %v1368 = vunpack.c.l.b16 %v355
    %v1369 = vunpack.c.h.b16 %v355
    %v1370 = vunpack.c.l.b16 %v356
    %v1371 = vunpack.c.h.b16 %v356
    %v1372 = vunpack.c.l.b16 %v357
    %v1373 = vunpack.c.h.b16 %v357
    %v1374 = vunpack.c.l.b16 %v358
    %v1375 = vunpack.c.h.b16 %v358
    %v1376 = vunpack.c.l.b16 %v359
    %v1377 = vunpack.c.h.b16 %v359
    %v1378 = vunpack.c.l.b16 %v360
    %v1379 = vunpack.c.h.b16 %v360
    %v1380 = vunpack.c.l.b16 %v361
    %v1381 = vunpack.c.h.b16 %v361
    %v1382 = vunpack.c.l.b16 %v362
    %v1383 = vunpack.c.h.b16 %v362
    %v1384 = vunpack.c.l.b16 %v363
    %v1385 = vunpack.c.h.b16 %v363
    %v1386 = vunpack.c.l.b16 %v364
    %v1387 = vunpack.c.h.b16 %v364
    %v1388 = vunpack.c.l.b16 %v365
    %v1389 = vunpack.c.h.b16 %v365
    %v1390 = vunpack.c.l.b16 %v366
    %v1391 = vunpack.c.h.b16 %v366
    %v1392 = vunpack.c.l.b16 %v367
    %v1393 = vunpack.c.h.b16 %v367
    %v1394 = vunpack.c.l.b16 %v368
    %v1395 = vunpack.c.h.b16 %v368
    %v1396 = vunpack.c.l.b16 %v369
    %v1397 = vunpack.c.h.b16 %v369
    %v1398 = vunpack.c.l.b16 %v370
    %v1399 = vunpack.c.h.b16 %v370
    %v1400 = vunpack.c.l.b16 %v371
    %v1401 = vunpack.c.h.b16 %v371
    %v1402 = vunpack.c.l.b16 %v372
    %v1403 = vunpack.c.h.b16 %v372
    %v1404 = vunpack.c.l.b16 %v373
    %v1405 = vunpack.c.h.b16 %v373
    %v1406 = vunpack.c.l.b16 %v374
    %v1407 = vunpack.c.h.b16 %v374
    %v1408 = vunpack.c.l.b16 %v375
    %v1409 = vunpack.c.h.b16 %v375
    %v1410 = vunpack.c.l.b16 %v376
    %v1411 = vunpack.c.h.b16 %v376
    %v1412 = vunpack.c.l.b16 %v377
    %v1413 = vunpack.c.h.b16 %v377
    %v1414 = vunpack.c.l.b16 %v378
    %v1415 = vunpack.c.h.b16 %v378
    %v1416 = vunpack.c.l.b16 %v379
    %v1417 = vunpack.c.h.b16 %v379
    %v1418 = vunpack.c.l.b16 %v380
    %v1419 = vunpack.c.h.b16 %v380
    %v1420 = vunpack.c.l.b16 %v381
    %v1421 = vunpack.c.h.b16 %v381
    %v1422 = vunpack.c.l.b16 %v382
    %v1423 = vunpack.c.h.b16 %v382
    %v1424 = vunpack.c.l.b16 %v383
    %v1425 = vunpack.c.h.b16 %v383
    %v1426 = vunpack.c.l.b16 %v384
    %v1427 = vunpack.c.h.b16 %v384
    %v1428 = vunpack.c.l.b16 %v385
    %v1429 = vunpack.c.h.b16 %v385
    %v1430 = vunpack.c.l.b16 %v386
    %v1431 = vunpack.c.h.b16 %v386
    %v1432 = vunpack.c.l.b16 %v387
    %v1433 = vunpack.c.h.b16 %v387
    %v1434 = vunpack.c.l.b16 %v388
    %v1435 = vunpack.c.h.b16 %v388
    %v1436 = vunpack.c.l.b16 %v389
    %v1437 = vunpack.c.h.b16 %v389
    %v1438 = vunpack.c.l.b16 %v390
    %v1439 = vunpack.c.h.b16 %v390
    %v1440 = vunpack.c.l.b16 %v391
    %v1441 = vunpack.c.h.b16 %v391
    %v1442 = vunpack.c.l.b16 %v392
    %v1443 = vunpack.c.h.b16 %v392
    %v1444 = vunpack.c.l.b16 %v393
    %v1445 = vunpack.c.h.b16 %v393
    %v1446 = vunpack.c.l.b16 %v394
    %v1447 = vunpack.c.h.b16 %v394
    %v1448 = vunpack.c.l.b16 %v395
    %v1449 = vunpack.c.h.b16 %v395
    %v1450 = vunpack.c.l.b16 %v396
    %v1451 = vunpack.c.h.b16 %v396
    %v1452 = vunpack.c.l.b16 %v397
    %v1453 = vunpack.c.h.b16 %v397
    %v1454 = vunpack.c.l.b16 %v398
    %v1455 = vunpack.c.h.b16 %v398
    %v1456 = vunpack.c.l.b16 %v399
    %v1457 = vunpack.c.h.b16 %v399
    %v1458 = vunpack.c.l.b16 %v400
    %v1459 = vunpack.c.h.b16 %v400
    %v1460 = vunpack.c.l.b16 %v401
    %v1461 = vunpack.c.h.b16 %v401
    %v1462 = vunpack.c.l.b16 %v402
    %v1463 = vunpack.c.h.b16 %v402
    %v1464 = vunpack.c.l.b16 %v403
    %v1465 = vunpack.c.h.b16 %v403
    %v1466 = vunpack.c.l.b16 %v404
    %v1467 = vunpack.c.h.b16 %v404
    %v1468 = vunpack.c.l.b16 %v405
    %v1469 = vunpack.c.h.b16 %v405
    %v1470 = vunpack.c.l.b16 %v406
    %v1471 = vunpack.c.h.b16 %v406
    %v1472 = vunpack.c.l.b16 %v407
    %v1473 = vunpack.c.h.b16 %v407
    %v1474 = vunpack.c.l.b16 %v408
    %v1475 = vunpack.c.h.b16 %v408
    %v1476 = vunpack.c.l.b16 %v409
    %v1477 = vunpack.c.h.b16 %v409
    %v1478 = vunpack.c.l.b16 %v410
    %v1479 = vunpack.c.h.b16 %v410
    %v1480 = vunpack.c.l.b16 %v411
    %v1481 = vunpack.c.h.b16 %v411
    %v1482 = vunpack.c.l.b16 %v412
    %v1483 = vunpack.c.h.b16 %v412
    %v1484 = vunpack.c.l.b16 %v413
    %v1485 = vunpack.c.h.b16 %v413
    %v1486 = vunpack.c.l.b16 %v414
    %v1487 = vunpack.c.h.b16 %v414
    %v1488 = vunpack.c.l.b16 %v415
    %v1489 = vunpack.c.h.b16 %v415
    %v1490 = vunpack.c.l.b16 %v416
    %v1491 = vunpack.c.h.b16 %v416
    %v1492 = vunpack.c.l.b16 %v417
    %v1493 = vunpack.c.h.b16 %v417
    %v1494 = vunpack.c.l.b16 %v418
    %v1495 = vunpack.c.h.b16 %v418
    %v1496 = vunpack.c.l.b16 %v419
    %v1497 = vunpack.c.h.b16 %v419
    %v1498 = vunpack.c.l.b16 %v420
    %v1499 = vunpack.c.h.b16 %v420
    %v1500 = vunpack.c.l.b16 %v421
    %v1501 = vunpack.c.h.b16 %v421
    %v1502 = vunpack.c.l.b16 %v422
    %v1503 = vunpack.c.h.b16 %v422
    %v1504 = vunpack.c.l.b16 %v423
    %v1505 = vunpack.c.h.b16 %v423
    %v1506 = vunpack.c.l.b16 %v424
    %v1507 = vunpack.c.h.b16 %v424
    %v1508 = vunpack.c.l.b16 %v425
    %v1509 = vunpack.c.h.b16 %v425
    %v1510 = vunpack.c.l.b16 %v426
    %v1511 = vunpack.c.h.b16 %v426
    %v1512 = vunpack.c.l.b16 %v427
    %v1513 = vunpack.c.h.b16 %v427
    %v1514 = vunpack.c.l.b16 %v428
    %v1515 = vunpack.c.h.b16 %v428
    %v1516 = vunpack.c.l.b16 %v429
    %v1517 = vunpack.c.h.b16 %v429
    %v1518 = vunpack.c.l.b16 %v430
    %v1519 = vunpack.c.h.b16 %v430
    %v1520 = vunpack.c.l.b16 %v431
    %v1521 = vunpack.c.h.b16 %v431
    %v1522 = vunpack.c.l.b16 %v432
    %v1523 = vunpack.c.h.b16 %v432
    %v1524 = vunpack.c.l.b16 %v433
    %v1525 = vunpack.c.h.b16 %v433
    %v1526 = vunpack.c.l.b16 %v434
    %v1527 = vunpack.c.h.b16 %v434
    %v1528 = vunpack.c.l.b16 %v435
    %v1529 = vunpack.c.h.b16 %v435
    %v1530 = vunpack.c.l.b16 %v436
    %v1531 = vunpack.c.h.b16 %v436
    %v1532 = vunpack.c.l.b16 %v437
    %v1533 = vunpack.c.h.b16 %v437
    %v1534 = vunpack.c.l.b16 %v438
    %v1535 = vunpack.c.h.b16 %v438
    %v1536 = vunpack.c.l.b16 %v439
    %v1537 = vunpack.c.h.b16 %v439
    %v1538 = vunpack.c.l.b16 %v440
    %v1539 = vunpack.c.h.b16 %v440
    %v1540 = vunpack.c.l.b16 %v441
    %v1541 = vunpack.c.h.b16 %v441
    %v1542 = vunpack.c.l.b16 %v442
    %v1543 = vunpack.c.h.b16 %v442
    %v1544 = vunpack.c.l.b16 %v443
    %v1545 = vunpack.c.h.b16 %v443
    %v1546 = vunpack.c.l.b16 %v444
    %v1547 = vunpack.c.h.b16 %v444
    %v1548 = vunpack.c.l.b16 %v445
    %v1549 = vunpack.c.h.b16 %v445
    %v1550 = vunpack.c.l.b16 %v446
    %v1551 = vunpack.c.h.b16 %v446
    %v1552 = vunpack.c.l.b16 %v447
    %v1553 = vunpack.c.h.b16 %v447
    %v1554 = vunpack.c.l.b16 %v448
    %v1555 = vunpack.c.h.b16 %v448
    %v1556 = vunpack.c.l.b16 %v449
    %v1557 = vunpack.c.h.b16 %v449
    %v1558 = vunpack.c.l.b16 %v450
    %v1559 = vunpack.c.h.b16 %v450
    %v1560 = vunpack.c.l.b16 %v451
    %v1561 = vunpack.c.h.b16 %v451
    %v1562 = vunpack.c.l.b16 %v452
    %v1563 = vunpack.c.h.b16 %v452
    %v1564 = vunpack.c.l.b16 %v453
    %v1565 = vunpack.c.h.b16 %v453
    %v1566 = vunpack.c.l.b16 %v454
    %v1567 = vunpack.c.h.b16 %v454
    %v1568 = vunpack.c.l.b16 %v455
    %v1569 = vunpack.c.h.b16 %v455
    %v1570 = vunpack.c.l.b16 %v456
    %v1571 = vunpack.c.h.b16 %v456
    %v1572 = vunpack.c.l.b16 %v457
    %v1573 = vunpack.c.h.b16 %v457
    %v1574 = vunpack.c.l.b16 %v458
    %v1575 = vunpack.c.h.b16 %v458
    %v1576 = vunpack.c.l.b16 %v459
    %v1577 = vunpack.c.h.b16 %v459
    %v1578 = vunpack.c.l.b16 %v460
    %v1579 = vunpack.c.h.b16 %v460
    %v1580 = vunpack.c.l.b16 %v461
    %v1581 = vunpack.c.h.b16 %v461
    %v1582 = vunpack.c.l.b16 %v462
    %v1583 = vunpack.c.h.b16 %v462
    %v1584 = vunpack.c.l.b16 %v463
    %v1585 = vunpack.c.h.b16 %v463
    %v1586 = vunpack.c.l.b16 %v464
    %v1587 = vunpack.c.h.b16 %v464
    %v1588 = vunpack.c.l.b16 %v465
    %v1589 = vunpack.c.h.b16 %v465
    %v1590 = vunpack.c.l.b16 %v466
    %v1591 = vunpack.c.h.b16 %v466
    %v1592 = vunpack.c.l.b16 %v467
    %v1593 = vunpack.c.h.b16 %v467
    %v1594 = vunpack.c.l.b16 %v468
    %v1595 = vunpack.c.h.b16 %v468
    %v1596 = vunpack.c.l.b16 %v469
    %v1597 = vunpack.c.h.b16 %v469
    %v1598 = vunpack.c.l.b16 %v470
    %v1599 = vunpack.c.h.b16 %v470
    %v1600 = vunpack.c.l.b16 %v471
    %v1601 = vunpack.c.h.b16 %v471
    %v1602 = vunpack.c.l.b16 %v472
    %v1603 = vunpack.c.h.b16 %v472
    %v1604 = vunpack.c.l.b16 %v473
    %v1605 = vunpack.c.h.b16 %v473
    %v1606 = vunpack.c.l.b16 %v474
    %v1607 = vunpack.c.h.b16 %v474
    %v1608 = vunpack.c.l.b16 %v475
    %v1609 = vunpack.c.h.b16 %v475
    %v1610 = vunpack.c.l.b16 %v476
    %v1611 = vunpack.c.h.b16 %v476
    %v1612 = vunpack.c.l.b16 %v477
    %v1613 = vunpack.c.h.b16 %v477
    %v1614 = vunpack.c.l.b16 %v478
    %v1615 = vunpack.c.h.b16 %v478
    %v1616 = vunpack.c.l.b16 %v479
    %v1617 = vunpack.c.h.b16 %v479
    %v1618 = vunpack.c.l.b16 %v480
    %v1619 = vunpack.c.h.b16 %v480
    %v1620 = vunpack.c.l.b16 %v481
    %v1621 = vunpack.c.h.b16 %v481
    %v1622 = vunpack.c.l.b16 %v482
    %v1623 = vunpack.c.h.b16 %v482
    %v1624 = vunpack.c.l.b16 %v483
    %v1625 = vunpack.c.h.b16 %v483
    %v1626 = vunpack.c.l.b16 %v484
    %v1627 = vunpack.c.h.b16 %v484
    %v1628 = vunpack.c.l.b16 %v485
    %v1629 = vunpack.c.h.b16 %v485
    %v1630 = vunpack.c.l.b16 %v486
    %v1631 = vunpack.c.h.b16 %v486
    %v1632 = vunpack.c.l.b16 %v487
    %v1633 = vunpack.c.h.b16 %v487
    %v1634 = vunpack.c.l.b16 %v488
    %v1635 = vunpack.c.h.b16 %v488
    %v1636 = vunpack.c.l.b16 %v489
    %v1637 = vunpack.c.h.b16 %v489
    %v1638 = vunpack.c.l.b16 %v490
    %v1639 = vunpack.c.h.b16 %v490
    %v1640 = vunpack.c.l.b16 %v491
    %v1641 = vunpack.c.h.b16 %v491
    %v1642 = vunpack.c.l.b16 %v492
    %v1643 = vunpack.c.h.b16 %v492
    %v1644 = vunpack.c.l.b16 %v493
    %v1645 = vunpack.c.h.b16 %v493
    %v1646 = vunpack.c.l.b16 %v494
    %v1647 = vunpack.c.h.b16 %v494
    %v1648 = vunpack.c.l.b16 %v495
    %v1649 = vunpack.c.h.b16 %v495
    %v1650 = vunpack.c.l.b16 %v496
    %v1651 = vunpack.c.h.b16 %v496
    %v1652 = vunpack.c.l.b16 %v497
    %v1653 = vunpack.c.h.b16 %v497
    %v1654 = vunpack.c.l.b16 %v498
    %v1655 = vunpack.c.h.b16 %v498
    %v1656 = vunpack.c.l.b16 %v499
    %v1657 = vunpack.c.h.b16 %v499
    %v1658 = vunpack.c.l.b16 %v500
    %v1659 = vunpack.c.h.b16 %v500
    %v1660 = vunpack.c.l.b16 %v501
    %v1661 = vunpack.c.h.b16 %v501
    %v1662 = vunpack.c.l.b16 %v502
    %v1663 = vunpack.c.h.b16 %v502
    %v1664 = vunpack.c.l.b16 %v503
    %v1665 = vunpack.c.h.b16 %v503
    %v1666 = vunpack.c.l.b16 %v504
    %v1667 = vunpack.c.h.b16 %v504
    %v1668 = vunpack.c.l.b16 %v505
    %v1669 = vunpack.c.h.b16 %v505
    %v1670 = vunpack.c.l.b16 %v506
    %v1671 = vunpack.c.h.b16 %v506
    %v1672 = vunpack.c.l.b16 %v507
    %v1673 = vunpack.c.h.b16 %v507
    %v1674 = vunpack.c.l.b16 %v508
    %v1675 = vunpack.c.h.b16 %v508
    %v1676 = vunpack.c.l.b16 %v509
    %v1677 = vunpack.c.h.b16 %v509
    %v1678 = vunpack.c.l.b16 %v510
    %v1679 = vunpack.c.h.b16 %v510
    %v1680 = vunpack.c.l.b16 %v511
    %v1681 = vunpack.c.h.b16 %v511
    %v1682 = vunpack.c.l.b16 %v512
    %v1683 = vunpack.c.h.b16 %v512
    %v1684 = vunpack.c.l.b16 %v513
    %v1685 = vunpack.c.h.b16 %v513
    %v1686 = vunpack.c.l.b16 %v514
    %v1687 = vunpack.c.h.b16 %v514
    %v1688 = vunpack.c.l.b16 %v515
    %v1689 = vunpack.c.h.b16 %v515
    %v1690 = vunpack.c.l.b16 %v516
    %v1691 = vunpack.c.h.b16 %v516
    %v1692 = vunpack.c.l.b16 %v517
    %v1693 = vunpack.c.h.b16 %v517
    %v1694 = vunpack.c.l.b16 %v518
    %v1695 = vunpack.c.h.b16 %v518
    %v1696 = vunpack.c.l.b16 %v519
    %v1697 = vunpack.c.h.b16 %v519
    %v1698 = vunpack.c.l.b16 %v520
    %v1699 = vunpack.c.h.b16 %v520
    %v1700 = vunpack.c.l.b16 %v521
    %v1701 = vunpack.c.h.b16 %v521
    %v1702 = vunpack.c.l.b16 %v522
    %v1703 = vunpack.c.h.b16 %v522
    %v1704 = vunpack.c.l.b16 %v523
    %v1705 = vunpack.c.h.b16 %v523
    %v1706 = vunpack.c.l.b16 %v524
    %v1707 = vunpack.c.h.b16 %v524
    %v1708 = vunpack.c.l.b16 %v525
    %v1709 = vunpack.c.h.b16 %v525
    %v1710 = vunpack.c.l.b16 %v526
    %v1711 = vunpack.c.h.b16 %v526
    %v1712 = vunpack.c.l.b16 %v527
    %v1713 = vunpack.c.h.b16 %v527
    %v1714 = vunpack.c.l.b16 %v528
    %v1715 = vunpack.c.h.b16 %v528
    %v1716 = vunpack.c.l.b16 %v529
    %v1717 = vunpack.c.h.b16 %v529
    %v1718 = vunpack.c.l.b16 %v530
    %v1719 = vunpack.c.h.b16 %v530
    %v1720 = vunpack.c.l.b16 %v531
    %v1721 = vunpack.c.h.b16 %v531
    %v1722 = vunpack.c.l.b16 %v532
    %v1723 = vunpack.c.h.b16 %v532
    %v1724 = vunpack.c.l.b16 %v533
    %v1725 = vunpack.c.h.b16 %v533
    %v1726 = vunpack.c.l.b16 %v534
    %v1727 = vunpack.c.h.b16 %v534
    %v1728 = vunpack.c.l.b16 %v535
    %v1729 = vunpack.c.h.b16 %v535
    %v1730 = vunpack.c.l.b16 %v536
    %v1731 = vunpack.c.h.b16 %v536
    %v1732 = vunpack.c.l.b16 %v537
    %v1733 = vunpack.c.h.b16 %v537
    %v1734 = vunpack.c.l.b16 %v538
    %v1735 = vunpack.c.h.b16 %v538
    %v1736 = vunpack.c.l.b16 %v539
    %v1737 = vunpack.c.h.b16 %v539
    %v1738 = vunpack.c.l.b16 %v540
    %v1739 = vunpack.c.h.b16 %v540
    %v1740 = vunpack.c.l.b16 %v541
    %v1741 = vunpack.c.h.b16 %v541
    %v1742 = vunpack.c.l.b16 %v542
    %v1743 = vunpack.c.h.b16 %v542
    %v1744 = vunpack.c.l.b16 %v543
    %v1745 = vunpack.c.h.b16 %v543
    %v1746 = vunpack.c.l.b16 %v544
    %v1747 = vunpack.c.h.b16 %v544
    %v1748 = vunpack.c.l.b16 %v545
    %v1749 = vunpack.c.h.b16 %v545
    %v1750 = vunpack.c.l.b16 %v546
    %v1751 = vunpack.c.h.b16 %v546
    %v1752 = vunpack.c.l.b16 %v547
    %v1753 = vunpack.c.h.b16 %v547
    %v1754 = vunpack.c.l.b16 %v548
    %v1755 = vunpack.c.h.b16 %v548
    %v1756 = vunpack.c.l.b16 %v549
    %v1757 = vunpack.c.h.b16 %v549
    %v1758 = vunpack.c.l.b16 %v550
    %v1759 = vunpack.c.h.b16 %v550
    %v1760 = vunpack.c.l.b16 %v551
    %v1761 = vunpack.c.h.b16 %v551
    %v1762 = vunpack.c.l.b16 %v552
    %v1763 = vunpack.c.h.b16 %v552
    %v1764 = vunpack.c.l.b16 %v553
    %v1765 = vunpack.c.h.b16 %v553
    %v1766 = vunpack.c.l.b16 %v554
    %v1767 = vunpack.c.h.b16 %v554
    %v1768 = vunpack.c.l.b16 %v555
    %v1769 = vunpack.c.h.b16 %v555
    %v1770 = vunpack.c.l.b16 %v556
    %v1771 = vunpack.c.h.b16 %v556
    %v1772 = vunpack.c.l.b16 %v557
    %v1773 = vunpack.c.h.b16 %v557
    %v1774 = vunpack.c.l.b16 %v558
    %v1775 = vunpack.c.h.b16 %v558
    %v1776 = vunpack.c.l.b16 %v559
    %v1777 = vunpack.c.h.b16 %v559
    %v1778 = vpack.c.b16 %v1002, %v994
    %v1779 = vpack.c.b16 %v1003, %v995
    %v1780 = vpack.c.b16 %v1004, %v996
    %v1781 = vpack.c.b16 %v1005, %v997
    %v1782 = vpack.c.b16 %v1006, %v998
    %v1783 = vpack.c.b16 %v1007, %v999
    %v1784 = vpack.c.b16 %v1008, %v1000
    %v1785 = vpack.c.b16 %v1009, %v1001
    %v1786 = vpack.c.b16 %v1018, %v1010
    %v1787 = vpack.c.b16 %v1019, %v1011
    %v1788 = vpack.c.b16 %v1020, %v1012
    %v1789 = vpack.c.b16 %v1021, %v1013
    %v1790 = vpack.c.b16 %v1022, %v1014
    %v1791 = vpack.c.b16 %v1023, %v1015
    %v1792 = vpack.c.b16 %v1024, %v1016
    %v1793 = vpack.c.b16 %v1025, %v1017
    %v1794 = vpack.c.b16 %v1034, %v1026
    %v1795 = vpack.c.b16 %v1035, %v1027
    %v1796 = vpack.c.b16 %v1036, %v1028
    %v1797 = vpack.c.b16 %v1037, %v1029
    %v1798 = vpack.c.b16 %v1038, %v1030
    %v1799 = vpack.c.b16 %v1039, %v1031
    %v1800 = vpack.c.b16 %v1040, %v1032
    %v1801 = vpack.c.b16 %v1041, %v1033
    %v1802 = vpack.c.b16 %v1050, %v1042
    %v1803 = vpack.c.b16 %v1051, %v1043
    %v1804 = vpack.c.b16 %v1052, %v1044
    %v1805 = vpack.c.b16 %v1053, %v1045
    %v1806 = vpack.c.b16 %v1054, %v1046
    %v1807 = vpack.c.b16 %v1055, %v1047
    %v1808 = vpack.c.b16 %v1056, %v1048
    %v1809 = vpack.c.b16 %v1057, %v1049
    %v1810 = vpack.c.b16 %v1066, %v1058
    %v1811 = vpack.c.b16 %v1067, %v1059
    %v1812 = vpack.c.b16 %v1068, %v1060
    %v1813 = vpack.c.b16 %v1069, %v1061
    %v1814 = vpack.c.b16 %v1070, %v1062
    %v1815 = vpack.c.b16 %v1071, %v1063
    %v1816 = vpack.c.b16 %v1072, %v1064
    %v1817 = vpack.c.b16 %v1073, %v1065
    %v1818 = vpack.c.b16 %v1082, %v1074
    %v1819 = vpack.c.b16 %v1083, %v1075
    %v1820 = vpack.c.b16 %v1084, %v1076
    %v1821 = vpack.c.b16 %v1085, %v1077
    %v1822 = vpack.c.b16 %v1086, %v1078
    %v1823 = vpack.c.b16 %v1087, %v1079
    %v1824 = vpack.c.b16 %v1088, %v1080
    %v1825 = vpack.c.b16 %v1089, %v1081
    %v1826 = vpack.c.b16 %v1098, %v1090
    %v1827 = vpack.c.b16 %v1099, %v1091
    %v1828 = vpack.c.b16 %v1100, %v1092
    %v1829 = vpack.c.b16 %v1101, %v1093
    %v1830 = vpack.c.b16 %v1102, %v1094
    %v1831 = vpack.c.b16 %v1103, %v1095
    %v1832 = vpack.c.b16 %v1104, %v1096
    %v1833 = vpack.c.b16 %v1105, %v1097
    %v1834 = vpack.c.b16 %v1114, %v1106
    %v1835 = vpack.c.b16 %v1115, %v1107
    %v1836 = vpack.c.b16 %v1116, %v1108
    %v1837 = vpack.c.b16 %v1117, %v1109
    %v1838 = vpack.c.b16 %v1118, %v1110
    %v1839 = vpack.c.b16 %v1119, %v1111
    %v1840 = vpack.c.b16 %v1120, %v1112
    %v1841 = vpack.c.b16 %v1121, %v1113
    %v1842 = vpack.c.b16 %v1130, %v1122
    %v1843 = vpack.c.b16 %v1131, %v1123
    %v1844 = vpack.c.b16 %v1132, %v1124
    %v1845 = vpack.c.b16 %v1133, %v1125
    %v1846 = vpack.c.b16 %v1134, %v1126
    %v1847 = vpack.c.b16 %v1135, %v1127
    %v1848 = vpack.c.b16 %v1136, %v1128
    %v1849 = vpack.c.b16 %v1137, %v1129
    %v1850 = vpack.c.b16 %v1146, %v1138
    %v1851 = vpack.c.b16 %v1147, %v1139
    %v1852 = vpack.c.b16 %v1148, %v1140
    %v1853 = vpack.c.b16 %v1149, %v1141
    %v1854 = vpack.c.b16 %v1150, %v1142
    %v1855 = vpack.c.b16 %v1151, %v1143
    %v1856 = vpack.c.b16 %v1152, %v1144
    %v1857 = vpack.c.b16 %v1153, %v1145
    %v1858 = vpack.c.b16 %v1162, %v1154
    %v1859 = vpack.c.b16 %v1163, %v1155
    %v1860 = vpack.c.b16 %v1164, %v1156
    %v1861 = vpack.c.b16 %v1165, %v1157
    %v1862 = vpack.c.b16 %v1166, %v1158
    %v1863 = vpack.c.b16 %v1167, %v1159
    %v1864 = vpack.c.b16 %v1168, %v1160
    %v1865 = vpack.c.b16 %v1169, %v1161
    %v1866 = vpack.c.b16 %v1178, %v1170
    %v1867 = vpack.c.b16 %v1179, %v1171
    %v1868 = vpack.c.b16 %v1180, %v1172
    %v1869 = vpack.c.b16 %v1181, %v1173
    %v1870 = vpack.c.b16 %v1182, %v1174
    %v1871 = vpack.c.b16 %v1183, %v1175
    %v1872 = vpack.c.b16 %v1184, %v1176
    %v1873 = vpack.c.b16 %v1185, %v1177
    %v1874 = vpack.c.b16 %v1194, %v1186
    %v1875 = vpack.c.b16 %v1195, %v1187
    %v1876 = vpack.c.b16 %v1196, %v1188
    %v1877 = vpack.c.b16 %v1197, %v1189
    %v1878 = vpack.c.b16 %v1198, %v1190
    %v1879 = vpack.c.b16 %v1199, %v1191
    %v1880 = vpack.c.b16 %v1200, %v1192
    %v1881 = vpack.c.b16 %v1201, %v1193
    %v1882 = vpack.c.b16 %v1210, %v1202
    %v1883 = vpack.c.b16 %v1211, %v1203
    %v1884 = vpack.c.b16 %v1212, %v1204
    %v1885 = vpack.c.b16 %v1213, %v1205
    %v1886 = vpack.c.b16 %v1214, %v1206
    %v1887 = vpack.c.b16 %v1215, %v1207
    %v1888 = vpack.c.b16 %v1216, %v1208
    %v1889 = vpack.c.b16 %v1217, %v1209
    %v1890 = vpack.c.b16 %v1226, %v1218
    %v1891 = vpack.c.b16 %v1227, %v1219
    %v1892 = vpack.c.b16 %v1228, %v1220
    %v1893 = vpack.c.b16 %v1229, %v1221
    %v1894 = vpack.c.b16 %v1230, %v1222
    %v1895 = vpack.c.b16 %v1231, %v1223
    %v1896 = vpack.c.b16 %v1232, %v1224
    %v1897 = vpack.c.b16 %v1233, %v1225
    %v1898 = vpack.c.b16 %v1242, %v1234
    %v1899 = vpack.c.b16 %v1243, %v1235
    %v1900 = vpack.c.b16 %v1244, %v1236
    %v1901 = vpack.c.b16 %v1245, %v1237
    %v1902 = vpack.c.b16 %v1246, %v1238
    %v1903 = vpack.c.b16 %v1247, %v1239
    %v1904 = vpack.c.b16 %v1248, %v1240
    %v1905 = vpack.c.b16 %v1249, %v1241
    %v1906 = vpack.c.b16 %v1258, %v1250
    %v1907 = vpack.c.b16 %v1259, %v1251
    %v1908 = vpack.c.b16 %v1260, %v1252
    %v1909 = vpack.c.b16 %v1261, %v1253
    %v1910 = vpack.c.b16 %v1262, %v1254
    %v1911 = vpack.c.b16 %v1263, %v1255
    %v1912 = vpack.c.b16 %v1264, %v1256
    %v1913 = vpack.c.b16 %v1265, %v1257
    %v1914 = vpack.c.b16 %v1274, %v1266
    %v1915 = vpack.c.b16 %v1275, %v1267
    %v1916 = vpack.c.b16 %v1276, %v1268
    %v1917 = vpack.c.b16 %v1277, %v1269
    %v1918 = vpack.c.b16 %v1278, %v1270
    %v1919 = vpack.c.b16 %v1279, %v1271
    %v1920 = vpack.c.b16 %v1280, %v1272
    %v1921 = vpack.c.b16 %v1281, %v1273
    %v1922 = vpack.c.b16 %v1290, %v1282
    %v1923 = vpack.c.b16 %v1291, %v1283
    %v1924 = vpack.c.b16 %v1292, %v1284
    %v1925 = vpack.c.b16 %v1293, %v1285
    %v1926 = vpack.c.b16 %v1294, %v1286
    %v1927 = vpack.c.b16 %v1295, %v1287
    %v1928 = vpack.c.b16 %v1296, %v1288
    %v1929 = vpack.c.b16 %v1297, %v1289
    %v1930 = vpack.c.b16 %v1306, %v1298
    %v1931 = vpack.c.b16 %v1307, %v1299
    %v1932 = vpack.c.b16 %v1308, %v1300
    %v1933 = vpack.c.b16 %v1309, %v1301
    %v1934 = vpack.c.b16 %v1310, %v1302
    %v1935 = vpack.c.b16 %v1311, %v1303
    %v1936 = vpack.c.b16 %v1312, %v1304
    %v1937 = vpack.c.b16 %v1313, %v1305
    %v1938 = vpack.c.b16 %v1322, %v1314
    %v1939 = vpack.c.b16 %v1323, %v1315
    %v1940 = vpack.c.b16 %v1324, %v1316
    %v1941 = vpack.c.b16 %v1325, %v1317
    %v1942 = vpack.c.b16 %v1326, %v1318
    %v1943 = vpack.c.b16 %v1327, %v1319
    %v1944 = vpack.c.b16 %v1328, %v1320
    %v1945 = vpack.c.b16 %v1329, %v1321
    %v1946 = vpack.c.b16 %v1338, %v1330
    %v1947 = vpack.c.b16 %v1339, %v1331
    %v1948 = vpack.c.b16 %v1340, %v1332
    %v1949 = vpack.c.b16 %v1341, %v1333
    %v1950 = vpack.c.b16 %v1342, %v1334
    %v1951 = vpack.c.b16 %v1343, %v1335
    %v1952 = vpack.c.b16 %v1344, %v1336
    %v1953 = vpack.c.b16 %v1345, %v1337
    %v1954 = vpack.c.b16 %v1354, %v1346
    %v1955 = vpack.c.b16 %v1355, %v1347
    %v1956 = vpack.c.b16 %v1356, %v1348
    %v1957 = vpack.c.b16 %v1357, %v1349
    %v1958 = vpack.c.b16 %v1358, %v1350
    %v1959 = vpack.c.b16 %v1359, %v1351
    %v1960 = vpack.c.b16 %v1360, %v1352
    %v1961 = vpack.c.b16 %v1361, %v1353
    %v1962 = vpack.c.b16 %v1370, %v1362
    %v1963 = vpack.c.b16 %v1371, %v1363
    %v1964 = vpack.c.b16 %v1372, %v1364
    %v1965 = vpack.c.b16 %v1373, %v1365
    %v1966 = vpack.c.b16 %v1374, %v1366
    %v1967 = vpack.c.b16 %v1375, %v1367
    %v1968 = vpack.c.b16 %v1376, %v1368
    %v1969 = vpack.c.b16 %v1377, %v1369
    %v1970 = vpack.c.b16 %v1386, %v1378
    %v1971 = vpack.c.b16 %v1387, %v1379
    %v1972 = vpack.c.b16 %v1388, %v1380
    %v1973 = vpack.c.b16 %v1389, %v1381
    %v1974 = vpack.c.b16 %v1390, %v1382
    %v1975 = vpack.c.b16 %v1391, %v1383
    %v1976 = vpack.c.b16 %v1392, %v1384
    %v1977 = vpack.c.b16 %v1393, %v1385
    %v1978 = vpack.c.b16 %v1402, %v1394
    %v1979 = vpack.c.b16 %v1403, %v1395
    %v1980 = vpack.c.b16 %v1404, %v1396
    %v1981 = vpack.c.b16 %v1405, %v1397
    %v1982 = vpack.c.b16 %v1406, %v1398
    %v1983 = vpack.c.b16 %v1407, %v1399
    %v1984 = vpack.c.b16 %v1408, %v1400
    %v1985 = vpack.c.b16 %v1409, %v1401
    %v1986 = vpack.c.b16 %v1418, %v1410
    %v1987 = vpack.c.b16 %v1419, %v1411
    %v1988 = vpack.c.b16 %v1420, %v1412
    %v1989 = vpack.c.b16 %v1421, %v1413
    %v1990 = vpack.c.b16 %v1422, %v1414
    %v1991 = vpack.c.b16 %v1423, %v1415
    %v1992 = vpack.c.b16 %v1424, %v1416
    %v1993 = vpack.c.b16 %v1425, %v1417
    %v1994 = vpack.c.b16 %v1434, %v1426
    %v1995 = vpack.c.b16 %v1435, %v1427
    %v1996 = vpack.c.b16 %v1436, %v1428
    %v1997 = vpack.c.b16 %v1437, %v1429
    %v1998 = vpack.c.b16 %v1438, %v1430
    %v1999 = vpack.c.b16 %v1439, %v1431
    %v2000 = vpack.c.b16 %v1440, %v1432
    %v2001 = vpack.c.b16 %v1441, %v1433
    %v2002 = vpack.c.b16 %v1450, %v1442
    %v2003 = vpack.c.b16 %v1451, %v1443
    %v2004 = vpack.c.b16 %v1452, %v1444
    %v2005 = vpack.c.b16 %v1453, %v1445
    %v2006 = vpack.c.b16 %v1454, %v1446
    %v2007 = vpack.c.b16 %v1455, %v1447
    %v2008 = vpack.c.b16 %v1456, %v1448
    %v2009 = vpack.c.b16 %v1457, %v1449
    %v2010 = vpack.c.b16 %v1466, %v1458
    %v2011 = vpack.c.b16 %v1467, %v1459
    %v2012 = vpack.c.b16 %v1468, %v1460
    %v2013 = vpack.c.b16 %v1469, %v1461
    %v2014 = vpack.c.b16 %v1470, %v1462
    %v2015 = vpack.c.b16 %v1471, %v1463
    %v2016 = vpack.c.b16 %v1472, %v1464
    %v2017 = vpack.c.b16 %v1473, %v1465
    %v2018 = vpack.c.b16 %v1482, %v1474
    %v2019 = vpack.c.b16 %v1483, %v1475
    %v2020 = vpack.c.b16 %v1484, %v1476
    %v2021 = vpack.c.b16 %v1485, %v1477
    %v2022 = vpack.c.b16 %v1486, %v1478
    %v2023 = vpack.c.b16 %v1487, %v1479
    %v2024 = vpack.c.b16 %v1488, %v1480
    %v2025 = vpack.c.b16 %v1489, %v1481
    %v2026 = vpack.c.b16 %v1498, %v1490
    %v2027 = vpack.c.b16 %v1499, %v1491
    %v2028 = vpack.c.b16 %v1500, %v1492
    %v2029 = vpack.c.b16 %v1501, %v1493
    %v2030 = vpack.c.b16 %v1502, %v1494
    %v2031 = vpack.c.b16 %v1503, %v1495
    %v2032 = vpack.c.b16 %v1504, %v1496
    %v2033 = vpack.c.b16 %v1505, %v1497
    %v2034 = vpack.c.b16 %v1514, %v1506
    %v2035 = vpack.c.b16 %v1515, %v1507
    %v2036 = vpack.c.b16 %v1516, %v1508
    %v2037 = vpack.c.b16 %v1517, %v1509
    %v2038 = vpack.c.b16 %v1518, %v1510
    %v2039 = vpack.c.b16 %v1519, %v1511
    %v2040 = vpack.c.b16 %v1520, %v1512
    %v2041 = vpack.c.b16 %v1521, %v1513
    %v2042 = vpack.c.b16 %v1530, %v1522
    %v2043 = vpack.c.b16 %v1531, %v1523
    %v2044 = vpack.c.b16 %v1532, %v1524
    %v2045 = vpack.c.b16 %v1533, %v1525
    %v2046 = vpack.c.b16 %v1534, %v1526
    %v2047 = vpack.c.b16 %v1535, %v1527
    %v2048 = vpack.c.b16 %v1536, %v1528
    %v2049 = vpack.c.b16 %v1537, %v1529
    %v2050 = vpack.c.b16 %v1546, %v1538
    %v2051 = vpack.c.b16 %v1547, %v1539
    %v2052 = vpack.c.b16 %v1548, %v1540
    %v2053 = vpack.c.b16 %v1549, %v1541
    %v2054 = vpack.c.b16 %v1550, %v1542
    %v2055 = vpack.c.b16 %v1551, %v1543
    %v2056 = vpack.c.b16 %v1552, %v1544
    %v2057 = vpack.c.b16 %v1553, %v1545
    %v2058 = vpack.c.b16 %v1562, %v1554
    %v2059 = vpack.c.b16 %v1563, %v1555
    %v2060 = vpack.c.b16 %v1564, %v1556
    %v2061 = vpack.c.b16 %v1565, %v1557
    %v2062 = vpack.c.b16 %v1566, %v1558
    %v2063 = vpack.c.b16 %v1567, %v1559
    %v2064 = vpack.c.b16 %v1568, %v1560
    %v2065 = vpack.c.b16 %v1569, %v1561
    %v2066 = vpack.c.b16 %v1578, %v1570
    %v2067 = vpack.c.b16 %v1579, %v1571
    %v2068 = vpack.c.b16 %v1580, %v1572
    %v2069 = vpack.c.b16 %v1581, %v1573
    %v2070 = vpack.c.b16 %v1582, %v1574
    %v2071 = vpack.c.b16 %v1583, %v1575
    %v2072 = vpack.c.b16 %v1584, %v1576
    %v2073 = vpack.c.b16 %v1585, %v1577
    %v2074 = vpack.c.b16 %v1594, %v1586
    %v2075 = vpack.c.b16 %v1595, %v1587
    %v2076 = vpack.c.b16 %v1596, %v1588
    %v2077 = vpack.c.b16 %v1597, %v1589
    %v2078 = vpack.c.b16 %v1598, %v1590
    %v2079 = vpack.c.b16 %v1599, %v1591
    %v2080 = vpack.c.b16 %v1600, %v1592
    %v2081 = vpack.c.b16 %v1601, %v1593
    %v2082 = vpack.c.b16 %v1610, %v1602
    %v2083 = vpack.c.b16 %v1611, %v1603
    %v2084 = vpack.c.b16 %v1612, %v1604
    %v2085 = vpack.c.b16 %v1613, %v1605
    %v2086 = vpack.c.b16 %v1614, %v1606
    %v2087 = vpack.c.b16 %v1615, %v1607
    %v2088 = vpack.c.b16 %v1616, %v1608
    %v2089 = vpack.c.b16 %v1617, %v1609
    %v2090 = vpack.c.b16 %v1626, %v1618
    %v2091 = vpack.c.b16 %v1627, %v1619
    %v2092 = vpack.c.b16 %v1628, %v1620
    %v2093 = vpack.c.b16 %v1629, %v1621
    %v2094 = vpack.c.b16 %v1630, %v1622
    %v2095 = vpack.c.b16 %v1631, %v1623
    %v2096 = vpack.c.b16 %v1632, %v1624
    %v2097 = vpack.c.b16 %v1633, %v1625
    %v2098 = vpack.c.b16 %v1642, %v1634
    %v2099 = vpack.c.b16 %v1643, %v1635
    %v2100 = vpack.c.b16 %v1644, %v1636
    %v2101 = vpack.c.b16 %v1645, %v1637
    %v2102 = vpack.c.b16 %v1646, %v1638
    %v2103 = vpack.c.b16 %v1647, %v1639
    %v2104 = vpack.c.b16 %v1648, %v1640
    %v2105 = vpack.c.b16 %v1649, %v1641
    %v2106 = vpack.c.b16 %v1658, %v1650
    %v2107 = vpack.c.b16 %v1659, %v1651
    %v2108 = vpack.c.b16 %v1660, %v1652
    %v2109 = vpack.c.b16 %v1661, %v1653
    %v2110 = vpack.c.b16 %v1662, %v1654
    %v2111 = vpack.c.b16 %v1663, %v1655
    %v2112 = vpack.c.b16 %v1664, %v1656
    %v2113 = vpack.c.b16 %v1665, %v1657
    %v2114 = vpack.c.b16 %v1674, %v1666
    %v2115 = vpack.c.b16 %v1675, %v1667
    %v2116 = vpack.c.b16 %v1676, %v1668
    %v2117 = vpack.c.b16 %v1677, %v1669
    %v2118 = vpack.c.b16 %v1678, %v1670
    %v2119 = vpack.c.b16 %v1679, %v1671
    %v2120 = vpack.c.b16 %v1680, %v1672
    %v2121 = vpack.c.b16 %v1681, %v1673
    %v2122 = vpack.c.b16 %v1690, %v1682
    %v2123 = vpack.c.b16 %v1691, %v1683
    %v2124 = vpack.c.b16 %v1692, %v1684
    %v2125 = vpack.c.b16 %v1693, %v1685
    %v2126 = vpack.c.b16 %v1694, %v1686
    %v2127 = vpack.c.b16 %v1695, %v1687
    %v2128 = vpack.c.b16 %v1696, %v1688
    %v2129 = vpack.c.b16 %v1697, %v1689
    %v2130 = vpack.c.b16 %v1706, %v1698
    %v2131 = vpack.c.b16 %v1707, %v1699
    %v2132 = vpack.c.b16 %v1708, %v1700
    %v2133 = vpack.c.b16 %v1709, %v1701
    %v2134 = vpack.c.b16 %v1710, %v1702
    %v2135 = vpack.c.b16 %v1711, %v1703
    %v2136 = vpack.c.b16 %v1712, %v1704
    %v2137 = vpack.c.b16 %v1713, %v1705
    %v2138 = vpack.c.b16 %v1722, %v1714
    %v2139 = vpack.c.b16 %v1723, %v1715
    %v2140 = vpack.c.b16 %v1724, %v1716
    %v2141 = vpack.c.b16 %v1725, %v1717
    %v2142 = vpack.c.b16 %v1726, %v1718
    %v2143 = vpack.c.b16 %v1727, %v1719
    %v2144 = vpack.c.b16 %v1728, %v1720
    %v2145 = vpack.c.b16 %v1729, %v1721
    %v2146 = vpack.c.b16 %v1738, %v1730
    %v2147 = vpack.c.b16 %v1739, %v1731
    %v2148 = vpack.c.b16 %v1740, %v1732
    %v2149 = vpack.c.b16 %v1741, %v1733
    %v2150 = vpack.c.b16 %v1742, %v1734
    %v2151 = vpack.c.b16 %v1743, %v1735
    %v2152 = vpack.c.b16 %v1744, %v1736
    %v2153 = vpack.c.b16 %v1745, %v1737
    %v2154 = vpack.c.b16 %v1754, %v1746
    %v2155 = vpack.c.b16 %v1755, %v1747
    %v2156 = vpack.c.b16 %v1756, %v1748
    %v2157 = vpack.c.b16 %v1757, %v1749
    %v2158 = vpack.c.b16 %v1758, %v1750
    %v2159 = vpack.c.b16 %v1759, %v1751
    %v2160 = vpack.c.b16 %v1760, %v1752
    %v2161 = vpack.c.b16 %v1761, %v1753
    %v2162 = vpack.c.b16 %v1770, %v1762
    %v2163 = vpack.c.b16 %v1771, %v1763
    %v2164 = vpack.c.b16 %v1772, %v1764
    %v2165 = vpack.c.b16 %v1773, %v1765
    %v2166 = vpack.c.b16 %v1774, %v1766
    %v2167 = vpack.c.b16 %v1775, %v1767
    %v2168 = vpack.c.b16 %v1776, %v1768
    %v2169 = vpack.c.b16 %v1777, %v1769
    %vm2562 = vcmask 130048
    %v2564 = vsel %vm2562, %v167, 0
    %2566 = vmatprep.subr.bf16.mxu0 %v1835
    %2567 = vmatpush1.bf16.msra.mxu0 %v1834
    %2568 = vmatprep.subr.bf16.mxu0 %v1827
    %2569 = vmatpush1.bf16.msra.mxu0 %v1826
    %2570 = vmatprep.subr.bf16.mxu0 %v1819
    %2571 = vmatpush1.bf16.msra.mxu0 %v1818
    %2572 = vmatprep.subr.bf16.mxu0 %v1811
    %2573 = vmatpush1.bf16.msra.mxu0 %v1810
    %2574 = vmatprep.subr.bf16.mxu0 %v1803
    %2575 = vmatpush1.bf16.msra.mxu0 %v1802
    %2576 = vmatprep.subr.bf16.mxu0 %v1795
    %2577 = vmatpush1.bf16.msra.mxu0 %v1794
    %2578 = vmatprep.subr.bf16.mxu0 %v1787
    %2579 = vmatpush1.bf16.msra.mxu0 %v1786
    %2580 = vmatprep.subr.bf16.mxu0 %v1779
    %2581 = vmatpush1.bf16.msra.mxu0 %v1778
    %2582 = vmatprep.subr.bf16.mxu0 %v1899
    %2583 = vmatpush2.bf16.msra.mxu0 %v1898
    %2584 = vmatprep.subr.bf16.mxu0 %v1891
    %2585 = vmatpush2.bf16.msra.mxu0 %v1890
    %2586 = vmatprep.subr.bf16.mxu0 %v1883
    %2587 = vmatpush2.bf16.msra.mxu0 %v1882
    %2588 = vmatprep.subr.bf16.mxu0 %v1875
    %2589 = vmatpush2.bf16.msra.mxu0 %v1874
    %2590 = vmatprep.subr.bf16.mxu0 %v1867
    %2591 = vmatpush2.bf16.msra.mxu0 %v1866
    %2592 = vmatprep.subr.bf16.mxu0 %v1859
    %2593 = vmatpush2.bf16.msra.mxu0 %v1858
    %2594 = vmatprep.subr.bf16.mxu0 %v1851
    %2595 = vmatpush2.bf16.msra.mxu0 %v1850
    %2596 = vmatprep.subr.bf16.mxu0 %v1843
    %2597 = vmatpush2.bf16.msra.mxu0 %v1842
    %2598 = vmatprep.mubr.bf16.mxu0 %v162
    %2599 = vmatmul.mubr.bf16.gmra.mxu0 %v161
    %v2600 = vpop.f32.mrf.mxu0
    %v2601 = vadd.f32 %v565, %v2600
    %v2602 = vpop.f32.mrf.mxu0
    %v2603 = vadd.f32 %v569, %v2602
    %v2604 = vpop.f32.mrf.mxu0
    %v2605 = vadd.f32 %v565, %v2604
    %v2606 = vpop.f32.mrf.mxu0
    %v2607 = vadd.f32 %v569, %v2606
    %2608 = vdwg.mxu0
    %2609 = vmatprep.subr.bf16.mxu0 %v1963
    %2610 = vmatpush1.bf16.msra.mxu0 %v1962
    %2611 = vmatprep.subr.bf16.mxu0 %v1955
    %2612 = vmatpush1.bf16.msra.mxu0 %v1954
    %2613 = vmatprep.subr.bf16.mxu0 %v1947
    %2614 = vmatpush1.bf16.msra.mxu0 %v1946
    %2615 = vmatprep.subr.bf16.mxu0 %v1939
    %2616 = vmatpush1.bf16.msra.mxu0 %v1938
    %2617 = vmatprep.subr.bf16.mxu0 %v1931
    %2618 = vmatpush1.bf16.msra.mxu0 %v1930
    %2619 = vmatprep.subr.bf16.mxu0 %v1923
    %2620 = vmatpush1.bf16.msra.mxu0 %v1922
    %2621 = vmatprep.subr.bf16.mxu0 %v1915
    %2622 = vmatpush1.bf16.msra.mxu0 %v1914
    %2623 = vmatprep.subr.bf16.mxu0 %v1907
    %2624 = vmatpush1.bf16.msra.mxu0 %v1906
    %2625 = vmatprep.subr.bf16.mxu0 %v2027
    %2626 = vmatpush2.bf16.msra.mxu0 %v2026
    %2627 = vmatprep.subr.bf16.mxu0 %v2019
    %2628 = vmatpush2.bf16.msra.mxu0 %v2018
    %2629 = vmatprep.subr.bf16.mxu0 %v2011
    %2630 = vmatpush2.bf16.msra.mxu0 %v2010
    %2631 = vmatprep.subr.bf16.mxu0 %v2003
    %2632 = vmatpush2.bf16.msra.mxu0 %v2002
    %2633 = vmatprep.subr.bf16.mxu0 %v1995
    %2634 = vmatpush2.bf16.msra.mxu0 %v1994
    %2635 = vmatprep.subr.bf16.mxu0 %v1987
    %2636 = vmatpush2.bf16.msra.mxu0 %v1986
    %2637 = vmatprep.subr.bf16.mxu0 %v1979
    %2638 = vmatpush2.bf16.msra.mxu0 %v1978
    %2639 = vmatprep.subr.bf16.mxu0 %v1971
    %2640 = vmatpush2.bf16.msra.mxu0 %v1970
    %2641 = vmatprep.mubr.bf16.mxu0 %v164
    %2642 = vmatmul.mubr.bf16.gmra.mxu0 %v163
    %v2643 = vpop.f32.mrf.mxu0
    %v2644 = vadd.f32 %v2601, %v2643
    %v2645 = vpop.f32.mrf.mxu0
    %v2646 = vadd.f32 %v2603, %v2645
    %v2647 = vpop.f32.mrf.mxu0
    %v2648 = vadd.f32 %v2605, %v2647
    %v2649 = vpop.f32.mrf.mxu0
    %v2650 = vadd.f32 %v2607, %v2649
    %2651 = vdwg.mxu0
    %2652 = vmatprep.subr.bf16.mxu0 %v2091
    %2653 = vmatpush1.bf16.msra.mxu0 %v2090
    %2654 = vmatprep.subr.bf16.mxu0 %v2083
    %2655 = vmatpush1.bf16.msra.mxu0 %v2082
    %2656 = vmatprep.subr.bf16.mxu0 %v2075
    %2657 = vmatpush1.bf16.msra.mxu0 %v2074
    %2658 = vmatprep.subr.bf16.mxu0 %v2067
    %2659 = vmatpush1.bf16.msra.mxu0 %v2066
    %2660 = vmatprep.subr.bf16.mxu0 %v2059
    %2661 = vmatpush1.bf16.msra.mxu0 %v2058
    %2662 = vmatprep.subr.bf16.mxu0 %v2051
    %2663 = vmatpush1.bf16.msra.mxu0 %v2050
    %2664 = vmatprep.subr.bf16.mxu0 %v2043
    %2665 = vmatpush1.bf16.msra.mxu0 %v2042
    %2666 = vmatprep.subr.bf16.mxu0 %v2035
    %2667 = vmatpush1.bf16.msra.mxu0 %v2034
    %2668 = vmatprep.subr.bf16.mxu0 %v2155
    %2669 = vmatpush2.bf16.msra.mxu0 %v2154
    %2670 = vmatprep.subr.bf16.mxu0 %v2147
    %2671 = vmatpush2.bf16.msra.mxu0 %v2146
    %2672 = vmatprep.subr.bf16.mxu0 %v2139
    %2673 = vmatpush2.bf16.msra.mxu0 %v2138
    %2674 = vmatprep.subr.bf16.mxu0 %v2131
    %2675 = vmatpush2.bf16.msra.mxu0 %v2130
    %2676 = vmatprep.subr.bf16.mxu0 %v2123
    %2677 = vmatpush2.bf16.msra.mxu0 %v2122
    %2678 = vmatprep.subr.bf16.mxu0 %v2115
    %2679 = vmatpush2.bf16.msra.mxu0 %v2114
    %2680 = vmatprep.subr.bf16.mxu0 %v2107
    %2681 = vmatpush2.bf16.msra.mxu0 %v2106
    %2682 = vmatprep.subr.bf16.mxu0 %v2099
    %2683 = vmatpush2.bf16.msra.mxu0 %v2098
    %2684 = vmatprep.mubr.bf16.mxu0 %v166
    %2685 = vmatmul.mubr.bf16.gmra.mxu0 %v165
    %v2686 = vpop.f32.mrf.mxu0
    %v2687 = vadd.f32 %v2644, %v2686
    %v2688 = vpop.f32.mrf.mxu0
    %v2689 = vadd.f32 %v2646, %v2688
    %v2690 = vpop.f32.mrf.mxu0
    %v2691 = vadd.f32 %v2648, %v2690
    %v2692 = vpop.f32.mrf.mxu0
    %v2693 = vadd.f32 %v2650, %v2692
    %2694 = vdwg.mxu0
    %2695 = vmatprep.subr.bf16.mxu0 0
    %2696 = vmatpush1.bf16.msra.mxu0 0
    %2697 = vmatprep.subr.bf16.mxu0 0
    %2698 = vmatpush1.bf16.msra.mxu0 0
    %2699 = vmatprep.subr.bf16.mxu0 0
    %2700 = vmatpush1.bf16.msra.mxu0 0
    %2701 = vmatprep.subr.bf16.mxu0 0
    %2702 = vmatpush1.bf16.msra.mxu0 0
    %2703 = vmatprep.subr.bf16.mxu0 0
    %2704 = vmatpush1.bf16.msra.mxu0 0
    %2705 = vmatprep.subr.bf16.mxu0 0
    %2706 = vmatpush1.bf16.msra.mxu0 0
    %2707 = vmatprep.subr.bf16.mxu0 0
    %2708 = vmatpush1.bf16.msra.mxu0 0
    %2709 = vmatprep.subr.bf16.mxu0 %v2163
    %2710 = vmatpush1.bf16.msra.mxu0 %v2162
    %2711 = vmatprep.subr.bf16.mxu0 0
    %2712 = vmatpush2.bf16.msra.mxu0 0
    %2713 = vmatprep.subr.bf16.mxu0 0
    %2714 = vmatpush2.bf16.msra.mxu0 0
    %2715 = vmatprep.subr.bf16.mxu0 0
    %2716 = vmatpush2.bf16.msra.mxu0 0
    %2717 = vmatprep.subr.bf16.mxu0 0
    %2718 = vmatpush2.bf16.msra.mxu0 0
    %2719 = vmatprep.subr.bf16.mxu0 0
    %2720 = vmatpush2.bf16.msra.mxu0 0
    %2721 = vmatprep.subr.bf16.mxu0 0
    %2722 = vmatpush2.bf16.msra.mxu0 0
    %2723 = vmatprep.subr.bf16.mxu0 0
    %2724 = vmatpush2.bf16.msra.mxu0 0
    %2725 = vmatprep.subr.bf16.mxu0 0
    %2726 = vmatpush2.bf16.msra.mxu0 0
    %2727 = vmatprep.mubr.bf16.mxu0 0
    %2728 = vmatmul.mubr.bf16.gmra.mxu0 %v2564
    %v2729 = vpop.f32.mrf.mxu0
    %v2730 = vadd.f32 %v2687, %v2729
    %v2731 = vpop.f32.mrf.mxu0
    %v2732 = vadd.f32 %v2689, %v2731
    %v2733 = vpop.f32.mrf.mxu0
    %v2734 = vadd.f32 %v2691, %v2733
    %v2735 = vpop.f32.mrf.mxu0
    %v2736 = vadd.f32 %v2693, %v2735
    %2737 = vdwg.mxu0
    %2738 = vmatprep.subr.bf16.mxu0 %v1837
    %2739 = vmatpush1.bf16.msra.mxu0 %v1836
    %2740 = vmatprep.subr.bf16.mxu0 %v1829
    %2741 = vmatpush1.bf16.msra.mxu0 %v1828
    %2742 = vmatprep.subr.bf16.mxu0 %v1821
    %2743 = vmatpush1.bf16.msra.mxu0 %v1820
    %2744 = vmatprep.subr.bf16.mxu0 %v1813
    %2745 = vmatpush1.bf16.msra.mxu0 %v1812
    %2746 = vmatprep.subr.bf16.mxu0 %v1805
    %2747 = vmatpush1.bf16.msra.mxu0 %v1804
    %2748 = vmatprep.subr.bf16.mxu0 %v1797
    %2749 = vmatpush1.bf16.msra.mxu0 %v1796
    %2750 = vmatprep.subr.bf16.mxu0 %v1789
    %2751 = vmatpush1.bf16.msra.mxu0 %v1788
    %2752 = vmatprep.subr.bf16.mxu0 %v1781
    %2753 = vmatpush1.bf16.msra.mxu0 %v1780
    %2754 = vmatprep.subr.bf16.mxu0 %v1901
    %2755 = vmatpush2.bf16.msra.mxu0 %v1900
    %2756 = vmatprep.subr.bf16.mxu0 %v1893
    %2757 = vmatpush2.bf16.msra.mxu0 %v1892
    %2758 = vmatprep.subr.bf16.mxu0 %v1885
    %2759 = vmatpush2.bf16.msra.mxu0 %v1884
    %2760 = vmatprep.subr.bf16.mxu0 %v1877
    %2761 = vmatpush2.bf16.msra.mxu0 %v1876
    %2762 = vmatprep.subr.bf16.mxu0 %v1869
    %2763 = vmatpush2.bf16.msra.mxu0 %v1868
    %2764 = vmatprep.subr.bf16.mxu0 %v1861
    %2765 = vmatpush2.bf16.msra.mxu0 %v1860
    %2766 = vmatprep.subr.bf16.mxu0 %v1853
    %2767 = vmatpush2.bf16.msra.mxu0 %v1852
    %2768 = vmatprep.subr.bf16.mxu0 %v1845
    %2769 = vmatpush2.bf16.msra.mxu0 %v1844
    %2770 = vmatprep.mubr.bf16.mxu0 %v162
    %2771 = vmatmul.mubr.bf16.gmra.mxu0 %v161
    %v2772 = vpop.f32.mrf.mxu0
    %v2773 = vadd.f32 %v573, %v2772
    %v2774 = vpop.f32.mrf.mxu0
    %v2775 = vadd.f32 %v577, %v2774
    %v2776 = vpop.f32.mrf.mxu0
    %v2777 = vadd.f32 %v573, %v2776
    %v2778 = vpop.f32.mrf.mxu0
    %v2779 = vadd.f32 %v577, %v2778
    %2780 = vdwg.mxu0
    %2781 = vmatprep.subr.bf16.mxu0 %v1965
    %2782 = vmatpush1.bf16.msra.mxu0 %v1964
    %2783 = vmatprep.subr.bf16.mxu0 %v1957
    %2784 = vmatpush1.bf16.msra.mxu0 %v1956
    %2785 = vmatprep.subr.bf16.mxu0 %v1949
    %2786 = vmatpush1.bf16.msra.mxu0 %v1948
    %2787 = vmatprep.subr.bf16.mxu0 %v1941
    %2788 = vmatpush1.bf16.msra.mxu0 %v1940
    %2789 = vmatprep.subr.bf16.mxu0 %v1933
    %2790 = vmatpush1.bf16.msra.mxu0 %v1932
    %2791 = vmatprep.subr.bf16.mxu0 %v1925
    %2792 = vmatpush1.bf16.msra.mxu0 %v1924
    %2793 = vmatprep.subr.bf16.mxu0 %v1917
    %2794 = vmatpush1.bf16.msra.mxu0 %v1916
    %2795 = vmatprep.subr.bf16.mxu0 %v1909
    %2796 = vmatpush1.bf16.msra.mxu0 %v1908
    %2797 = vmatprep.subr.bf16.mxu0 %v2029
    %2798 = vmatpush2.bf16.msra.mxu0 %v2028
    %2799 = vmatprep.subr.bf16.mxu0 %v2021
    %2800 = vmatpush2.bf16.msra.mxu0 %v2020
    %2801 = vmatprep.subr.bf16.mxu0 %v2013
    %2802 = vmatpush2.bf16.msra.mxu0 %v2012
    %2803 = vmatprep.subr.bf16.mxu0 %v2005
    %2804 = vmatpush2.bf16.msra.mxu0 %v2004
    %2805 = vmatprep.subr.bf16.mxu0 %v1997
    %2806 = vmatpush2.bf16.msra.mxu0 %v1996
    %2807 = vmatprep.subr.bf16.mxu0 %v1989
    %2808 = vmatpush2.bf16.msra.mxu0 %v1988
    %2809 = vmatprep.subr.bf16.mxu0 %v1981
    %2810 = vmatpush2.bf16.msra.mxu0 %v1980
    %2811 = vmatprep.subr.bf16.mxu0 %v1973
    %2812 = vmatpush2.bf16.msra.mxu0 %v1972
    %2813 = vmatprep.mubr.bf16.mxu0 %v164
    %2814 = vmatmul.mubr.bf16.gmra.mxu0 %v163
    %v2815 = vpop.f32.mrf.mxu0
    %v2816 = vadd.f32 %v2773, %v2815
    %v2817 = vpop.f32.mrf.mxu0
    %v2818 = vadd.f32 %v2775, %v2817
    %v2819 = vpop.f32.mrf.mxu0
    %v2820 = vadd.f32 %v2777, %v2819
    %v2821 = vpop.f32.mrf.mxu0
    %v2822 = vadd.f32 %v2779, %v2821
    %2823 = vdwg.mxu0
    %2824 = vmatprep.subr.bf16.mxu0 %v2093
    %2825 = vmatpush1.bf16.msra.mxu0 %v2092
    %2826 = vmatprep.subr.bf16.mxu0 %v2085
    %2827 = vmatpush1.bf16.msra.mxu0 %v2084
    %2828 = vmatprep.subr.bf16.mxu0 %v2077
    %2829 = vmatpush1.bf16.msra.mxu0 %v2076
    %2830 = vmatprep.subr.bf16.mxu0 %v2069
    %2831 = vmatpush1.bf16.msra.mxu0 %v2068
    %2832 = vmatprep.subr.bf16.mxu0 %v2061
    %2833 = vmatpush1.bf16.msra.mxu0 %v2060
    %2834 = vmatprep.subr.bf16.mxu0 %v2053
    %2835 = vmatpush1.bf16.msra.mxu0 %v2052
    %2836 = vmatprep.subr.bf16.mxu0 %v2045
    %2837 = vmatpush1.bf16.msra.mxu0 %v2044
    %2838 = vmatprep.subr.bf16.mxu0 %v2037
    %2839 = vmatpush1.bf16.msra.mxu0 %v2036
    %2840 = vmatprep.subr.bf16.mxu0 %v2157
    %2841 = vmatpush2.bf16.msra.mxu0 %v2156
    %2842 = vmatprep.subr.bf16.mxu0 %v2149
    %2843 = vmatpush2.bf16.msra.mxu0 %v2148
    %2844 = vmatprep.subr.bf16.mxu0 %v2141
    %2845 = vmatpush2.bf16.msra.mxu0 %v2140
    %2846 = vmatprep.subr.bf16.mxu0 %v2133
    %2847 = vmatpush2.bf16.msra.mxu0 %v2132
    %2848 = vmatprep.subr.bf16.mxu0 %v2125
    %2849 = vmatpush2.bf16.msra.mxu0 %v2124
    %2850 = vmatprep.subr.bf16.mxu0 %v2117
    %2851 = vmatpush2.bf16.msra.mxu0 %v2116
    %2852 = vmatprep.subr.bf16.mxu0 %v2109
    %2853 = vmatpush2.bf16.msra.mxu0 %v2108
    %2854 = vmatprep.subr.bf16.mxu0 %v2101
    %2855 = vmatpush2.bf16.msra.mxu0 %v2100
    %2856 = vmatprep.mubr.bf16.mxu0 %v166
    %2857 = vmatmul.mubr.bf16.gmra.mxu0 %v165
    %v2858 = vpop.f32.mrf.mxu0
    %v2859 = vadd.f32 %v2816, %v2858
    %v2860 = vpop.f32.mrf.mxu0
    %v2861 = vadd.f32 %v2818, %v2860
    %v2862 = vpop.f32.mrf.mxu0
    %v2863 = vadd.f32 %v2820, %v2862
    %v2864 = vpop.f32.mrf.mxu0
    %v2865 = vadd.f32 %v2822, %v2864
    %2866 = vdwg.mxu0
    %2867 = vmatprep.subr.bf16.mxu0 0
    %2868 = vmatpush1.bf16.msra.mxu0 0
    %2869 = vmatprep.subr.bf16.mxu0 0
    %2870 = vmatpush1.bf16.msra.mxu0 0
    %2871 = vmatprep.subr.bf16.mxu0 0
    %2872 = vmatpush1.bf16.msra.mxu0 0
    %2873 = vmatprep.subr.bf16.mxu0 0
    %2874 = vmatpush1.bf16.msra.mxu0 0
    %2875 = vmatprep.subr.bf16.mxu0 0
    %2876 = vmatpush1.bf16.msra.mxu0 0
    %2877 = vmatprep.subr.bf16.mxu0 0
    %2878 = vmatpush1.bf16.msra.mxu0 0
    %2879 = vmatprep.subr.bf16.mxu0 0
    %2880 = vmatpush1.bf16.msra.mxu0 0
    %2881 = vmatprep.subr.bf16.mxu0 %v2165
    %2882 = vmatpush1.bf16.msra.mxu0 %v2164
    %2883 = vmatprep.subr.bf16.mxu0 0
    %2884 = vmatpush2.bf16.msra.mxu0 0
    %2885 = vmatprep.subr.bf16.mxu0 0
    %2886 = vmatpush2.bf16.msra.mxu0 0
    %2887 = vmatprep.subr.bf16.mxu0 0
    %2888 = vmatpush2.bf16.msra.mxu0 0
    %2889 = vmatprep.subr.bf16.mxu0 0
    %2890 = vmatpush2.bf16.msra.mxu0 0
    %2891 = vmatprep.subr.bf16.mxu0 0
    %2892 = vmatpush2.bf16.msra.mxu0 0
    %2893 = vmatprep.subr.bf16.mxu0 0
    %2894 = vmatpush2.bf16.msra.mxu0 0
    %2895 = vmatprep.subr.bf16.mxu0 0
    %2896 = vmatpush2.bf16.msra.mxu0 0
    %2897 = vmatprep.subr.bf16.mxu0 0
    %2898 = vmatpush2.bf16.msra.mxu0 0
    %2899 = vmatprep.mubr.bf16.mxu0 0
    %2900 = vmatmul.mubr.bf16.gmra.mxu0 %v2564
    %v2901 = vpop.f32.mrf.mxu0
    %v2902 = vadd.f32 %v2859, %v2901
    %v2903 = vpop.f32.mrf.mxu0
    %v2904 = vadd.f32 %v2861, %v2903
    %v2905 = vpop.f32.mrf.mxu0
    %v2906 = vadd.f32 %v2863, %v2905
    %v2907 = vpop.f32.mrf.mxu0
    %v2908 = vadd.f32 %v2865, %v2907
    %2909 = vdwg.mxu0
    %2910 = vmatprep.subr.bf16.mxu0 %v1839
    %2911 = vmatpush1.bf16.msra.mxu0 %v1838
    %2912 = vmatprep.subr.bf16.mxu0 %v1831
    %2913 = vmatpush1.bf16.msra.mxu0 %v1830
    %2914 = vmatprep.subr.bf16.mxu0 %v1823
    %2915 = vmatpush1.bf16.msra.mxu0 %v1822
    %2916 = vmatprep.subr.bf16.mxu0 %v1815
    %2917 = vmatpush1.bf16.msra.mxu0 %v1814
    %2918 = vmatprep.subr.bf16.mxu0 %v1807
    %2919 = vmatpush1.bf16.msra.mxu0 %v1806
    %2920 = vmatprep.subr.bf16.mxu0 %v1799
    %2921 = vmatpush1.bf16.msra.mxu0 %v1798
    %2922 = vmatprep.subr.bf16.mxu0 %v1791
    %2923 = vmatpush1.bf16.msra.mxu0 %v1790
    %2924 = vmatprep.subr.bf16.mxu0 %v1783
    %2925 = vmatpush1.bf16.msra.mxu0 %v1782
    %2926 = vmatprep.subr.bf16.mxu0 %v1903
    %2927 = vmatpush2.bf16.msra.mxu0 %v1902
    %2928 = vmatprep.subr.bf16.mxu0 %v1895
    %2929 = vmatpush2.bf16.msra.mxu0 %v1894
    %2930 = vmatprep.subr.bf16.mxu0 %v1887
    %2931 = vmatpush2.bf16.msra.mxu0 %v1886
    %2932 = vmatprep.subr.bf16.mxu0 %v1879
    %2933 = vmatpush2.bf16.msra.mxu0 %v1878
    %2934 = vmatprep.subr.bf16.mxu0 %v1871
    %2935 = vmatpush2.bf16.msra.mxu0 %v1870
    %2936 = vmatprep.subr.bf16.mxu0 %v1863
    %2937 = vmatpush2.bf16.msra.mxu0 %v1862
    %2938 = vmatprep.subr.bf16.mxu0 %v1855
    %2939 = vmatpush2.bf16.msra.mxu0 %v1854
    %2940 = vmatprep.subr.bf16.mxu0 %v1847
    %2941 = vmatpush2.bf16.msra.mxu0 %v1846
    %2942 = vmatprep.mubr.bf16.mxu0 %v162
    %2943 = vmatmul.mubr.bf16.gmra.mxu0 %v161
    %v2944 = vpop.f32.mrf.mxu0
    %v2945 = vadd.f32 %v581, %v2944
    %v2946 = vpop.f32.mrf.mxu0
    %v2947 = vadd.f32 %v585, %v2946
    %v2948 = vpop.f32.mrf.mxu0
    %v2949 = vadd.f32 %v581, %v2948
    %v2950 = vpop.f32.mrf.mxu0
    %v2951 = vadd.f32 %v585, %v2950
    %2952 = vdwg.mxu0
    %2953 = vmatprep.subr.bf16.mxu0 %v1967
    %2954 = vmatpush1.bf16.msra.mxu0 %v1966
    %2955 = vmatprep.subr.bf16.mxu0 %v1959
    %2956 = vmatpush1.bf16.msra.mxu0 %v1958
    %2957 = vmatprep.subr.bf16.mxu0 %v1951
    %2958 = vmatpush1.bf16.msra.mxu0 %v1950
    %2959 = vmatprep.subr.bf16.mxu0 %v1943
    %2960 = vmatpush1.bf16.msra.mxu0 %v1942
    %2961 = vmatprep.subr.bf16.mxu0 %v1935
    %2962 = vmatpush1.bf16.msra.mxu0 %v1934
    %2963 = vmatprep.subr.bf16.mxu0 %v1927
    %2964 = vmatpush1.bf16.msra.mxu0 %v1926
    %2965 = vmatprep.subr.bf16.mxu0 %v1919
    %2966 = vmatpush1.bf16.msra.mxu0 %v1918
    %2967 = vmatprep.subr.bf16.mxu0 %v1911
    %2968 = vmatpush1.bf16.msra.mxu0 %v1910
    %2969 = vmatprep.subr.bf16.mxu0 %v2031
    %2970 = vmatpush2.bf16.msra.mxu0 %v2030
    %2971 = vmatprep.subr.bf16.mxu0 %v2023
    %2972 = vmatpush2.bf16.msra.mxu0 %v2022
    %2973 = vmatprep.subr.bf16.mxu0 %v2015
    %2974 = vmatpush2.bf16.msra.mxu0 %v2014
    %2975 = vmatprep.subr.bf16.mxu0 %v2007
    %2976 = vmatpush2.bf16.msra.mxu0 %v2006
    %2977 = vmatprep.subr.bf16.mxu0 %v1999
    %2978 = vmatpush2.bf16.msra.mxu0 %v1998
    %2979 = vmatprep.subr.bf16.mxu0 %v1991
    %2980 = vmatpush2.bf16.msra.mxu0 %v1990
    %2981 = vmatprep.subr.bf16.mxu0 %v1983
    %2982 = vmatpush2.bf16.msra.mxu0 %v1982
    %2983 = vmatprep.subr.bf16.mxu0 %v1975
    %2984 = vmatpush2.bf16.msra.mxu0 %v1974
    %2985 = vmatprep.mubr.bf16.mxu0 %v164
    %2986 = vmatmul.mubr.bf16.gmra.mxu0 %v163
    %v2987 = vpop.f32.mrf.mxu0
    %v2988 = vadd.f32 %v2945, %v2987
    %v2989 = vpop.f32.mrf.mxu0
    %v2990 = vadd.f32 %v2947, %v2989
    %v2991 = vpop.f32.mrf.mxu0
    %v2992 = vadd.f32 %v2949, %v2991
    %v2993 = vpop.f32.mrf.mxu0
    %v2994 = vadd.f32 %v2951, %v2993
    %2995 = vdwg.mxu0
    %2996 = vmatprep.subr.bf16.mxu0 %v2095
    %2997 = vmatpush1.bf16.msra.mxu0 %v2094
    %2998 = vmatprep.subr.bf16.mxu0 %v2087
    %2999 = vmatpush1.bf16.msra.mxu0 %v2086
    %3000 = vmatprep.subr.bf16.mxu0 %v2079
    %3001 = vmatpush1.bf16.msra.mxu0 %v2078
    %3002 = vmatprep.subr.bf16.mxu0 %v2071
    %3003 = vmatpush1.bf16.msra.mxu0 %v2070
    %3004 = vmatprep.subr.bf16.mxu0 %v2063
    %3005 = vmatpush1.bf16.msra.mxu0 %v2062
    %3006 = vmatprep.subr.bf16.mxu0 %v2055
    %3007 = vmatpush1.bf16.msra.mxu0 %v2054
    %3008 = vmatprep.subr.bf16.mxu0 %v2047
    %3009 = vmatpush1.bf16.msra.mxu0 %v2046
    %3010 = vmatprep.subr.bf16.mxu0 %v2039
    %3011 = vmatpush1.bf16.msra.mxu0 %v2038
    %3012 = vmatprep.subr.bf16.mxu0 %v2159
    %3013 = vmatpush2.bf16.msra.mxu0 %v2158
    %3014 = vmatprep.subr.bf16.mxu0 %v2151
    %3015 = vmatpush2.bf16.msra.mxu0 %v2150
    %3016 = vmatprep.subr.bf16.mxu0 %v2143
    %3017 = vmatpush2.bf16.msra.mxu0 %v2142
    %3018 = vmatprep.subr.bf16.mxu0 %v2135
    %3019 = vmatpush2.bf16.msra.mxu0 %v2134
    %3020 = vmatprep.subr.bf16.mxu0 %v2127
    %3021 = vmatpush2.bf16.msra.mxu0 %v2126
    %3022 = vmatprep.subr.bf16.mxu0 %v2119
    %3023 = vmatpush2.bf16.msra.mxu0 %v2118
    %3024 = vmatprep.subr.bf16.mxu0 %v2111
    %3025 = vmatpush2.bf16.msra.mxu0 %v2110
    %3026 = vmatprep.subr.bf16.mxu0 %v2103
    %3027 = vmatpush2.bf16.msra.mxu0 %v2102
    %3028 = vmatprep.mubr.bf16.mxu0 %v166
    %3029 = vmatmul.mubr.bf16.gmra.mxu0 %v165
    %v3030 = vpop.f32.mrf.mxu0
    %v3031 = vadd.f32 %v2988, %v3030
    %v3032 = vpop.f32.mrf.mxu0
    %v3033 = vadd.f32 %v2990, %v3032
    %v3034 = vpop.f32.mrf.mxu0
    %v3035 = vadd.f32 %v2992, %v3034
    %v3036 = vpop.f32.mrf.mxu0
    %v3037 = vadd.f32 %v2994, %v3036
    %3038 = vdwg.mxu0
    %3039 = vmatprep.subr.bf16.mxu0 0
    %3040 = vmatpush1.bf16.msra.mxu0 0
    %3041 = vmatprep.subr.bf16.mxu0 0
    %3042 = vmatpush1.bf16.msra.mxu0 0
    %3043 = vmatprep.subr.bf16.mxu0 0
    %3044 = vmatpush1.bf16.msra.mxu0 0
    %3045 = vmatprep.subr.bf16.mxu0 0
    %3046 = vmatpush1.bf16.msra.mxu0 0
    %3047 = vmatprep.subr.bf16.mxu0 0
    %3048 = vmatpush1.bf16.msra.mxu0 0
    %3049 = vmatprep.subr.bf16.mxu0 0
    %3050 = vmatpush1.bf16.msra.mxu0 0
    %3051 = vmatprep.subr.bf16.mxu0 0
    %3052 = vmatpush1.bf16.msra.mxu0 0
    %3053 = vmatprep.subr.bf16.mxu0 %v2167
    %3054 = vmatpush1.bf16.msra.mxu0 %v2166
    %3055 = vmatprep.subr.bf16.mxu0 0
    %3056 = vmatpush2.bf16.msra.mxu0 0
    %3057 = vmatprep.subr.bf16.mxu0 0
    %3058 = vmatpush2.bf16.msra.mxu0 0
    %3059 = vmatprep.subr.bf16.mxu0 0
    %3060 = vmatpush2.bf16.msra.mxu0 0
    %3061 = vmatprep.subr.bf16.mxu0 0
    %3062 = vmatpush2.bf16.msra.mxu0 0
    %3063 = vmatprep.subr.bf16.mxu0 0
    %3064 = vmatpush2.bf16.msra.mxu0 0
    %3065 = vmatprep.subr.bf16.mxu0 0
    %3066 = vmatpush2.bf16.msra.mxu0 0
    %3067 = vmatprep.subr.bf16.mxu0 0
    %3068 = vmatpush2.bf16.msra.mxu0 0
    %3069 = vmatprep.subr.bf16.mxu0 0
    %3070 = vmatpush2.bf16.msra.mxu0 0
    %3071 = vmatprep.mubr.bf16.mxu0 0
    %3072 = vmatmul.mubr.bf16.gmra.mxu0 %v2564
    %v3073 = vpop.f32.mrf.mxu0
    %v3074 = vadd.f32 %v3031, %v3073
    %v3075 = vpop.f32.mrf.mxu0
    %v3076 = vadd.f32 %v3033, %v3075
    %v3077 = vpop.f32.mrf.mxu0
    %v3078 = vadd.f32 %v3035, %v3077
    %v3079 = vpop.f32.mrf.mxu0
    %v3080 = vadd.f32 %v3037, %v3079
    %3081 = vdwg.mxu0
    %3082 = vmatprep.subr.bf16.mxu0 %v1841
    %3083 = vmatpush1.bf16.msra.mxu0 %v1840
    %3084 = vmatprep.subr.bf16.mxu0 %v1833
    %3085 = vmatpush1.bf16.msra.mxu0 %v1832
    %3086 = vmatprep.subr.bf16.mxu0 %v1825
    %3087 = vmatpush1.bf16.msra.mxu0 %v1824
    %3088 = vmatprep.subr.bf16.mxu0 %v1817
    %3089 = vmatpush1.bf16.msra.mxu0 %v1816
    %3090 = vmatprep.subr.bf16.mxu0 %v1809
    %3091 = vmatpush1.bf16.msra.mxu0 %v1808
    %3092 = vmatprep.subr.bf16.mxu0 %v1801
    %3093 = vmatpush1.bf16.msra.mxu0 %v1800
    %3094 = vmatprep.subr.bf16.mxu0 %v1793
    %3095 = vmatpush1.bf16.msra.mxu0 %v1792
    %3096 = vmatprep.subr.bf16.mxu0 %v1785
    %3097 = vmatpush1.bf16.msra.mxu0 %v1784
    %3098 = vmatprep.subr.bf16.mxu0 %v1905
    %3099 = vmatpush2.bf16.msra.mxu0 %v1904
    %3100 = vmatprep.subr.bf16.mxu0 %v1897
    %3101 = vmatpush2.bf16.msra.mxu0 %v1896
    %3102 = vmatprep.subr.bf16.mxu0 %v1889
    %3103 = vmatpush2.bf16.msra.mxu0 %v1888
    %3104 = vmatprep.subr.bf16.mxu0 %v1881
    %3105 = vmatpush2.bf16.msra.mxu0 %v1880
    %3106 = vmatprep.subr.bf16.mxu0 %v1873
    %3107 = vmatpush2.bf16.msra.mxu0 %v1872
    %3108 = vmatprep.subr.bf16.mxu0 %v1865
    %3109 = vmatpush2.bf16.msra.mxu0 %v1864
    %3110 = vmatprep.subr.bf16.mxu0 %v1857
    %3111 = vmatpush2.bf16.msra.mxu0 %v1856
    %3112 = vmatprep.subr.bf16.mxu0 %v1849
    %3113 = vmatpush2.bf16.msra.mxu0 %v1848
    %3114 = vmatprep.mubr.bf16.mxu0 %v162
    %3115 = vmatmul.mubr.bf16.gmra.mxu0 %v161
    %v3116 = vpop.f32.mrf.mxu0
    %v3117 = vadd.f32 %v589, %v3116
    %v3118 = vpop.f32.mrf.mxu0
    %v3119 = vadd.f32 %v593, %v3118
    %v3120 = vpop.f32.mrf.mxu0
    %v3121 = vadd.f32 %v589, %v3120
    %v3122 = vpop.f32.mrf.mxu0
    %v3123 = vadd.f32 %v593, %v3122
    %3124 = vdwg.mxu0
    %3125 = vmatprep.subr.bf16.mxu0 %v1969
    %3126 = vmatpush1.bf16.msra.mxu0 %v1968
    %3127 = vmatprep.subr.bf16.mxu0 %v1961
    %3128 = vmatpush1.bf16.msra.mxu0 %v1960
    %3129 = vmatprep.subr.bf16.mxu0 %v1953
    %3130 = vmatpush1.bf16.msra.mxu0 %v1952
    %3131 = vmatprep.subr.bf16.mxu0 %v1945
    %3132 = vmatpush1.bf16.msra.mxu0 %v1944
    %3133 = vmatprep.subr.bf16.mxu0 %v1937
    %3134 = vmatpush1.bf16.msra.mxu0 %v1936
    %3135 = vmatprep.subr.bf16.mxu0 %v1929
    %3136 = vmatpush1.bf16.msra.mxu0 %v1928
    %3137 = vmatprep.subr.bf16.mxu0 %v1921
    %3138 = vmatpush1.bf16.msra.mxu0 %v1920
    %3139 = vmatprep.subr.bf16.mxu0 %v1913
    %3140 = vmatpush1.bf16.msra.mxu0 %v1912
    %3141 = vmatprep.subr.bf16.mxu0 %v2033
    %3142 = vmatpush2.bf16.msra.mxu0 %v2032
    %3143 = vmatprep.subr.bf16.mxu0 %v2025
    %3144 = vmatpush2.bf16.msra.mxu0 %v2024
    %3145 = vmatprep.subr.bf16.mxu0 %v2017
    %3146 = vmatpush2.bf16.msra.mxu0 %v2016
    %3147 = vmatprep.subr.bf16.mxu0 %v2009
    %3148 = vmatpush2.bf16.msra.mxu0 %v2008
    %3149 = vmatprep.subr.bf16.mxu0 %v2001
    %3150 = vmatpush2.bf16.msra.mxu0 %v2000
    %3151 = vmatprep.subr.bf16.mxu0 %v1993
    %3152 = vmatpush2.bf16.msra.mxu0 %v1992
    %3153 = vmatprep.subr.bf16.mxu0 %v1985
    %3154 = vmatpush2.bf16.msra.mxu0 %v1984
    %3155 = vmatprep.subr.bf16.mxu0 %v1977
    %3156 = vmatpush2.bf16.msra.mxu0 %v1976
    %3157 = vmatprep.mubr.bf16.mxu0 %v164
    %3158 = vmatmul.mubr.bf16.gmra.mxu0 %v163
    %v3159 = vpop.f32.mrf.mxu0
    %v3160 = vadd.f32 %v3117, %v3159
    %v3161 = vpop.f32.mrf.mxu0
    %v3162 = vadd.f32 %v3119, %v3161
    %v3163 = vpop.f32.mrf.mxu0
    %v3164 = vadd.f32 %v3121, %v3163
    %v3165 = vpop.f32.mrf.mxu0
    %v3166 = vadd.f32 %v3123, %v3165
    %3167 = vdwg.mxu0
    %3168 = vmatprep.subr.bf16.mxu0 %v2097
    %3169 = vmatpush1.bf16.msra.mxu0 %v2096
    %3170 = vmatprep.subr.bf16.mxu0 %v2089
    %3171 = vmatpush1.bf16.msra.mxu0 %v2088
    %3172 = vmatprep.subr.bf16.mxu0 %v2081
    %3173 = vmatpush1.bf16.msra.mxu0 %v2080
    %3174 = vmatprep.subr.bf16.mxu0 %v2073
    %3175 = vmatpush1.bf16.msra.mxu0 %v2072
    %3176 = vmatprep.subr.bf16.mxu0 %v2065
    %3177 = vmatpush1.bf16.msra.mxu0 %v2064
    %3178 = vmatprep.subr.bf16.mxu0 %v2057
    %3179 = vmatpush1.bf16.msra.mxu0 %v2056
    %3180 = vmatprep.subr.bf16.mxu0 %v2049
    %3181 = vmatpush1.bf16.msra.mxu0 %v2048
    %3182 = vmatprep.subr.bf16.mxu0 %v2041
    %3183 = vmatpush1.bf16.msra.mxu0 %v2040
    %3184 = vmatprep.subr.bf16.mxu0 %v2161
    %3185 = vmatpush2.bf16.msra.mxu0 %v2160
    %3186 = vmatprep.subr.bf16.mxu0 %v2153
    %3187 = vmatpush2.bf16.msra.mxu0 %v2152
    %3188 = vmatprep.subr.bf16.mxu0 %v2145
    %3189 = vmatpush2.bf16.msra.mxu0 %v2144
    %3190 = vmatprep.subr.bf16.mxu0 %v2137
    %3191 = vmatpush2.bf16.msra.mxu0 %v2136
    %3192 = vmatprep.subr.bf16.mxu0 %v2129
    %3193 = vmatpush2.bf16.msra.mxu0 %v2128
    %3194 = vmatprep.subr.bf16.mxu0 %v2121
    %3195 = vmatpush2.bf16.msra.mxu0 %v2120
    %3196 = vmatprep.subr.bf16.mxu0 %v2113
    %3197 = vmatpush2.bf16.msra.mxu0 %v2112
    %3198 = vmatprep.subr.bf16.mxu0 %v2105
    %3199 = vmatpush2.bf16.msra.mxu0 %v2104
    %3200 = vmatprep.mubr.bf16.mxu0 %v166
    %3201 = vmatmul.mubr.bf16.gmra.mxu0 %v165
    %v3202 = vpop.f32.mrf.mxu0
    %v3203 = vadd.f32 %v3160, %v3202
    %v3204 = vpop.f32.mrf.mxu0
    %v3205 = vadd.f32 %v3162, %v3204
    %v3206 = vpop.f32.mrf.mxu0
    %v3207 = vadd.f32 %v3164, %v3206
    %v3208 = vpop.f32.mrf.mxu0
    %v3209 = vadd.f32 %v3166, %v3208
    %3210 = vdwg.mxu0
    %3211 = vmatprep.subr.bf16.mxu0 0
    %3212 = vmatpush1.bf16.msra.mxu0 0
    %3213 = vmatprep.subr.bf16.mxu0 0
    %3214 = vmatpush1.bf16.msra.mxu0 0
    %3215 = vmatprep.subr.bf16.mxu0 0
    %3216 = vmatpush1.bf16.msra.mxu0 0
    %3217 = vmatprep.subr.bf16.mxu0 0
    %3218 = vmatpush1.bf16.msra.mxu0 0
    %3219 = vmatprep.subr.bf16.mxu0 0
    %3220 = vmatpush1.bf16.msra.mxu0 0
    %3221 = vmatprep.subr.bf16.mxu0 0
    %3222 = vmatpush1.bf16.msra.mxu0 0
    %3223 = vmatprep.subr.bf16.mxu0 0
    %3224 = vmatpush1.bf16.msra.mxu0 0
    %3225 = vmatprep.subr.bf16.mxu0 %v2169
    %3226 = vmatpush1.bf16.msra.mxu0 %v2168
    %3227 = vmatprep.subr.bf16.mxu0 0
    %3228 = vmatpush2.bf16.msra.mxu0 0
    %3229 = vmatprep.subr.bf16.mxu0 0
    %3230 = vmatpush2.bf16.msra.mxu0 0
    %3231 = vmatprep.subr.bf16.mxu0 0
    %3232 = vmatpush2.bf16.msra.mxu0 0
    %3233 = vmatprep.subr.bf16.mxu0 0
    %3234 = vmatpush2.bf16.msra.mxu0 0
    %3235 = vmatprep.subr.bf16.mxu0 0
    %3236 = vmatpush2.bf16.msra.mxu0 0
    %3237 = vmatprep.subr.bf16.mxu0 0
    %3238 = vmatpush2.bf16.msra.mxu0 0
    %3239 = vmatprep.subr.bf16.mxu0 0
    %3240 = vmatpush2.bf16.msra.mxu0 0
    %3241 = vmatprep.subr.bf16.mxu0 0
    %3242 = vmatpush2.bf16.msra.mxu0 0
    %3243 = vmatprep.mubr.bf16.mxu0 0
    %3244 = vmatmul.mubr.bf16.gmra.mxu0 %v2564
    %v3245 = vpop.f32.mrf.mxu0
    %v3246 = vadd.f32 %v3203, %v3245
    %v3247 = vpop.f32.mrf.mxu0
    %v3248 = vadd.f32 %v3205, %v3247
    %v3249 = vpop.f32.mrf.mxu0
    %v3250 = vadd.f32 %v3207, %v3249
    %v3251 = vpop.f32.mrf.mxu0
    %v3252 = vadd.f32 %v3209, %v3251
    %3253 = vdwg.mxu0
    %v3254 = vmul.f32 %v2730, 0.2
    %v3255 = vmul.f32 %v2732, 0.2
    %v3256 = vmul.f32 %v2902, 0.2
    %v3257 = vmul.f32 %v2904, 0.2
    %v3258 = vmul.f32 %v3074, 0.2
    %v3259 = vmul.f32 %v3076, 0.2
    %v3260 = vmul.f32 %v3246, 0.2
    %v3261 = vmul.f32 %v3248, 0.2
    %v3262 = vmul.f32 %v2734, 0.2
    %v3263 = vmul.f32 %v2736, 0.2
    %v3264 = vmul.f32 %v2906, 0.2
    %v3265 = vmul.f32 %v2908, 0.2
    %v3266 = vmul.f32 %v3078, 0.2
    %v3267 = vmul.f32 %v3080, 0.2
    %v3268 = vmul.f32 %v3250, 0.2
    %v3269 = vmul.f32 %v3252, 0.2
    %v3270 = vmax.f32 %v2730, %v3254
    %v3271 = vmax.f32 %v2732, %v3255
    %v3272 = vmax.f32 %v2902, %v3256
    %v3273 = vmax.f32 %v2904, %v3257
    %v3274 = vmax.f32 %v3074, %v3258
    %v3275 = vmax.f32 %v3076, %v3259
    %v3276 = vmax.f32 %v3246, %v3260
    %v3277 = vmax.f32 %v3248, %v3261
    %v3278 = vmax.f32 %v2734, %v3262
    %v3279 = vmax.f32 %v2736, %v3263
    %v3280 = vmax.f32 %v2906, %v3264
    %v3281 = vmax.f32 %v2908, %v3265
    %v3282 = vmax.f32 %v3078, %v3266
    %v3283 = vmax.f32 %v3080, %v3267
    %v3284 = vmax.f32 %v3250, %v3268
    %v3285 = vmax.f32 %v3252, %v3269
    %v3286 = vpack.c.bf16 %v3278, %v3270
    %v3287 = vpack.c.bf16 %v3279, %v3271
    %v3288 = vpack.c.bf16 %v3280, %v3272
    %v3289 = vpack.c.bf16 %v3281, %v3273
    %v3290 = vpack.c.bf16 %v3282, %v3274
    %v3291 = vpack.c.bf16 %v3283, %v3275
    %v3292 = vpack.c.bf16 %v3284, %v3276
    %v3293 = vpack.c.bf16 %v3285, %v3277
    %v3294 = vld [vmem:[#allocation7] sm:$0xff]
    %v3295 = vld [vmem:[#allocation7 + $0x8] sm:$0xff]
    %v3296 = vld [vmem:[#allocation7 + $0x10] sm:$0xff]
    %v3297 = vld [vmem:[#allocation7 + $0x18] sm:$0xff]
    %v3298 = vld [vmem:[#allocation7 + $0x20] sm:$0xff]
    %v3299 = vld [vmem:[#allocation7 + $0x28] sm:$0xff]
    %v3300 = vld [vmem:[#allocation7 + $0x30] sm:$0xff]
    %v3301 = vld [vmem:[#allocation7 + $0x38] sm:$0xff]
    %v3302 = vld [vmem:[#allocation7 + $0x40] sm:$0xff]
    %v3303 = vld [vmem:[#allocation7 + $0x48] sm:$0xff]
    %v3304 = vld [vmem:[#allocation7 + $0x50] sm:$0xff]
    %v3305 = vld [vmem:[#allocation7 + $0x58] sm:$0xff]
    %v3306 = vld [vmem:[#allocation7 + $0x60] sm:$0xff]
    %v3307 = vld [vmem:[#allocation7 + $0x68] sm:$0xff]
    %v3308 = vld [vmem:[#allocation7 + $0x70] sm:$0xff]
    %v3309 = vld [vmem:[#allocation7 + $0x78] sm:$0xff]
    %v3310 = vld [vmem:[#allocation7 + $0x80] sm:$0xff]
    %v3311 = vld [vmem:[#allocation7 + $0x88] sm:$0xff]
    %v3312 = vld [vmem:[#allocation7 + $0x90] sm:$0xff]
    %v3313 = vld [vmem:[#allocation7 + $0x98] sm:$0xff]
    %v3314 = vld [vmem:[#allocation7 + $0xa0] sm:$0xff]
    %v3315 = vld [vmem:[#allocation7 + $0xa8] sm:$0xff]
    %v3316 = vld [vmem:[#allocation7 + $0xb0] sm:$0xff]
    %v3317 = vld [vmem:[#allocation7 + $0xb8] sm:$0xff]
    %v3318 = vld [vmem:[#allocation7 + $0xc0] sm:$0xff]
    %v3319 = vld [vmem:[#allocation7 + $0xc8] sm:$0xff]
    %v3320 = vld [vmem:[#allocation7 + $0xd0] sm:$0xff]
    %v3321 = vld [vmem:[#allocation7 + $0xd8] sm:$0xff]
    %v3322 = vld [vmem:[#allocation7 + $0xe0] sm:$0xff]
    %v3323 = vld [vmem:[#allocation7 + $0xe8] sm:$0xff]
    %v3324 = vld [vmem:[#allocation7 + $0xf0] sm:$0xff]
    %v3325 = vld [vmem:[#allocation7 + $0xf8] sm:$0xff]
    %v3326 = vld [vmem:[#allocation7 + $0x100] sm:$0xff]
    %v3327 = vld [vmem:[#allocation7 + $0x108] sm:$0xff]
    %v3328 = vld [vmem:[#allocation7 + $0x110] sm:$0xff]
    %v3329 = vld [vmem:[#allocation7 + $0x118] sm:$0xff]
    %v3330 = vld [vmem:[#allocation7 + $0x120] sm:$0xff]
    %v3331 = vld [vmem:[#allocation7 + $0x128] sm:$0xff]
    %v3332 = vld [vmem:[#allocation7 + $0x130] sm:$0xff]
    %v3333 = vld [vmem:[#allocation7 + $0x138] sm:$0xff]
    %v3334 = vld [vmem:[#allocation7 + $0x140] sm:$0xff]
    %v3335 = vld [vmem:[#allocation7 + $0x148] sm:$0xff]
    %v3336 = vld [vmem:[#allocation7 + $0x150] sm:$0xff]
    %v3337 = vld [vmem:[#allocation7 + $0x158] sm:$0xff]
    %v3338 = vld [vmem:[#allocation7 + $0x160] sm:$0xff]
    %v3339 = vld [vmem:[#allocation7 + $0x168] sm:$0xff]
    %v3340 = vld [vmem:[#allocation7 + $0x170] sm:$0xff]
    %v3341 = vld [vmem:[#allocation7 + $0x178] sm:$0xff]
    %v3342 = vld [vmem:[#allocation7 + $0x180] sm:$0xff]
    %v3343 = vld [vmem:[#allocation7 + $0x188] sm:$0xff]
    %v3344 = vld [vmem:[#allocation7 + $0x190] sm:$0xff]
    %v3345 = vld [vmem:[#allocation7 + $0x198] sm:$0xff]
    %v3346 = vld [vmem:[#allocation7 + $0x1a0] sm:$0xff]
    %v3347 = vld [vmem:[#allocation7 + $0x1a8] sm:$0xff]
    %v3348 = vld [vmem:[#allocation7 + $0x1b0] sm:$0xff]
    %v3349 = vld [vmem:[#allocation7 + $0x1b8] sm:$0xff]
    %v3350 = vld [vmem:[#allocation7 + $0x1c0] sm:$0xff]
    %v3351 = vld [vmem:[#allocation7 + $0x1c8] sm:$0xff]
    %v3352 = vld [vmem:[#allocation7 + $0x1d0] sm:$0xff]
    %v3353 = vld [vmem:[#allocation7 + $0x1d8] sm:$0xff]
    %v3354 = vld [vmem:[#allocation7 + $0x1e0] sm:$0xff]
    %v3355 = vld [vmem:[#allocation7 + $0x1e8] sm:$0xff]
    %v3356 = vld [vmem:[#allocation7 + $0x1f0] sm:$0xff]
    %v3357 = vld [vmem:[#allocation7 + $0x1f8] sm:$0xff]
    %v3358 = vld [vmem:[#allocation7 + $0x200] sm:$0xff]
    %v3359 = vld [vmem:[#allocation7 + $0x208] sm:$0xff]
    %v3360 = vld [vmem:[#allocation7 + $0x210] sm:$0xff]
    %v3361 = vld [vmem:[#allocation7 + $0x218] sm:$0xff]
    %v3362 = vld [vmem:[#allocation7 + $0x220] sm:$0xff]
    %v3363 = vld [vmem:[#allocation7 + $0x228] sm:$0xff]
    %v3364 = vld [vmem:[#allocation7 + $0x230] sm:$0xff]
    %v3365 = vld [vmem:[#allocation7 + $0x238] sm:$0xff]
    %v3366 = vld [vmem:[#allocation7 + $0x240] sm:$0xff]
    %v3367 = vld [vmem:[#allocation7 + $0x248] sm:$0xff]
    %v3368 = vld [vmem:[#allocation7 + $0x250] sm:$0xff]
    %v3369 = vld [vmem:[#allocation7 + $0x258] sm:$0xff]
    %v3370 = vld [vmem:[#allocation7 + $0x260] sm:$0xff]
    %v3371 = vld [vmem:[#allocation7 + $0x268] sm:$0xff]
    %v3372 = vld [vmem:[#allocation7 + $0x270] sm:$0xff]
    %v3373 = vld [vmem:[#allocation7 + $0x278] sm:$0xff]
    %v3374 = vld [vmem:[#allocation7 + $0x280] sm:$0xff]
    %v3375 = vld [vmem:[#allocation7 + $0x288] sm:$0xff]
    %v3376 = vld [vmem:[#allocation7 + $0x290] sm:$0xff]
    %v3377 = vld [vmem:[#allocation7 + $0x298] sm:$0xff]
    %v3378 = vld [vmem:[#allocation7 + $0x2a0] sm:$0xff]
    %v3379 = vld [vmem:[#allocation7 + $0x2a8] sm:$0xff]
    %v3380 = vld [vmem:[#allocation7 + $0x2b0] sm:$0xff]
    %v3381 = vld [vmem:[#allocation7 + $0x2b8] sm:$0xff]
    %v3382 = vld [vmem:[#allocation7 + $0x2c0] sm:$0xff]
    %v3383 = vld [vmem:[#allocation7 + $0x2c8] sm:$0xff]
    %v3384 = vld [vmem:[#allocation7 + $0x2d0] sm:$0xff]
    %v3385 = vld [vmem:[#allocation7 + $0x2d8] sm:$0xff]
    %v3386 = vld [vmem:[#allocation7 + $0x2e0] sm:$0xff]
    %v3387 = vld [vmem:[#allocation7 + $0x2e8] sm:$0xff]
    %v3388 = vld [vmem:[#allocation7 + $0x2f0] sm:$0xff]
    %v3389 = vld [vmem:[#allocation7 + $0x2f8] sm:$0xff]
    %v3390 = vld [vmem:[#allocation7 + $0x300] sm:$0xff]
    %v3391 = vld [vmem:[#allocation7 + $0x308] sm:$0xff]
    %v3392 = vld [vmem:[#allocation7 + $0x310] sm:$0xff]
    %v3393 = vld [vmem:[#allocation7 + $0x318] sm:$0xff]
    %v3394 = vld [vmem:[#allocation7 + $0x320] sm:$0xff]
    %v3395 = vld [vmem:[#allocation7 + $0x328] sm:$0xff]
    %v3396 = vld [vmem:[#allocation7 + $0x330] sm:$0xff]
    %v3397 = vld [vmem:[#allocation7 + $0x338] sm:$0xff]
    %v3398 = vld [vmem:[#allocation7 + $0x340] sm:$0xff]
    %v3399 = vld [vmem:[#allocation7 + $0x348] sm:$0xff]
    %v3400 = vld [vmem:[#allocation7 + $0x350] sm:$0xff]
    %v3401 = vld [vmem:[#allocation7 + $0x358] sm:$0xff]
    %v3402 = vld [vmem:[#allocation7 + $0x360] sm:$0xff]
    %v3403 = vld [vmem:[#allocation7 + $0x368] sm:$0xff]
    %v3404 = vld [vmem:[#allocation7 + $0x370] sm:$0xff]
    %v3405 = vld [vmem:[#allocation7 + $0x378] sm:$0xff]
    %v3406 = vld [vmem:[#allocation7 + $0x380] sm:$0xff]
    %v3407 = vld [vmem:[#allocation7 + $0x388] sm:$0xff]
    %v3408 = vld [vmem:[#allocation7 + $0x390] sm:$0xff]
    %v3409 = vld [vmem:[#allocation7 + $0x398] sm:$0xff]
    %v3410 = vld [vmem:[#allocation7 + $0x3a0] sm:$0xff]
    %v3411 = vld [vmem:[#allocation7 + $0x3a8] sm:$0xff]
    %v3412 = vld [vmem:[#allocation7 + $0x3b0] sm:$0xff]
    %v3413 = vld [vmem:[#allocation7 + $0x3b8] sm:$0xff]
    %v3414 = vld [vmem:[#allocation7 + $0x3c0] sm:$0xff]
    %v3415 = vld [vmem:[#allocation7 + $0x3c8] sm:$0xff]
    %v3416 = vld [vmem:[#allocation7 + $0x3d0] sm:$0xff]
    %v3417 = vld [vmem:[#allocation7 + $0x3d8] sm:$0xff]
    %v3418 = vld [vmem:[#allocation7 + $0x3e0] sm:$0xff]
    %v3419 = vld [vmem:[#allocation7 + $0x3e8] sm:$0xff]
    %v3420 = vld [vmem:[#allocation7 + $0x3f0] sm:$0xff]
    %v3421 = vld [vmem:[#allocation7 + $0x3f8] sm:$0xff]
    %v3422 = vld [vmem:[#allocation7 + $0x400] sm:$0xff]
    %v3423 = vld [vmem:[#allocation7 + $0x408] sm:$0xff]
    %v3424 = vld [vmem:[#allocation7 + $0x410] sm:$0xff]
    %v3425 = vld [vmem:[#allocation7 + $0x418] sm:$0xff]
    %v3426 = vld [vmem:[#allocation7 + $0x420] sm:$0xff]
    %v3427 = vld [vmem:[#allocation7 + $0x428] sm:$0xff]
    %v3428 = vld [vmem:[#allocation7 + $0x430] sm:$0xff]
    %v3429 = vld [vmem:[#allocation7 + $0x438] sm:$0xff]
    %v3430 = vld [vmem:[#allocation7 + $0x440] sm:$0xff]
    %v3431 = vld [vmem:[#allocation7 + $0x448] sm:$0xff]
    %v3432 = vld [vmem:[#allocation7 + $0x450] sm:$0xff]
    %v3433 = vld [vmem:[#allocation7 + $0x458] sm:$0xff]
    %v3434 = vld [vmem:[#allocation7 + $0x460] sm:$0xff]
    %v3435 = vld [vmem:[#allocation7 + $0x468] sm:$0xff]
    %v3436 = vld [vmem:[#allocation7 + $0x470] sm:$0xff]
    %v3437 = vld [vmem:[#allocation7 + $0x478] sm:$0xff]
    %v3438 = vld [vmem:[#allocation7 + $0x480] sm:$0xff]
    %v3439 = vld [vmem:[#allocation7 + $0x488] sm:$0xff]
    %v3440 = vld [vmem:[#allocation7 + $0x490] sm:$0xff]
    %v3441 = vld [vmem:[#allocation7 + $0x498] sm:$0xff]
    %v3442 = vld [vmem:[#allocation7 + $0x4a0] sm:$0xff]
    %v3443 = vld [vmem:[#allocation7 + $0x4a8] sm:$0xff]
    %v3444 = vld [vmem:[#allocation7 + $0x4b0] sm:$0xff]
    %v3445 = vld [vmem:[#allocation7 + $0x4b8] sm:$0xff]
    %v3446 = vld [vmem:[#allocation7 + $0x4c0] sm:$0xff]
    %v3447 = vld [vmem:[#allocation7 + $0x4c8] sm:$0xff]
    %v3448 = vld [vmem:[#allocation7 + $0x4d0] sm:$0xff]
    %v3449 = vld [vmem:[#allocation7 + $0x4d8] sm:$0xff]
    %v3450 = vld [vmem:[#allocation7 + $0x4e0] sm:$0xff]
    %v3451 = vld [vmem:[#allocation7 + $0x4e8] sm:$0xff]
    %v3452 = vld [vmem:[#allocation7 + $0x4f0] sm:$0xff]
    %v3453 = vld [vmem:[#allocation7 + $0x4f8] sm:$0xff]
    %v3454 = vld [vmem:[#allocation7 + $0x500] sm:$0xff]
    %v3455 = vld [vmem:[#allocation7 + $0x508] sm:$0xff]
    %v3456 = vld [vmem:[#allocation7 + $0x510] sm:$0xff]
    %v3457 = vld [vmem:[#allocation7 + $0x518] sm:$0xff]
    %v3458 = vld [vmem:[#allocation7 + $0x520] sm:$0xff]
    %v3459 = vld [vmem:[#allocation7 + $0x528] sm:$0xff]
    %v3460 = vld [vmem:[#allocation7 + $0x530] sm:$0xff]
    %v3461 = vld [vmem:[#allocation7 + $0x538] sm:$0xff]
    %v3462 = vld [vmem:[#allocation7 + $0x540] sm:$0xff]
    %v3463 = vld [vmem:[#allocation7 + $0x548] sm:$0xff]
    %v3464 = vld [vmem:[#allocation7 + $0x550] sm:$0xff]
    %v3465 = vld [vmem:[#allocation7 + $0x558] sm:$0xff]
    %v3466 = vld [vmem:[#allocation7 + $0x560] sm:$0xff]
    %v3467 = vld [vmem:[#allocation7 + $0x568] sm:$0xff]
    %v3468 = vld [vmem:[#allocation7 + $0x570] sm:$0xff]
    %v3469 = vld [vmem:[#allocation7 + $0x578] sm:$0xff]
    %v3470 = vld [vmem:[#allocation7 + $0x580] sm:$0xff]
    %v3471 = vld [vmem:[#allocation7 + $0x588] sm:$0xff]
    %v3472 = vld [vmem:[#allocation7 + $0x590] sm:$0xff]
    %v3473 = vld [vmem:[#allocation7 + $0x598] sm:$0xff]
    %v3474 = vld [vmem:[#allocation7 + $0x5a0] sm:$0xff]
    %v3475 = vld [vmem:[#allocation7 + $0x5a8] sm:$0xff]
    %v3476 = vld [vmem:[#allocation7 + $0x5b0] sm:$0xff]
    %v3477 = vld [vmem:[#allocation7 + $0x5b8] sm:$0xff]
    %v3478 = vld [vmem:[#allocation7 + $0x5c0] sm:$0xff]
    %v3479 = vld [vmem:[#allocation7 + $0x5c8] sm:$0xff]
    %v3480 = vld [vmem:[#allocation7 + $0x5d0] sm:$0xff]
    %v3481 = vld [vmem:[#allocation7 + $0x5d8] sm:$0xff]
    %v3482 = vld [vmem:[#allocation7 + $0x5e0] sm:$0xff]
    %v3483 = vld [vmem:[#allocation7 + $0x5e8] sm:$0xff]
    %v3484 = vld [vmem:[#allocation7 + $0x5f0] sm:$0xff]
    %v3485 = vld [vmem:[#allocation7 + $0x5f8] sm:$0xff]
    %v3486 = vld [vmem:[#allocation7 + $0x600] sm:$0xff]
    %v3487 = vld [vmem:[#allocation7 + $0x608] sm:$0xff]
    %v3488 = vld [vmem:[#allocation7 + $0x610] sm:$0xff]
    %v3489 = vld [vmem:[#allocation7 + $0x618] sm:$0xff]
    %v3490 = vld [vmem:[#allocation7 + $0x620] sm:$0xff]
    %v3491 = vld [vmem:[#allocation7 + $0x628] sm:$0xff]
    %v3492 = vld [vmem:[#allocation7 + $0x630] sm:$0xff]
    %v3493 = vld [vmem:[#allocation7 + $0x638] sm:$0xff]
    %v3494 = vld [vmem:[#allocation7 + $0x640] sm:$0xff]
    %v3495 = vld [vmem:[#allocation7 + $0x648] sm:$0xff]
    %v3496 = vld [vmem:[#allocation7 + $0x650] sm:$0xff]
    %v3497 = vld [vmem:[#allocation7 + $0x658] sm:$0xff]
    %v3498 = vld [vmem:[#allocation7 + $0x660] sm:$0xff]
    %v3499 = vld [vmem:[#allocation7 + $0x668] sm:$0xff]
    %v3500 = vld [vmem:[#allocation7 + $0x670] sm:$0xff]
    %v3501 = vld [vmem:[#allocation7 + $0x678] sm:$0xff]
    %v3502 = vld [vmem:[#allocation7 + $0x680] sm:$0xff]
    %v3503 = vld [vmem:[#allocation7 + $0x688] sm:$0xff]
    %v3504 = vld [vmem:[#allocation7 + $0x690] sm:$0xff]
    %v3505 = vld [vmem:[#allocation7 + $0x698] sm:$0xff]
    %v3506 = vld [vmem:[#allocation7 + $0x6a0] sm:$0xff]
    %v3507 = vld [vmem:[#allocation7 + $0x6a8] sm:$0xff]
    %v3508 = vld [vmem:[#allocation7 + $0x6b0] sm:$0xff]
    %v3509 = vld [vmem:[#allocation7 + $0x6b8] sm:$0xff]
    %v3510 = vld [vmem:[#allocation7 + $0x6c0] sm:$0xff]
    %v3511 = vld [vmem:[#allocation7 + $0x6c8] sm:$0xff]
    %v3512 = vld [vmem:[#allocation7 + $0x6d0] sm:$0xff]
    %v3513 = vld [vmem:[#allocation7 + $0x6d8] sm:$0xff]
    %v3514 = vld [vmem:[#allocation7 + $0x6e0] sm:$0xff]
    %v3515 = vld [vmem:[#allocation7 + $0x6e8] sm:$0xff]
    %v3516 = vld [vmem:[#allocation7 + $0x6f0] sm:$0xff]
    %v3517 = vld [vmem:[#allocation7 + $0x6f8] sm:$0xff]
    %v3518 = vld [vmem:[#allocation7 + $0x700] sm:$0xff]
    %v3519 = vld [vmem:[#allocation7 + $0x708] sm:$0xff]
    %v3520 = vld [vmem:[#allocation7 + $0x710] sm:$0xff]
    %v3521 = vld [vmem:[#allocation7 + $0x718] sm:$0xff]
    %v3522 = vld [vmem:[#allocation7 + $0x720] sm:$0xff]
    %v3523 = vld [vmem:[#allocation7 + $0x728] sm:$0xff]
    %v3524 = vld [vmem:[#allocation7 + $0x730] sm:$0xff]
    %v3525 = vld [vmem:[#allocation7 + $0x738] sm:$0xff]
    %v3526 = vld [vmem:[#allocation7 + $0x740] sm:$0xff]
    %v3527 = vld [vmem:[#allocation7 + $0x748] sm:$0xff]
    %v3528 = vld [vmem:[#allocation7 + $0x750] sm:$0xff]
    %v3529 = vld [vmem:[#allocation7 + $0x758] sm:$0xff]
    %v3530 = vld [vmem:[#allocation7 + $0x760] sm:$0xff]
    %v3531 = vld [vmem:[#allocation7 + $0x768] sm:$0xff]
    %v3532 = vld [vmem:[#allocation7 + $0x770] sm:$0xff]
    %v3533 = vld [vmem:[#allocation7 + $0x778] sm:$0xff]
    %v3534 = vld [vmem:[#allocation7 + $0x780] sm:$0xff]
    %v3535 = vld [vmem:[#allocation7 + $0x788] sm:$0xff]
    %v3536 = vld [vmem:[#allocation7 + $0x790] sm:$0xff]
    %v3537 = vld [vmem:[#allocation7 + $0x798] sm:$0xff]
    %v3538 = vld [vmem:[#allocation7 + $0x7a0] sm:$0xff]
    %v3539 = vld [vmem:[#allocation7 + $0x7a8] sm:$0xff]
    %v3540 = vld [vmem:[#allocation7 + $0x7b0] sm:$0xff]
    %v3541 = vld [vmem:[#allocation7 + $0x7b8] sm:$0xff]
    %v3542 = vld [vmem:[#allocation7 + $0x7c0] sm:$0xff]
    %v3543 = vld [vmem:[#allocation7 + $0x7c8] sm:$0xff]
    %v3544 = vld [vmem:[#allocation7 + $0x7d0] sm:$0xff]
    %v3545 = vld [vmem:[#allocation7 + $0x7d8] sm:$0xff]
    %v3546 = vld [vmem:[#allocation7 + $0x7e0] sm:$0xff]
    %v3547 = vld [vmem:[#allocation7 + $0x7e8] sm:$0xff]
    %v3548 = vld [vmem:[#allocation7 + $0x7f0] sm:$0xff]
    %v3549 = vld [vmem:[#allocation7 + $0x7f8] sm:$0xff]
    %v3550 = vld [vmem:[#allocation9] sm:$0xf]
    %v3552 = vlaneseq
    %v3553 = vshrl.u32 %v3552, 7
    %v3554 = vsub.s32 0, %v3553
    %v3555 = vrot.slane %v3550, %v3554
    %v3556 = vlaneseq
    %v3557 = vshrl.u32 %v3556, 7
    %v3558 = vsub.s32 1, %v3557
    %v3559 = vrot.slane %v3550, %v3558
    %v3560 = vlaneseq
    %v3561 = vshrl.u32 %v3560, 7
    %v3562 = vsub.s32 2, %v3561
    %v3563 = vrot.slane %v3550, %v3562
    %v3564 = vlaneseq
    %v3565 = vshrl.u32 %v3564, 7
    %v3566 = vsub.s32 3, %v3565
    %v3567 = vrot.slane %v3550, %v3566
    %v3828 = vunpack.c.l.b16 %v3294
    %v3829 = vunpack.c.h.b16 %v3294
    %v3830 = vunpack.c.l.b16 %v3295
    %v3831 = vunpack.c.h.b16 %v3295
    %v3832 = vunpack.c.l.b16 %v3296
    %v3833 = vunpack.c.h.b16 %v3296
    %v3834 = vunpack.c.l.b16 %v3297
    %v3835 = vunpack.c.h.b16 %v3297
    %v3836 = vunpack.c.l.b16 %v3298
    %v3837 = vunpack.c.h.b16 %v3298
    %v3838 = vunpack.c.l.b16 %v3299
    %v3839 = vunpack.c.h.b16 %v3299
    %v3840 = vunpack.c.l.b16 %v3300
    %v3841 = vunpack.c.h.b16 %v3300
    %v3842 = vunpack.c.l.b16 %v3301
    %v3843 = vunpack.c.h.b16 %v3301
    %v3844 = vunpack.c.l.b16 %v3302
    %v3845 = vunpack.c.h.b16 %v3302
    %v3846 = vunpack.c.l.b16 %v3303
    %v3847 = vunpack.c.h.b16 %v3303
    %v3848 = vunpack.c.l.b16 %v3304
    %v3849 = vunpack.c.h.b16 %v3304
    %v3850 = vunpack.c.l.b16 %v3305
    %v3851 = vunpack.c.h.b16 %v3305
    %v3852 = vunpack.c.l.b16 %v3306
    %v3853 = vunpack.c.h.b16 %v3306
    %v3854 = vunpack.c.l.b16 %v3307
    %v3855 = vunpack.c.h.b16 %v3307
    %v3856 = vunpack.c.l.b16 %v3308
    %v3857 = vunpack.c.h.b16 %v3308
    %v3858 = vunpack.c.l.b16 %v3309
    %v3859 = vunpack.c.h.b16 %v3309
    %v3860 = vunpack.c.l.b16 %v3310
    %v3861 = vunpack.c.h.b16 %v3310
    %v3862 = vunpack.c.l.b16 %v3311
    %v3863 = vunpack.c.h.b16 %v3311
    %v3864 = vunpack.c.l.b16 %v3312
    %v3865 = vunpack.c.h.b16 %v3312
    %v3866 = vunpack.c.l.b16 %v3313
    %v3867 = vunpack.c.h.b16 %v3313
    %v3868 = vunpack.c.l.b16 %v3314
    %v3869 = vunpack.c.h.b16 %v3314
    %v3870 = vunpack.c.l.b16 %v3315
    %v3871 = vunpack.c.h.b16 %v3315
    %v3872 = vunpack.c.l.b16 %v3316
    %v3873 = vunpack.c.h.b16 %v3316
    %v3874 = vunpack.c.l.b16 %v3317
    %v3875 = vunpack.c.h.b16 %v3317
    %v3876 = vunpack.c.l.b16 %v3318
    %v3877 = vunpack.c.h.b16 %v3318
    %v3878 = vunpack.c.l.b16 %v3319
    %v3879 = vunpack.c.h.b16 %v3319
    %v3880 = vunpack.c.l.b16 %v3320
    %v3881 = vunpack.c.h.b16 %v3320
    %v3882 = vunpack.c.l.b16 %v3321
    %v3883 = vunpack.c.h.b16 %v3321
    %v3884 = vunpack.c.l.b16 %v3322
    %v3885 = vunpack.c.h.b16 %v3322
    %v3886 = vunpack.c.l.b16 %v3323
    %v3887 = vunpack.c.h.b16 %v3323
    %v3888 = vunpack.c.l.b16 %v3324
    %v3889 = vunpack.c.h.b16 %v3324
    %v3890 = vunpack.c.l.b16 %v3325
    %v3891 = vunpack.c.h.b16 %v3325
    %v3892 = vunpack.c.l.b16 %v3326
    %v3893 = vunpack.c.h.b16 %v3326
    %v3894 = vunpack.c.l.b16 %v3327
    %v3895 = vunpack.c.h.b16 %v3327
    %v3896 = vunpack.c.l.b16 %v3328
    %v3897 = vunpack.c.h.b16 %v3328
    %v3898 = vunpack.c.l.b16 %v3329
    %v3899 = vunpack.c.h.b16 %v3329
    %v3900 = vunpack.c.l.b16 %v3330
    %v3901 = vunpack.c.h.b16 %v3330
    %v3902 = vunpack.c.l.b16 %v3331
    %v3903 = vunpack.c.h.b16 %v3331
    %v3904 = vunpack.c.l.b16 %v3332
    %v3905 = vunpack.c.h.b16 %v3332
    %v3906 = vunpack.c.l.b16 %v3333
    %v3907 = vunpack.c.h.b16 %v3333
    %v3908 = vunpack.c.l.b16 %v3334
    %v3909 = vunpack.c.h.b16 %v3334
    %v3910 = vunpack.c.l.b16 %v3335
    %v3911 = vunpack.c.h.b16 %v3335
    %v3912 = vunpack.c.l.b16 %v3336
    %v3913 = vunpack.c.h.b16 %v3336
    %v3914 = vunpack.c.l.b16 %v3337
    %v3915 = vunpack.c.h.b16 %v3337
    %v3916 = vunpack.c.l.b16 %v3338
    %v3917 = vunpack.c.h.b16 %v3338
    %v3918 = vunpack.c.l.b16 %v3339
    %v3919 = vunpack.c.h.b16 %v3339
    %v3920 = vunpack.c.l.b16 %v3340
    %v3921 = vunpack.c.h.b16 %v3340
    %v3922 = vunpack.c.l.b16 %v3341
    %v3923 = vunpack.c.h.b16 %v3341
    %v3924 = vunpack.c.l.b16 %v3342
    %v3925 = vunpack.c.h.b16 %v3342
    %v3926 = vunpack.c.l.b16 %v3343
    %v3927 = vunpack.c.h.b16 %v3343
    %v3928 = vunpack.c.l.b16 %v3344
    %v3929 = vunpack.c.h.b16 %v3344
    %v3930 = vunpack.c.l.b16 %v3345
    %v3931 = vunpack.c.h.b16 %v3345
    %v3932 = vunpack.c.l.b16 %v3346
    %v3933 = vunpack.c.h.b16 %v3346
    %v3934 = vunpack.c.l.b16 %v3347
    %v3935 = vunpack.c.h.b16 %v3347
    %v3936 = vunpack.c.l.b16 %v3348
    %v3937 = vunpack.c.h.b16 %v3348
    %v3938 = vunpack.c.l.b16 %v3349
    %v3939 = vunpack.c.h.b16 %v3349
    %v3940 = vunpack.c.l.b16 %v3350
    %v3941 = vunpack.c.h.b16 %v3350
    %v3942 = vunpack.c.l.b16 %v3351
    %v3943 = vunpack.c.h.b16 %v3351
    %v3944 = vunpack.c.l.b16 %v3352
    %v3945 = vunpack.c.h.b16 %v3352
    %v3946 = vunpack.c.l.b16 %v3353
    %v3947 = vunpack.c.h.b16 %v3353
    %v3948 = vunpack.c.l.b16 %v3354
    %v3949 = vunpack.c.h.b16 %v3354
    %v3950 = vunpack.c.l.b16 %v3355
    %v3951 = vunpack.c.h.b16 %v3355
    %v3952 = vunpack.c.l.b16 %v3356
    %v3953 = vunpack.c.h.b16 %v3356
    %v3954 = vunpack.c.l.b16 %v3357
    %v3955 = vunpack.c.h.b16 %v3357
    %v3956 = vunpack.c.l.b16 %v3358
    %v3957 = vunpack.c.h.b16 %v3358
    %v3958 = vunpack.c.l.b16 %v3359
    %v3959 = vunpack.c.h.b16 %v3359
    %v3960 = vunpack.c.l.b16 %v3360
    %v3961 = vunpack.c.h.b16 %v3360
    %v3962 = vunpack.c.l.b16 %v3361
    %v3963 = vunpack.c.h.b16 %v3361
    %v3964 = vunpack.c.l.b16 %v3362
    %v3965 = vunpack.c.h.b16 %v3362
    %v3966 = vunpack.c.l.b16 %v3363
    %v3967 = vunpack.c.h.b16 %v3363
    %v3968 = vunpack.c.l.b16 %v3364
    %v3969 = vunpack.c.h.b16 %v3364
    %v3970 = vunpack.c.l.b16 %v3365
    %v3971 = vunpack.c.h.b16 %v3365
    %v3972 = vunpack.c.l.b16 %v3366
    %v3973 = vunpack.c.h.b16 %v3366
    %v3974 = vunpack.c.l.b16 %v3367
    %v3975 = vunpack.c.h.b16 %v3367
    %v3976 = vunpack.c.l.b16 %v3368
    %v3977 = vunpack.c.h.b16 %v3368
    %v3978 = vunpack.c.l.b16 %v3369
    %v3979 = vunpack.c.h.b16 %v3369
    %v3980 = vunpack.c.l.b16 %v3370
    %v3981 = vunpack.c.h.b16 %v3370
    %v3982 = vunpack.c.l.b16 %v3371
    %v3983 = vunpack.c.h.b16 %v3371
    %v3984 = vunpack.c.l.b16 %v3372
    %v3985 = vunpack.c.h.b16 %v3372
    %v3986 = vunpack.c.l.b16 %v3373
    %v3987 = vunpack.c.h.b16 %v3373
    %v3988 = vunpack.c.l.b16 %v3374
    %v3989 = vunpack.c.h.b16 %v3374
    %v3990 = vunpack.c.l.b16 %v3375
    %v3991 = vunpack.c.h.b16 %v3375
    %v3992 = vunpack.c.l.b16 %v3376
    %v3993 = vunpack.c.h.b16 %v3376
    %v3994 = vunpack.c.l.b16 %v3377
    %v3995 = vunpack.c.h.b16 %v3377
    %v3996 = vunpack.c.l.b16 %v3378
    %v3997 = vunpack.c.h.b16 %v3378
    %v3998 = vunpack.c.l.b16 %v3379
    %v3999 = vunpack.c.h.b16 %v3379
    %v4000 = vunpack.c.l.b16 %v3380
    %v4001 = vunpack.c.h.b16 %v3380
    %v4002 = vunpack.c.l.b16 %v3381
    %v4003 = vunpack.c.h.b16 %v3381
    %v4004 = vunpack.c.l.b16 %v3382
    %v4005 = vunpack.c.h.b16 %v3382
    %v4006 = vunpack.c.l.b16 %v3383
    %v4007 = vunpack.c.h.b16 %v3383
    %v4008 = vunpack.c.l.b16 %v3384
    %v4009 = vunpack.c.h.b16 %v3384
    %v4010 = vunpack.c.l.b16 %v3385
    %v4011 = vunpack.c.h.b16 %v3385
    %v4012 = vunpack.c.l.b16 %v3386
    %v4013 = vunpack.c.h.b16 %v3386
    %v4014 = vunpack.c.l.b16 %v3387
    %v4015 = vunpack.c.h.b16 %v3387
    %v4016 = vunpack.c.l.b16 %v3388
    %v4017 = vunpack.c.h.b16 %v3388
    %v4018 = vunpack.c.l.b16 %v3389
    %v4019 = vunpack.c.h.b16 %v3389
    %v4020 = vunpack.c.l.b16 %v3390
    %v4021 = vunpack.c.h.b16 %v3390
    %v4022 = vunpack.c.l.b16 %v3391
    %v4023 = vunpack.c.h.b16 %v3391
    %v4024 = vunpack.c.l.b16 %v3392
    %v4025 = vunpack.c.h.b16 %v3392
    %v4026 = vunpack.c.l.b16 %v3393
    %v4027 = vunpack.c.h.b16 %v3393
    %v4028 = vunpack.c.l.b16 %v3394
    %v4029 = vunpack.c.h.b16 %v3394
    %v4030 = vunpack.c.l.b16 %v3395
    %v4031 = vunpack.c.h.b16 %v3395
    %v4032 = vunpack.c.l.b16 %v3396
    %v4033 = vunpack.c.h.b16 %v3396
    %v4034 = vunpack.c.l.b16 %v3397
    %v4035 = vunpack.c.h.b16 %v3397
    %v4036 = vunpack.c.l.b16 %v3398
    %v4037 = vunpack.c.h.b16 %v3398
    %v4038 = vunpack.c.l.b16 %v3399
    %v4039 = vunpack.c.h.b16 %v3399
    %v4040 = vunpack.c.l.b16 %v3400
    %v4041 = vunpack.c.h.b16 %v3400
    %v4042 = vunpack.c.l.b16 %v3401
    %v4043 = vunpack.c.h.b16 %v3401
    %v4044 = vunpack.c.l.b16 %v3402
    %v4045 = vunpack.c.h.b16 %v3402
    %v4046 = vunpack.c.l.b16 %v3403
    %v4047 = vunpack.c.h.b16 %v3403
    %v4048 = vunpack.c.l.b16 %v3404
    %v4049 = vunpack.c.h.b16 %v3404
    %v4050 = vunpack.c.l.b16 %v3405
    %v4051 = vunpack.c.h.b16 %v3405
    %v4052 = vunpack.c.l.b16 %v3406
    %v4053 = vunpack.c.h.b16 %v3406
    %v4054 = vunpack.c.l.b16 %v3407
    %v4055 = vunpack.c.h.b16 %v3407
    %v4056 = vunpack.c.l.b16 %v3408
    %v4057 = vunpack.c.h.b16 %v3408
    %v4058 = vunpack.c.l.b16 %v3409
    %v4059 = vunpack.c.h.b16 %v3409
    %v4060 = vunpack.c.l.b16 %v3410
    %v4061 = vunpack.c.h.b16 %v3410
    %v4062 = vunpack.c.l.b16 %v3411
    %v4063 = vunpack.c.h.b16 %v3411
    %v4064 = vunpack.c.l.b16 %v3412
    %v4065 = vunpack.c.h.b16 %v3412
    %v4066 = vunpack.c.l.b16 %v3413
    %v4067 = vunpack.c.h.b16 %v3413
    %v4068 = vunpack.c.l.b16 %v3414
    %v4069 = vunpack.c.h.b16 %v3414
    %v4070 = vunpack.c.l.b16 %v3415
    %v4071 = vunpack.c.h.b16 %v3415
    %v4072 = vunpack.c.l.b16 %v3416
    %v4073 = vunpack.c.h.b16 %v3416
    %v4074 = vunpack.c.l.b16 %v3417
    %v4075 = vunpack.c.h.b16 %v3417
    %v4076 = vunpack.c.l.b16 %v3418
    %v4077 = vunpack.c.h.b16 %v3418
    %v4078 = vunpack.c.l.b16 %v3419
    %v4079 = vunpack.c.h.b16 %v3419
    %v4080 = vunpack.c.l.b16 %v3420
    %v4081 = vunpack.c.h.b16 %v3420
    %v4082 = vunpack.c.l.b16 %v3421
    %v4083 = vunpack.c.h.b16 %v3421
    %v4084 = vunpack.c.l.b16 %v3422
    %v4085 = vunpack.c.h.b16 %v3422
    %v4086 = vunpack.c.l.b16 %v3423
    %v4087 = vunpack.c.h.b16 %v3423
    %v4088 = vunpack.c.l.b16 %v3424
    %v4089 = vunpack.c.h.b16 %v3424
    %v4090 = vunpack.c.l.b16 %v3425
    %v4091 = vunpack.c.h.b16 %v3425
    %v4092 = vunpack.c.l.b16 %v3426
    %v4093 = vunpack.c.h.b16 %v3426
    %v4094 = vunpack.c.l.b16 %v3427
    %v4095 = vunpack.c.h.b16 %v3427
    %v4096 = vunpack.c.l.b16 %v3428
    %v4097 = vunpack.c.h.b16 %v3428
    %v4098 = vunpack.c.l.b16 %v3429
    %v4099 = vunpack.c.h.b16 %v3429
    %v4100 = vunpack.c.l.b16 %v3430
    %v4101 = vunpack.c.h.b16 %v3430
    %v4102 = vunpack.c.l.b16 %v3431
    %v4103 = vunpack.c.h.b16 %v3431
    %v4104 = vunpack.c.l.b16 %v3432
    %v4105 = vunpack.c.h.b16 %v3432
    %v4106 = vunpack.c.l.b16 %v3433
    %v4107 = vunpack.c.h.b16 %v3433
    %v4108 = vunpack.c.l.b16 %v3434
    %v4109 = vunpack.c.h.b16 %v3434
    %v4110 = vunpack.c.l.b16 %v3435
    %v4111 = vunpack.c.h.b16 %v3435
    %v4112 = vunpack.c.l.b16 %v3436
    %v4113 = vunpack.c.h.b16 %v3436
    %v4114 = vunpack.c.l.b16 %v3437
    %v4115 = vunpack.c.h.b16 %v3437
    %v4116 = vunpack.c.l.b16 %v3438
    %v4117 = vunpack.c.h.b16 %v3438
    %v4118 = vunpack.c.l.b16 %v3439
    %v4119 = vunpack.c.h.b16 %v3439
    %v4120 = vunpack.c.l.b16 %v3440
    %v4121 = vunpack.c.h.b16 %v3440
    %v4122 = vunpack.c.l.b16 %v3441
    %v4123 = vunpack.c.h.b16 %v3441
    %v4124 = vunpack.c.l.b16 %v3442
    %v4125 = vunpack.c.h.b16 %v3442
    %v4126 = vunpack.c.l.b16 %v3443
    %v4127 = vunpack.c.h.b16 %v3443
    %v4128 = vunpack.c.l.b16 %v3444
    %v4129 = vunpack.c.h.b16 %v3444
    %v4130 = vunpack.c.l.b16 %v3445
    %v4131 = vunpack.c.h.b16 %v3445
    %v4132 = vunpack.c.l.b16 %v3446
    %v4133 = vunpack.c.h.b16 %v3446
    %v4134 = vunpack.c.l.b16 %v3447
    %v4135 = vunpack.c.h.b16 %v3447
    %v4136 = vunpack.c.l.b16 %v3448
    %v4137 = vunpack.c.h.b16 %v3448
    %v4138 = vunpack.c.l.b16 %v3449
    %v4139 = vunpack.c.h.b16 %v3449
    %v4140 = vunpack.c.l.b16 %v3450
    %v4141 = vunpack.c.h.b16 %v3450
    %v4142 = vunpack.c.l.b16 %v3451
    %v4143 = vunpack.c.h.b16 %v3451
    %v4144 = vunpack.c.l.b16 %v3452
    %v4145 = vunpack.c.h.b16 %v3452
    %v4146 = vunpack.c.l.b16 %v3453
    %v4147 = vunpack.c.h.b16 %v3453
    %v4148 = vunpack.c.l.b16 %v3454
    %v4149 = vunpack.c.h.b16 %v3454
    %v4150 = vunpack.c.l.b16 %v3455
    %v4151 = vunpack.c.h.b16 %v3455
    %v4152 = vunpack.c.l.b16 %v3456
    %v4153 = vunpack.c.h.b16 %v3456
    %v4154 = vunpack.c.l.b16 %v3457
    %v4155 = vunpack.c.h.b16 %v3457
    %v4156 = vunpack.c.l.b16 %v3458
    %v4157 = vunpack.c.h.b16 %v3458
    %v4158 = vunpack.c.l.b16 %v3459
    %v4159 = vunpack.c.h.b16 %v3459
    %v4160 = vunpack.c.l.b16 %v3460
    %v4161 = vunpack.c.h.b16 %v3460
    %v4162 = vunpack.c.l.b16 %v3461
    %v4163 = vunpack.c.h.b16 %v3461
    %v4164 = vunpack.c.l.b16 %v3462
    %v4165 = vunpack.c.h.b16 %v3462
    %v4166 = vunpack.c.l.b16 %v3463
    %v4167 = vunpack.c.h.b16 %v3463
    %v4168 = vunpack.c.l.b16 %v3464
    %v4169 = vunpack.c.h.b16 %v3464
    %v4170 = vunpack.c.l.b16 %v3465
    %v4171 = vunpack.c.h.b16 %v3465
    %v4172 = vunpack.c.l.b16 %v3466
    %v4173 = vunpack.c.h.b16 %v3466
    %v4174 = vunpack.c.l.b16 %v3467
    %v4175 = vunpack.c.h.b16 %v3467
    %v4176 = vunpack.c.l.b16 %v3468
    %v4177 = vunpack.c.h.b16 %v3468
    %v4178 = vunpack.c.l.b16 %v3469
    %v4179 = vunpack.c.h.b16 %v3469
    %v4180 = vunpack.c.l.b16 %v3470
    %v4181 = vunpack.c.h.b16 %v3470
    %v4182 = vunpack.c.l.b16 %v3471
    %v4183 = vunpack.c.h.b16 %v3471
    %v4184 = vunpack.c.l.b16 %v3472
    %v4185 = vunpack.c.h.b16 %v3472
    %v4186 = vunpack.c.l.b16 %v3473
    %v4187 = vunpack.c.h.b16 %v3473
    %v4188 = vunpack.c.l.b16 %v3474
    %v4189 = vunpack.c.h.b16 %v3474
    %v4190 = vunpack.c.l.b16 %v3475
    %v4191 = vunpack.c.h.b16 %v3475
    %v4192 = vunpack.c.l.b16 %v3476
    %v4193 = vunpack.c.h.b16 %v3476
    %v4194 = vunpack.c.l.b16 %v3477
    %v4195 = vunpack.c.h.b16 %v3477
    %v4196 = vunpack.c.l.b16 %v3478
    %v4197 = vunpack.c.h.b16 %v3478
    %v4198 = vunpack.c.l.b16 %v3479
    %v4199 = vunpack.c.h.b16 %v3479
    %v4200 = vunpack.c.l.b16 %v3480
    %v4201 = vunpack.c.h.b16 %v3480
    %v4202 = vunpack.c.l.b16 %v3481
    %v4203 = vunpack.c.h.b16 %v3481
    %v4204 = vunpack.c.l.b16 %v3482
    %v4205 = vunpack.c.h.b16 %v3482
    %v4206 = vunpack.c.l.b16 %v3483
    %v4207 = vunpack.c.h.b16 %v3483
    %v4208 = vunpack.c.l.b16 %v3484
    %v4209 = vunpack.c.h.b16 %v3484
    %v4210 = vunpack.c.l.b16 %v3485
    %v4211 = vunpack.c.h.b16 %v3485
    %v4212 = vunpack.c.l.b16 %v3486
    %v4213 = vunpack.c.h.b16 %v3486
    %v4214 = vunpack.c.l.b16 %v3487
    %v4215 = vunpack.c.h.b16 %v3487
    %v4216 = vunpack.c.l.b16 %v3488
    %v4217 = vunpack.c.h.b16 %v3488
    %v4218 = vunpack.c.l.b16 %v3489
    %v4219 = vunpack.c.h.b16 %v3489
    %v4220 = vunpack.c.l.b16 %v3490
    %v4221 = vunpack.c.h.b16 %v3490
    %v4222 = vunpack.c.l.b16 %v3491
    %v4223 = vunpack.c.h.b16 %v3491
    %v4224 = vunpack.c.l.b16 %v3492
    %v4225 = vunpack.c.h.b16 %v3492
    %v4226 = vunpack.c.l.b16 %v3493
    %v4227 = vunpack.c.h.b16 %v3493
    %v4228 = vunpack.c.l.b16 %v3494
    %v4229 = vunpack.c.h.b16 %v3494
    %v4230 = vunpack.c.l.b16 %v3495
    %v4231 = vunpack.c.h.b16 %v3495
    %v4232 = vunpack.c.l.b16 %v3496
    %v4233 = vunpack.c.h.b16 %v3496
    %v4234 = vunpack.c.l.b16 %v3497
    %v4235 = vunpack.c.h.b16 %v3497
    %v4236 = vunpack.c.l.b16 %v3498
    %v4237 = vunpack.c.h.b16 %v3498
    %v4238 = vunpack.c.l.b16 %v3499
    %v4239 = vunpack.c.h.b16 %v3499
    %v4240 = vunpack.c.l.b16 %v3500
    %v4241 = vunpack.c.h.b16 %v3500
    %v4242 = vunpack.c.l.b16 %v3501
    %v4243 = vunpack.c.h.b16 %v3501
    %v4244 = vunpack.c.l.b16 %v3502
    %v4245 = vunpack.c.h.b16 %v3502
    %v4246 = vunpack.c.l.b16 %v3503
    %v4247 = vunpack.c.h.b16 %v3503
    %v4248 = vunpack.c.l.b16 %v3504
    %v4249 = vunpack.c.h.b16 %v3504
    %v4250 = vunpack.c.l.b16 %v3505
    %v4251 = vunpack.c.h.b16 %v3505
    %v4252 = vunpack.c.l.b16 %v3506
    %v4253 = vunpack.c.h.b16 %v3506
    %v4254 = vunpack.c.l.b16 %v3507
    %v4255 = vunpack.c.h.b16 %v3507
    %v4256 = vunpack.c.l.b16 %v3508
    %v4257 = vunpack.c.h.b16 %v3508
    %v4258 = vunpack.c.l.b16 %v3509
    %v4259 = vunpack.c.h.b16 %v3509
    %v4260 = vunpack.c.l.b16 %v3510
    %v4261 = vunpack.c.h.b16 %v3510
    %v4262 = vunpack.c.l.b16 %v3511
    %v4263 = vunpack.c.h.b16 %v3511
    %v4264 = vunpack.c.l.b16 %v3512
    %v4265 = vunpack.c.h.b16 %v3512
    %v4266 = vunpack.c.l.b16 %v3513
    %v4267 = vunpack.c.h.b16 %v3513
    %v4268 = vunpack.c.l.b16 %v3514
    %v4269 = vunpack.c.h.b16 %v3514
    %v4270 = vunpack.c.l.b16 %v3515
    %v4271 = vunpack.c.h.b16 %v3515
    %v4272 = vunpack.c.l.b16 %v3516
    %v4273 = vunpack.c.h.b16 %v3516
    %v4274 = vunpack.c.l.b16 %v3517
    %v4275 = vunpack.c.h.b16 %v3517
    %v4276 = vunpack.c.l.b16 %v3518
    %v4277 = vunpack.c.h.b16 %v3518
    %v4278 = vunpack.c.l.b16 %v3519
    %v4279 = vunpack.c.h.b16 %v3519
    %v4280 = vunpack.c.l.b16 %v3520
    %v4281 = vunpack.c.h.b16 %v3520
    %v4282 = vunpack.c.l.b16 %v3521
    %v4283 = vunpack.c.h.b16 %v3521
    %v4284 = vunpack.c.l.b16 %v3522
    %v4285 = vunpack.c.h.b16 %v3522
    %v4286 = vunpack.c.l.b16 %v3523
    %v4287 = vunpack.c.h.b16 %v3523
    %v4288 = vunpack.c.l.b16 %v3524
    %v4289 = vunpack.c.h.b16 %v3524
    %v4290 = vunpack.c.l.b16 %v3525
    %v4291 = vunpack.c.h.b16 %v3525
    %v4292 = vunpack.c.l.b16 %v3526
    %v4293 = vunpack.c.h.b16 %v3526
    %v4294 = vunpack.c.l.b16 %v3527
    %v4295 = vunpack.c.h.b16 %v3527
    %v4296 = vunpack.c.l.b16 %v3528
    %v4297 = vunpack.c.h.b16 %v3528
    %v4298 = vunpack.c.l.b16 %v3529
    %v4299 = vunpack.c.h.b16 %v3529
    %v4300 = vunpack.c.l.b16 %v3530
    %v4301 = vunpack.c.h.b16 %v3530
    %v4302 = vunpack.c.l.b16 %v3531
    %v4303 = vunpack.c.h.b16 %v3531
    %v4304 = vunpack.c.l.b16 %v3532
    %v4305 = vunpack.c.h.b16 %v3532
    %v4306 = vunpack.c.l.b16 %v3533
    %v4307 = vunpack.c.h.b16 %v3533
    %v4308 = vunpack.c.l.b16 %v3534
    %v4309 = vunpack.c.h.b16 %v3534
    %v4310 = vunpack.c.l.b16 %v3535
    %v4311 = vunpack.c.h.b16 %v3535
    %v4312 = vunpack.c.l.b16 %v3536
    %v4313 = vunpack.c.h.b16 %v3536
    %v4314 = vunpack.c.l.b16 %v3537
    %v4315 = vunpack.c.h.b16 %v3537
    %v4316 = vunpack.c.l.b16 %v3538
    %v4317 = vunpack.c.h.b16 %v3538
    %v4318 = vunpack.c.l.b16 %v3539
    %v4319 = vunpack.c.h.b16 %v3539
    %v4320 = vunpack.c.l.b16 %v3540
    %v4321 = vunpack.c.h.b16 %v3540
    %v4322 = vunpack.c.l.b16 %v3541
    %v4323 = vunpack.c.h.b16 %v3541
    %v4324 = vunpack.c.l.b16 %v3542
    %v4325 = vunpack.c.h.b16 %v3542
    %v4326 = vunpack.c.l.b16 %v3543
    %v4327 = vunpack.c.h.b16 %v3543
    %v4328 = vunpack.c.l.b16 %v3544
    %v4329 = vunpack.c.h.b16 %v3544
    %v4330 = vunpack.c.l.b16 %v3545
    %v4331 = vunpack.c.h.b16 %v3545
    %v4332 = vunpack.c.l.b16 %v3546
    %v4333 = vunpack.c.h.b16 %v3546
    %v4334 = vunpack.c.l.b16 %v3547
    %v4335 = vunpack.c.h.b16 %v3547
    %v4336 = vunpack.c.l.b16 %v3548
    %v4337 = vunpack.c.h.b16 %v3548
    %v4338 = vunpack.c.l.b16 %v3549
    %v4339 = vunpack.c.h.b16 %v3549
    %v4340 = vpack.c.b16 %v3832, %v3828
    %v4341 = vpack.c.b16 %v3833, %v3829
    %v4342 = vpack.c.b16 %v3834, %v3830
    %v4343 = vpack.c.b16 %v3835, %v3831
    %v4344 = vpack.c.b16 %v3840, %v3836
    %v4345 = vpack.c.b16 %v3841, %v3837
    %v4346 = vpack.c.b16 %v3842, %v3838
    %v4347 = vpack.c.b16 %v3843, %v3839
    %v4348 = vpack.c.b16 %v3848, %v3844
    %v4349 = vpack.c.b16 %v3849, %v3845
    %v4350 = vpack.c.b16 %v3850, %v3846
    %v4351 = vpack.c.b16 %v3851, %v3847
    %v4352 = vpack.c.b16 %v3856, %v3852
    %v4353 = vpack.c.b16 %v3857, %v3853
    %v4354 = vpack.c.b16 %v3858, %v3854
    %v4355 = vpack.c.b16 %v3859, %v3855
    %v4356 = vpack.c.b16 %v3864, %v3860
    %v4357 = vpack.c.b16 %v3865, %v3861
    %v4358 = vpack.c.b16 %v3866, %v3862
    %v4359 = vpack.c.b16 %v3867, %v3863
    %v4360 = vpack.c.b16 %v3872, %v3868
    %v4361 = vpack.c.b16 %v3873, %v3869
    %v4362 = vpack.c.b16 %v3874, %v3870
    %v4363 = vpack.c.b16 %v3875, %v3871
    %v4364 = vpack.c.b16 %v3880, %v3876
    %v4365 = vpack.c.b16 %v3881, %v3877
    %v4366 = vpack.c.b16 %v3882, %v3878
    %v4367 = vpack.c.b16 %v3883, %v3879
    %v4368 = vpack.c.b16 %v3888, %v3884
    %v4369 = vpack.c.b16 %v3889, %v3885
    %v4370 = vpack.c.b16 %v3890, %v3886
    %v4371 = vpack.c.b16 %v3891, %v3887
    %v4372 = vpack.c.b16 %v3896, %v3892
    %v4373 = vpack.c.b16 %v3897, %v3893
    %v4374 = vpack.c.b16 %v3898, %v3894
    %v4375 = vpack.c.b16 %v3899, %v3895
    %v4376 = vpack.c.b16 %v3904, %v3900
    %v4377 = vpack.c.b16 %v3905, %v3901
    %v4378 = vpack.c.b16 %v3906, %v3902
    %v4379 = vpack.c.b16 %v3907, %v3903
    %v4380 = vpack.c.b16 %v3912, %v3908
    %v4381 = vpack.c.b16 %v3913, %v3909
    %v4382 = vpack.c.b16 %v3914, %v3910
    %v4383 = vpack.c.b16 %v3915, %v3911
    %v4384 = vpack.c.b16 %v3920, %v3916
    %v4385 = vpack.c.b16 %v3921, %v3917
    %v4386 = vpack.c.b16 %v3922, %v3918
    %v4387 = vpack.c.b16 %v3923, %v3919
    %v4388 = vpack.c.b16 %v3928, %v3924
    %v4389 = vpack.c.b16 %v3929, %v3925
    %v4390 = vpack.c.b16 %v3930, %v3926
    %v4391 = vpack.c.b16 %v3931, %v3927
    %v4392 = vpack.c.b16 %v3936, %v3932
    %v4393 = vpack.c.b16 %v3937, %v3933
    %v4394 = vpack.c.b16 %v3938, %v3934
    %v4395 = vpack.c.b16 %v3939, %v3935
    %v4396 = vpack.c.b16 %v3944, %v3940
    %v4397 = vpack.c.b16 %v3945, %v3941
    %v4398 = vpack.c.b16 %v3946, %v3942
    %v4399 = vpack.c.b16 %v3947, %v3943
    %v4400 = vpack.c.b16 %v3952, %v3948
    %v4401 = vpack.c.b16 %v3953, %v3949
    %v4402 = vpack.c.b16 %v3954, %v3950
    %v4403 = vpack.c.b16 %v3955, %v3951
    %v4404 = vpack.c.b16 %v3960, %v3956
    %v4405 = vpack.c.b16 %v3961, %v3957
    %v4406 = vpack.c.b16 %v3962, %v3958
    %v4407 = vpack.c.b16 %v3963, %v3959
    %v4408 = vpack.c.b16 %v3968, %v3964
    %v4409 = vpack.c.b16 %v3969, %v3965
    %v4410 = vpack.c.b16 %v3970, %v3966
    %v4411 = vpack.c.b16 %v3971, %v3967
    %v4412 = vpack.c.b16 %v3976, %v3972
    %v4413 = vpack.c.b16 %v3977, %v3973
    %v4414 = vpack.c.b16 %v3978, %v3974
    %v4415 = vpack.c.b16 %v3979, %v3975
    %v4416 = vpack.c.b16 %v3984, %v3980
    %v4417 = vpack.c.b16 %v3985, %v3981
    %v4418 = vpack.c.b16 %v3986, %v3982
    %v4419 = vpack.c.b16 %v3987, %v3983
    %v4420 = vpack.c.b16 %v3992, %v3988
    %v4421 = vpack.c.b16 %v3993, %v3989
    %v4422 = vpack.c.b16 %v3994, %v3990
    %v4423 = vpack.c.b16 %v3995, %v3991
    %v4424 = vpack.c.b16 %v4000, %v3996
    %v4425 = vpack.c.b16 %v4001, %v3997
    %v4426 = vpack.c.b16 %v4002, %v3998
    %v4427 = vpack.c.b16 %v4003, %v3999
    %v4428 = vpack.c.b16 %v4008, %v4004
    %v4429 = vpack.c.b16 %v4009, %v4005
    %v4430 = vpack.c.b16 %v4010, %v4006
    %v4431 = vpack.c.b16 %v4011, %v4007
    %v4432 = vpack.c.b16 %v4016, %v4012
    %v4433 = vpack.c.b16 %v4017, %v4013
    %v4434 = vpack.c.b16 %v4018, %v4014
    %v4435 = vpack.c.b16 %v4019, %v4015
    %v4436 = vpack.c.b16 %v4024, %v4020
    %v4437 = vpack.c.b16 %v4025, %v4021
    %v4438 = vpack.c.b16 %v4026, %v4022
    %v4439 = vpack.c.b16 %v4027, %v4023
    %v4440 = vpack.c.b16 %v4032, %v4028
    %v4441 = vpack.c.b16 %v4033, %v4029
    %v4442 = vpack.c.b16 %v4034, %v4030
    %v4443 = vpack.c.b16 %v4035, %v4031
    %v4444 = vpack.c.b16 %v4040, %v4036
    %v4445 = vpack.c.b16 %v4041, %v4037
    %v4446 = vpack.c.b16 %v4042, %v4038
    %v4447 = vpack.c.b16 %v4043, %v4039
    %v4448 = vpack.c.b16 %v4048, %v4044
    %v4449 = vpack.c.b16 %v4049, %v4045
    %v4450 = vpack.c.b16 %v4050, %v4046
    %v4451 = vpack.c.b16 %v4051, %v4047
    %v4452 = vpack.c.b16 %v4056, %v4052
    %v4453 = vpack.c.b16 %v4057, %v4053
    %v4454 = vpack.c.b16 %v4058, %v4054
    %v4455 = vpack.c.b16 %v4059, %v4055
    %v4456 = vpack.c.b16 %v4064, %v4060
    %v4457 = vpack.c.b16 %v4065, %v4061
    %v4458 = vpack.c.b16 %v4066, %v4062
    %v4459 = vpack.c.b16 %v4067, %v4063
    %v4460 = vpack.c.b16 %v4072, %v4068
    %v4461 = vpack.c.b16 %v4073, %v4069
    %v4462 = vpack.c.b16 %v4074, %v4070
    %v4463 = vpack.c.b16 %v4075, %v4071
    %v4464 = vpack.c.b16 %v4080, %v4076
    %v4465 = vpack.c.b16 %v4081, %v4077
    %v4466 = vpack.c.b16 %v4082, %v4078
    %v4467 = vpack.c.b16 %v4083, %v4079
    %v4468 = vpack.c.b16 %v4088, %v4084
    %v4469 = vpack.c.b16 %v4089, %v4085
    %v4470 = vpack.c.b16 %v4090, %v4086
    %v4471 = vpack.c.b16 %v4091, %v4087
    %v4472 = vpack.c.b16 %v4096, %v4092
    %v4473 = vpack.c.b16 %v4097, %v4093
    %v4474 = vpack.c.b16 %v4098, %v4094
    %v4475 = vpack.c.b16 %v4099, %v4095
    %v4476 = vpack.c.b16 %v4104, %v4100
    %v4477 = vpack.c.b16 %v4105, %v4101
    %v4478 = vpack.c.b16 %v4106, %v4102
    %v4479 = vpack.c.b16 %v4107, %v4103
    %v4480 = vpack.c.b16 %v4112, %v4108
    %v4481 = vpack.c.b16 %v4113, %v4109
    %v4482 = vpack.c.b16 %v4114, %v4110
    %v4483 = vpack.c.b16 %v4115, %v4111
    %v4484 = vpack.c.b16 %v4120, %v4116
    %v4485 = vpack.c.b16 %v4121, %v4117
    %v4486 = vpack.c.b16 %v4122, %v4118
    %v4487 = vpack.c.b16 %v4123, %v4119
    %v4488 = vpack.c.b16 %v4128, %v4124
    %v4489 = vpack.c.b16 %v4129, %v4125
    %v4490 = vpack.c.b16 %v4130, %v4126
    %v4491 = vpack.c.b16 %v4131, %v4127
    %v4492 = vpack.c.b16 %v4136, %v4132
    %v4493 = vpack.c.b16 %v4137, %v4133
    %v4494 = vpack.c.b16 %v4138, %v4134
    %v4495 = vpack.c.b16 %v4139, %v4135
    %v4496 = vpack.c.b16 %v4144, %v4140
    %v4497 = vpack.c.b16 %v4145, %v4141
    %v4498 = vpack.c.b16 %v4146, %v4142
    %v4499 = vpack.c.b16 %v4147, %v4143
    %v4500 = vpack.c.b16 %v4152, %v4148
    %v4501 = vpack.c.b16 %v4153, %v4149
    %v4502 = vpack.c.b16 %v4154, %v4150
    %v4503 = vpack.c.b16 %v4155, %v4151
    %v4504 = vpack.c.b16 %v4160, %v4156
    %v4505 = vpack.c.b16 %v4161, %v4157
    %v4506 = vpack.c.b16 %v4162, %v4158
    %v4507 = vpack.c.b16 %v4163, %v4159
    %v4508 = vpack.c.b16 %v4168, %v4164
    %v4509 = vpack.c.b16 %v4169, %v4165
    %v4510 = vpack.c.b16 %v4170, %v4166
    %v4511 = vpack.c.b16 %v4171, %v4167
    %v4512 = vpack.c.b16 %v4176, %v4172
    %v4513 = vpack.c.b16 %v4177, %v4173
    %v4514 = vpack.c.b16 %v4178, %v4174
    %v4515 = vpack.c.b16 %v4179, %v4175
    %v4516 = vpack.c.b16 %v4184, %v4180
    %v4517 = vpack.c.b16 %v4185, %v4181
    %v4518 = vpack.c.b16 %v4186, %v4182
    %v4519 = vpack.c.b16 %v4187, %v4183
    %v4520 = vpack.c.b16 %v4192, %v4188
    %v4521 = vpack.c.b16 %v4193, %v4189
    %v4522 = vpack.c.b16 %v4194, %v4190
    %v4523 = vpack.c.b16 %v4195, %v4191
    %v4524 = vpack.c.b16 %v4200, %v4196
    %v4525 = vpack.c.b16 %v4201, %v4197
    %v4526 = vpack.c.b16 %v4202, %v4198
    %v4527 = vpack.c.b16 %v4203, %v4199
    %v4528 = vpack.c.b16 %v4208, %v4204
    %v4529 = vpack.c.b16 %v4209, %v4205
    %v4530 = vpack.c.b16 %v4210, %v4206
    %v4531 = vpack.c.b16 %v4211, %v4207
    %v4532 = vpack.c.b16 %v4216, %v4212
    %v4533 = vpack.c.b16 %v4217, %v4213
    %v4534 = vpack.c.b16 %v4218, %v4214
    %v4535 = vpack.c.b16 %v4219, %v4215
    %v4536 = vpack.c.b16 %v4224, %v4220
    %v4537 = vpack.c.b16 %v4225, %v4221
    %v4538 = vpack.c.b16 %v4226, %v4222
    %v4539 = vpack.c.b16 %v4227, %v4223
    %v4540 = vpack.c.b16 %v4232, %v4228
    %v4541 = vpack.c.b16 %v4233, %v4229
    %v4542 = vpack.c.b16 %v4234, %v4230
    %v4543 = vpack.c.b16 %v4235, %v4231
    %v4544 = vpack.c.b16 %v4240, %v4236
    %v4545 = vpack.c.b16 %v4241, %v4237
    %v4546 = vpack.c.b16 %v4242, %v4238
    %v4547 = vpack.c.b16 %v4243, %v4239
    %v4548 = vpack.c.b16 %v4248, %v4244
    %v4549 = vpack.c.b16 %v4249, %v4245
    %v4550 = vpack.c.b16 %v4250, %v4246
    %v4551 = vpack.c.b16 %v4251, %v4247
    %v4552 = vpack.c.b16 %v4256, %v4252
    %v4553 = vpack.c.b16 %v4257, %v4253
    %v4554 = vpack.c.b16 %v4258, %v4254
    %v4555 = vpack.c.b16 %v4259, %v4255
    %v4556 = vpack.c.b16 %v4264, %v4260
    %v4557 = vpack.c.b16 %v4265, %v4261
    %v4558 = vpack.c.b16 %v4266, %v4262
    %v4559 = vpack.c.b16 %v4267, %v4263
    %v4560 = vpack.c.b16 %v4272, %v4268
    %v4561 = vpack.c.b16 %v4273, %v4269
    %v4562 = vpack.c.b16 %v4274, %v4270
    %v4563 = vpack.c.b16 %v4275, %v4271
    %v4564 = vpack.c.b16 %v4280, %v4276
    %v4565 = vpack.c.b16 %v4281, %v4277
    %v4566 = vpack.c.b16 %v4282, %v4278
    %v4567 = vpack.c.b16 %v4283, %v4279
    %v4568 = vpack.c.b16 %v4288, %v4284
    %v4569 = vpack.c.b16 %v4289, %v4285
    %v4570 = vpack.c.b16 %v4290, %v4286
    %v4571 = vpack.c.b16 %v4291, %v4287
    %v4572 = vpack.c.b16 %v4296, %v4292
    %v4573 = vpack.c.b16 %v4297, %v4293
    %v4574 = vpack.c.b16 %v4298, %v4294
    %v4575 = vpack.c.b16 %v4299, %v4295
    %v4576 = vpack.c.b16 %v4304, %v4300
    %v4577 = vpack.c.b16 %v4305, %v4301
    %v4578 = vpack.c.b16 %v4306, %v4302
    %v4579 = vpack.c.b16 %v4307, %v4303
    %v4580 = vpack.c.b16 %v4312, %v4308
    %v4581 = vpack.c.b16 %v4313, %v4309
    %v4582 = vpack.c.b16 %v4314, %v4310
    %v4583 = vpack.c.b16 %v4315, %v4311
    %v4584 = vpack.c.b16 %v4320, %v4316
    %v4585 = vpack.c.b16 %v4321, %v4317
    %v4586 = vpack.c.b16 %v4322, %v4318
    %v4587 = vpack.c.b16 %v4323, %v4319
    %v4588 = vpack.c.b16 %v4328, %v4324
    %v4589 = vpack.c.b16 %v4329, %v4325
    %v4590 = vpack.c.b16 %v4330, %v4326
    %v4591 = vpack.c.b16 %v4331, %v4327
    %v4592 = vpack.c.b16 %v4336, %v4332
    %v4593 = vpack.c.b16 %v4337, %v4333
    %v4594 = vpack.c.b16 %v4338, %v4334
    %v4595 = vpack.c.b16 %v4339, %v4335
    %4852 = vmatprep.subr.bf16.mxu0 %v4369
    %4853 = vmatpush1.bf16.msra.mxu0 %v4368
    %4854 = vmatprep.subr.bf16.mxu0 %v4365
    %4855 = vmatpush1.bf16.msra.mxu0 %v4364
    %4856 = vmatprep.subr.bf16.mxu0 %v4361
    %4857 = vmatpush1.bf16.msra.mxu0 %v4360
    %4858 = vmatprep.subr.bf16.mxu0 %v4357
    %4859 = vmatpush1.bf16.msra.mxu0 %v4356
    %4860 = vmatprep.subr.bf16.mxu0 %v4353
    %4861 = vmatpush1.bf16.msra.mxu0 %v4352
    %4862 = vmatprep.subr.bf16.mxu0 %v4349
    %4863 = vmatpush1.bf16.msra.mxu0 %v4348
    %4864 = vmatprep.subr.bf16.mxu0 %v4345
    %4865 = vmatpush1.bf16.msra.mxu0 %v4344
    %4866 = vmatprep.subr.bf16.mxu0 %v4341
    %4867 = vmatpush1.bf16.msra.mxu0 %v4340
    %4868 = vmatprep.subr.bf16.mxu0 %v4401
    %4869 = vmatpush2.bf16.msra.mxu0 %v4400
    %4870 = vmatprep.subr.bf16.mxu0 %v4397
    %4871 = vmatpush2.bf16.msra.mxu0 %v4396
    %4872 = vmatprep.subr.bf16.mxu0 %v4393
    %4873 = vmatpush2.bf16.msra.mxu0 %v4392
    %4874 = vmatprep.subr.bf16.mxu0 %v4389
    %4875 = vmatpush2.bf16.msra.mxu0 %v4388
    %4876 = vmatprep.subr.bf16.mxu0 %v4385
    %4877 = vmatpush2.bf16.msra.mxu0 %v4384
    %4878 = vmatprep.subr.bf16.mxu0 %v4381
    %4879 = vmatpush2.bf16.msra.mxu0 %v4380
    %4880 = vmatprep.subr.bf16.mxu0 %v4377
    %4881 = vmatpush2.bf16.msra.mxu0 %v4376
    %4882 = vmatprep.subr.bf16.mxu0 %v4373
    %4883 = vmatpush2.bf16.msra.mxu0 %v4372
    %4884 = vmatprep.mubr.bf16.mxu0 %v3287
    %4885 = vmatmul.mubr.bf16.gmra.mxu0 %v3286
    %v4886 = vpop.f32.mrf.mxu0
    %v4887 = vadd.f32 %v3555, %v4886
    %v4888 = vpop.f32.mrf.mxu0
    %v4889 = vadd.f32 %v3559, %v4888
    %v4890 = vpop.f32.mrf.mxu0
    %v4891 = vadd.f32 %v3555, %v4890
    %v4892 = vpop.f32.mrf.mxu0
    %v4893 = vadd.f32 %v3559, %v4892
    %4894 = vdwg.mxu0
    %4895 = vmatprep.subr.bf16.mxu0 %v4433
    %4896 = vmatpush1.bf16.msra.mxu0 %v4432
    %4897 = vmatprep.subr.bf16.mxu0 %v4429
    %4898 = vmatpush1.bf16.msra.mxu0 %v4428
    %4899 = vmatprep.subr.bf16.mxu0 %v4425
    %4900 = vmatpush1.bf16.msra.mxu0 %v4424
    %4901 = vmatprep.subr.bf16.mxu0 %v4421
    %4902 = vmatpush1.bf16.msra.mxu0 %v4420
    %4903 = vmatprep.subr.bf16.mxu0 %v4417
    %4904 = vmatpush1.bf16.msra.mxu0 %v4416
    %4905 = vmatprep.subr.bf16.mxu0 %v4413
    %4906 = vmatpush1.bf16.msra.mxu0 %v4412
    %4907 = vmatprep.subr.bf16.mxu0 %v4409
    %4908 = vmatpush1.bf16.msra.mxu0 %v4408
    %4909 = vmatprep.subr.bf16.mxu0 %v4405
    %4910 = vmatpush1.bf16.msra.mxu0 %v4404
    %4911 = vmatprep.subr.bf16.mxu0 %v4465
    %4912 = vmatpush2.bf16.msra.mxu0 %v4464
    %4913 = vmatprep.subr.bf16.mxu0 %v4461
    %4914 = vmatpush2.bf16.msra.mxu0 %v4460
    %4915 = vmatprep.subr.bf16.mxu0 %v4457
    %4916 = vmatpush2.bf16.msra.mxu0 %v4456
    %4917 = vmatprep.subr.bf16.mxu0 %v4453
    %4918 = vmatpush2.bf16.msra.mxu0 %v4452
    %4919 = vmatprep.subr.bf16.mxu0 %v4449
    %4920 = vmatpush2.bf16.msra.mxu0 %v4448
    %4921 = vmatprep.subr.bf16.mxu0 %v4445
    %4922 = vmatpush2.bf16.msra.mxu0 %v4444
    %4923 = vmatprep.subr.bf16.mxu0 %v4441
    %4924 = vmatpush2.bf16.msra.mxu0 %v4440
    %4925 = vmatprep.subr.bf16.mxu0 %v4437
    %4926 = vmatpush2.bf16.msra.mxu0 %v4436
    %4927 = vmatprep.mubr.bf16.mxu0 %v3289
    %4928 = vmatmul.mubr.bf16.gmra.mxu0 %v3288
    %v4929 = vpop.f32.mrf.mxu0
    %v4930 = vadd.f32 %v4887, %v4929
    %v4931 = vpop.f32.mrf.mxu0
    %v4932 = vadd.f32 %v4889, %v4931
    %v4933 = vpop.f32.mrf.mxu0
    %v4934 = vadd.f32 %v4891, %v4933
    %v4935 = vpop.f32.mrf.mxu0
    %v4936 = vadd.f32 %v4893, %v4935
    %4937 = vdwg.mxu0
    %4938 = vmatprep.subr.bf16.mxu0 %v4497
    %4939 = vmatpush1.bf16.msra.mxu0 %v4496
    %4940 = vmatprep.subr.bf16.mxu0 %v4493
    %4941 = vmatpush1.bf16.msra.mxu0 %v4492
    %4942 = vmatprep.subr.bf16.mxu0 %v4489
    %4943 = vmatpush1.bf16.msra.mxu0 %v4488
    %4944 = vmatprep.subr.bf16.mxu0 %v4485
    %4945 = vmatpush1.bf16.msra.mxu0 %v4484
    %4946 = vmatprep.subr.bf16.mxu0 %v4481
    %4947 = vmatpush1.bf16.msra.mxu0 %v4480
    %4948 = vmatprep.subr.bf16.mxu0 %v4477
    %4949 = vmatpush1.bf16.msra.mxu0 %v4476
    %4950 = vmatprep.subr.bf16.mxu0 %v4473
    %4951 = vmatpush1.bf16.msra.mxu0 %v4472
    %4952 = vmatprep.subr.bf16.mxu0 %v4469
    %4953 = vmatpush1.bf16.msra.mxu0 %v4468
    %4954 = vmatprep.subr.bf16.mxu0 %v4529
    %4955 = vmatpush2.bf16.msra.mxu0 %v4528
    %4956 = vmatprep.subr.bf16.mxu0 %v4525
    %4957 = vmatpush2.bf16.msra.mxu0 %v4524
    %4958 = vmatprep.subr.bf16.mxu0 %v4521
    %4959 = vmatpush2.bf16.msra.mxu0 %v4520
    %4960 = vmatprep.subr.bf16.mxu0 %v4517
    %4961 = vmatpush2.bf16.msra.mxu0 %v4516
    %4962 = vmatprep.subr.bf16.mxu0 %v4513
    %4963 = vmatpush2.bf16.msra.mxu0 %v4512
    %4964 = vmatprep.subr.bf16.mxu0 %v4509
    %4965 = vmatpush2.bf16.msra.mxu0 %v4508
    %4966 = vmatprep.subr.bf16.mxu0 %v4505
    %4967 = vmatpush2.bf16.msra.mxu0 %v4504
    %4968 = vmatprep.subr.bf16.mxu0 %v4501
    %4969 = vmatpush2.bf16.msra.mxu0 %v4500
    %4970 = vmatprep.mubr.bf16.mxu0 %v3291
    %4971 = vmatmul.mubr.bf16.gmra.mxu0 %v3290
    %v4972 = vpop.f32.mrf.mxu0
    %v4973 = vadd.f32 %v4930, %v4972
    %v4974 = vpop.f32.mrf.mxu0
    %v4975 = vadd.f32 %v4932, %v4974
    %v4976 = vpop.f32.mrf.mxu0
    %v4977 = vadd.f32 %v4934, %v4976
    %v4978 = vpop.f32.mrf.mxu0
    %v4979 = vadd.f32 %v4936, %v4978
    %4980 = vdwg.mxu0
    %4981 = vmatprep.subr.bf16.mxu0 %v4561
    %4982 = vmatpush1.bf16.msra.mxu0 %v4560
    %4983 = vmatprep.subr.bf16.mxu0 %v4557
    %4984 = vmatpush1.bf16.msra.mxu0 %v4556
    %4985 = vmatprep.subr.bf16.mxu0 %v4553
    %4986 = vmatpush1.bf16.msra.mxu0 %v4552
    %4987 = vmatprep.subr.bf16.mxu0 %v4549
    %4988 = vmatpush1.bf16.msra.mxu0 %v4548
    %4989 = vmatprep.subr.bf16.mxu0 %v4545
    %4990 = vmatpush1.bf16.msra.mxu0 %v4544
    %4991 = vmatprep.subr.bf16.mxu0 %v4541
    %4992 = vmatpush1.bf16.msra.mxu0 %v4540
    %4993 = vmatprep.subr.bf16.mxu0 %v4537
    %4994 = vmatpush1.bf16.msra.mxu0 %v4536
    %4995 = vmatprep.subr.bf16.mxu0 %v4533
    %4996 = vmatpush1.bf16.msra.mxu0 %v4532
    %4997 = vmatprep.subr.bf16.mxu0 %v4593
    %4998 = vmatpush2.bf16.msra.mxu0 %v4592
    %4999 = vmatprep.subr.bf16.mxu0 %v4589
    %5000 = vmatpush2.bf16.msra.mxu0 %v4588
    %5001 = vmatprep.subr.bf16.mxu0 %v4585
    %5002 = vmatpush2.bf16.msra.mxu0 %v4584
    %5003 = vmatprep.subr.bf16.mxu0 %v4581
    %5004 = vmatpush2.bf16.msra.mxu0 %v4580
    %5005 = vmatprep.subr.bf16.mxu0 %v4577
    %5006 = vmatpush2.bf16.msra.mxu0 %v4576
    %5007 = vmatprep.subr.bf16.mxu0 %v4573
    %5008 = vmatpush2.bf16.msra.mxu0 %v4572
    %5009 = vmatprep.subr.bf16.mxu0 %v4569
    %5010 = vmatpush2.bf16.msra.mxu0 %v4568
    %5011 = vmatprep.subr.bf16.mxu0 %v4565
    %5012 = vmatpush2.bf16.msra.mxu0 %v4564
    %5013 = vmatprep.mubr.bf16.mxu0 %v3293
    %5014 = vmatmul.mubr.bf16.gmra.mxu0 %v3292
    %v5015 = vpop.f32.mrf.mxu0
    %v5016 = vadd.f32 %v4973, %v5015
    %v5017 = vpop.f32.mrf.mxu0
    %v5018 = vadd.f32 %v4975, %v5017
    %v5019 = vpop.f32.mrf.mxu0
    %v5020 = vadd.f32 %v4977, %v5019
    %v5021 = vpop.f32.mrf.mxu0
    %v5022 = vadd.f32 %v4979, %v5021
    %5023 = vdwg.mxu0
    %5024 = vmatprep.subr.bf16.mxu0 %v4371
    %5025 = vmatpush1.bf16.msra.mxu0 %v4370
    %5026 = vmatprep.subr.bf16.mxu0 %v4367
    %5027 = vmatpush1.bf16.msra.mxu0 %v4366
    %5028 = vmatprep.subr.bf16.mxu0 %v4363
    %5029 = vmatpush1.bf16.msra.mxu0 %v4362
    %5030 = vmatprep.subr.bf16.mxu0 %v4359
    %5031 = vmatpush1.bf16.msra.mxu0 %v4358
    %5032 = vmatprep.subr.bf16.mxu0 %v4355
    %5033 = vmatpush1.bf16.msra.mxu0 %v4354
    %5034 = vmatprep.subr.bf16.mxu0 %v4351
    %5035 = vmatpush1.bf16.msra.mxu0 %v4350
    %5036 = vmatprep.subr.bf16.mxu0 %v4347
    %5037 = vmatpush1.bf16.msra.mxu0 %v4346
    %5038 = vmatprep.subr.bf16.mxu0 %v4343
    %5039 = vmatpush1.bf16.msra.mxu0 %v4342
    %5040 = vmatprep.subr.bf16.mxu0 %v4403
    %5041 = vmatpush2.bf16.msra.mxu0 %v4402
    %5042 = vmatprep.subr.bf16.mxu0 %v4399
    %5043 = vmatpush2.bf16.msra.mxu0 %v4398
    %5044 = vmatprep.subr.bf16.mxu0 %v4395
    %5045 = vmatpush2.bf16.msra.mxu0 %v4394
    %5046 = vmatprep.subr.bf16.mxu0 %v4391
    %5047 = vmatpush2.bf16.msra.mxu0 %v4390
    %5048 = vmatprep.subr.bf16.mxu0 %v4387
    %5049 = vmatpush2.bf16.msra.mxu0 %v4386
    %5050 = vmatprep.subr.bf16.mxu0 %v4383
    %5051 = vmatpush2.bf16.msra.mxu0 %v4382
    %5052 = vmatprep.subr.bf16.mxu0 %v4379
    %5053 = vmatpush2.bf16.msra.mxu0 %v4378
    %5054 = vmatprep.subr.bf16.mxu0 %v4375
    %5055 = vmatpush2.bf16.msra.mxu0 %v4374
    %5056 = vmatprep.mubr.bf16.mxu0 %v3287
    %5057 = vmatmul.mubr.bf16.gmra.mxu0 %v3286
    %v5058 = vpop.f32.mrf.mxu0
    %v5059 = vadd.f32 %v3563, %v5058
    %v5060 = vpop.f32.mrf.mxu0
    %v5061 = vadd.f32 %v3567, %v5060
    %v5062 = vpop.f32.mrf.mxu0
    %v5063 = vadd.f32 %v3563, %v5062
    %v5064 = vpop.f32.mrf.mxu0
    %v5065 = vadd.f32 %v3567, %v5064
    %5066 = vdwg.mxu0
    %5067 = vmatprep.subr.bf16.mxu0 %v4435
    %5068 = vmatpush1.bf16.msra.mxu0 %v4434
    %5069 = vmatprep.subr.bf16.mxu0 %v4431
    %5070 = vmatpush1.bf16.msra.mxu0 %v4430
    %5071 = vmatprep.subr.bf16.mxu0 %v4427
    %5072 = vmatpush1.bf16.msra.mxu0 %v4426
    %5073 = vmatprep.subr.bf16.mxu0 %v4423
    %5074 = vmatpush1.bf16.msra.mxu0 %v4422
    %5075 = vmatprep.subr.bf16.mxu0 %v4419
    %5076 = vmatpush1.bf16.msra.mxu0 %v4418
    %5077 = vmatprep.subr.bf16.mxu0 %v4415
    %5078 = vmatpush1.bf16.msra.mxu0 %v4414
    %5079 = vmatprep.subr.bf16.mxu0 %v4411
    %5080 = vmatpush1.bf16.msra.mxu0 %v4410
    %5081 = vmatprep.subr.bf16.mxu0 %v4407
    %5082 = vmatpush1.bf16.msra.mxu0 %v4406
    %5083 = vmatprep.subr.bf16.mxu0 %v4467
    %5084 = vmatpush2.bf16.msra.mxu0 %v4466
    %5085 = vmatprep.subr.bf16.mxu0 %v4463
    %5086 = vmatpush2.bf16.msra.mxu0 %v4462
    %5087 = vmatprep.subr.bf16.mxu0 %v4459
    %5088 = vmatpush2.bf16.msra.mxu0 %v4458
    %5089 = vmatprep.subr.bf16.mxu0 %v4455
    %5090 = vmatpush2.bf16.msra.mxu0 %v4454
    %5091 = vmatprep.subr.bf16.mxu0 %v4451
    %5092 = vmatpush2.bf16.msra.mxu0 %v4450
    %5093 = vmatprep.subr.bf16.mxu0 %v4447
    %5094 = vmatpush2.bf16.msra.mxu0 %v4446
    %5095 = vmatprep.subr.bf16.mxu0 %v4443
    %5096 = vmatpush2.bf16.msra.mxu0 %v4442
    %5097 = vmatprep.subr.bf16.mxu0 %v4439
    %5098 = vmatpush2.bf16.msra.mxu0 %v4438
    %5099 = vmatprep.mubr.bf16.mxu0 %v3289
    %5100 = vmatmul.mubr.bf16.gmra.mxu0 %v3288
    %v5101 = vpop.f32.mrf.mxu0
    %v5102 = vadd.f32 %v5059, %v5101
    %v5103 = vpop.f32.mrf.mxu0
    %v5104 = vadd.f32 %v5061, %v5103
    %v5105 = vpop.f32.mrf.mxu0
    %v5106 = vadd.f32 %v5063, %v5105
    %v5107 = vpop.f32.mrf.mxu0
    %v5108 = vadd.f32 %v5065, %v5107
    %5109 = vdwg.mxu0
    %5110 = vmatprep.subr.bf16.mxu0 %v4499
    %5111 = vmatpush1.bf16.msra.mxu0 %v4498
    %5112 = vmatprep.subr.bf16.mxu0 %v4495
    %5113 = vmatpush1.bf16.msra.mxu0 %v4494
    %5114 = vmatprep.subr.bf16.mxu0 %v4491
    %5115 = vmatpush1.bf16.msra.mxu0 %v4490
    %5116 = vmatprep.subr.bf16.mxu0 %v4487
    %5117 = vmatpush1.bf16.msra.mxu0 %v4486
    %5118 = vmatprep.subr.bf16.mxu0 %v4483
    %5119 = vmatpush1.bf16.msra.mxu0 %v4482
    %5120 = vmatprep.subr.bf16.mxu0 %v4479
    %5121 = vmatpush1.bf16.msra.mxu0 %v4478
    %5122 = vmatprep.subr.bf16.mxu0 %v4475
    %5123 = vmatpush1.bf16.msra.mxu0 %v4474
    %5124 = vmatprep.subr.bf16.mxu0 %v4471
    %5125 = vmatpush1.bf16.msra.mxu0 %v4470
    %5126 = vmatprep.subr.bf16.mxu0 %v4531
    %5127 = vmatpush2.bf16.msra.mxu0 %v4530
    %5128 = vmatprep.subr.bf16.mxu0 %v4527
    %5129 = vmatpush2.bf16.msra.mxu0 %v4526
    %5130 = vmatprep.subr.bf16.mxu0 %v4523
    %5131 = vmatpush2.bf16.msra.mxu0 %v4522
    %5132 = vmatprep.subr.bf16.mxu0 %v4519
    %5133 = vmatpush2.bf16.msra.mxu0 %v4518
    %5134 = vmatprep.subr.bf16.mxu0 %v4515
    %5135 = vmatpush2.bf16.msra.mxu0 %v4514
    %5136 = vmatprep.subr.bf16.mxu0 %v4511
    %5137 = vmatpush2.bf16.msra.mxu0 %v4510
    %5138 = vmatprep.subr.bf16.mxu0 %v4507
    %5139 = vmatpush2.bf16.msra.mxu0 %v4506
    %5140 = vmatprep.subr.bf16.mxu0 %v4503
    %5141 = vmatpush2.bf16.msra.mxu0 %v4502
    %5142 = vmatprep.mubr.bf16.mxu0 %v3291
    %5143 = vmatmul.mubr.bf16.gmra.mxu0 %v3290
    %v5144 = vpop.f32.mrf.mxu0
    %v5145 = vadd.f32 %v5102, %v5144
    %v5146 = vpop.f32.mrf.mxu0
    %v5147 = vadd.f32 %v5104, %v5146
    %v5148 = vpop.f32.mrf.mxu0
    %v5149 = vadd.f32 %v5106, %v5148
    %v5150 = vpop.f32.mrf.mxu0
    %v5151 = vadd.f32 %v5108, %v5150
    %5152 = vdwg.mxu0
    %5153 = vmatprep.subr.bf16.mxu0 %v4563
    %5154 = vmatpush1.bf16.msra.mxu0 %v4562
    %5155 = vmatprep.subr.bf16.mxu0 %v4559
    %5156 = vmatpush1.bf16.msra.mxu0 %v4558
    %5157 = vmatprep.subr.bf16.mxu0 %v4555
    %5158 = vmatpush1.bf16.msra.mxu0 %v4554
    %5159 = vmatprep.subr.bf16.mxu0 %v4551
    %5160 = vmatpush1.bf16.msra.mxu0 %v4550
    %5161 = vmatprep.subr.bf16.mxu0 %v4547
    %5162 = vmatpush1.bf16.msra.mxu0 %v4546
    %5163 = vmatprep.subr.bf16.mxu0 %v4543
    %5164 = vmatpush1.bf16.msra.mxu0 %v4542
    %5165 = vmatprep.subr.bf16.mxu0 %v4539
    %5166 = vmatpush1.bf16.msra.mxu0 %v4538
    %5167 = vmatprep.subr.bf16.mxu0 %v4535
    %5168 = vmatpush1.bf16.msra.mxu0 %v4534
    %5169 = vmatprep.subr.bf16.mxu0 %v4595
    %5170 = vmatpush2.bf16.msra.mxu0 %v4594
    %5171 = vmatprep.subr.bf16.mxu0 %v4591
    %5172 = vmatpush2.bf16.msra.mxu0 %v4590
    %5173 = vmatprep.subr.bf16.mxu0 %v4587
    %5174 = vmatpush2.bf16.msra.mxu0 %v4586
    %5175 = vmatprep.subr.bf16.mxu0 %v4583
    %5176 = vmatpush2.bf16.msra.mxu0 %v4582
    %5177 = vmatprep.subr.bf16.mxu0 %v4579
    %5178 = vmatpush2.bf16.msra.mxu0 %v4578
    %5179 = vmatprep.subr.bf16.mxu0 %v4575
    %5180 = vmatpush2.bf16.msra.mxu0 %v4574
    %5181 = vmatprep.subr.bf16.mxu0 %v4571
    %5182 = vmatpush2.bf16.msra.mxu0 %v4570
    %5183 = vmatprep.subr.bf16.mxu0 %v4567
    %5184 = vmatpush2.bf16.msra.mxu0 %v4566
    %5185 = vmatprep.mubr.bf16.mxu0 %v3293
    %5186 = vmatmul.mubr.bf16.gmra.mxu0 %v3292
    %v5187 = vpop.f32.mrf.mxu0
    %v5188 = vadd.f32 %v5145, %v5187
    %v5189 = vpop.f32.mrf.mxu0
    %v5190 = vadd.f32 %v5147, %v5189
    %v5191 = vpop.f32.mrf.mxu0
    %v5192 = vadd.f32 %v5149, %v5191
    %v5193 = vpop.f32.mrf.mxu0
    %v5194 = vadd.f32 %v5151, %v5193
    %5195 = vdwg.mxu0
    %v5196 = vmul.f32 %v5016, 0.2
    %v5197 = vmul.f32 %v5018, 0.2
    %v5198 = vmul.f32 %v5188, 0.2
    %v5199 = vmul.f32 %v5190, 0.2
    %v5200 = vmul.f32 %v5020, 0.2
    %v5201 = vmul.f32 %v5022, 0.2
    %v5202 = vmul.f32 %v5192, 0.2
    %v5203 = vmul.f32 %v5194, 0.2
    %v5204 = vmax.f32 %v5016, %v5196
    %v5205 = vmax.f32 %v5018, %v5197
    %v5206 = vmax.f32 %v5188, %v5198
    %v5207 = vmax.f32 %v5190, %v5199
    %v5208 = vmax.f32 %v5020, %v5200
    %v5209 = vmax.f32 %v5022, %v5201
    %v5210 = vmax.f32 %v5192, %v5202
    %v5211 = vmax.f32 %v5194, %v5203
    %v5212 = vpack.c.bf16 %v5208, %v5204
    %v5213 = vpack.c.bf16 %v5209, %v5205
    %v5214 = vpack.c.bf16 %v5210, %v5206
    %v5215 = vpack.c.bf16 %v5211, %v5207
    %v5216 = vld [vmem:[#allocation10] sm:$0xff]
    %v5217 = vld [vmem:[#allocation10 + $0x8] sm:$0xff]
    %v5218 = vld [vmem:[#allocation10 + $0x10] sm:$0xff]
    %v5219 = vld [vmem:[#allocation10 + $0x18] sm:$0xff]
    %v5220 = vld [vmem:[#allocation10 + $0x20] sm:$0xff]
    %v5221 = vld [vmem:[#allocation10 + $0x28] sm:$0xff]
    %v5222 = vld [vmem:[#allocation10 + $0x30] sm:$0xff]
    %v5223 = vld [vmem:[#allocation10 + $0x38] sm:$0xff]
    %v5224 = vld [vmem:[#allocation10 + $0x40] sm:$0xff]
    %v5225 = vld [vmem:[#allocation10 + $0x48] sm:$0xff]
    %v5226 = vld [vmem:[#allocation10 + $0x50] sm:$0xff]
    %v5227 = vld [vmem:[#allocation10 + $0x58] sm:$0xff]
    %v5228 = vld [vmem:[#allocation10 + $0x60] sm:$0xff]
    %v5229 = vld [vmem:[#allocation10 + $0x68] sm:$0xff]
    %v5230 = vld [vmem:[#allocation10 + $0x70] sm:$0xff]
    %v5231 = vld [vmem:[#allocation10 + $0x78] sm:$0xff]
    %v5232 = vld [vmem:[#allocation10 + $0x80] sm:$0xff]
    %v5233 = vld [vmem:[#allocation10 + $0x88] sm:$0xff]
    %v5234 = vld [vmem:[#allocation10 + $0x90] sm:$0xff]
    %v5235 = vld [vmem:[#allocation10 + $0x98] sm:$0xff]
    %v5236 = vld [vmem:[#allocation10 + $0xa0] sm:$0xff]
    %v5237 = vld [vmem:[#allocation10 + $0xa8] sm:$0xff]
    %v5238 = vld [vmem:[#allocation10 + $0xb0] sm:$0xff]
    %v5239 = vld [vmem:[#allocation10 + $0xb8] sm:$0xff]
    %v5240 = vld [vmem:[#allocation10 + $0xc0] sm:$0xff]
    %v5241 = vld [vmem:[#allocation10 + $0xc8] sm:$0xff]
    %v5242 = vld [vmem:[#allocation10 + $0xd0] sm:$0xff]
    %v5243 = vld [vmem:[#allocation10 + $0xd8] sm:$0xff]
    %v5244 = vld [vmem:[#allocation10 + $0xe0] sm:$0xff]
    %v5245 = vld [vmem:[#allocation10 + $0xe8] sm:$0xff]
    %v5246 = vld [vmem:[#allocation10 + $0xf0] sm:$0xff]
    %v5247 = vld [vmem:[#allocation10 + $0xf8] sm:$0xff]
    %v5248 = vld [vmem:[#allocation10 + $0x100] sm:$0xff]
    %v5249 = vld [vmem:[#allocation10 + $0x108] sm:$0xff]
    %v5250 = vld [vmem:[#allocation10 + $0x110] sm:$0xff]
    %v5251 = vld [vmem:[#allocation10 + $0x118] sm:$0xff]
    %v5252 = vld [vmem:[#allocation10 + $0x120] sm:$0xff]
    %v5253 = vld [vmem:[#allocation10 + $0x128] sm:$0xff]
    %v5254 = vld [vmem:[#allocation10 + $0x130] sm:$0xff]
    %v5255 = vld [vmem:[#allocation10 + $0x138] sm:$0xff]
    %v5256 = vld [vmem:[#allocation10 + $0x140] sm:$0xff]
    %v5257 = vld [vmem:[#allocation10 + $0x148] sm:$0xff]
    %v5258 = vld [vmem:[#allocation10 + $0x150] sm:$0xff]
    %v5259 = vld [vmem:[#allocation10 + $0x158] sm:$0xff]
    %v5260 = vld [vmem:[#allocation10 + $0x160] sm:$0xff]
    %v5261 = vld [vmem:[#allocation10 + $0x168] sm:$0xff]
    %v5262 = vld [vmem:[#allocation10 + $0x170] sm:$0xff]
    %v5263 = vld [vmem:[#allocation10 + $0x178] sm:$0xff]
    %v5264 = vld [vmem:[#allocation10 + $0x180] sm:$0xff]
    %v5265 = vld [vmem:[#allocation10 + $0x188] sm:$0xff]
    %v5266 = vld [vmem:[#allocation10 + $0x190] sm:$0xff]
    %v5267 = vld [vmem:[#allocation10 + $0x198] sm:$0xff]
    %v5268 = vld [vmem:[#allocation10 + $0x1a0] sm:$0xff]
    %v5269 = vld [vmem:[#allocation10 + $0x1a8] sm:$0xff]
    %v5270 = vld [vmem:[#allocation10 + $0x1b0] sm:$0xff]
    %v5271 = vld [vmem:[#allocation10 + $0x1b8] sm:$0xff]
    %v5272 = vld [vmem:[#allocation10 + $0x1c0] sm:$0xff]
    %v5273 = vld [vmem:[#allocation10 + $0x1c8] sm:$0xff]
    %v5274 = vld [vmem:[#allocation10 + $0x1d0] sm:$0xff]
    %v5275 = vld [vmem:[#allocation10 + $0x1d8] sm:$0xff]
    %v5276 = vld [vmem:[#allocation10 + $0x1e0] sm:$0xff]
    %v5277 = vld [vmem:[#allocation10 + $0x1e8] sm:$0xff]
    %v5278 = vld [vmem:[#allocation10 + $0x1f0] sm:$0xff]
    %v5279 = vld [vmem:[#allocation10 + $0x1f8] sm:$0xff]
    %v5280 = vld [vmem:[#allocation12] sm:$0x3]
    %v5282 = vlaneseq
    %v5283 = vshrl.u32 %v5282, 7
    %v5284 = vsub.s32 0, %v5283
    %v5285 = vrot.slane %v5280, %v5284
    %v5286 = vlaneseq
    %v5287 = vshrl.u32 %v5286, 7
    %v5288 = vsub.s32 1, %v5287
    %v5289 = vrot.slane %v5280, %v5288
    %v5356 = vunpack.c.l.b16 %v5216
    %v5357 = vunpack.c.h.b16 %v5216
    %v5358 = vunpack.c.l.b16 %v5217
    %v5359 = vunpack.c.h.b16 %v5217
    %v5360 = vunpack.c.l.b16 %v5218
    %v5361 = vunpack.c.h.b16 %v5218
    %v5362 = vunpack.c.l.b16 %v5219
    %v5363 = vunpack.c.h.b16 %v5219
    %v5364 = vunpack.c.l.b16 %v5220
    %v5365 = vunpack.c.h.b16 %v5220
    %v5366 = vunpack.c.l.b16 %v5221
    %v5367 = vunpack.c.h.b16 %v5221
    %v5368 = vunpack.c.l.b16 %v5222
    %v5369 = vunpack.c.h.b16 %v5222
    %v5370 = vunpack.c.l.b16 %v5223
    %v5371 = vunpack.c.h.b16 %v5223
    %v5372 = vunpack.c.l.b16 %v5224
    %v5373 = vunpack.c.h.b16 %v5224
    %v5374 = vunpack.c.l.b16 %v5225
    %v5375 = vunpack.c.h.b16 %v5225
    %v5376 = vunpack.c.l.b16 %v5226
    %v5377 = vunpack.c.h.b16 %v5226
    %v5378 = vunpack.c.l.b16 %v5227
    %v5379 = vunpack.c.h.b16 %v5227
    %v5380 = vunpack.c.l.b16 %v5228
    %v5381 = vunpack.c.h.b16 %v5228
    %v5382 = vunpack.c.l.b16 %v5229
    %v5383 = vunpack.c.h.b16 %v5229
    %v5384 = vunpack.c.l.b16 %v5230
    %v5385 = vunpack.c.h.b16 %v5230
    %v5386 = vunpack.c.l.b16 %v5231
    %v5387 = vunpack.c.h.b16 %v5231
    %v5388 = vunpack.c.l.b16 %v5232
    %v5389 = vunpack.c.h.b16 %v5232
    %v5390 = vunpack.c.l.b16 %v5233
    %v5391 = vunpack.c.h.b16 %v5233
    %v5392 = vunpack.c.l.b16 %v5234
    %v5393 = vunpack.c.h.b16 %v5234
    %v5394 = vunpack.c.l.b16 %v5235
    %v5395 = vunpack.c.h.b16 %v5235
    %v5396 = vunpack.c.l.b16 %v5236
    %v5397 = vunpack.c.h.b16 %v5236
    %v5398 = vunpack.c.l.b16 %v5237
    %v5399 = vunpack.c.h.b16 %v5237
    %v5400 = vunpack.c.l.b16 %v5238
    %v5401 = vunpack.c.h.b16 %v5238
    %v5402 = vunpack.c.l.b16 %v5239
    %v5403 = vunpack.c.h.b16 %v5239
    %v5404 = vunpack.c.l.b16 %v5240
    %v5405 = vunpack.c.h.b16 %v5240
    %v5406 = vunpack.c.l.b16 %v5241
    %v5407 = vunpack.c.h.b16 %v5241
    %v5408 = vunpack.c.l.b16 %v5242
    %v5409 = vunpack.c.h.b16 %v5242
    %v5410 = vunpack.c.l.b16 %v5243
    %v5411 = vunpack.c.h.b16 %v5243
    %v5412 = vunpack.c.l.b16 %v5244
    %v5413 = vunpack.c.h.b16 %v5244
    %v5414 = vunpack.c.l.b16 %v5245
    %v5415 = vunpack.c.h.b16 %v5245
    %v5416 = vunpack.c.l.b16 %v5246
    %v5417 = vunpack.c.h.b16 %v5246
    %v5418 = vunpack.c.l.b16 %v5247
    %v5419 = vunpack.c.h.b16 %v5247
    %v5420 = vunpack.c.l.b16 %v5248
    %v5421 = vunpack.c.h.b16 %v5248
    %v5422 = vunpack.c.l.b16 %v5249
    %v5423 = vunpack.c.h.b16 %v5249
    %v5424 = vunpack.c.l.b16 %v5250
    %v5425 = vunpack.c.h.b16 %v5250
    %v5426 = vunpack.c.l.b16 %v5251
    %v5427 = vunpack.c.h.b16 %v5251
    %v5428 = vunpack.c.l.b16 %v5252
    %v5429 = vunpack.c.h.b16 %v5252
    %v5430 = vunpack.c.l.b16 %v5253
    %v5431 = vunpack.c.h.b16 %v5253
    %v5432 = vunpack.c.l.b16 %v5254
    %v5433 = vunpack.c.h.b16 %v5254
    %v5434 = vunpack.c.l.b16 %v5255
    %v5435 = vunpack.c.h.b16 %v5255
    %v5436 = vunpack.c.l.b16 %v5256
    %v5437 = vunpack.c.h.b16 %v5256
    %v5438 = vunpack.c.l.b16 %v5257
    %v5439 = vunpack.c.h.b16 %v5257
    %v5440 = vunpack.c.l.b16 %v5258
    %v5441 = vunpack.c.h.b16 %v5258
    %v5442 = vunpack.c.l.b16 %v5259
    %v5443 = vunpack.c.h.b16 %v5259
    %v5444 = vunpack.c.l.b16 %v5260
    %v5445 = vunpack.c.h.b16 %v5260
    %v5446 = vunpack.c.l.b16 %v5261
    %v5447 = vunpack.c.h.b16 %v5261
    %v5448 = vunpack.c.l.b16 %v5262
    %v5449 = vunpack.c.h.b16 %v5262
    %v5450 = vunpack.c.l.b16 %v5263
    %v5451 = vunpack.c.h.b16 %v5263
    %v5452 = vunpack.c.l.b16 %v5264
    %v5453 = vunpack.c.h.b16 %v5264
    %v5454 = vunpack.c.l.b16 %v5265
    %v5455 = vunpack.c.h.b16 %v5265
    %v5456 = vunpack.c.l.b16 %v5266
    %v5457 = vunpack.c.h.b16 %v5266
    %v5458 = vunpack.c.l.b16 %v5267
    %v5459 = vunpack.c.h.b16 %v5267
    %v5460 = vunpack.c.l.b16 %v5268
    %v5461 = vunpack.c.h.b16 %v5268
    %v5462 = vunpack.c.l.b16 %v5269
    %v5463 = vunpack.c.h.b16 %v5269
    %v5464 = vunpack.c.l.b16 %v5270
    %v5465 = vunpack.c.h.b16 %v5270
    %v5466 = vunpack.c.l.b16 %v5271
    %v5467 = vunpack.c.h.b16 %v5271
    %v5468 = vunpack.c.l.b16 %v5272
    %v5469 = vunpack.c.h.b16 %v5272
    %v5470 = vunpack.c.l.b16 %v5273
    %v5471 = vunpack.c.h.b16 %v5273
    %v5472 = vunpack.c.l.b16 %v5274
    %v5473 = vunpack.c.h.b16 %v5274
    %v5474 = vunpack.c.l.b16 %v5275
    %v5475 = vunpack.c.h.b16 %v5275
    %v5476 = vunpack.c.l.b16 %v5276
    %v5477 = vunpack.c.h.b16 %v5276
    %v5478 = vunpack.c.l.b16 %v5277
    %v5479 = vunpack.c.h.b16 %v5277
    %v5480 = vunpack.c.l.b16 %v5278
    %v5481 = vunpack.c.h.b16 %v5278
    %v5482 = vunpack.c.l.b16 %v5279
    %v5483 = vunpack.c.h.b16 %v5279
    %v5484 = vpack.c.b16 %v5358, %v5356
    %v5485 = vpack.c.b16 %v5359, %v5357
    %v5486 = vpack.c.b16 %v5362, %v5360
    %v5487 = vpack.c.b16 %v5363, %v5361
    %v5488 = vpack.c.b16 %v5366, %v5364
    %v5489 = vpack.c.b16 %v5367, %v5365
    %v5490 = vpack.c.b16 %v5370, %v5368
    %v5491 = vpack.c.b16 %v5371, %v5369
    %v5492 = vpack.c.b16 %v5374, %v5372
    %v5493 = vpack.c.b16 %v5375, %v5373
    %v5494 = vpack.c.b16 %v5378, %v5376
    %v5495 = vpack.c.b16 %v5379, %v5377
    %v5496 = vpack.c.b16 %v5382, %v5380
    %v5497 = vpack.c.b16 %v5383, %v5381
    %v5498 = vpack.c.b16 %v5386, %v5384
    %v5499 = vpack.c.b16 %v5387, %v5385
    %v5500 = vpack.c.b16 %v5390, %v5388
    %v5501 = vpack.c.b16 %v5391, %v5389
    %v5502 = vpack.c.b16 %v5394, %v5392
    %v5503 = vpack.c.b16 %v5395, %v5393
    %v5504 = vpack.c.b16 %v5398, %v5396
    %v5505 = vpack.c.b16 %v5399, %v5397
    %v5506 = vpack.c.b16 %v5402, %v5400
    %v5507 = vpack.c.b16 %v5403, %v5401
    %v5508 = vpack.c.b16 %v5406, %v5404
    %v5509 = vpack.c.b16 %v5407, %v5405
    %v5510 = vpack.c.b16 %v5410, %v5408
    %v5511 = vpack.c.b16 %v5411, %v5409
    %v5512 = vpack.c.b16 %v5414, %v5412
    %v5513 = vpack.c.b16 %v5415, %v5413
    %v5514 = vpack.c.b16 %v5418, %v5416
    %v5515 = vpack.c.b16 %v5419, %v5417
    %v5516 = vpack.c.b16 %v5422, %v5420
    %v5517 = vpack.c.b16 %v5423, %v5421
    %v5518 = vpack.c.b16 %v5426, %v5424
    %v5519 = vpack.c.b16 %v5427, %v5425
    %v5520 = vpack.c.b16 %v5430, %v5428
    %v5521 = vpack.c.b16 %v5431, %v5429
    %v5522 = vpack.c.b16 %v5434, %v5432
    %v5523 = vpack.c.b16 %v5435, %v5433
    %v5524 = vpack.c.b16 %v5438, %v5436
    %v5525 = vpack.c.b16 %v5439, %v5437
    %v5526 = vpack.c.b16 %v5442, %v5440
    %v5527 = vpack.c.b16 %v5443, %v5441
    %v5528 = vpack.c.b16 %v5446, %v5444
    %v5529 = vpack.c.b16 %v5447, %v5445
    %v5530 = vpack.c.b16 %v5450, %v5448
    %v5531 = vpack.c.b16 %v5451, %v5449
    %v5532 = vpack.c.b16 %v5454, %v5452
    %v5533 = vpack.c.b16 %v5455, %v5453
    %v5534 = vpack.c.b16 %v5458, %v5456
    %v5535 = vpack.c.b16 %v5459, %v5457
    %v5536 = vpack.c.b16 %v5462, %v5460
    %v5537 = vpack.c.b16 %v5463, %v5461
    %v5538 = vpack.c.b16 %v5466, %v5464
    %v5539 = vpack.c.b16 %v5467, %v5465
    %v5540 = vpack.c.b16 %v5470, %v5468
    %v5541 = vpack.c.b16 %v5471, %v5469
    %v5542 = vpack.c.b16 %v5474, %v5472
    %v5543 = vpack.c.b16 %v5475, %v5473
    %v5544 = vpack.c.b16 %v5478, %v5476
    %v5545 = vpack.c.b16 %v5479, %v5477
    %v5546 = vpack.c.b16 %v5482, %v5480
    %v5547 = vpack.c.b16 %v5483, %v5481
    %5612 = vmatprep.subr.bf16.mxu0 %v5499
    %5613 = vmatpush1.bf16.msra.mxu0 %v5498
    %5614 = vmatprep.subr.bf16.mxu0 %v5497
    %5615 = vmatpush1.bf16.msra.mxu0 %v5496
    %5616 = vmatprep.subr.bf16.mxu0 %v5495
    %5617 = vmatpush1.bf16.msra.mxu0 %v5494
    %5618 = vmatprep.subr.bf16.mxu0 %v5493
    %5619 = vmatpush1.bf16.msra.mxu0 %v5492
    %5620 = vmatprep.subr.bf16.mxu0 %v5491
    %5621 = vmatpush1.bf16.msra.mxu0 %v5490
    %5622 = vmatprep.subr.bf16.mxu0 %v5489
    %5623 = vmatpush1.bf16.msra.mxu0 %v5488
    %5624 = vmatprep.subr.bf16.mxu0 %v5487
    %5625 = vmatpush1.bf16.msra.mxu0 %v5486
    %5626 = vmatprep.subr.bf16.mxu0 %v5485
    %5627 = vmatpush1.bf16.msra.mxu0 %v5484
    %5628 = vmatprep.subr.bf16.mxu0 %v5515
    %5629 = vmatpush2.bf16.msra.mxu0 %v5514
    %5630 = vmatprep.subr.bf16.mxu0 %v5513
    %5631 = vmatpush2.bf16.msra.mxu0 %v5512
    %5632 = vmatprep.subr.bf16.mxu0 %v5511
    %5633 = vmatpush2.bf16.msra.mxu0 %v5510
    %5634 = vmatprep.subr.bf16.mxu0 %v5509
    %5635 = vmatpush2.bf16.msra.mxu0 %v5508
    %5636 = vmatprep.subr.bf16.mxu0 %v5507
    %5637 = vmatpush2.bf16.msra.mxu0 %v5506
    %5638 = vmatprep.subr.bf16.mxu0 %v5505
    %5639 = vmatpush2.bf16.msra.mxu0 %v5504
    %5640 = vmatprep.subr.bf16.mxu0 %v5503
    %5641 = vmatpush2.bf16.msra.mxu0 %v5502
    %5642 = vmatprep.subr.bf16.mxu0 %v5501
    %5643 = vmatpush2.bf16.msra.mxu0 %v5500
    %5644 = vmatprep.mubr.bf16.mxu0 %v5213
    %5645 = vmatmul.mubr.bf16.gmra.mxu0 %v5212
    %v5646 = vpop.f32.mrf.mxu0
    %v5647 = vadd.f32 %v5285, %v5646
    %v5648 = vpop.f32.mrf.mxu0
    %v5649 = vadd.f32 %v5289, %v5648
    %v5650 = vpop.f32.mrf.mxu0
    %v5651 = vadd.f32 %v5285, %v5650
    %v5652 = vpop.f32.mrf.mxu0
    %v5653 = vadd.f32 %v5289, %v5652
    %5654 = vdwg.mxu0
    %5655 = vmatprep.subr.bf16.mxu0 %v5531
    %5656 = vmatpush1.bf16.msra.mxu0 %v5530
    %5657 = vmatprep.subr.bf16.mxu0 %v5529
    %5658 = vmatpush1.bf16.msra.mxu0 %v5528
    %5659 = vmatprep.subr.bf16.mxu0 %v5527
    %5660 = vmatpush1.bf16.msra.mxu0 %v5526
    %5661 = vmatprep.subr.bf16.mxu0 %v5525
    %5662 = vmatpush1.bf16.msra.mxu0 %v5524
    %5663 = vmatprep.subr.bf16.mxu0 %v5523
    %5664 = vmatpush1.bf16.msra.mxu0 %v5522
    %5665 = vmatprep.subr.bf16.mxu0 %v5521
    %5666 = vmatpush1.bf16.msra.mxu0 %v5520
    %5667 = vmatprep.subr.bf16.mxu0 %v5519
    %5668 = vmatpush1.bf16.msra.mxu0 %v5518
    %5669 = vmatprep.subr.bf16.mxu0 %v5517
    %5670 = vmatpush1.bf16.msra.mxu0 %v5516
    %5671 = vmatprep.subr.bf16.mxu0 %v5547
    %5672 = vmatpush2.bf16.msra.mxu0 %v5546
    %5673 = vmatprep.subr.bf16.mxu0 %v5545
    %5674 = vmatpush2.bf16.msra.mxu0 %v5544
    %5675 = vmatprep.subr.bf16.mxu0 %v5543
    %5676 = vmatpush2.bf16.msra.mxu0 %v5542
    %5677 = vmatprep.subr.bf16.mxu0 %v5541
    %5678 = vmatpush2.bf16.msra.mxu0 %v5540
    %5679 = vmatprep.subr.bf16.mxu0 %v5539
    %5680 = vmatpush2.bf16.msra.mxu0 %v5538
    %5681 = vmatprep.subr.bf16.mxu0 %v5537
    %5682 = vmatpush2.bf16.msra.mxu0 %v5536
    %5683 = vmatprep.subr.bf16.mxu0 %v5535
    %5684 = vmatpush2.bf16.msra.mxu0 %v5534
    %5685 = vmatprep.subr.bf16.mxu0 %v5533
    %5686 = vmatpush2.bf16.msra.mxu0 %v5532
    %5687 = vmatprep.mubr.bf16.mxu0 %v5215
    %5688 = vmatmul.mubr.bf16.gmra.mxu0 %v5214
    %v5689 = vpop.f32.mrf.mxu0
    %v5690 = vadd.f32 %v5647, %v5689
    %v5691 = vpop.f32.mrf.mxu0
    %v5692 = vadd.f32 %v5649, %v5691
    %v5693 = vpop.f32.mrf.mxu0
    %v5694 = vadd.f32 %v5651, %v5693
    %v5695 = vpop.f32.mrf.mxu0
    %v5696 = vadd.f32 %v5653, %v5695
    %5697 = vdwg.mxu0
    %v5698 = vmul.f32 %v5690, 0.2
    %v5699 = vmul.f32 %v5692, 0.2
    %v5700 = vmul.f32 %v5694, 0.2
    %v5701 = vmul.f32 %v5696, 0.2
    %v5702 = vmax.f32 %v5690, %v5698
    %v5703 = vmax.f32 %v5692, %v5699
    %v5704 = vmax.f32 %v5694, %v5700
    %v5705 = vmax.f32 %v5696, %v5701
    %v5706 = vpack.c.bf16 %v5704, %v5702
    %v5707 = vpack.c.bf16 %v5705, %v5703
    %v5708 = vld [vmem:[#allocation13] sm:$0xf]
    %v5709 = vld [vmem:[#allocation13 + $0x4] sm:$0xf]
    %v5710 = vld [vmem:[#allocation13 + $0x8] sm:$0xf]
    %v5711 = vld [vmem:[#allocation13 + $0xc] sm:$0xf]
    %v5712 = vld [vmem:[#allocation13 + $0x10] sm:$0xf]
    %v5713 = vld [vmem:[#allocation13 + $0x14] sm:$0xf]
    %v5714 = vld [vmem:[#allocation13 + $0x18] sm:$0xf]
    %v5715 = vld [vmem:[#allocation13 + $0x1c] sm:$0xf]
    %v5716 = vld [vmem:[#allocation13 + $0x20] sm:$0xf]
    %v5717 = vld [vmem:[#allocation13 + $0x24] sm:$0xf]
    %v5718 = vld [vmem:[#allocation13 + $0x28] sm:$0xf]
    %v5719 = vld [vmem:[#allocation13 + $0x2c] sm:$0xf]
    %v5720 = vld [vmem:[#allocation13 + $0x30] sm:$0xf]
    %v5721 = vld [vmem:[#allocation13 + $0x34] sm:$0xf]
    %v5722 = vld [vmem:[#allocation13 + $0x38] sm:$0xf]
    %v5723 = vld [vmem:[#allocation13 + $0x3c] sm:$0xf]
    %v5724 = vld [vmem:[#allocation13 + $0x40] sm:$0xf]
    %v5725 = vld [vmem:[#allocation13 + $0x44] sm:$0xf]
    %v5726 = vld [vmem:[#allocation13 + $0x48] sm:$0xf]
    %v5727 = vld [vmem:[#allocation13 + $0x4c] sm:$0xf]
    %v5728 = vld [vmem:[#allocation13 + $0x50] sm:$0xf]
    %v5729 = vld [vmem:[#allocation13 + $0x54] sm:$0xf]
    %v5730 = vld [vmem:[#allocation13 + $0x58] sm:$0xf]
    %v5731 = vld [vmem:[#allocation13 + $0x5c] sm:$0xf]
    %v5732 = vld [vmem:[#allocation13 + $0x60] sm:$0xf]
    %v5733 = vld [vmem:[#allocation13 + $0x64] sm:$0xf]
    %v5734 = vld [vmem:[#allocation13 + $0x68] sm:$0xf]
    %v5735 = vld [vmem:[#allocation13 + $0x6c] sm:$0xf]
    %v5736 = vld [vmem:[#allocation13 + $0x70] sm:$0xf]
    %v5737 = vld [vmem:[#allocation13 + $0x74] sm:$0xf]
    %v5738 = vld [vmem:[#allocation13 + $0x78] sm:$0xf]
    %v5739 = vld [vmem:[#allocation13 + $0x7c] sm:$0xf]
    %v5740 = vld [vmem:[#allocation15] sm:$0x1]
    %v5742 = vlaneseq
    %v5743 = vshrl.u32 %v5742, 7
    %v5744 = vsub.s32 0, %v5743
    %v5745 = vrot.slane %v5740, %v5744
    %v5779 = vunpack.c.l.b16 %v5708
    %v5780 = vunpack.c.l.b16 %v5709
    %v5781 = vunpack.c.l.b16 %v5710
    %v5782 = vunpack.c.l.b16 %v5711
    %v5783 = vunpack.c.l.b16 %v5712
    %v5784 = vunpack.c.l.b16 %v5713
    %v5785 = vunpack.c.l.b16 %v5714
    %v5786 = vunpack.c.l.b16 %v5715
    %v5787 = vunpack.c.l.b16 %v5716
    %v5788 = vunpack.c.l.b16 %v5717
    %v5789 = vunpack.c.l.b16 %v5718
    %v5790 = vunpack.c.l.b16 %v5719
    %v5791 = vunpack.c.l.b16 %v5720
    %v5792 = vunpack.c.l.b16 %v5721
    %v5793 = vunpack.c.l.b16 %v5722
    %v5794 = vunpack.c.l.b16 %v5723
    %v5795 = vunpack.c.l.b16 %v5724
    %v5796 = vunpack.c.l.b16 %v5725
    %v5797 = vunpack.c.l.b16 %v5726
    %v5798 = vunpack.c.l.b16 %v5727
    %v5799 = vunpack.c.l.b16 %v5728
    %v5800 = vunpack.c.l.b16 %v5729
    %v5801 = vunpack.c.l.b16 %v5730
    %v5802 = vunpack.c.l.b16 %v5731
    %v5803 = vunpack.c.l.b16 %v5732
    %v5804 = vunpack.c.l.b16 %v5733
    %v5805 = vunpack.c.l.b16 %v5734
    %v5806 = vunpack.c.l.b16 %v5735
    %v5807 = vunpack.c.l.b16 %v5736
    %v5808 = vunpack.c.l.b16 %v5737
    %v5809 = vunpack.c.l.b16 %v5738
    %v5810 = vunpack.c.l.b16 %v5739
    %v5811 = vpack.c.b16 %v5780, %v5779
    %v5812 = vpack.c.b16 %v5782, %v5781
    %v5813 = vpack.c.b16 %v5784, %v5783
    %v5814 = vpack.c.b16 %v5786, %v5785
    %v5815 = vpack.c.b16 %v5788, %v5787
    %v5816 = vpack.c.b16 %v5790, %v5789
    %v5817 = vpack.c.b16 %v5792, %v5791
    %v5818 = vpack.c.b16 %v5794, %v5793
    %v5819 = vpack.c.b16 %v5796, %v5795
    %v5820 = vpack.c.b16 %v5798, %v5797
    %v5821 = vpack.c.b16 %v5800, %v5799
    %v5822 = vpack.c.b16 %v5802, %v5801
    %v5823 = vpack.c.b16 %v5804, %v5803
    %v5824 = vpack.c.b16 %v5806, %v5805
    %v5825 = vpack.c.b16 %v5808, %v5807
    %v5826 = vpack.c.b16 %v5810, %v5809
    %5843 = vmatprep.subr.bf16.mxu0 0
    %5844 = vmatpush1.bf16.msra.mxu0 %v5818
    %5845 = vmatprep.subr.bf16.mxu0 0
    %5846 = vmatpush1.bf16.msra.mxu0 %v5817
    %5847 = vmatprep.subr.bf16.mxu0 0
    %5848 = vmatpush1.bf16.msra.mxu0 %v5816
    %5849 = vmatprep.subr.bf16.mxu0 0
    %5850 = vmatpush1.bf16.msra.mxu0 %v5815
    %5851 = vmatprep.subr.bf16.mxu0 0
    %5852 = vmatpush1.bf16.msra.mxu0 %v5814
    %5853 = vmatprep.subr.bf16.mxu0 0
    %5854 = vmatpush1.bf16.msra.mxu0 %v5813
    %5855 = vmatprep.subr.bf16.mxu0 0
    %5856 = vmatpush1.bf16.msra.mxu0 %v5812
    %5857 = vmatprep.subr.bf16.mxu0 0
    %5858 = vmatpush1.bf16.msra.mxu0 %v5811
    %5859 = vmatprep.subr.bf16.mxu0 0
    %5860 = vmatpush2.bf16.msra.mxu0 %v5826
    %5861 = vmatprep.subr.bf16.mxu0 0
    %5862 = vmatpush2.bf16.msra.mxu0 %v5825
    %5863 = vmatprep.subr.bf16.mxu0 0
    %5864 = vmatpush2.bf16.msra.mxu0 %v5824
    %5865 = vmatprep.subr.bf16.mxu0 0
    %5866 = vmatpush2.bf16.msra.mxu0 %v5823
    %5867 = vmatprep.subr.bf16.mxu0 0
    %5868 = vmatpush2.bf16.msra.mxu0 %v5822
    %5869 = vmatprep.subr.bf16.mxu0 0
    %5870 = vmatpush2.bf16.msra.mxu0 %v5821
    %5871 = vmatprep.subr.bf16.mxu0 0
    %5872 = vmatpush2.bf16.msra.mxu0 %v5820
    %5873 = vmatprep.subr.bf16.mxu0 0
    %5874 = vmatpush2.bf16.msra.mxu0 %v5819
    %5875 = vmatprep.mubr.bf16.mxu0 %v5707
    %5876 = vmatmul.mubr.bf16.gmra.mxu0 %v5706
    %v5877 = vpop.f32.mrf.mxu0
    %v5878 = vadd.f32 %v5745, %v5877
    %v5879 = vpop.f32.mrf.mxu0
    %v5880 = vpop.f32.mrf.mxu0
    %v5881 = vadd.f32 %v5745, %v5880
    %v5882 = vpop.f32.mrf.mxu0
    %5883 = vdwg.mxu0
    %v5884 = vsub.f32 0.0, %v5878
    %v5885 = vsub.f32 0.0, %v5881
    %v5886 = vmul.f32 %v5884, 1.442695
    %v5887 = vpow.pop %v5886
    %v5888 = vmul.f32 %v5885, 1.442695
    %v5889 = vpow.pop %v5888
    %v5890 = vadd.f32 %v5887, 1.0
    %v5891 = vadd.f32 %v5889, 1.0
    %v5892 = vrcp.pop %v5890
    %v5893 = vmul.f32 1.0, %v5892
    %v5894 = vrcp.pop %v5891
    %v5895 = vmul.f32 1.0, %v5894
    %vm5896 = vcmask 7168
    %5897 = vst.msk [vmem:[%s9] sm:$0xff] %vm5896, %v5893
    %5898 = vst.msk [vmem:[%s9 + $0x8] sm:$0xff] %vm5896, %v5895
    // Predicated region
    $region74: #{tpu_custom_call.1} parent=1 // pred_check
      _
    $region75: #{tpu_custom_call.1} parent=1 // pred_check_branch
      %5900 = sbr.rel (0) target = $region77
    $region76: #{tpu_custom_call.1} parent=1 // pred_region
      _
    $region77: #{tpu_custom_call.1} parent=1 // pred_fallthru
      _
    // Predicated region
    $region78: #{tpu_custom_call.1} parent=1 // pred_check
      _
    $region79: #{tpu_custom_call.1} parent=1 // pred_check_branch
      %5902 = sbr.rel (0) target = $region81
    $region80: #{tpu_custom_call.1} parent=1 // pred_region
      _
    $region81: #{tpu_custom_call.1} parent=1 // pred_fallthru
      _
    %5903 = vsyncpa [#allocation3], 1
    %5904 = vsyncpa [#allocation5], 1
    %5905 = vsyncpa [#allocation8], 1
    %5906 = vsyncpa [#allocation11], 1
    %5907 = vsyncpa [#allocation14], 1

</llo_original>
